<compile_context>
chip_gen: v6e
topology: v6e:2x2x1
jax: 0.10.0
libtpu: 0.0.40
codegen_flags: <defaults>
</compile_context>

<pallas_src>
import numpy as np
import jax
import jax.numpy as jnp
from jax import lax
from jax.experimental import pallas as pl
from jax.experimental.pallas import tpu as pltpu

DILATIONS = (7, 5, 3, 1)      # conv_branch1, conv_branch2_f, conv_branch3_f, conv_branch4_f
PAD = max(DILATIONS)          # spatial padding of the scratch buffers
KH = KW = 3
LANE = 128


def _tffm_kernel(x1_ref, x2_ref, w_ref, b_ref, o_ref, xpad_ref, apad_ref):
    """Fused TemporalFeatureFusionModule forward for one batch element.

    x1_ref, x2_ref : (1, H, W, Cin)        NHWC inputs
    w_ref          : (4, 10*Cin, CP) bf16  per-stage packed weights:
                       rows [0:9*Cin]  BN-folded dilated 3x3 conv, (kh, kw, ci) order
                       rows [9*Cin: ]  1x1 skip-branch conv, (ci) order
    b_ref          : (4, CP) f32           fused bias (BN shift + conv biases)
    o_ref          : (1, H*W, CP)          lane-dense output slab (real ch = [0:out_d])
    xpad_ref       : (H+2P, W+2P, Cin) f32 scratch: zero-padded |x1 - x2|
    apad_ref       : (H+2P, W+2P, Cin) f32 scratch: zero-padded stage activation
    """
    _, H, W, Cin = x1_ref.shape
    HW = H * W

    # Zero once per image so the spatial border acts as the conv zero padding.
    xpad_ref[...] = jnp.zeros_like(xpad_ref)
    apad_ref[...] = jnp.zeros_like(apad_ref)

    # x = |x1 - x2|  (f32), placed in the centre of the padded buffer.
    x = jnp.abs(x1_ref[0] - x2_ref[0])                       # (H, W, Cin)
    xpad_ref[PAD:PAD + H, PAD:PAD + W, :] = x
    x_flat = x.reshape(HW, Cin)                              # shared 1x1-branch operand

    src = xpad_ref
    for s, d in enumerate(DILATIONS):
        # im2col: 9 dilated taps + the 1x1 branch -> one (HW, 10*Cin) LHS,
        # one MXU matmul per stage (bf16 inputs, f32 accumulation).
        cols = []
        for kh in range(KH):
            r0 = PAD + (kh - 1) * d
            for kw in range(KW):
                c0 = PAD + (kw - 1) * d
                cols.append(src[r0:r0 + H, c0:c0 + W, :].reshape(HW, Cin))
        cols.append(x_flat)
        lhs = jnp.concatenate(cols, axis=1).astype(jnp.bfloat16)          # (HW, 10*Cin)

        z = jnp.dot(lhs, w_ref[s], preferred_element_type=jnp.float32)    # (HW, CP) f32
        act = jnp.maximum(z + b_ref[s:s + 1, :], 0.0)                     # bias + ReLU, f32

        if s + 1 < len(DILATIONS):
            # Real channels [0:Cin] feed the next stage's dilated conv.
            apad_ref[PAD:PAD + H, PAD:PAD + W, :] = act[:, :Cin].reshape(H, W, Cin)
            src = apad_ref
        else:
            # Lane-dense (last dim = CP, a multiple of 128) unmasked store.
            o_ref[...] = act.reshape(1, HW, act.shape[1]).astype(o_ref.dtype)


def temporal_feature_fusion_forward(x1, x2, packed_w, packed_b, out_d):
    """x1, x2: (B, H, W, in_d) NHWC.  Returns (B, H, W, out_d) NHWC."""
    B, H, W, Cin = x1.shape
    CP = packed_w.shape[-1]
    HP, WP = H + 2 * PAD, W + 2 * PAD

    out_slab = pl.pallas_call(
        _tffm_kernel,
        out_shape=jax.ShapeDtypeStruct((B, H * W, CP), x1.dtype),
        grid_spec=pltpu.PrefetchScalarGridSpec(
            num_scalar_prefetch=0,
            grid=(B,),
            in_specs=[
                pl.BlockSpec((1, H, W, Cin), lambda b: (b, 0, 0, 0)),
                pl.BlockSpec((1, H, W, Cin), lambda b: (b, 0, 0, 0)),
                pl.BlockSpec(packed_w.shape, lambda b: (0, 0, 0)),
                pl.BlockSpec(packed_b.shape, lambda b: (0, 0)),
            ],
            out_specs=pl.BlockSpec((1, H * W, CP), lambda b: (b, 0, 0)),
            scratch_shapes=[
                pltpu.VMEM((HP, WP, Cin), jnp.float32),
                pltpu.VMEM((HP, WP, Cin), jnp.float32),
            ],
        ),
        compiler_params=pltpu.CompilerParams(
            dimension_semantics=("parallel",),   # v7x: both TensorCores for B >= 2
            vmem_limit_bytes=32 * 1024 * 1024,
        ),
    )(x1, x2, packed_w, packed_b)

    # Drop the zero channel padding; reshape back to NHWC (metadata only).
    return out_slab[:, :, :out_d].reshape(B, H, W, out_d)


# ------------------------- host-side parameter setup -------------------------

def init_params(key, in_d, out_d):
    """PyTorch-equivalent parameters (Conv2d OIHW weights + bias, BatchNorm2d)."""
    def conv(k, co, ci, ks):
        kw_, kb_ = jax.random.split(k)
        bound = 1.0 / np.sqrt(ci * ks * ks)
        w = jax.random.uniform(kw_, (co, ci, ks, ks), jnp.float32, -bound, bound)
        b = jax.random.uniform(kb_, (co,), jnp.float32, -bound, bound)
        return w, b

    def bn(k, c):
        k1, k2, k3, k4 = jax.random.split(k, 4)
        gamma = jax.random.uniform(k1, (c,), jnp.float32, 0.5, 1.5)
        beta = jax.random.uniform(k2, (c,), jnp.float32, -0.2, 0.2)
        mean = jax.random.normal(k3, (c,), jnp.float32) * 0.1
        var = jax.random.uniform(k4, (c,), jnp.float32, 0.5, 1.5)
        return gamma, beta, mean, var

    keys = jax.random.split(key, 16)
    stage_out = (in_d, in_d, in_d, out_d)
    return {
        # dilated 3x3 conv + BN: branch1, branch2_f, branch3_f, branch4_f
        "dconv": [conv(keys[i], stage_out[i], in_d, 3) for i in range(4)],
        "bn":    [bn(keys[4 + i], stage_out[i]) for i in range(4)],
        # 1x1 convs on x: branch2, branch3, branch4, branch5
        "pconv": [conv(keys[8 + i], stage_out[i], in_d, 1) for i in range(4)],
    }


def fold_and_pack(params, in_d, out_d, eps=1e-5):
    """Fold eval-mode BN into the dilated convs, cast to bf16 and pack each
    stage's (dilated 3x3 + 1x1) weights into one im2col matmul operand."""
    CP = LANE * int(np.ceil(max(in_d, out_d) / LANE))
    w_stages, b_stages = [], []
    wd_b16, wp_b16, bias_f32 = [], [], []          # kept for the JAX reference
    for s in range(4):
        wd, bd = params["dconv"][s]
        gamma, beta, mean, var = params["bn"][s]
        wp, bp = params["pconv"][s]
        scale = gamma / jnp.sqrt(var + eps)
        wdf = (wd * scale[:, None, None, None]).astype(jnp.bfloat16)     # (n, in_d, 3, 3)
        wpf = wp.astype(jnp.bfloat16)                                    # (n, in_d, 1, 1)
        bias = (bd - mean) * scale + beta + bp                           # (n,) f32
        n = wdf.shape[0]
        rows_d = jnp.transpose(wdf, (2, 3, 1, 0)).reshape(9 * in_d, n)   # (kh,kw,ci) rows
        rows_p = wpf[:, :, 0, 0].T                                       # (ci) rows
        wmat = jnp.concatenate([rows_d, rows_p], axis=0)                 # (10*in_d, n) bf16
        w_stages.append(jnp.pad(wmat, ((0, 0), (0, CP - n))))
        b_stages.append(jnp.pad(bias, (0, CP - n)))
        wd_b16.append(wdf); wp_b16.append(wpf); bias_f32.append(bias)
    return jnp.stack(w_stages), jnp.stack(b_stages), (wd_b16, wp_b16, bias_f32)


def reference_forward(x1, x2, folded):
    """Pure-JAX reference with the same math (bf16 conv operands, f32 accum)."""
    wd_b16, wp_b16, bias_f32 = folded
    dn = ("NHWC", "OIHW", "NHWC")
    x = jnp.abs(x1 - x2)
    a = x
    for s, d in enumerate(DILATIONS):
        zd = lax.conv_general_dilated(
            a.astype(jnp.bfloat16), wd_b16[s], (1, 1), ((d, d), (d, d)),
            rhs_dilation=(d, d), dimension_numbers=dn,
            preferred_element_type=jnp.float32)
        zp = lax.conv_general_dilated(
            x.astype(jnp.bfloat16), wp_b16[s], (1, 1), ((0, 0), (0, 0)),
            dimension_numbers=dn, preferred_element_type=jnp.float32)
        a = jnp.maximum(zd + zp + bias_f32[s].reshape(1, 1, 1, -1), 0.0)
    return a


if __name__ == "__main__":
    key = jax.random.PRNGKey(0)
    B, H, W = 2, 16, 16
    in_d, out_d = 4, 8

    k1, k2, kp = jax.random.split(key, 3)
    x1 = jax.random.normal(k1, (B, H, W, in_d), jnp.float32)
    x2 = jax.random.normal(k2, (B, H, W, in_d), jnp.float32)

    params = init_params(kp, in_d, out_d)
    packed_w, packed_b, folded = fold_and_pack(params, in_d, out_d)

    out = temporal_feature_fusion_forward(x1, x2, packed_w, packed_b, out_d)
    out = jax.block_until_ready(out)

    ref = reference_forward(x1, x2, folded)
    assert out.shape == (B, H, W, out_d)
    err = float(np.max(np.abs(np.asarray(out) - np.asarray(ref))))
    assert np.allclose(np.asarray(out), np.asarray(ref), atol=2e-3, rtol=2e-3), err

    print("KERNEL_OK")
</pallas_src>

<mosaic_0001>
module attributes {stable_mosaic.version = 11 : i64} {
  func.func @_tffm_kernel(%arg0: i32, %arg1: memref<1x16x16x4xf32, #tpu.memory_space<vmem>>, %arg2: memref<1x16x16x4xf32, #tpu.memory_space<vmem>>, %arg3: memref<4x40x128xbf16, #tpu.memory_space<vmem>>, %arg4: memref<4x128xf32, #tpu.memory_space<vmem>>, %arg5: memref<1x256x128xf32, #tpu.memory_space<vmem>>, %arg6: memref<30x30x4xf32, #tpu.memory_space<vmem>>, %arg7: memref<30x30x4xf32, #tpu.memory_space<vmem>>) attributes {dimension_semantics = [#tpu.dimension_semantics<parallel>], iteration_bounds = array<i64: 2>, scalar_prefetch = 0 : i64, scratch_operands = 2 : i64, tpu.core_type = #tpu.core_type<tc>, window_params = [{transform_indices = @transform_0, window_bounds = array<i64: 1, 16, 16, 4>}, {transform_indices = @transform_1, window_bounds = array<i64: 1, 16, 16, 4>}, {pipeline_mode = #tpu.pipeline_mode<synchronous>, transform_indices = @transform_2, window_bounds = array<i64: 4, 40, 128>}, {pipeline_mode = #tpu.pipeline_mode<synchronous>, transform_indices = @transform_3, window_bounds = array<i64: 4, 128>}, {transform_indices = @transform_4, window_bounds = array<i64: 1, 256, 128>}]} {
    %cst = arith.constant 0.000000e+00 : f32
    %0 = vector.broadcast %cst : f32 to vector<30x30x4xf32>
    %c0 = arith.constant 0 : index
    %c0_0 = arith.constant 0 : index
    %c0_1 = arith.constant 0 : index
    %1 = vector.load %arg6[%c0, %c0_0, %c0_1] : memref<30x30x4xf32, #tpu.memory_space<vmem>>, vector<30x30x4xf32>
    tpu.vector_store %arg6[%c0, %c0_0, %c0_1], %0 {strides = array<i32>} : memref<30x30x4xf32, #tpu.memory_space<vmem>>, vector<30x30x4xf32>,
    %cst_2 = arith.constant 0.000000e+00 : f32
    %2 = vector.broadcast %cst_2 : f32 to vector<30x30x4xf32>
    %c0_3 = arith.constant 0 : index
    %c0_4 = arith.constant 0 : index
    %c0_5 = arith.constant 0 : index
    %3 = vector.load %arg7[%c0_3, %c0_4, %c0_5] : memref<30x30x4xf32, #tpu.memory_space<vmem>>, vector<30x30x4xf32>
    tpu.vector_store %arg7[%c0_3, %c0_4, %c0_5], %2 {strides = array<i32>} : memref<30x30x4xf32, #tpu.memory_space<vmem>>, vector<30x30x4xf32>,
    %c0_6 = arith.constant 0 : index
    %c0_7 = arith.constant 0 : index
    %c0_8 = arith.constant 0 : index
    %c0_9 = arith.constant 0 : index
    %4 = vector.load %arg1[%c0_6, %c0_7, %c0_8, %c0_9] : memref<1x16x16x4xf32, #tpu.memory_space<vmem>>, vector<1x16x16x4xf32>
    %5 = vector.shape_cast %4 : vector<1x16x16x4xf32> to vector<16x16x4xf32>
    %c0_10 = arith.constant 0 : index
    %c0_11 = arith.constant 0 : index
    %c0_12 = arith.constant 0 : index
    %c0_13 = arith.constant 0 : index
    %6 = vector.load %arg2[%c0_10, %c0_11, %c0_12, %c0_13] : memref<1x16x16x4xf32, #tpu.memory_space<vmem>>, vector<1x16x16x4xf32>
    %7 = vector.shape_cast %6 : vector<1x16x16x4xf32> to vector<16x16x4xf32>
    %8 = arith.subf %5, %7 : vector<16x16x4xf32>
    %9 = math.absf %8 : vector<16x16x4xf32>
    %c7 = arith.constant 7 : index
    %c7_14 = arith.constant 7 : index
    %c0_15 = arith.constant 0 : index
    %10 = vector.load %arg6[%c7, %c7_14, %c0_15] : memref<30x30x4xf32, #tpu.memory_space<vmem>>, vector<16x16x4xf32>
    tpu.vector_store %arg6[%c7, %c7_14, %c0_15], %9 {strides = array<i32>} : memref<30x30x4xf32, #tpu.memory_space<vmem>>, vector<16x16x4xf32>,
    %11 = vector.shape_cast %9 : vector<16x16x4xf32> to vector<256x4xf32>
    %c0_16 = arith.constant 0 : index
    %c0_17 = arith.constant 0 : index
    %c0_18 = arith.constant 0 : index
    %12 = vector.load %arg6[%c0_16, %c0_17, %c0_18] : memref<30x30x4xf32, #tpu.memory_space<vmem>>, vector<16x16x4xf32>
    %13 = vector.shape_cast %12 : vector<16x16x4xf32> to vector<256x4xf32>
    %c0_19 = arith.constant 0 : index
    %c7_20 = arith.constant 7 : index
    %c0_21 = arith.constant 0 : index
    %14 = vector.load %arg6[%c0_19, %c7_20, %c0_21] : memref<30x30x4xf32, #tpu.memory_space<vmem>>, vector<16x16x4xf32>
    %15 = vector.shape_cast %14 : vector<16x16x4xf32> to vector<256x4xf32>
    %c0_22 = arith.constant 0 : index
    %c14 = arith.constant 14 : index
    %c0_23 = arith.constant 0 : index
    %16 = vector.load %arg6[%c0_22, %c14, %c0_23] : memref<30x30x4xf32, #tpu.memory_space<vmem>>, vector<16x16x4xf32>
    %17 = vector.shape_cast %16 : vector<16x16x4xf32> to vector<256x4xf32>
    %c7_24 = arith.constant 7 : index
    %c0_25 = arith.constant 0 : index
    %c0_26 = arith.constant 0 : index
    %18 = vector.load %arg6[%c7_24, %c0_25, %c0_26] : memref<30x30x4xf32, #tpu.memory_space<vmem>>, vector<16x16x4xf32>
    %19 = vector.shape_cast %18 : vector<16x16x4xf32> to vector<256x4xf32>
    %c7_27 = arith.constant 7 : index
    %c7_28 = arith.constant 7 : index
    %c0_29 = arith.constant 0 : index
    %20 = vector.load %arg6[%c7_27, %c7_28, %c0_29] : memref<30x30x4xf32, #tpu.memory_space<vmem>>, vector<16x16x4xf32>
    %21 = vector.shape_cast %20 : vector<16x16x4xf32> to vector<256x4xf32>
    %c7_30 = arith.constant 7 : index
    %c14_31 = arith.constant 14 : index
    %c0_32 = arith.constant 0 : index
    %22 = vector.load %arg6[%c7_30, %c14_31, %c0_32] : memref<30x30x4xf32, #tpu.memory_space<vmem>>, vector<16x16x4xf32>
    %23 = vector.shape_cast %22 : vector<16x16x4xf32> to vector<256x4xf32>
    %c14_33 = arith.constant 14 : index
    %c0_34 = arith.constant 0 : index
    %c0_35 = arith.constant 0 : index
    %24 = vector.load %arg6[%c14_33, %c0_34, %c0_35] : memref<30x30x4xf32, #tpu.memory_space<vmem>>, vector<16x16x4xf32>
    %25 = vector.shape_cast %24 : vector<16x16x4xf32> to vector<256x4xf32>
    %c14_36 = arith.constant 14 : index
    %c7_37 = arith.constant 7 : index
    %c0_38 = arith.constant 0 : index
    %26 = vector.load %arg6[%c14_36, %c7_37, %c0_38] : memref<30x30x4xf32, #tpu.memory_space<vmem>>, vector<16x16x4xf32>
    %27 = vector.shape_cast %26 : vector<16x16x4xf32> to vector<256x4xf32>
    %c14_39 = arith.constant 14 : index
    %c14_40 = arith.constant 14 : index
    %c0_41 = arith.constant 0 : index
    %28 = vector.load %arg6[%c14_39, %c14_40, %c0_41] : memref<30x30x4xf32, #tpu.memory_space<vmem>>, vector<16x16x4xf32>
    %29 = vector.shape_cast %28 : vector<16x16x4xf32> to vector<256x4xf32>
    %30 = tpu.concatenate %13, %15, %17, %19, %21, %23, %25, %27, %29, %11 in 1 : vector<256x4xf32>, vector<256x4xf32>, vector<256x4xf32>, vector<256x4xf32>, vector<256x4xf32>, vector<256x4xf32>, vector<256x4xf32>, vector<256x4xf32>, vector<256x4xf32>, vector<256x4xf32> -> vector<256x40xf32>
    %31 = arith.truncf %30 : vector<256x40xf32> to vector<256x40xbf16>
    %c0_42 = arith.constant 0 : index
    %c0_43 = arith.constant 0 : index
    %c0_44 = arith.constant 0 : index
    %32 = vector.load %arg3[%c0_42, %c0_43, %c0_44] : memref<4x40x128xbf16, #tpu.memory_space<vmem>>, vector<1x40x128xbf16>
    %33 = vector.shape_cast %32 : vector<1x40x128xbf16> to vector<40x128xbf16>
    %cst_45 = arith.constant dense<0.000000e+00> : vector<256x128xf32>
    %34 = tpu.matmul %31, %33, %cst_45 {dimension_numbers = #tpu.dot_dimension_numbers<[1], [0], [0], [1], [0, 0, 1, 1], [], []>} : vector<256x40xbf16>, vector<40x128xbf16>, vector<256x128xf32> -> vector<256x128xf32>
    %c0_46 = arith.constant 0 : index
    %c0_47 = arith.constant 0 : index
    %35 = vector.load %arg4[%c0_46, %c0_47] : memref<4x128xf32, #tpu.memory_space<vmem>>, vector<1x128xf32>
    %36 = vector.broadcast %35 : vector<1x128xf32> to vector<256x128xf32>
    %37 = arith.addf %34, %36 : vector<256x128xf32>
    %cst_48 = arith.constant 0.000000e+00 : f32
    %38 = vector.broadcast %cst_48 : f32 to vector<256x128xf32>
    %39 = arith.maximumf %37, %38 : vector<256x128xf32>
    %40 = vector.extract_strided_slice %39 {offsets = [0, 0], sizes = [256, 4], strides = [1, 1]} : vector<256x128xf32> to vector<256x4xf32>
    %41 = vector.shape_cast %40 : vector<256x4xf32> to vector<16x16x4xf32>
    %c7_49 = arith.constant 7 : index
    %c7_50 = arith.constant 7 : index
    %c0_51 = arith.constant 0 : index
    %42 = vector.load %arg7[%c7_49, %c7_50, %c0_51] : memref<30x30x4xf32, #tpu.memory_space<vmem>>, vector<16x16x4xf32>
    tpu.vector_store %arg7[%c7_49, %c7_50, %c0_51], %41 {strides = array<i32>} : memref<30x30x4xf32, #tpu.memory_space<vmem>>, vector<16x16x4xf32>,
    %c2 = arith.constant 2 : index
    %c2_52 = arith.constant 2 : index
    %c0_53 = arith.constant 0 : index
    %43 = vector.load %arg7[%c2, %c2_52, %c0_53] : memref<30x30x4xf32, #tpu.memory_space<vmem>>, vector<16x16x4xf32>
    %44 = vector.shape_cast %43 : vector<16x16x4xf32> to vector<256x4xf32>
    %c2_54 = arith.constant 2 : index
    %c7_55 = arith.constant 7 : index
    %c0_56 = arith.constant 0 : index
    %45 = vector.load %arg7[%c2_54, %c7_55, %c0_56] : memref<30x30x4xf32, #tpu.memory_space<vmem>>, vector<16x16x4xf32>
    %46 = vector.shape_cast %45 : vector<16x16x4xf32> to vector<256x4xf32>
    %c2_57 = arith.constant 2 : index
    %c12 = arith.constant 12 : index
    %c0_58 = arith.constant 0 : index
    %47 = vector.load %arg7[%c2_57, %c12, %c0_58] : memref<30x30x4xf32, #tpu.memory_space<vmem>>, vector<16x16x4xf32>
    %48 = vector.shape_cast %47 : vector<16x16x4xf32> to vector<256x4xf32>
    %c7_59 = arith.constant 7 : index
    %c2_60 = arith.constant 2 : index
    %c0_61 = arith.constant 0 : index
    %49 = vector.load %arg7[%c7_59, %c2_60, %c0_61] : memref<30x30x4xf32, #tpu.memory_space<vmem>>, vector<16x16x4xf32>
    %50 = vector.shape_cast %49 : vector<16x16x4xf32> to vector<256x4xf32>
    %c7_62 = arith.constant 7 : index
    %c7_63 = arith.constant 7 : index
    %c0_64 = arith.constant 0 : index
    %51 = vector.load %arg7[%c7_62, %c7_63, %c0_64] : memref<30x30x4xf32, #tpu.memory_space<vmem>>, vector<16x16x4xf32>
    %52 = vector.shape_cast %51 : vector<16x16x4xf32> to vector<256x4xf32>
    %c7_65 = arith.constant 7 : index
    %c12_66 = arith.constant 12 : index
    %c0_67 = arith.constant 0 : index
    %53 = vector.load %arg7[%c7_65, %c12_66, %c0_67] : memref<30x30x4xf32, #tpu.memory_space<vmem>>, vector<16x16x4xf32>
    %54 = vector.shape_cast %53 : vector<16x16x4xf32> to vector<256x4xf32>
    %c12_68 = arith.constant 12 : index
    %c2_69 = arith.constant 2 : index
    %c0_70 = arith.constant 0 : index
    %55 = vector.load %arg7[%c12_68, %c2_69, %c0_70] : memref<30x30x4xf32, #tpu.memory_space<vmem>>, vector<16x16x4xf32>
    %56 = vector.shape_cast %55 : vector<16x16x4xf32> to vector<256x4xf32>
    %c12_71 = arith.constant 12 : index
    %c7_72 = arith.constant 7 : index
    %c0_73 = arith.constant 0 : index
    %57 = vector.load %arg7[%c12_71, %c7_72, %c0_73] : memref<30x30x4xf32, #tpu.memory_space<vmem>>, vector<16x16x4xf32>
    %58 = vector.shape_cast %57 : vector<16x16x4xf32> to vector<256x4xf32>
    %c12_74 = arith.constant 12 : index
    %c12_75 = arith.constant 12 : index
    %c0_76 = arith.constant 0 : index
    %59 = vector.load %arg7[%c12_74, %c12_75, %c0_76] : memref<30x30x4xf32, #tpu.memory_space<vmem>>, vector<16x16x4xf32>
    %60 = vector.shape_cast %59 : vector<16x16x4xf32> to vector<256x4xf32>
    %61 = tpu.concatenate %44, %46, %48, %50, %52, %54, %56, %58, %60, %11 in 1 : vector<256x4xf32>, vector<256x4xf32>, vector<256x4xf32>, vector<256x4xf32>, vector<256x4xf32>, vector<256x4xf32>, vector<256x4xf32>, vector<256x4xf32>, vector<256x4xf32>, vector<256x4xf32> -> vector<256x40xf32>
    %62 = arith.truncf %61 : vector<256x40xf32> to vector<256x40xbf16>
    %c1 = arith.constant 1 : index
    %c0_77 = arith.constant 0 : index
    %c0_78 = arith.constant 0 : index
    %63 = vector.load %arg3[%c1, %c0_77, %c0_78] : memref<4x40x128xbf16, #tpu.memory_space<vmem>>, vector<1x40x128xbf16>
    %64 = vector.shape_cast %63 : vector<1x40x128xbf16> to vector<40x128xbf16>
    %cst_79 = arith.constant dense<0.000000e+00> : vector<256x128xf32>
    %65 = tpu.matmul %62, %64, %cst_79 {dimension_numbers = #tpu.dot_dimension_numbers<[1], [0], [0], [1], [0, 0, 1, 1], [], []>} : vector<256x40xbf16>, vector<40x128xbf16>, vector<256x128xf32> -> vector<256x128xf32>
    %c1_80 = arith.constant 1 : index
    %c0_81 = arith.constant 0 : index
    %66 = vector.load %arg4[%c1_80, %c0_81] : memref<4x128xf32, #tpu.memory_space<vmem>>, vector<1x128xf32>
    %67 = vector.broadcast %66 : vector<1x128xf32> to vector<256x128xf32>
    %68 = arith.addf %65, %67 : vector<256x128xf32>
    %cst_82 = arith.constant 0.000000e+00 : f32
    %69 = vector.broadcast %cst_82 : f32 to vector<256x128xf32>
    %70 = arith.maximumf %68, %69 : vector<256x128xf32>
    %71 = vector.extract_strided_slice %70 {offsets = [0, 0], sizes = [256, 4], strides = [1, 1]} : vector<256x128xf32> to vector<256x4xf32>
    %72 = vector.shape_cast %71 : vector<256x4xf32> to vector<16x16x4xf32>
    %c7_83 = arith.constant 7 : index
    %c7_84 = arith.constant 7 : index
    %c0_85 = arith.constant 0 : index
    %73 = vector.load %arg7[%c7_83, %c7_84, %c0_85] : memref<30x30x4xf32, #tpu.memory_space<vmem>>, vector<16x16x4xf32>
    tpu.vector_store %arg7[%c7_83, %c7_84, %c0_85], %72 {strides = array<i32>} : memref<30x30x4xf32, #tpu.memory_space<vmem>>, vector<16x16x4xf32>,
    %c4 = arith.constant 4 : index
    %c4_86 = arith.constant 4 : index
    %c0_87 = arith.constant 0 : index
    %74 = vector.load %arg7[%c4, %c4_86, %c0_87] : memref<30x30x4xf32, #tpu.memory_space<vmem>>, vector<16x16x4xf32>
    %75 = vector.shape_cast %74 : vector<16x16x4xf32> to vector<256x4xf32>
    %c4_88 = arith.constant 4 : index
    %c7_89 = arith.constant 7 : index
    %c0_90 = arith.constant 0 : index
    %76 = vector.load %arg7[%c4_88, %c7_89, %c0_90] : memref<30x30x4xf32, #tpu.memory_space<vmem>>, vector<16x16x4xf32>
    %77 = vector.shape_cast %76 : vector<16x16x4xf32> to vector<256x4xf32>
    %c4_91 = arith.constant 4 : index
    %c10 = arith.constant 10 : index
    %c0_92 = arith.constant 0 : index
    %78 = vector.load %arg7[%c4_91, %c10, %c0_92] : memref<30x30x4xf32, #tpu.memory_space<vmem>>, vector<16x16x4xf32>
    %79 = vector.shape_cast %78 : vector<16x16x4xf32> to vector<256x4xf32>
    %c7_93 = arith.constant 7 : index
    %c4_94 = arith.constant 4 : index
    %c0_95 = arith.constant 0 : index
    %80 = vector.load %arg7[%c7_93, %c4_94, %c0_95] : memref<30x30x4xf32, #tpu.memory_space<vmem>>, vector<16x16x4xf32>
    %81 = vector.shape_cast %80 : vector<16x16x4xf32> to vector<256x4xf32>
    %c7_96 = arith.constant 7 : index
    %c7_97 = arith.constant 7 : index
    %c0_98 = arith.constant 0 : index
    %82 = vector.load %arg7[%c7_96, %c7_97, %c0_98] : memref<30x30x4xf32, #tpu.memory_space<vmem>>, vector<16x16x4xf32>
    %83 = vector.shape_cast %82 : vector<16x16x4xf32> to vector<256x4xf32>
    %c7_99 = arith.constant 7 : index
    %c10_100 = arith.constant 10 : index
    %c0_101 = arith.constant 0 : index
    %84 = vector.load %arg7[%c7_99, %c10_100, %c0_101] : memref<30x30x4xf32, #tpu.memory_space<vmem>>, vector<16x16x4xf32>
    %85 = vector.shape_cast %84 : vector<16x16x4xf32> to vector<256x4xf32>
    %c10_102 = arith.constant 10 : index
    %c4_103 = arith.constant 4 : index
    %c0_104 = arith.constant 0 : index
    %86 = vector.load %arg7[%c10_102, %c4_103, %c0_104] : memref<30x30x4xf32, #tpu.memory_space<vmem>>, vector<16x16x4xf32>
    %87 = vector.shape_cast %86 : vector<16x16x4xf32> to vector<256x4xf32>
    %c10_105 = arith.constant 10 : index
    %c7_106 = arith.constant 7 : index
    %c0_107 = arith.constant 0 : index
    %88 = vector.load %arg7[%c10_105, %c7_106, %c0_107] : memref<30x30x4xf32, #tpu.memory_space<vmem>>, vector<16x16x4xf32>
    %89 = vector.shape_cast %88 : vector<16x16x4xf32> to vector<256x4xf32>
    %c10_108 = arith.constant 10 : index
    %c10_109 = arith.constant 10 : index
    %c0_110 = arith.constant 0 : index
    %90 = vector.load %arg7[%c10_108, %c10_109, %c0_110] : memref<30x30x4xf32, #tpu.memory_space<vmem>>, vector<16x16x4xf32>
    %91 = vector.shape_cast %90 : vector<16x16x4xf32> to vector<256x4xf32>
    %92 = tpu.concatenate %75, %77, %79, %81, %83, %85, %87, %89, %91, %11 in 1 : vector<256x4xf32>, vector<256x4xf32>, vector<256x4xf32>, vector<256x4xf32>, vector<256x4xf32>, vector<256x4xf32>, vector<256x4xf32>, vector<256x4xf32>, vector<256x4xf32>, vector<256x4xf32> -> vector<256x40xf32>
    %93 = arith.truncf %92 : vector<256x40xf32> to vector<256x40xbf16>
    %c2_111 = arith.constant 2 : index
    %c0_112 = arith.constant 0 : index
    %c0_113 = arith.constant 0 : index
    %94 = vector.load %arg3[%c2_111, %c0_112, %c0_113] : memref<4x40x128xbf16, #tpu.memory_space<vmem>>, vector<1x40x128xbf16>
    %95 = vector.shape_cast %94 : vector<1x40x128xbf16> to vector<40x128xbf16>
    %cst_114 = arith.constant dense<0.000000e+00> : vector<256x128xf32>
    %96 = tpu.matmul %93, %95, %cst_114 {dimension_numbers = #tpu.dot_dimension_numbers<[1], [0], [0], [1], [0, 0, 1, 1], [], []>} : vector<256x40xbf16>, vector<40x128xbf16>, vector<256x128xf32> -> vector<256x128xf32>
    %c2_115 = arith.constant 2 : index
    %c0_116 = arith.constant 0 : index
    %97 = vector.load %arg4[%c2_115, %c0_116] : memref<4x128xf32, #tpu.memory_space<vmem>>, vector<1x128xf32>
    %98 = vector.broadcast %97 : vector<1x128xf32> to vector<256x128xf32>
    %99 = arith.addf %96, %98 : vector<256x128xf32>
    %cst_117 = arith.constant 0.000000e+00 : f32
    %100 = vector.broadcast %cst_117 : f32 to vector<256x128xf32>
    %101 = arith.maximumf %99, %100 : vector<256x128xf32>
    %102 = vector.extract_strided_slice %101 {offsets = [0, 0], sizes = [256, 4], strides = [1, 1]} : vector<256x128xf32> to vector<256x4xf32>
    %103 = vector.shape_cast %102 : vector<256x4xf32> to vector<16x16x4xf32>
    %c7_118 = arith.constant 7 : index
    %c7_119 = arith.constant 7 : index
    %c0_120 = arith.constant 0 : index
    %104 = vector.load %arg7[%c7_118, %c7_119, %c0_120] : memref<30x30x4xf32, #tpu.memory_space<vmem>>, vector<16x16x4xf32>
    tpu.vector_store %arg7[%c7_118, %c7_119, %c0_120], %103 {strides = array<i32>} : memref<30x30x4xf32, #tpu.memory_space<vmem>>, vector<16x16x4xf32>,
    %c6 = arith.constant 6 : index
    %c6_121 = arith.constant 6 : index
    %c0_122 = arith.constant 0 : index
    %105 = vector.load %arg7[%c6, %c6_121, %c0_122] : memref<30x30x4xf32, #tpu.memory_space<vmem>>, vector<16x16x4xf32>
    %106 = vector.shape_cast %105 : vector<16x16x4xf32> to vector<256x4xf32>
    %c6_123 = arith.constant 6 : index
    %c7_124 = arith.constant 7 : index
    %c0_125 = arith.constant 0 : index
    %107 = vector.load %arg7[%c6_123, %c7_124, %c0_125] : memref<30x30x4xf32, #tpu.memory_space<vmem>>, vector<16x16x4xf32>
    %108 = vector.shape_cast %107 : vector<16x16x4xf32> to vector<256x4xf32>
    %c6_126 = arith.constant 6 : index
    %c8 = arith.constant 8 : index
    %c0_127 = arith.constant 0 : index
    %109 = vector.load %arg7[%c6_126, %c8, %c0_127] : memref<30x30x4xf32, #tpu.memory_space<vmem>>, vector<16x16x4xf32>
    %110 = vector.shape_cast %109 : vector<16x16x4xf32> to vector<256x4xf32>
    %c7_128 = arith.constant 7 : index
    %c6_129 = arith.constant 6 : index
    %c0_130 = arith.constant 0 : index
    %111 = vector.load %arg7[%c7_128, %c6_129, %c0_130] : memref<30x30x4xf32, #tpu.memory_space<vmem>>, vector<16x16x4xf32>
    %112 = vector.shape_cast %111 : vector<16x16x4xf32> to vector<256x4xf32>
    %c7_131 = arith.constant 7 : index
    %c7_132 = arith.constant 7 : index
    %c0_133 = arith.constant 0 : index
    %113 = vector.load %arg7[%c7_131, %c7_132, %c0_133] : memref<30x30x4xf32, #tpu.memory_space<vmem>>, vector<16x16x4xf32>
    %114 = vector.shape_cast %113 : vector<16x16x4xf32> to vector<256x4xf32>
    %c7_134 = arith.constant 7 : index
    %c8_135 = arith.constant 8 : index
    %c0_136 = arith.constant 0 : index
    %115 = vector.load %arg7[%c7_134, %c8_135, %c0_136] : memref<30x30x4xf32, #tpu.memory_space<vmem>>, vector<16x16x4xf32>
    %116 = vector.shape_cast %115 : vector<16x16x4xf32> to vector<256x4xf32>
    %c8_137 = arith.constant 8 : index
    %c6_138 = arith.constant 6 : index
    %c0_139 = arith.constant 0 : index
    %117 = vector.load %arg7[%c8_137, %c6_138, %c0_139] : memref<30x30x4xf32, #tpu.memory_space<vmem>>, vector<16x16x4xf32>
    %118 = vector.shape_cast %117 : vector<16x16x4xf32> to vector<256x4xf32>
    %c8_140 = arith.constant 8 : index
    %c7_141 = arith.constant 7 : index
    %c0_142 = arith.constant 0 : index
    %119 = vector.load %arg7[%c8_140, %c7_141, %c0_142] : memref<30x30x4xf32, #tpu.memory_space<vmem>>, vector<16x16x4xf32>
    %120 = vector.shape_cast %119 : vector<16x16x4xf32> to vector<256x4xf32>
    %c8_143 = arith.constant 8 : index
    %c8_144 = arith.constant 8 : index
    %c0_145 = arith.constant 0 : index
    %121 = vector.load %arg7[%c8_143, %c8_144, %c0_145] : memref<30x30x4xf32, #tpu.memory_space<vmem>>, vector<16x16x4xf32>
    %122 = vector.shape_cast %121 : vector<16x16x4xf32> to vector<256x4xf32>
    %123 = tpu.concatenate %106, %108, %110, %112, %114, %116, %118, %120, %122, %11 in 1 : vector<256x4xf32>, vector<256x4xf32>, vector<256x4xf32>, vector<256x4xf32>, vector<256x4xf32>, vector<256x4xf32>, vector<256x4xf32>, vector<256x4xf32>, vector<256x4xf32>, vector<256x4xf32> -> vector<256x40xf32>
    %124 = arith.truncf %123 : vector<256x40xf32> to vector<256x40xbf16>
    %c3 = arith.constant 3 : index
    %c0_146 = arith.constant 0 : index
    %c0_147 = arith.constant 0 : index
    %125 = vector.load %arg3[%c3, %c0_146, %c0_147] : memref<4x40x128xbf16, #tpu.memory_space<vmem>>, vector<1x40x128xbf16>
    %126 = vector.shape_cast %125 : vector<1x40x128xbf16> to vector<40x128xbf16>
    %cst_148 = arith.constant dense<0.000000e+00> : vector<256x128xf32>
    %127 = tpu.matmul %124, %126, %cst_148 {dimension_numbers = #tpu.dot_dimension_numbers<[1], [0], [0], [1], [0, 0, 1, 1], [], []>} : vector<256x40xbf16>, vector<40x128xbf16>, vector<256x128xf32> -> vector<256x128xf32>
    %c3_149 = arith.constant 3 : index
    %c0_150 = arith.constant 0 : index
    %128 = vector.load %arg4[%c3_149, %c0_150] : memref<4x128xf32, #tpu.memory_space<vmem>>, vector<1x128xf32>
    %129 = vector.broadcast %128 : vector<1x128xf32> to vector<256x128xf32>
    %130 = arith.addf %127, %129 : vector<256x128xf32>
    %cst_151 = arith.constant 0.000000e+00 : f32
    %131 = vector.broadcast %cst_151 : f32 to vector<256x128xf32>
    %132 = arith.maximumf %130, %131 : vector<256x128xf32>
    %133 = vector.shape_cast %132 : vector<256x128xf32> to vector<1x256x128xf32>
    %c0_152 = arith.constant 0 : index
    %c0_153 = arith.constant 0 : index
    %c0_154 = arith.constant 0 : index
    %134 = vector.load %arg5[%c0_152, %c0_153, %c0_154] : memref<1x256x128xf32, #tpu.memory_space<vmem>>, vector<1x256x128xf32>
    tpu.vector_store %arg5[%c0_152, %c0_153, %c0_154], %133 {strides = array<i32>} : memref<1x256x128xf32, #tpu.memory_space<vmem>>, vector<1x256x128xf32>,
    return
  }
  func.func @transform_0(%arg0: i32) -> (i32, i32, i32, i32) {
    %c0_i32 = arith.constant 0 : i32
    %c0_i32_0 = arith.constant 0 : i32
    %c0_i32_1 = arith.constant 0 : i32
    %c0_i32_2 = arith.constant 0 : i32
    return %arg0, %c0_i32, %c0_i32_0, %c0_i32_1 : i32, i32, i32, i32
  }
  func.func @transform_1(%arg0: i32) -> (i32, i32, i32, i32) {
    %c0_i32 = arith.constant 0 : i32
    %c0_i32_0 = arith.constant 0 : i32
    %c0_i32_1 = arith.constant 0 : i32
    %c0_i32_2 = arith.constant 0 : i32
    return %arg0, %c0_i32, %c0_i32_0, %c0_i32_1 : i32, i32, i32, i32
  }
  func.func @transform_2(%arg0: i32) -> (i32, i32, i32) {
    %c0_i32 = arith.constant 0 : i32
    %c0_i32_0 = arith.constant 0 : i32
    %c0_i32_1 = arith.constant 0 : i32
    %c0_i32_2 = arith.constant 0 : i32
    return %c0_i32, %c0_i32_0, %c0_i32_1 : i32, i32, i32
  }
  func.func @transform_3(%arg0: i32) -> (i32, i32) {
    %c0_i32 = arith.constant 0 : i32
    %c0_i32_0 = arith.constant 0 : i32
    %c0_i32_1 = arith.constant 0 : i32
    return %c0_i32, %c0_i32_0 : i32, i32
  }
  func.func @transform_4(%arg0: i32) -> (i32, i32, i32) {
    %c0_i32 = arith.constant 0 : i32
    %c0_i32_0 = arith.constant 0 : i32
    %c0_i32_1 = arith.constant 0 : i32
    return %arg0, %c0_i32, %c0_i32_0 : i32, i32, i32
  }
}

</mosaic_0001>

<llo_original>
// kernel: tpu_custom_call.1
$region0: #{tpu_custom_call.1}
  #allocation0 [shape = 'u32[]', space=smem, size = 0x4, offset = 0x4, fixed_abs, tag = 'smem constant byte address 0x4 - core index']
  #allocation1 [shape = 'u32[144,128]{1,0:T(1,128)}', space=vmem, size = 0x12000, scoped, tag = 'internal scratch']
  #allocation2 [shape = 'f32[30,30,4]{2,1,0:T(8,128)}', space=vmem, size = 0x78000, scoped, tag = 'scratch operand']
  #allocation3 [shape = 'f32[30,30,4]{2,1,0:T(8,128)}', space=vmem, size = 0x78000, scoped, tag = 'scratch operand']
  %s0 = inlined_call_operand.vmem [shape: f32[2,16,16,4], index: 0, kind: input, shape index: {}]
  %s1 = inlined_call_operand.vmem [shape: f32[2,16,16,4], index: 1, kind: input, shape index: {}]
  %s2 = inlined_call_operand.vmem [shape: bf16[4,40,128], index: 2, kind: input, shape index: {}]
  %s3 = inlined_call_operand.vmem [shape: f32[4,128], index: 3, kind: input, shape index: {}]
  %s4 = inlined_call_operand.hbm [shape: f32[2,256,128], index: 4, kind: output, shape index: {}]
  %s5 = sld [smem:[#allocation0]]
  $region49: #{tpu_custom_call.1} parent=0
    _
  %s7 = ssub.s32 1, %s5
  %s8 = scalar_select 0, %s7, %s5
  $region1: #{tpu_custom_call.1} parent=0
    #allocation4 [shape = 'u8[262144]{0}', space=vmem, size = 0x40000, scoped, tag = 'output window, operand 0']
    #allocation5 [shape = 's32[2]{0}', space=sflag, size = 0x8, scoped, tag = 'scoped memory for tpu_custom_call.1']
    %9 = vsyncpa [#allocation5], 0
    %s10 = scalar_lea.sflag [#allocation5], 1
    %11 = vsyncpa %s10, 0
    loop: start=0, step=1, limit=4
    $region2: #{tpu_custom_call.1} parent=1 // loop_pre_header
      _
    $region3: #{tpu_custom_call.1} parent=1 // loop_header
      %s13 = sphi 0, %s17
      %p14 = scmp.ge.s32.totalorder %s13, 4
      %s23 = sphi 0, %s25
      %s26 = sphi 0, %s23
      %s27 = sphi 0, %s26
      %s43 = sphi 0, %s27
      %s49 = sphi 0, %s51
      %s52 = sphi 0, %s49
      %s53 = sphi 0, %s52
      %s69 = sphi 0, %s53
      %s73 = sphi 0, %s73
      %s75 = sphi 0, %s73
      %s76 = sphi 0, %s75
      %s90 = sphi 0, %s76
      %s94 = sphi 0, %s94
      %s96 = sphi 0, %s94
      %s97 = sphi 0, %s96
      %s111 = sphi 0, %s97
      %s117 = sphi 0, %s119
      %s120 = sphi 0, %s117
      %s121 = sphi 0, %s120
      %s137 = sphi 0, %s121
    $region4: #{tpu_custom_call.1} parent=1 // loop_header_branch
      %16 = sbr.rel (%p14) target = $region8
    $region5: #{tpu_custom_call.1} parent=1 // loop_body
      %s18 = ssub.s32 %s13, 1
      %s19 = ssub.s32 %s13, 2
      %s20 = sadd.s32 %s13, 1
      %s21 = ssub.s32 %s13, %s20
      %p22 = scmp.eq.s32.totalorder %s21, 0
      %s24 = sadd.s32 %s23, 1
      %s25 = scalar_select %p22, %s23, %s24
      %p28 = pneg %p22
      %p29 = scmp.eq.s32.totalorder %s13, 1
      %p30 = por %p28, %p29
      %p31 = scmp.ne.s32.totalorder %s23, %s26
      %p32 = scmp.eq.s32.totalorder %s13, 0
      %p33 = por %p31, %p32
      %p34 = scmp.ne.s32.totalorder %s23, %s26
      %p35 = scmp.eq.s32.totalorder %s18, 1
      %p36 = por %p34, %p35
      %p37 = scmp.ne.s32.totalorder %s26, %s27
      %p38 = scmp.eq.s32.totalorder %s18, 0
      %p39 = por %p37, %p38
      %p40 = scmp.ne.s32.totalorder %s26, %s27
      %p41 = scmp.eq.s32.totalorder %s19, 1
      %p42 = por %p40, %p41
      %p44 = scmp.ne.s32.totalorder %s27, %s43
      %p45 = scmp.eq.s32.totalorder %s19, 0
      %p46 = por %p44, %p45
      %s47 = ssub.s32 %s13, %s20
      %p48 = scmp.eq.s32.totalorder %s47, 0
      %s50 = sadd.s32 %s49, 1
      %s51 = scalar_select %p48, %s49, %s50
      %p54 = pneg %p48
      %p55 = scmp.eq.s32.totalorder %s13, 1
      %p56 = por %p54, %p55
      %p57 = scmp.ne.s32.totalorder %s49, %s52
      %p58 = scmp.eq.s32.totalorder %s13, 0
      %p59 = por %p57, %p58
      %p60 = scmp.ne.s32.totalorder %s49, %s52
      %p61 = scmp.eq.s32.totalorder %s18, 1
      %p62 = por %p60, %p61
      %p63 = scmp.ne.s32.totalorder %s52, %s53
      %p64 = scmp.eq.s32.totalorder %s18, 0
      %p65 = por %p63, %p64
      %p66 = scmp.ne.s32.totalorder %s52, %s53
      %p67 = scmp.eq.s32.totalorder %s19, 1
      %p68 = por %p66, %p67
      %p70 = scmp.ne.s32.totalorder %s53, %s69
      %p71 = scmp.eq.s32.totalorder %s19, 0
      %p72 = por %p70, %p71
      %s74 = sadd.s32 %s73, 1
      %p77 = scmp.eq.s32.totalorder %s13, 1
      %p78 = scmp.ne.s32.totalorder %s73, %s75
      %p79 = scmp.eq.s32.totalorder %s13, 0
      %p80 = por %p78, %p79
      %p81 = scmp.ne.s32.totalorder %s73, %s75
      %p82 = scmp.eq.s32.totalorder %s18, 1
      %p83 = por %p81, %p82
      %p84 = scmp.ne.s32.totalorder %s75, %s76
      %p85 = scmp.eq.s32.totalorder %s18, 0
      %p86 = por %p84, %p85
      %p87 = scmp.ne.s32.totalorder %s75, %s76
      %p88 = scmp.eq.s32.totalorder %s19, 1
      %p89 = por %p87, %p88
      %p91 = scmp.ne.s32.totalorder %s76, %s90
      %p92 = scmp.eq.s32.totalorder %s19, 0
      %p93 = por %p91, %p92
      %s95 = sadd.s32 %s94, 1
      %p98 = scmp.eq.s32.totalorder %s13, 1
      %p99 = scmp.ne.s32.totalorder %s94, %s96
      %p100 = scmp.eq.s32.totalorder %s13, 0
      %p101 = por %p99, %p100
      %p102 = scmp.ne.s32.totalorder %s94, %s96
      %p103 = scmp.eq.s32.totalorder %s18, 1
      %p104 = por %p102, %p103
      %p105 = scmp.ne.s32.totalorder %s96, %s97
      %p106 = scmp.eq.s32.totalorder %s18, 0
      %p107 = por %p105, %p106
      %p108 = scmp.ne.s32.totalorder %s96, %s97
      %p109 = scmp.eq.s32.totalorder %s19, 1
      %p110 = por %p108, %p109
      %p112 = scmp.ne.s32.totalorder %s97, %s111
      %p113 = scmp.eq.s32.totalorder %s19, 0
      %p114 = por %p112, %p113
      %s115 = ssub.s32 %s13, %s20
      %p116 = scmp.eq.s32.totalorder %s115, 0
      %s118 = sadd.s32 %s117, 1
      %s119 = scalar_select %p116, %s117, %s118
      %p122 = pneg %p116
      %p123 = scmp.eq.s32.totalorder %s13, 1
      %p124 = por %p122, %p123
      %p125 = scmp.ne.s32.totalorder %s117, %s120
      %p126 = scmp.eq.s32.totalorder %s13, 0
      %p127 = por %p125, %p126
      %p128 = scmp.ne.s32.totalorder %s117, %s120
      %p129 = scmp.eq.s32.totalorder %s18, 1
      %p130 = por %p128, %p129
      %p131 = scmp.ne.s32.totalorder %s120, %s121
      %p132 = scmp.eq.s32.totalorder %s18, 0
      %p133 = por %p131, %p132
      %p134 = scmp.ne.s32.totalorder %s120, %s121
      %p135 = scmp.eq.s32.totalorder %s19, 1
      %p136 = por %p134, %p135
      %p138 = scmp.ne.s32.totalorder %s121, %s137
      %p139 = scmp.eq.s32.totalorder %s19, 0
      %p140 = por %p138, %p139
      %p141 = scmp.le.s32.totalorder 1, %s13
      %p142 = scmp.lt.s32.totalorder %s13, 3
      %p143 = pnand %p141, %p142
      %p144 = pneg %p143
      // Predicated region
      $region9: #{tpu_custom_call.1} parent=5 // pred_check
        _
      $region10: #{tpu_custom_call.1} parent=5 // pred_check_branch
        %146 = sbr.rel (%p143) target = $region12
      $region11: #{tpu_custom_call.1} parent=5 // pred_region
        %s147 = ssub.s32 %s13, 1
        // Predicated region
        $region13: #{tpu_custom_call.1} parent=11 // pred_check
          %p148 = pneg %p86
        $region14: #{tpu_custom_call.1} parent=11 // pred_check_branch
          %150 = sbr.rel (%p148) target = $region16
        $region15: #{tpu_custom_call.1} parent=11 // pred_region
          _
        $region16: #{tpu_custom_call.1} parent=11 // pred_fallthru
          _
        // Predicated region
        $region17: #{tpu_custom_call.1} parent=11 // pred_check
          %p151 = pneg %p107
        $region18: #{tpu_custom_call.1} parent=11 // pred_check_branch
          %153 = sbr.rel (%p151) target = $region20
        $region19: #{tpu_custom_call.1} parent=11 // pred_region
          _
        $region20: #{tpu_custom_call.1} parent=11 // pred_fallthru
          _
      $region12: #{tpu_custom_call.1} parent=5 // pred_fallthru
        _
      %p154 = scmp.lt.s32.totalorder %s13, 2
      // Predicated region
      $region21: #{tpu_custom_call.1} parent=5 // pred_check
        %p155 = pneg %p154
      $region22: #{tpu_custom_call.1} parent=5 // pred_check_branch
        %157 = sbr.rel (%p155) target = $region24
      $region23: #{tpu_custom_call.1} parent=5 // pred_region
        // Predicated region
        $region25: #{tpu_custom_call.1} parent=23 // pred_check
          %p158 = pneg %p33
        $region26: #{tpu_custom_call.1} parent=23 // pred_check_branch
          %160 = sbr.rel (%p158) target = $region28
        $region27: #{tpu_custom_call.1} parent=23 // pred_region
          %p161 = scmp.lt.s32.totalorder %s13, 1
          %s162 = scalar_select %p161, %s13, 1
          %s163 = smul.addr %s162, 32
          %s164 = smul.addr %s163, 8
          %s165 = scalar_lea.vmem %s0, %s164
        $region28: #{tpu_custom_call.1} parent=23 // pred_fallthru
          _
        // Predicated region
        $region29: #{tpu_custom_call.1} parent=23 // pred_check
          %p166 = pneg %p59
        $region30: #{tpu_custom_call.1} parent=23 // pred_check_branch
          %168 = sbr.rel (%p166) target = $region32
        $region31: #{tpu_custom_call.1} parent=23 // pred_region
          %p169 = scmp.lt.s32.totalorder %s13, 1
          %s170 = scalar_select %p169, %s13, 1
          %s171 = smul.addr %s170, 32
          %s172 = smul.addr %s171, 8
          %s173 = scalar_lea.vmem %s1, %s172
        $region32: #{tpu_custom_call.1} parent=23 // pred_fallthru
          _
      $region24: #{tpu_custom_call.1} parent=5 // pred_fallthru
        _
      %p174 = scmp.le.s32.totalorder 1, %s13
      %p175 = scmp.lt.s32.totalorder %s13, 3
      %p176 = pnand %p174, %p175
      %p177 = pneg %p176
      // Predicated region
      $region33: #{tpu_custom_call.1} parent=5 // pred_check
        _
      $region34: #{tpu_custom_call.1} parent=5 // pred_check_branch
        %179 = sbr.rel (%p176) target = $region36
      $region35: #{tpu_custom_call.1} parent=5 // pred_region
        %s180 = ssub.s32 %s13, 1
        %p181 = scmp.lt.s32.totalorder %s18, 1
        %s182 = scalar_select %p181, %s18, 1
        %s183 = smul.addr %s182, 32
        %s184 = smul.addr %s183, 8
        %s185 = scalar_lea.vmem %s0, %s184
        %p186 = pneg %p39
        %p187 = pneg %p36
        %p188 = scmp.lt.s32.totalorder %s18, 1
        %s189 = scalar_select %p188, %s18, 1
        %s190 = smul.addr %s189, 32
        %s191 = smul.addr %s190, 8
        %s192 = scalar_lea.vmem %s1, %s191
        %p193 = pneg %p65
        %p194 = pneg %p62
        %p195 = pneg %p86
        %p196 = pneg %p83
        %p197 = pneg %p107
        %p198 = pneg %p104
        %p199 = pneg %p133
        %p200 = pneg %p130
        %s201 = sand.u32 %s120, 1
        %s202 = scalar_lea.sflag [#allocation5], %s201
        %s203 = sand.u32 %s120, 1
        %s204 = smul.addr %s203, 256
        %s205 = scalar_lea.vmem [#allocation4], %s204
        %p206 = scmp.lt.s32.totalorder %s18, 1
        %s207 = scalar_select %p206, %s18, 1
        %s208 = smul.addr %s207, 32
        %s209 = smul.addr %s208, 8
        %s210 = scalar_lea.vmem %s0, %s209
        %p211 = scmp.lt.s32.totalorder %s18, 1
        %s212 = scalar_select %p211, %s18, 1
        %s213 = smul.addr %s212, 32
        %s214 = smul.addr %s213, 8
        %s215 = scalar_lea.vmem %s1, %s214
        %vm217 = vcmask 31744
        %218 = vst.msk [vmem:[#allocation2] sm:$0xff] %vm217, 0.0
        %219 = vst.msk [vmem:[#allocation2 + $0x8] sm:$0xff] %vm217, 0.0
        %220 = vst.msk [vmem:[#allocation2 + $0x10] sm:$0xff] %vm217, 0.0
        %vm221 = vcmask 29696
        %222 = vst.msk [vmem:[#allocation2 + $0x18] sm:$0x3f] %vm221, 0.0
        %223 = vst.msk [vmem:[#allocation2 + $0x20] sm:$0xff] %vm217, 0.0
        %224 = vst.msk [vmem:[#allocation2 + $0x28] sm:$0xff] %vm217, 0.0
        %225 = vst.msk [vmem:[#allocation2 + $0x30] sm:$0xff] %vm217, 0.0
        %226 = vst.msk [vmem:[#allocation2 + $0x38] sm:$0x3f] %vm221, 0.0
        %227 = vst.msk [vmem:[#allocation2 + $0x40] sm:$0xff] %vm217, 0.0
        %228 = vst.msk [vmem:[#allocation2 + $0x48] sm:$0xff] %vm217, 0.0
        %229 = vst.msk [vmem:[#allocation2 + $0x50] sm:$0xff] %vm217, 0.0
        %230 = vst.msk [vmem:[#allocation2 + $0x58] sm:$0x3f] %vm221, 0.0
        %231 = vst.msk [vmem:[#allocation2 + $0x60] sm:$0xff] %vm217, 0.0
        %232 = vst.msk [vmem:[#allocation2 + $0x68] sm:$0xff] %vm217, 0.0
        %233 = vst.msk [vmem:[#allocation2 + $0x70] sm:$0xff] %vm217, 0.0
        %234 = vst.msk [vmem:[#allocation2 + $0x78] sm:$0x3f] %vm221, 0.0
        %235 = vst.msk [vmem:[#allocation2 + $0x80] sm:$0xff] %vm217, 0.0
        %236 = vst.msk [vmem:[#allocation2 + $0x88] sm:$0xff] %vm217, 0.0
        %237 = vst.msk [vmem:[#allocation2 + $0x90] sm:$0xff] %vm217, 0.0
        %238 = vst.msk [vmem:[#allocation2 + $0x98] sm:$0x3f] %vm221, 0.0
        %239 = vst.msk [vmem:[#allocation2 + $0xa0] sm:$0xff] %vm217, 0.0
        %240 = vst.msk [vmem:[#allocation2 + $0xa8] sm:$0xff] %vm217, 0.0
        %241 = vst.msk [vmem:[#allocation2 + $0xb0] sm:$0xff] %vm217, 0.0
        %242 = vst.msk [vmem:[#allocation2 + $0xb8] sm:$0x3f] %vm221, 0.0
        %243 = vst.msk [vmem:[#allocation2 + $0xc0] sm:$0xff] %vm217, 0.0
        %244 = vst.msk [vmem:[#allocation2 + $0xc8] sm:$0xff] %vm217, 0.0
        %245 = vst.msk [vmem:[#allocation2 + $0xd0] sm:$0xff] %vm217, 0.0
        %246 = vst.msk [vmem:[#allocation2 + $0xd8] sm:$0x3f] %vm221, 0.0
        %247 = vst.msk [vmem:[#allocation2 + $0xe0] sm:$0xff] %vm217, 0.0
        %248 = vst.msk [vmem:[#allocation2 + $0xe8] sm:$0xff] %vm217, 0.0
        %249 = vst.msk [vmem:[#allocation2 + $0xf0] sm:$0xff] %vm217, 0.0
        %250 = vst.msk [vmem:[#allocation2 + $0xf8] sm:$0x3f] %vm221, 0.0
        %251 = vst.msk [vmem:[#allocation2 + $0x100] sm:$0xff] %vm217, 0.0
        %252 = vst.msk [vmem:[#allocation2 + $0x108] sm:$0xff] %vm217, 0.0
        %253 = vst.msk [vmem:[#allocation2 + $0x110] sm:$0xff] %vm217, 0.0
        %254 = vst.msk [vmem:[#allocation2 + $0x118] sm:$0x3f] %vm221, 0.0
        %255 = vst.msk [vmem:[#allocation2 + $0x120] sm:$0xff] %vm217, 0.0
        %256 = vst.msk [vmem:[#allocation2 + $0x128] sm:$0xff] %vm217, 0.0
        %257 = vst.msk [vmem:[#allocation2 + $0x130] sm:$0xff] %vm217, 0.0
        %258 = vst.msk [vmem:[#allocation2 + $0x138] sm:$0x3f] %vm221, 0.0
        %259 = vst.msk [vmem:[#allocation2 + $0x140] sm:$0xff] %vm217, 0.0
        %260 = vst.msk [vmem:[#allocation2 + $0x148] sm:$0xff] %vm217, 0.0
        %261 = vst.msk [vmem:[#allocation2 + $0x150] sm:$0xff] %vm217, 0.0
        %262 = vst.msk [vmem:[#allocation2 + $0x158] sm:$0x3f] %vm221, 0.0
        %263 = vst.msk [vmem:[#allocation2 + $0x160] sm:$0xff] %vm217, 0.0
        %264 = vst.msk [vmem:[#allocation2 + $0x168] sm:$0xff] %vm217, 0.0
        %265 = vst.msk [vmem:[#allocation2 + $0x170] sm:$0xff] %vm217, 0.0
        %266 = vst.msk [vmem:[#allocation2 + $0x178] sm:$0x3f] %vm221, 0.0
        %267 = vst.msk [vmem:[#allocation2 + $0x180] sm:$0xff] %vm217, 0.0
        %268 = vst.msk [vmem:[#allocation2 + $0x188] sm:$0xff] %vm217, 0.0
        %269 = vst.msk [vmem:[#allocation2 + $0x190] sm:$0xff] %vm217, 0.0
        %270 = vst.msk [vmem:[#allocation2 + $0x198] sm:$0x3f] %vm221, 0.0
        %271 = vst.msk [vmem:[#allocation2 + $0x1a0] sm:$0xff] %vm217, 0.0
        %272 = vst.msk [vmem:[#allocation2 + $0x1a8] sm:$0xff] %vm217, 0.0
        %273 = vst.msk [vmem:[#allocation2 + $0x1b0] sm:$0xff] %vm217, 0.0
        %274 = vst.msk [vmem:[#allocation2 + $0x1b8] sm:$0x3f] %vm221, 0.0
        %275 = vst.msk [vmem:[#allocation2 + $0x1c0] sm:$0xff] %vm217, 0.0
        %276 = vst.msk [vmem:[#allocation2 + $0x1c8] sm:$0xff] %vm217, 0.0
        %277 = vst.msk [vmem:[#allocation2 + $0x1d0] sm:$0xff] %vm217, 0.0
        %278 = vst.msk [vmem:[#allocation2 + $0x1d8] sm:$0x3f] %vm221, 0.0
        %279 = vst.msk [vmem:[#allocation2 + $0x1e0] sm:$0xff] %vm217, 0.0
        %280 = vst.msk [vmem:[#allocation2 + $0x1e8] sm:$0xff] %vm217, 0.0
        %281 = vst.msk [vmem:[#allocation2 + $0x1f0] sm:$0xff] %vm217, 0.0
        %282 = vst.msk [vmem:[#allocation2 + $0x1f8] sm:$0x3f] %vm221, 0.0
        %283 = vst.msk [vmem:[#allocation2 + $0x200] sm:$0xff] %vm217, 0.0
        %284 = vst.msk [vmem:[#allocation2 + $0x208] sm:$0xff] %vm217, 0.0
        %285 = vst.msk [vmem:[#allocation2 + $0x210] sm:$0xff] %vm217, 0.0
        %286 = vst.msk [vmem:[#allocation2 + $0x218] sm:$0x3f] %vm221, 0.0
        %287 = vst.msk [vmem:[#allocation2 + $0x220] sm:$0xff] %vm217, 0.0
        %288 = vst.msk [vmem:[#allocation2 + $0x228] sm:$0xff] %vm217, 0.0
        %289 = vst.msk [vmem:[#allocation2 + $0x230] sm:$0xff] %vm217, 0.0
        %290 = vst.msk [vmem:[#allocation2 + $0x238] sm:$0x3f] %vm221, 0.0
        %291 = vst.msk [vmem:[#allocation2 + $0x240] sm:$0xff] %vm217, 0.0
        %292 = vst.msk [vmem:[#allocation2 + $0x248] sm:$0xff] %vm217, 0.0
        %293 = vst.msk [vmem:[#allocation2 + $0x250] sm:$0xff] %vm217, 0.0
        %294 = vst.msk [vmem:[#allocation2 + $0x258] sm:$0x3f] %vm221, 0.0
        %295 = vst.msk [vmem:[#allocation2 + $0x260] sm:$0xff] %vm217, 0.0
        %296 = vst.msk [vmem:[#allocation2 + $0x268] sm:$0xff] %vm217, 0.0
        %297 = vst.msk [vmem:[#allocation2 + $0x270] sm:$0xff] %vm217, 0.0
        %298 = vst.msk [vmem:[#allocation2 + $0x278] sm:$0x3f] %vm221, 0.0
        %299 = vst.msk [vmem:[#allocation2 + $0x280] sm:$0xff] %vm217, 0.0
        %300 = vst.msk [vmem:[#allocation2 + $0x288] sm:$0xff] %vm217, 0.0
        %301 = vst.msk [vmem:[#allocation2 + $0x290] sm:$0xff] %vm217, 0.0
        %302 = vst.msk [vmem:[#allocation2 + $0x298] sm:$0x3f] %vm221, 0.0
        %303 = vst.msk [vmem:[#allocation2 + $0x2a0] sm:$0xff] %vm217, 0.0
        %304 = vst.msk [vmem:[#allocation2 + $0x2a8] sm:$0xff] %vm217, 0.0
        %305 = vst.msk [vmem:[#allocation2 + $0x2b0] sm:$0xff] %vm217, 0.0
        %306 = vst.msk [vmem:[#allocation2 + $0x2b8] sm:$0x3f] %vm221, 0.0
        %307 = vst.msk [vmem:[#allocation2 + $0x2c0] sm:$0xff] %vm217, 0.0
        %308 = vst.msk [vmem:[#allocation2 + $0x2c8] sm:$0xff] %vm217, 0.0
        %309 = vst.msk [vmem:[#allocation2 + $0x2d0] sm:$0xff] %vm217, 0.0
        %310 = vst.msk [vmem:[#allocation2 + $0x2d8] sm:$0x3f] %vm221, 0.0
        %311 = vst.msk [vmem:[#allocation2 + $0x2e0] sm:$0xff] %vm217, 0.0
        %312 = vst.msk [vmem:[#allocation2 + $0x2e8] sm:$0xff] %vm217, 0.0
        %313 = vst.msk [vmem:[#allocation2 + $0x2f0] sm:$0xff] %vm217, 0.0
        %314 = vst.msk [vmem:[#allocation2 + $0x2f8] sm:$0x3f] %vm221, 0.0
        %315 = vst.msk [vmem:[#allocation2 + $0x300] sm:$0xff] %vm217, 0.0
        %316 = vst.msk [vmem:[#allocation2 + $0x308] sm:$0xff] %vm217, 0.0
        %317 = vst.msk [vmem:[#allocation2 + $0x310] sm:$0xff] %vm217, 0.0
        %318 = vst.msk [vmem:[#allocation2 + $0x318] sm:$0x3f] %vm221, 0.0
        %319 = vst.msk [vmem:[#allocation2 + $0x320] sm:$0xff] %vm217, 0.0
        %320 = vst.msk [vmem:[#allocation2 + $0x328] sm:$0xff] %vm217, 0.0
        %321 = vst.msk [vmem:[#allocation2 + $0x330] sm:$0xff] %vm217, 0.0
        %322 = vst.msk [vmem:[#allocation2 + $0x338] sm:$0x3f] %vm221, 0.0
        %323 = vst.msk [vmem:[#allocation2 + $0x340] sm:$0xff] %vm217, 0.0
        %324 = vst.msk [vmem:[#allocation2 + $0x348] sm:$0xff] %vm217, 0.0
        %325 = vst.msk [vmem:[#allocation2 + $0x350] sm:$0xff] %vm217, 0.0
        %326 = vst.msk [vmem:[#allocation2 + $0x358] sm:$0x3f] %vm221, 0.0
        %327 = vst.msk [vmem:[#allocation2 + $0x360] sm:$0xff] %vm217, 0.0
        %328 = vst.msk [vmem:[#allocation2 + $0x368] sm:$0xff] %vm217, 0.0
        %329 = vst.msk [vmem:[#allocation2 + $0x370] sm:$0xff] %vm217, 0.0
        %330 = vst.msk [vmem:[#allocation2 + $0x378] sm:$0x3f] %vm221, 0.0
        %331 = vst.msk [vmem:[#allocation2 + $0x380] sm:$0xff] %vm217, 0.0
        %332 = vst.msk [vmem:[#allocation2 + $0x388] sm:$0xff] %vm217, 0.0
        %333 = vst.msk [vmem:[#allocation2 + $0x390] sm:$0xff] %vm217, 0.0
        %334 = vst.msk [vmem:[#allocation2 + $0x398] sm:$0x3f] %vm221, 0.0
        %335 = vst.msk [vmem:[#allocation2 + $0x3a0] sm:$0xff] %vm217, 0.0
        %336 = vst.msk [vmem:[#allocation2 + $0x3a8] sm:$0xff] %vm217, 0.0
        %337 = vst.msk [vmem:[#allocation2 + $0x3b0] sm:$0xff] %vm217, 0.0
        %338 = vst.msk [vmem:[#allocation2 + $0x3b8] sm:$0x3f] %vm221, 0.0
        %339 = vst.msk [vmem:[#allocation3] sm:$0xff] %vm217, 0.0
        %340 = vst.msk [vmem:[#allocation3 + $0x8] sm:$0xff] %vm217, 0.0
        %341 = vst.msk [vmem:[#allocation3 + $0x10] sm:$0xff] %vm217, 0.0
        %342 = vst.msk [vmem:[#allocation3 + $0x18] sm:$0x3f] %vm221, 0.0
        %343 = vst.msk [vmem:[#allocation3 + $0x20] sm:$0xff] %vm217, 0.0
        %344 = vst.msk [vmem:[#allocation3 + $0x28] sm:$0xff] %vm217, 0.0
        %345 = vst.msk [vmem:[#allocation3 + $0x30] sm:$0xff] %vm217, 0.0
        %346 = vst.msk [vmem:[#allocation3 + $0x38] sm:$0x3f] %vm221, 0.0
        %347 = vst.msk [vmem:[#allocation3 + $0x40] sm:$0xff] %vm217, 0.0
        %348 = vst.msk [vmem:[#allocation3 + $0x48] sm:$0xff] %vm217, 0.0
        %349 = vst.msk [vmem:[#allocation3 + $0x50] sm:$0xff] %vm217, 0.0
        %350 = vst.msk [vmem:[#allocation3 + $0x58] sm:$0x3f] %vm221, 0.0
        %351 = vst.msk [vmem:[#allocation3 + $0x60] sm:$0xff] %vm217, 0.0
        %352 = vst.msk [vmem:[#allocation3 + $0x68] sm:$0xff] %vm217, 0.0
        %353 = vst.msk [vmem:[#allocation3 + $0x70] sm:$0xff] %vm217, 0.0
        %354 = vst.msk [vmem:[#allocation3 + $0x78] sm:$0x3f] %vm221, 0.0
        %355 = vst.msk [vmem:[#allocation3 + $0x80] sm:$0xff] %vm217, 0.0
        %356 = vst.msk [vmem:[#allocation3 + $0x88] sm:$0xff] %vm217, 0.0
        %357 = vst.msk [vmem:[#allocation3 + $0x90] sm:$0xff] %vm217, 0.0
        %358 = vst.msk [vmem:[#allocation3 + $0x98] sm:$0x3f] %vm221, 0.0
        %359 = vst.msk [vmem:[#allocation3 + $0xa0] sm:$0xff] %vm217, 0.0
        %360 = vst.msk [vmem:[#allocation3 + $0xa8] sm:$0xff] %vm217, 0.0
        %361 = vst.msk [vmem:[#allocation3 + $0xb0] sm:$0xff] %vm217, 0.0
        %362 = vst.msk [vmem:[#allocation3 + $0xb8] sm:$0x3f] %vm221, 0.0
        %363 = vst.msk [vmem:[#allocation3 + $0xc0] sm:$0xff] %vm217, 0.0
        %364 = vst.msk [vmem:[#allocation3 + $0xc8] sm:$0xff] %vm217, 0.0
        %365 = vst.msk [vmem:[#allocation3 + $0xd0] sm:$0xff] %vm217, 0.0
        %366 = vst.msk [vmem:[#allocation3 + $0xd8] sm:$0x3f] %vm221, 0.0
        %367 = vst.msk [vmem:[#allocation3 + $0xe0] sm:$0xff] %vm217, 0.0
        %368 = vst.msk [vmem:[#allocation3 + $0xe8] sm:$0xff] %vm217, 0.0
        %369 = vst.msk [vmem:[#allocation3 + $0xf0] sm:$0xff] %vm217, 0.0
        %370 = vst.msk [vmem:[#allocation3 + $0xf8] sm:$0x3f] %vm221, 0.0
        %371 = vst.msk [vmem:[#allocation3 + $0x100] sm:$0xff] %vm217, 0.0
        %372 = vst.msk [vmem:[#allocation3 + $0x108] sm:$0xff] %vm217, 0.0
        %373 = vst.msk [vmem:[#allocation3 + $0x110] sm:$0xff] %vm217, 0.0
        %374 = vst.msk [vmem:[#allocation3 + $0x118] sm:$0x3f] %vm221, 0.0
        %375 = vst.msk [vmem:[#allocation3 + $0x120] sm:$0xff] %vm217, 0.0
        %376 = vst.msk [vmem:[#allocation3 + $0x128] sm:$0xff] %vm217, 0.0
        %377 = vst.msk [vmem:[#allocation3 + $0x130] sm:$0xff] %vm217, 0.0
        %378 = vst.msk [vmem:[#allocation3 + $0x138] sm:$0x3f] %vm221, 0.0
        %379 = vst.msk [vmem:[#allocation3 + $0x140] sm:$0xff] %vm217, 0.0
        %380 = vst.msk [vmem:[#allocation3 + $0x148] sm:$0xff] %vm217, 0.0
        %381 = vst.msk [vmem:[#allocation3 + $0x150] sm:$0xff] %vm217, 0.0
        %382 = vst.msk [vmem:[#allocation3 + $0x158] sm:$0x3f] %vm221, 0.0
        %383 = vst.msk [vmem:[#allocation3 + $0x160] sm:$0xff] %vm217, 0.0
        %384 = vst.msk [vmem:[#allocation3 + $0x168] sm:$0xff] %vm217, 0.0
        %385 = vst.msk [vmem:[#allocation3 + $0x170] sm:$0xff] %vm217, 0.0
        %386 = vst.msk [vmem:[#allocation3 + $0x178] sm:$0x3f] %vm221, 0.0
        %387 = vst.msk [vmem:[#allocation3 + $0x180] sm:$0xff] %vm217, 0.0
        %388 = vst.msk [vmem:[#allocation3 + $0x188] sm:$0xff] %vm217, 0.0
        %389 = vst.msk [vmem:[#allocation3 + $0x190] sm:$0xff] %vm217, 0.0
        %390 = vst.msk [vmem:[#allocation3 + $0x198] sm:$0x3f] %vm221, 0.0
        %391 = vst.msk [vmem:[#allocation3 + $0x1a0] sm:$0xff] %vm217, 0.0
        %392 = vst.msk [vmem:[#allocation3 + $0x1a8] sm:$0xff] %vm217, 0.0
        %393 = vst.msk [vmem:[#allocation3 + $0x1b0] sm:$0xff] %vm217, 0.0
        %394 = vst.msk [vmem:[#allocation3 + $0x1b8] sm:$0x3f] %vm221, 0.0
        %395 = vst.msk [vmem:[#allocation3 + $0x1c0] sm:$0xff] %vm217, 0.0
        %396 = vst.msk [vmem:[#allocation3 + $0x1c8] sm:$0xff] %vm217, 0.0
        %397 = vst.msk [vmem:[#allocation3 + $0x1d0] sm:$0xff] %vm217, 0.0
        %398 = vst.msk [vmem:[#allocation3 + $0x1d8] sm:$0x3f] %vm221, 0.0
        %399 = vst.msk [vmem:[#allocation3 + $0x1e0] sm:$0xff] %vm217, 0.0
        %400 = vst.msk [vmem:[#allocation3 + $0x1e8] sm:$0xff] %vm217, 0.0
        %401 = vst.msk [vmem:[#allocation3 + $0x1f0] sm:$0xff] %vm217, 0.0
        %402 = vst.msk [vmem:[#allocation3 + $0x1f8] sm:$0x3f] %vm221, 0.0
        %403 = vst.msk [vmem:[#allocation3 + $0x200] sm:$0xff] %vm217, 0.0
        %404 = vst.msk [vmem:[#allocation3 + $0x208] sm:$0xff] %vm217, 0.0
        %405 = vst.msk [vmem:[#allocation3 + $0x210] sm:$0xff] %vm217, 0.0
        %406 = vst.msk [vmem:[#allocation3 + $0x218] sm:$0x3f] %vm221, 0.0
        %407 = vst.msk [vmem:[#allocation3 + $0x220] sm:$0xff] %vm217, 0.0
        %408 = vst.msk [vmem:[#allocation3 + $0x228] sm:$0xff] %vm217, 0.0
        %409 = vst.msk [vmem:[#allocation3 + $0x230] sm:$0xff] %vm217, 0.0
        %410 = vst.msk [vmem:[#allocation3 + $0x238] sm:$0x3f] %vm221, 0.0
        %411 = vst.msk [vmem:[#allocation3 + $0x240] sm:$0xff] %vm217, 0.0
        %412 = vst.msk [vmem:[#allocation3 + $0x248] sm:$0xff] %vm217, 0.0
        %413 = vst.msk [vmem:[#allocation3 + $0x250] sm:$0xff] %vm217, 0.0
        %414 = vst.msk [vmem:[#allocation3 + $0x258] sm:$0x3f] %vm221, 0.0
        %415 = vst.msk [vmem:[#allocation3 + $0x260] sm:$0xff] %vm217, 0.0
        %416 = vst.msk [vmem:[#allocation3 + $0x268] sm:$0xff] %vm217, 0.0
        %417 = vst.msk [vmem:[#allocation3 + $0x270] sm:$0xff] %vm217, 0.0
        %418 = vst.msk [vmem:[#allocation3 + $0x278] sm:$0x3f] %vm221, 0.0
        %419 = vst.msk [vmem:[#allocation3 + $0x280] sm:$0xff] %vm217, 0.0
        %420 = vst.msk [vmem:[#allocation3 + $0x288] sm:$0xff] %vm217, 0.0
        %421 = vst.msk [vmem:[#allocation3 + $0x290] sm:$0xff] %vm217, 0.0
        %422 = vst.msk [vmem:[#allocation3 + $0x298] sm:$0x3f] %vm221, 0.0
        %423 = vst.msk [vmem:[#allocation3 + $0x2a0] sm:$0xff] %vm217, 0.0
        %424 = vst.msk [vmem:[#allocation3 + $0x2a8] sm:$0xff] %vm217, 0.0
        %425 = vst.msk [vmem:[#allocation3 + $0x2b0] sm:$0xff] %vm217, 0.0
        %426 = vst.msk [vmem:[#allocation3 + $0x2b8] sm:$0x3f] %vm221, 0.0
        %427 = vst.msk [vmem:[#allocation3 + $0x2c0] sm:$0xff] %vm217, 0.0
        %428 = vst.msk [vmem:[#allocation3 + $0x2c8] sm:$0xff] %vm217, 0.0
        %429 = vst.msk [vmem:[#allocation3 + $0x2d0] sm:$0xff] %vm217, 0.0
        %430 = vst.msk [vmem:[#allocation3 + $0x2d8] sm:$0x3f] %vm221, 0.0
        %431 = vst.msk [vmem:[#allocation3 + $0x2e0] sm:$0xff] %vm217, 0.0
        %432 = vst.msk [vmem:[#allocation3 + $0x2e8] sm:$0xff] %vm217, 0.0
        %433 = vst.msk [vmem:[#allocation3 + $0x2f0] sm:$0xff] %vm217, 0.0
        %434 = vst.msk [vmem:[#allocation3 + $0x2f8] sm:$0x3f] %vm221, 0.0
        %435 = vst.msk [vmem:[#allocation3 + $0x300] sm:$0xff] %vm217, 0.0
        %436 = vst.msk [vmem:[#allocation3 + $0x308] sm:$0xff] %vm217, 0.0
        %437 = vst.msk [vmem:[#allocation3 + $0x310] sm:$0xff] %vm217, 0.0
        %438 = vst.msk [vmem:[#allocation3 + $0x318] sm:$0x3f] %vm221, 0.0
        %439 = vst.msk [vmem:[#allocation3 + $0x320] sm:$0xff] %vm217, 0.0
        %440 = vst.msk [vmem:[#allocation3 + $0x328] sm:$0xff] %vm217, 0.0
        %441 = vst.msk [vmem:[#allocation3 + $0x330] sm:$0xff] %vm217, 0.0
        %442 = vst.msk [vmem:[#allocation3 + $0x338] sm:$0x3f] %vm221, 0.0
        %443 = vst.msk [vmem:[#allocation3 + $0x340] sm:$0xff] %vm217, 0.0
        %444 = vst.msk [vmem:[#allocation3 + $0x348] sm:$0xff] %vm217, 0.0
        %445 = vst.msk [vmem:[#allocation3 + $0x350] sm:$0xff] %vm217, 0.0
        %446 = vst.msk [vmem:[#allocation3 + $0x358] sm:$0x3f] %vm221, 0.0
        %447 = vst.msk [vmem:[#allocation3 + $0x360] sm:$0xff] %vm217, 0.0
        %448 = vst.msk [vmem:[#allocation3 + $0x368] sm:$0xff] %vm217, 0.0
        %449 = vst.msk [vmem:[#allocation3 + $0x370] sm:$0xff] %vm217, 0.0
        %450 = vst.msk [vmem:[#allocation3 + $0x378] sm:$0x3f] %vm221, 0.0
        %451 = vst.msk [vmem:[#allocation3 + $0x380] sm:$0xff] %vm217, 0.0
        %452 = vst.msk [vmem:[#allocation3 + $0x388] sm:$0xff] %vm217, 0.0
        %453 = vst.msk [vmem:[#allocation3 + $0x390] sm:$0xff] %vm217, 0.0
        %454 = vst.msk [vmem:[#allocation3 + $0x398] sm:$0x3f] %vm221, 0.0
        %455 = vst.msk [vmem:[#allocation3 + $0x3a0] sm:$0xff] %vm217, 0.0
        %456 = vst.msk [vmem:[#allocation3 + $0x3a8] sm:$0xff] %vm217, 0.0
        %457 = vst.msk [vmem:[#allocation3 + $0x3b0] sm:$0xff] %vm217, 0.0
        %458 = vst.msk [vmem:[#allocation3 + $0x3b8] sm:$0x3f] %vm221, 0.0
        %v459 = vld [vmem:[%s210] sm:$0xff]
        %v460 = vld [vmem:[%s210 + $0x8] sm:$0xff]
        %v461 = vld [vmem:[%s210 + $0x10] sm:$0xff]
        %v462 = vld [vmem:[%s210 + $0x18] sm:$0xff]
        %v463 = vld [vmem:[%s210 + $0x20] sm:$0xff]
        %v464 = vld [vmem:[%s210 + $0x28] sm:$0xff]
        %v465 = vld [vmem:[%s210 + $0x30] sm:$0xff]
        %v466 = vld [vmem:[%s210 + $0x38] sm:$0xff]
        %v467 = vld [vmem:[%s210 + $0x40] sm:$0xff]
        %v468 = vld [vmem:[%s210 + $0x48] sm:$0xff]
        %v469 = vld [vmem:[%s210 + $0x50] sm:$0xff]
        %v470 = vld [vmem:[%s210 + $0x58] sm:$0xff]
        %v471 = vld [vmem:[%s210 + $0x60] sm:$0xff]
        %v472 = vld [vmem:[%s210 + $0x68] sm:$0xff]
        %v473 = vld [vmem:[%s210 + $0x70] sm:$0xff]
        %v474 = vld [vmem:[%s210 + $0x78] sm:$0xff]
        %v475 = vld [vmem:[%s210 + $0x80] sm:$0xff]
        %v476 = vld [vmem:[%s210 + $0x88] sm:$0xff]
        %v477 = vld [vmem:[%s210 + $0x90] sm:$0xff]
        %v478 = vld [vmem:[%s210 + $0x98] sm:$0xff]
        %v479 = vld [vmem:[%s210 + $0xa0] sm:$0xff]
        %v480 = vld [vmem:[%s210 + $0xa8] sm:$0xff]
        %v481 = vld [vmem:[%s210 + $0xb0] sm:$0xff]
        %v482 = vld [vmem:[%s210 + $0xb8] sm:$0xff]
        %v483 = vld [vmem:[%s210 + $0xc0] sm:$0xff]
        %v484 = vld [vmem:[%s210 + $0xc8] sm:$0xff]
        %v485 = vld [vmem:[%s210 + $0xd0] sm:$0xff]
        %v486 = vld [vmem:[%s210 + $0xd8] sm:$0xff]
        %v487 = vld [vmem:[%s210 + $0xe0] sm:$0xff]
        %v488 = vld [vmem:[%s210 + $0xe8] sm:$0xff]
        %v489 = vld [vmem:[%s210 + $0xf0] sm:$0xff]
        %v490 = vld [vmem:[%s210 + $0xf8] sm:$0xff]
        %v491 = vld [vmem:[%s215] sm:$0xff]
        %v492 = vld [vmem:[%s215 + $0x8] sm:$0xff]
        %v493 = vld [vmem:[%s215 + $0x10] sm:$0xff]
        %v494 = vld [vmem:[%s215 + $0x18] sm:$0xff]
        %v495 = vld [vmem:[%s215 + $0x20] sm:$0xff]
        %v496 = vld [vmem:[%s215 + $0x28] sm:$0xff]
        %v497 = vld [vmem:[%s215 + $0x30] sm:$0xff]
        %v498 = vld [vmem:[%s215 + $0x38] sm:$0xff]
        %v499 = vld [vmem:[%s215 + $0x40] sm:$0xff]
        %v500 = vld [vmem:[%s215 + $0x48] sm:$0xff]
        %v501 = vld [vmem:[%s215 + $0x50] sm:$0xff]
        %v502 = vld [vmem:[%s215 + $0x58] sm:$0xff]
        %v503 = vld [vmem:[%s215 + $0x60] sm:$0xff]
        %v504 = vld [vmem:[%s215 + $0x68] sm:$0xff]
        %v505 = vld [vmem:[%s215 + $0x70] sm:$0xff]
        %v506 = vld [vmem:[%s215 + $0x78] sm:$0xff]
        %v507 = vld [vmem:[%s215 + $0x80] sm:$0xff]
        %v508 = vld [vmem:[%s215 + $0x88] sm:$0xff]
        %v509 = vld [vmem:[%s215 + $0x90] sm:$0xff]
        %v510 = vld [vmem:[%s215 + $0x98] sm:$0xff]
        %v511 = vld [vmem:[%s215 + $0xa0] sm:$0xff]
        %v512 = vld [vmem:[%s215 + $0xa8] sm:$0xff]
        %v513 = vld [vmem:[%s215 + $0xb0] sm:$0xff]
        %v514 = vld [vmem:[%s215 + $0xb8] sm:$0xff]
        %v515 = vld [vmem:[%s215 + $0xc0] sm:$0xff]
        %v516 = vld [vmem:[%s215 + $0xc8] sm:$0xff]
        %v517 = vld [vmem:[%s215 + $0xd0] sm:$0xff]
        %v518 = vld [vmem:[%s215 + $0xd8] sm:$0xff]
        %v519 = vld [vmem:[%s215 + $0xe0] sm:$0xff]
        %v520 = vld [vmem:[%s215 + $0xe8] sm:$0xff]
        %v521 = vld [vmem:[%s215 + $0xf0] sm:$0xff]
        %v522 = vld [vmem:[%s215 + $0xf8] sm:$0xff]
        %v523 = vsub.f32 %v459, %v491
        %v524 = vsub.f32 %v460, %v492
        %v525 = vsub.f32 %v461, %v493
        %v526 = vsub.f32 %v462, %v494
        %v527 = vsub.f32 %v463, %v495
        %v528 = vsub.f32 %v464, %v496
        %v529 = vsub.f32 %v465, %v497
        %v530 = vsub.f32 %v466, %v498
        %v531 = vsub.f32 %v467, %v499
        %v532 = vsub.f32 %v468, %v500
        %v533 = vsub.f32 %v469, %v501
        %v534 = vsub.f32 %v470, %v502
        %v535 = vsub.f32 %v471, %v503
        %v536 = vsub.f32 %v472, %v504
        %v537 = vsub.f32 %v473, %v505
        %v538 = vsub.f32 %v474, %v506
        %v539 = vsub.f32 %v475, %v507
        %v540 = vsub.f32 %v476, %v508
        %v541 = vsub.f32 %v477, %v509
        %v542 = vsub.f32 %v478, %v510
        %v543 = vsub.f32 %v479, %v511
        %v544 = vsub.f32 %v480, %v512
        %v545 = vsub.f32 %v481, %v513
        %v546 = vsub.f32 %v482, %v514
        %v547 = vsub.f32 %v483, %v515
        %v548 = vsub.f32 %v484, %v516
        %v549 = vsub.f32 %v485, %v517
        %v550 = vsub.f32 %v486, %v518
        %v551 = vsub.f32 %v487, %v519
        %v552 = vsub.f32 %v488, %v520
        %v553 = vsub.f32 %v489, %v521
        %v554 = vsub.f32 %v490, %v522
        %v555 = vand.u32 2147483647, %v523
        %v556 = vand.u32 2147483647, %v524
        %v557 = vand.u32 2147483647, %v525
        %v558 = vand.u32 2147483647, %v526
        %v559 = vand.u32 2147483647, %v527
        %v560 = vand.u32 2147483647, %v528
        %v561 = vand.u32 2147483647, %v529
        %v562 = vand.u32 2147483647, %v530
        %v563 = vand.u32 2147483647, %v531
        %v564 = vand.u32 2147483647, %v532
        %v565 = vand.u32 2147483647, %v533
        %v566 = vand.u32 2147483647, %v534
        %v567 = vand.u32 2147483647, %v535
        %v568 = vand.u32 2147483647, %v536
        %v569 = vand.u32 2147483647, %v537
        %v570 = vand.u32 2147483647, %v538
        %v571 = vand.u32 2147483647, %v539
        %v572 = vand.u32 2147483647, %v540
        %v573 = vand.u32 2147483647, %v541
        %v574 = vand.u32 2147483647, %v542
        %v575 = vand.u32 2147483647, %v543
        %v576 = vand.u32 2147483647, %v544
        %v577 = vand.u32 2147483647, %v545
        %v578 = vand.u32 2147483647, %v546
        %v579 = vand.u32 2147483647, %v547
        %v580 = vand.u32 2147483647, %v548
        %v581 = vand.u32 2147483647, %v549
        %v582 = vand.u32 2147483647, %v550
        %v583 = vand.u32 2147483647, %v551
        %v584 = vand.u32 2147483647, %v552
        %v585 = vand.u32 2147483647, %v553
        %v586 = vand.u32 2147483647, %v554
        %s587 = scalar_lea.vmem [#allocation2], 224
        %588 = vst.msk [vmem:[%s587 + $0x7] sm:$0xff] %vm217, %v555
        %589 = vst.msk [vmem:[%s587 + $0xf] sm:$0xff] %vm217, %v556
        %590 = vst.msk [vmem:[%s587 + $0x27] sm:$0xff] %vm217, %v557
        %591 = vst.msk [vmem:[%s587 + $0x2f] sm:$0xff] %vm217, %v558
        %592 = vst.msk [vmem:[%s587 + $0x47] sm:$0xff] %vm217, %v559
        %593 = vst.msk [vmem:[%s587 + $0x4f] sm:$0xff] %vm217, %v560
        %594 = vst.msk [vmem:[%s587 + $0x67] sm:$0xff] %vm217, %v561
        %595 = vst.msk [vmem:[%s587 + $0x6f] sm:$0xff] %vm217, %v562
        %596 = vst.msk [vmem:[%s587 + $0x87] sm:$0xff] %vm217, %v563
        %597 = vst.msk [vmem:[%s587 + $0x8f] sm:$0xff] %vm217, %v564
        %598 = vst.msk [vmem:[%s587 + $0xa7] sm:$0xff] %vm217, %v565
        %599 = vst.msk [vmem:[%s587 + $0xaf] sm:$0xff] %vm217, %v566
        %600 = vst.msk [vmem:[%s587 + $0xc7] sm:$0xff] %vm217, %v567
        %601 = vst.msk [vmem:[%s587 + $0xcf] sm:$0xff] %vm217, %v568
        %602 = vst.msk [vmem:[%s587 + $0xe7] sm:$0xff] %vm217, %v569
        %603 = vst.msk [vmem:[%s587 + $0xef] sm:$0xff] %vm217, %v570
        %604 = vst.msk [vmem:[%s587 + $0x107] sm:$0xff] %vm217, %v571
        %605 = vst.msk [vmem:[%s587 + $0x10f] sm:$0xff] %vm217, %v572
        %606 = vst.msk [vmem:[%s587 + $0x127] sm:$0xff] %vm217, %v573
        %607 = vst.msk [vmem:[%s587 + $0x12f] sm:$0xff] %vm217, %v574
        %608 = vst.msk [vmem:[%s587 + $0x147] sm:$0xff] %vm217, %v575
        %609 = vst.msk [vmem:[%s587 + $0x14f] sm:$0xff] %vm217, %v576
        %610 = vst.msk [vmem:[%s587 + $0x167] sm:$0xff] %vm217, %v577
        %611 = vst.msk [vmem:[%s587 + $0x16f] sm:$0xff] %vm217, %v578
        %612 = vst.msk [vmem:[%s587 + $0x187] sm:$0xff] %vm217, %v579
        %613 = vst.msk [vmem:[%s587 + $0x18f] sm:$0xff] %vm217, %v580
        %614 = vst.msk [vmem:[%s587 + $0x1a7] sm:$0xff] %vm217, %v581
        %615 = vst.msk [vmem:[%s587 + $0x1af] sm:$0xff] %vm217, %v582
        %616 = vst.msk [vmem:[%s587 + $0x1c7] sm:$0xff] %vm217, %v583
        %617 = vst.msk [vmem:[%s587 + $0x1cf] sm:$0xff] %vm217, %v584
        %618 = vst.msk [vmem:[%s587 + $0x1e7] sm:$0xff] %vm217, %v585
        %619 = vst.msk [vmem:[%s587 + $0x1ef] sm:$0xff] %vm217, %v586
        %v620 = vld [vmem:[#allocation2] sm:$0xff]
        %v621 = vld [vmem:[#allocation2 + $0x8] sm:$0xff]
        %v622 = vld [vmem:[#allocation2 + $0x20] sm:$0xff]
        %v623 = vld [vmem:[#allocation2 + $0x28] sm:$0xff]
        %v624 = vld [vmem:[#allocation2 + $0x40] sm:$0xff]
        %v625 = vld [vmem:[#allocation2 + $0x48] sm:$0xff]
        %v626 = vld [vmem:[#allocation2 + $0x60] sm:$0xff]
        %v627 = vld [vmem:[#allocation2 + $0x68] sm:$0xff]
        %v628 = vld [vmem:[#allocation2 + $0x80] sm:$0xff]
        %v629 = vld [vmem:[#allocation2 + $0x88] sm:$0xff]
        %v630 = vld [vmem:[#allocation2 + $0xa0] sm:$0xff]
        %v631 = vld [vmem:[#allocation2 + $0xa8] sm:$0xff]
        %v632 = vld [vmem:[#allocation2 + $0xc0] sm:$0xff]
        %v633 = vld [vmem:[#allocation2 + $0xc8] sm:$0xff]
        %v634 = vld [vmem:[#allocation2 + $0xe0] sm:$0xff]
        %v635 = vld [vmem:[#allocation2 + $0xe8] sm:$0xff]
        %v636 = vld [vmem:[#allocation2 + $0x100] sm:$0xff]
        %v637 = vld [vmem:[#allocation2 + $0x108] sm:$0xff]
        %v638 = vld [vmem:[#allocation2 + $0x120] sm:$0xff]
        %v639 = vld [vmem:[#allocation2 + $0x128] sm:$0xff]
        %v640 = vld [vmem:[#allocation2 + $0x140] sm:$0xff]
        %v641 = vld [vmem:[#allocation2 + $0x148] sm:$0xff]
        %v642 = vld [vmem:[#allocation2 + $0x160] sm:$0xff]
        %v643 = vld [vmem:[#allocation2 + $0x168] sm:$0xff]
        %v644 = vld [vmem:[#allocation2 + $0x180] sm:$0xff]
        %v645 = vld [vmem:[#allocation2 + $0x188] sm:$0xff]
        %v646 = vld [vmem:[#allocation2 + $0x1a0] sm:$0xff]
        %v647 = vld [vmem:[#allocation2 + $0x1a8] sm:$0xff]
        %v648 = vld [vmem:[#allocation2 + $0x1c0] sm:$0xff]
        %v649 = vld [vmem:[#allocation2 + $0x1c8] sm:$0xff]
        %v650 = vld [vmem:[#allocation2 + $0x1e0] sm:$0xff]
        %v651 = vld [vmem:[#allocation2 + $0x1e8] sm:$0xff]
        %v652 = vld [vmem:[#allocation2 + $0x7] sm:$0xff]
        %v653 = vld [vmem:[#allocation2 + $0xf] sm:$0xff]
        %v654 = vld [vmem:[#allocation2 + $0x27] sm:$0xff]
        %v655 = vld [vmem:[#allocation2 + $0x2f] sm:$0xff]
        %v656 = vld [vmem:[#allocation2 + $0x47] sm:$0xff]
        %v657 = vld [vmem:[#allocation2 + $0x4f] sm:$0xff]
        %v658 = vld [vmem:[#allocation2 + $0x67] sm:$0xff]
        %v659 = vld [vmem:[#allocation2 + $0x6f] sm:$0xff]
        %v660 = vld [vmem:[#allocation2 + $0x87] sm:$0xff]
        %v661 = vld [vmem:[#allocation2 + $0x8f] sm:$0xff]
        %v662 = vld [vmem:[#allocation2 + $0xa7] sm:$0xff]
        %v663 = vld [vmem:[#allocation2 + $0xaf] sm:$0xff]
        %v664 = vld [vmem:[#allocation2 + $0xc7] sm:$0xff]
        %v665 = vld [vmem:[#allocation2 + $0xcf] sm:$0xff]
        %v666 = vld [vmem:[#allocation2 + $0xe7] sm:$0xff]
        %v667 = vld [vmem:[#allocation2 + $0xef] sm:$0xff]
        %v668 = vld [vmem:[#allocation2 + $0x107] sm:$0xff]
        %v669 = vld [vmem:[#allocation2 + $0x10f] sm:$0xff]
        %v670 = vld [vmem:[#allocation2 + $0x127] sm:$0xff]
        %v671 = vld [vmem:[#allocation2 + $0x12f] sm:$0xff]
        %v672 = vld [vmem:[#allocation2 + $0x147] sm:$0xff]
        %v673 = vld [vmem:[#allocation2 + $0x14f] sm:$0xff]
        %v674 = vld [vmem:[#allocation2 + $0x167] sm:$0xff]
        %v675 = vld [vmem:[#allocation2 + $0x16f] sm:$0xff]
        %v676 = vld [vmem:[#allocation2 + $0x187] sm:$0xff]
        %v677 = vld [vmem:[#allocation2 + $0x18f] sm:$0xff]
        %v678 = vld [vmem:[#allocation2 + $0x1a7] sm:$0xff]
        %v679 = vld [vmem:[#allocation2 + $0x1af] sm:$0xff]
        %v680 = vld [vmem:[#allocation2 + $0x1c7] sm:$0xff]
        %v681 = vld [vmem:[#allocation2 + $0x1cf] sm:$0xff]
        %v682 = vld [vmem:[#allocation2 + $0x1e7] sm:$0xff]
        %v683 = vld [vmem:[#allocation2 + $0x1ef] sm:$0xff]
        %v684 = vld [vmem:[#allocation2 + $0xe] sm:$0xff]
        %v685 = vld [vmem:[#allocation2 + $0x16] sm:$0xff]
        %v686 = vld [vmem:[#allocation2 + $0x2e] sm:$0xff]
        %v687 = vld [vmem:[#allocation2 + $0x36] sm:$0xff]
        %v688 = vld [vmem:[#allocation2 + $0x4e] sm:$0xff]
        %v689 = vld [vmem:[#allocation2 + $0x56] sm:$0xff]
        %v690 = vld [vmem:[#allocation2 + $0x6e] sm:$0xff]
        %v691 = vld [vmem:[#allocation2 + $0x76] sm:$0xff]
        %v692 = vld [vmem:[#allocation2 + $0x8e] sm:$0xff]
        %v693 = vld [vmem:[#allocation2 + $0x96] sm:$0xff]
        %v694 = vld [vmem:[#allocation2 + $0xae] sm:$0xff]
        %v695 = vld [vmem:[#allocation2 + $0xb6] sm:$0xff]
        %v696 = vld [vmem:[#allocation2 + $0xce] sm:$0xff]
        %v697 = vld [vmem:[#allocation2 + $0xd6] sm:$0xff]
        %v698 = vld [vmem:[#allocation2 + $0xee] sm:$0xff]
        %v699 = vld [vmem:[#allocation2 + $0xf6] sm:$0xff]
        %v700 = vld [vmem:[#allocation2 + $0x10e] sm:$0xff]
        %v701 = vld [vmem:[#allocation2 + $0x116] sm:$0xff]
        %v702 = vld [vmem:[#allocation2 + $0x12e] sm:$0xff]
        %v703 = vld [vmem:[#allocation2 + $0x136] sm:$0xff]
        %v704 = vld [vmem:[#allocation2 + $0x14e] sm:$0xff]
        %v705 = vld [vmem:[#allocation2 + $0x156] sm:$0xff]
        %v706 = vld [vmem:[#allocation2 + $0x16e] sm:$0xff]
        %v707 = vld [vmem:[#allocation2 + $0x176] sm:$0xff]
        %v708 = vld [vmem:[#allocation2 + $0x18e] sm:$0xff]
        %v709 = vld [vmem:[#allocation2 + $0x196] sm:$0xff]
        %v710 = vld [vmem:[#allocation2 + $0x1ae] sm:$0xff]
        %v711 = vld [vmem:[#allocation2 + $0x1b6] sm:$0xff]
        %v712 = vld [vmem:[#allocation2 + $0x1ce] sm:$0xff]
        %v713 = vld [vmem:[#allocation2 + $0x1d6] sm:$0xff]
        %v714 = vld [vmem:[#allocation2 + $0x1ee] sm:$0xff]
        %v715 = vld [vmem:[#allocation2 + $0x1f6] sm:$0xff]
        %v716 = vld [vmem:[%s587] sm:$0xff]
        %v717 = vld [vmem:[%s587 + $0x8] sm:$0xff]
        %v718 = vld [vmem:[%s587 + $0x20] sm:$0xff]
        %v719 = vld [vmem:[%s587 + $0x28] sm:$0xff]
        %v720 = vld [vmem:[%s587 + $0x40] sm:$0xff]
        %v721 = vld [vmem:[%s587 + $0x48] sm:$0xff]
        %v722 = vld [vmem:[%s587 + $0x60] sm:$0xff]
        %v723 = vld [vmem:[%s587 + $0x68] sm:$0xff]
        %v724 = vld [vmem:[%s587 + $0x80] sm:$0xff]
        %v725 = vld [vmem:[%s587 + $0x88] sm:$0xff]
        %v726 = vld [vmem:[%s587 + $0xa0] sm:$0xff]
        %v727 = vld [vmem:[%s587 + $0xa8] sm:$0xff]
        %v728 = vld [vmem:[%s587 + $0xc0] sm:$0xff]
        %v729 = vld [vmem:[%s587 + $0xc8] sm:$0xff]
        %v730 = vld [vmem:[%s587 + $0xe0] sm:$0xff]
        %v731 = vld [vmem:[%s587 + $0xe8] sm:$0xff]
        %v732 = vld [vmem:[%s587 + $0x100] sm:$0xff]
        %v733 = vld [vmem:[%s587 + $0x108] sm:$0xff]
        %v734 = vld [vmem:[%s587 + $0x120] sm:$0xff]
        %v735 = vld [vmem:[%s587 + $0x128] sm:$0xff]
        %v736 = vld [vmem:[%s587 + $0x140] sm:$0xff]
        %v737 = vld [vmem:[%s587 + $0x148] sm:$0xff]
        %v738 = vld [vmem:[%s587 + $0x160] sm:$0xff]
        %v739 = vld [vmem:[%s587 + $0x168] sm:$0xff]
        %v740 = vld [vmem:[%s587 + $0x180] sm:$0xff]
        %v741 = vld [vmem:[%s587 + $0x188] sm:$0xff]
        %v742 = vld [vmem:[%s587 + $0x1a0] sm:$0xff]
        %v743 = vld [vmem:[%s587 + $0x1a8] sm:$0xff]
        %v744 = vld [vmem:[%s587 + $0x1c0] sm:$0xff]
        %v745 = vld [vmem:[%s587 + $0x1c8] sm:$0xff]
        %v746 = vld [vmem:[%s587 + $0x1e0] sm:$0xff]
        %v747 = vld [vmem:[%s587 + $0x1e8] sm:$0xff]
        %v748 = vld [vmem:[%s587 + $0x7] sm:$0xff]
        %v749 = vld [vmem:[%s587 + $0xf] sm:$0xff]
        %v750 = vld [vmem:[%s587 + $0x27] sm:$0xff]
        %v751 = vld [vmem:[%s587 + $0x2f] sm:$0xff]
        %v752 = vld [vmem:[%s587 + $0x47] sm:$0xff]
        %v753 = vld [vmem:[%s587 + $0x4f] sm:$0xff]
        %v754 = vld [vmem:[%s587 + $0x67] sm:$0xff]
        %v755 = vld [vmem:[%s587 + $0x6f] sm:$0xff]
        %v756 = vld [vmem:[%s587 + $0x87] sm:$0xff]
        %v757 = vld [vmem:[%s587 + $0x8f] sm:$0xff]
        %v758 = vld [vmem:[%s587 + $0xa7] sm:$0xff]
        %v759 = vld [vmem:[%s587 + $0xaf] sm:$0xff]
        %v760 = vld [vmem:[%s587 + $0xc7] sm:$0xff]
        %v761 = vld [vmem:[%s587 + $0xcf] sm:$0xff]
        %v762 = vld [vmem:[%s587 + $0xe7] sm:$0xff]
        %v763 = vld [vmem:[%s587 + $0xef] sm:$0xff]
        %v764 = vld [vmem:[%s587 + $0x107] sm:$0xff]
        %v765 = vld [vmem:[%s587 + $0x10f] sm:$0xff]
        %v766 = vld [vmem:[%s587 + $0x127] sm:$0xff]
        %v767 = vld [vmem:[%s587 + $0x12f] sm:$0xff]
        %v768 = vld [vmem:[%s587 + $0x147] sm:$0xff]
        %v769 = vld [vmem:[%s587 + $0x14f] sm:$0xff]
        %v770 = vld [vmem:[%s587 + $0x167] sm:$0xff]
        %v771 = vld [vmem:[%s587 + $0x16f] sm:$0xff]
        %v772 = vld [vmem:[%s587 + $0x187] sm:$0xff]
        %v773 = vld [vmem:[%s587 + $0x18f] sm:$0xff]
        %v774 = vld [vmem:[%s587 + $0x1a7] sm:$0xff]
        %v775 = vld [vmem:[%s587 + $0x1af] sm:$0xff]
        %v776 = vld [vmem:[%s587 + $0x1c7] sm:$0xff]
        %v777 = vld [vmem:[%s587 + $0x1cf] sm:$0xff]
        %v778 = vld [vmem:[%s587 + $0x1e7] sm:$0xff]
        %v779 = vld [vmem:[%s587 + $0x1ef] sm:$0xff]
        %v780 = vld [vmem:[%s587 + $0xe] sm:$0xff]
        %v781 = vld [vmem:[%s587 + $0x16] sm:$0xff]
        %v782 = vld [vmem:[%s587 + $0x2e] sm:$0xff]
        %v783 = vld [vmem:[%s587 + $0x36] sm:$0xff]
        %v784 = vld [vmem:[%s587 + $0x4e] sm:$0xff]
        %v785 = vld [vmem:[%s587 + $0x56] sm:$0xff]
        %v786 = vld [vmem:[%s587 + $0x6e] sm:$0xff]
        %v787 = vld [vmem:[%s587 + $0x76] sm:$0xff]
        %v788 = vld [vmem:[%s587 + $0x8e] sm:$0xff]
        %v789 = vld [vmem:[%s587 + $0x96] sm:$0xff]
        %v790 = vld [vmem:[%s587 + $0xae] sm:$0xff]
        %v791 = vld [vmem:[%s587 + $0xb6] sm:$0xff]
        %v792 = vld [vmem:[%s587 + $0xce] sm:$0xff]
        %v793 = vld [vmem:[%s587 + $0xd6] sm:$0xff]
        %v794 = vld [vmem:[%s587 + $0xee] sm:$0xff]
        %v795 = vld [vmem:[%s587 + $0xf6] sm:$0xff]
        %v796 = vld [vmem:[%s587 + $0x10e] sm:$0xff]
        %v797 = vld [vmem:[%s587 + $0x116] sm:$0xff]
        %v798 = vld [vmem:[%s587 + $0x12e] sm:$0xff]
        %v799 = vld [vmem:[%s587 + $0x136] sm:$0xff]
        %v800 = vld [vmem:[%s587 + $0x14e] sm:$0xff]
        %v801 = vld [vmem:[%s587 + $0x156] sm:$0xff]
        %v802 = vld [vmem:[%s587 + $0x16e] sm:$0xff]
        %v803 = vld [vmem:[%s587 + $0x176] sm:$0xff]
        %v804 = vld [vmem:[%s587 + $0x18e] sm:$0xff]
        %v805 = vld [vmem:[%s587 + $0x196] sm:$0xff]
        %v806 = vld [vmem:[%s587 + $0x1ae] sm:$0xff]
        %v807 = vld [vmem:[%s587 + $0x1b6] sm:$0xff]
        %v808 = vld [vmem:[%s587 + $0x1ce] sm:$0xff]
        %v809 = vld [vmem:[%s587 + $0x1d6] sm:$0xff]
        %v810 = vld [vmem:[%s587 + $0x1ee] sm:$0xff]
        %v811 = vld [vmem:[%s587 + $0x1f6] sm:$0xff]
        %s812 = scalar_lea.vmem [#allocation2], 448
        %v813 = vld [vmem:[%s812] sm:$0xff]
        %v814 = vld [vmem:[%s812 + $0x8] sm:$0xff]
        %v815 = vld [vmem:[%s812 + $0x20] sm:$0xff]
        %v816 = vld [vmem:[%s812 + $0x28] sm:$0xff]
        %v817 = vld [vmem:[%s812 + $0x40] sm:$0xff]
        %v818 = vld [vmem:[%s812 + $0x48] sm:$0xff]
        %v819 = vld [vmem:[%s812 + $0x60] sm:$0xff]
        %v820 = vld [vmem:[%s812 + $0x68] sm:$0xff]
        %v821 = vld [vmem:[%s812 + $0x80] sm:$0xff]
        %v822 = vld [vmem:[%s812 + $0x88] sm:$0xff]
        %v823 = vld [vmem:[%s812 + $0xa0] sm:$0xff]
        %v824 = vld [vmem:[%s812 + $0xa8] sm:$0xff]
        %v825 = vld [vmem:[%s812 + $0xc0] sm:$0xff]
        %v826 = vld [vmem:[%s812 + $0xc8] sm:$0xff]
        %v827 = vld [vmem:[%s812 + $0xe0] sm:$0xff]
        %v828 = vld [vmem:[%s812 + $0xe8] sm:$0xff]
        %v829 = vld [vmem:[%s812 + $0x100] sm:$0xff]
        %v830 = vld [vmem:[%s812 + $0x108] sm:$0xff]
        %v831 = vld [vmem:[%s812 + $0x120] sm:$0xff]
        %v832 = vld [vmem:[%s812 + $0x128] sm:$0xff]
        %v833 = vld [vmem:[%s812 + $0x140] sm:$0xff]
        %v834 = vld [vmem:[%s812 + $0x148] sm:$0xff]
        %v835 = vld [vmem:[%s812 + $0x160] sm:$0xff]
        %v836 = vld [vmem:[%s812 + $0x168] sm:$0xff]
        %v837 = vld [vmem:[%s812 + $0x180] sm:$0xff]
        %v838 = vld [vmem:[%s812 + $0x188] sm:$0xff]
        %v839 = vld [vmem:[%s812 + $0x1a0] sm:$0xff]
        %v840 = vld [vmem:[%s812 + $0x1a8] sm:$0xff]
        %v841 = vld [vmem:[%s812 + $0x1c0] sm:$0xff]
        %v842 = vld [vmem:[%s812 + $0x1c8] sm:$0xff]
        %v843 = vld [vmem:[%s812 + $0x1e0] sm:$0xff]
        %v844 = vld [vmem:[%s812 + $0x1e8] sm:$0xff]
        %v845 = vld [vmem:[%s812 + $0x7] sm:$0xff]
        %v846 = vld [vmem:[%s812 + $0xf] sm:$0xff]
        %v847 = vld [vmem:[%s812 + $0x27] sm:$0xff]
        %v848 = vld [vmem:[%s812 + $0x2f] sm:$0xff]
        %v849 = vld [vmem:[%s812 + $0x47] sm:$0xff]
        %v850 = vld [vmem:[%s812 + $0x4f] sm:$0xff]
        %v851 = vld [vmem:[%s812 + $0x67] sm:$0xff]
        %v852 = vld [vmem:[%s812 + $0x6f] sm:$0xff]
        %v853 = vld [vmem:[%s812 + $0x87] sm:$0xff]
        %v854 = vld [vmem:[%s812 + $0x8f] sm:$0xff]
        %v855 = vld [vmem:[%s812 + $0xa7] sm:$0xff]
        %v856 = vld [vmem:[%s812 + $0xaf] sm:$0xff]
        %v857 = vld [vmem:[%s812 + $0xc7] sm:$0xff]
        %v858 = vld [vmem:[%s812 + $0xcf] sm:$0xff]
        %v859 = vld [vmem:[%s812 + $0xe7] sm:$0xff]
        %v860 = vld [vmem:[%s812 + $0xef] sm:$0xff]
        %v861 = vld [vmem:[%s812 + $0x107] sm:$0xff]
        %v862 = vld [vmem:[%s812 + $0x10f] sm:$0xff]
        %v863 = vld [vmem:[%s812 + $0x127] sm:$0xff]
        %v864 = vld [vmem:[%s812 + $0x12f] sm:$0xff]
        %v865 = vld [vmem:[%s812 + $0x147] sm:$0xff]
        %v866 = vld [vmem:[%s812 + $0x14f] sm:$0xff]
        %v867 = vld [vmem:[%s812 + $0x167] sm:$0xff]
        %v868 = vld [vmem:[%s812 + $0x16f] sm:$0xff]
        %v869 = vld [vmem:[%s812 + $0x187] sm:$0xff]
        %v870 = vld [vmem:[%s812 + $0x18f] sm:$0xff]
        %v871 = vld [vmem:[%s812 + $0x1a7] sm:$0xff]
        %v872 = vld [vmem:[%s812 + $0x1af] sm:$0xff]
        %v873 = vld [vmem:[%s812 + $0x1c7] sm:$0xff]
        %v874 = vld [vmem:[%s812 + $0x1cf] sm:$0xff]
        %v875 = vld [vmem:[%s812 + $0x1e7] sm:$0xff]
        %v876 = vld [vmem:[%s812 + $0x1ef] sm:$0xff]
        %v877 = vld [vmem:[%s812 + $0xe] sm:$0xff]
        %v878 = vld [vmem:[%s812 + $0x16] sm:$0xff]
        %v879 = vld [vmem:[%s812 + $0x2e] sm:$0xff]
        %v880 = vld [vmem:[%s812 + $0x36] sm:$0xff]
        %v881 = vld [vmem:[%s812 + $0x4e] sm:$0xff]
        %v882 = vld [vmem:[%s812 + $0x56] sm:$0xff]
        %v883 = vld [vmem:[%s812 + $0x6e] sm:$0xff]
        %v884 = vld [vmem:[%s812 + $0x76] sm:$0xff]
        %v885 = vld [vmem:[%s812 + $0x8e] sm:$0xff]
        %v886 = vld [vmem:[%s812 + $0x96] sm:$0xff]
        %v887 = vld [vmem:[%s812 + $0xae] sm:$0xff]
        %v888 = vld [vmem:[%s812 + $0xb6] sm:$0xff]
        %v889 = vld [vmem:[%s812 + $0xce] sm:$0xff]
        %v890 = vld [vmem:[%s812 + $0xd6] sm:$0xff]
        %v891 = vld [vmem:[%s812 + $0xee] sm:$0xff]
        %v892 = vld [vmem:[%s812 + $0xf6] sm:$0xff]
        %v893 = vld [vmem:[%s812 + $0x10e] sm:$0xff]
        %v894 = vld [vmem:[%s812 + $0x116] sm:$0xff]
        %v895 = vld [vmem:[%s812 + $0x12e] sm:$0xff]
        %v896 = vld [vmem:[%s812 + $0x136] sm:$0xff]
        %v897 = vld [vmem:[%s812 + $0x14e] sm:$0xff]
        %v898 = vld [vmem:[%s812 + $0x156] sm:$0xff]
        %v899 = vld [vmem:[%s812 + $0x16e] sm:$0xff]
        %v900 = vld [vmem:[%s812 + $0x176] sm:$0xff]
        %v901 = vld [vmem:[%s812 + $0x18e] sm:$0xff]
        %v902 = vld [vmem:[%s812 + $0x196] sm:$0xff]
        %v903 = vld [vmem:[%s812 + $0x1ae] sm:$0xff]
        %v904 = vld [vmem:[%s812 + $0x1b6] sm:$0xff]
        %v905 = vld [vmem:[%s812 + $0x1ce] sm:$0xff]
        %v906 = vld [vmem:[%s812 + $0x1d6] sm:$0xff]
        %v907 = vld [vmem:[%s812 + $0x1ee] sm:$0xff]
        %v908 = vld [vmem:[%s812 + $0x1f6] sm:$0xff]
        %941 = vrot.lane.b32.xlu0 %v652, 4
        %v942 = vpop.permute.xlu0 %941
        %943 = vrot.lane.b32.xlu0 %v653, 4
        %v944 = vpop.permute.xlu0 %943
        %945 = vrot.lane.b32.xlu0 %v654, 4
        %v946 = vpop.permute.xlu0 %945
        %947 = vrot.lane.b32.xlu0 %v655, 4
        %v948 = vpop.permute.xlu0 %947
        %949 = vrot.lane.b32.xlu0 %v656, 4
        %v950 = vpop.permute.xlu0 %949
        %951 = vrot.lane.b32.xlu0 %v657, 4
        %v952 = vpop.permute.xlu0 %951
        %953 = vrot.lane.b32.xlu0 %v658, 4
        %v954 = vpop.permute.xlu0 %953
        %955 = vrot.lane.b32.xlu0 %v659, 4
        %v956 = vpop.permute.xlu0 %955
        %957 = vrot.lane.b32.xlu0 %v660, 4
        %v958 = vpop.permute.xlu0 %957
        %959 = vrot.lane.b32.xlu0 %v661, 4
        %v960 = vpop.permute.xlu0 %959
        %961 = vrot.lane.b32.xlu0 %v662, 4
        %v962 = vpop.permute.xlu0 %961
        %963 = vrot.lane.b32.xlu0 %v663, 4
        %v964 = vpop.permute.xlu0 %963
        %965 = vrot.lane.b32.xlu0 %v664, 4
        %v966 = vpop.permute.xlu0 %965
        %967 = vrot.lane.b32.xlu0 %v665, 4
        %v968 = vpop.permute.xlu0 %967
        %969 = vrot.lane.b32.xlu0 %v666, 4
        %v970 = vpop.permute.xlu0 %969
        %971 = vrot.lane.b32.xlu0 %v667, 4
        %v972 = vpop.permute.xlu0 %971
        %973 = vrot.lane.b32.xlu0 %v668, 4
        %v974 = vpop.permute.xlu0 %973
        %975 = vrot.lane.b32.xlu0 %v669, 4
        %v976 = vpop.permute.xlu0 %975
        %977 = vrot.lane.b32.xlu0 %v670, 4
        %v978 = vpop.permute.xlu0 %977
        %979 = vrot.lane.b32.xlu0 %v671, 4
        %v980 = vpop.permute.xlu0 %979
        %981 = vrot.lane.b32.xlu0 %v672, 4
        %v982 = vpop.permute.xlu0 %981
        %983 = vrot.lane.b32.xlu0 %v673, 4
        %v984 = vpop.permute.xlu0 %983
        %985 = vrot.lane.b32.xlu0 %v674, 4
        %v986 = vpop.permute.xlu0 %985
        %987 = vrot.lane.b32.xlu0 %v675, 4
        %v988 = vpop.permute.xlu0 %987
        %989 = vrot.lane.b32.xlu0 %v676, 4
        %v990 = vpop.permute.xlu0 %989
        %991 = vrot.lane.b32.xlu0 %v677, 4
        %v992 = vpop.permute.xlu0 %991
        %993 = vrot.lane.b32.xlu0 %v678, 4
        %v994 = vpop.permute.xlu0 %993
        %995 = vrot.lane.b32.xlu0 %v679, 4
        %v996 = vpop.permute.xlu0 %995
        %997 = vrot.lane.b32.xlu0 %v680, 4
        %v998 = vpop.permute.xlu0 %997
        %999 = vrot.lane.b32.xlu0 %v681, 4
        %v1000 = vpop.permute.xlu0 %999
        %1001 = vrot.lane.b32.xlu0 %v682, 4
        %v1002 = vpop.permute.xlu0 %1001
        %1003 = vrot.lane.b32.xlu0 %v683, 4
        %v1004 = vpop.permute.xlu0 %1003
        %1069 = vrot.lane.b32.xlu0 %v684, 8
        %v1070 = vpop.permute.xlu0 %1069
        %1071 = vrot.lane.b32.xlu0 %v685, 8
        %v1072 = vpop.permute.xlu0 %1071
        %1073 = vrot.lane.b32.xlu0 %v686, 8
        %v1074 = vpop.permute.xlu0 %1073
        %1075 = vrot.lane.b32.xlu0 %v687, 8
        %v1076 = vpop.permute.xlu0 %1075
        %1077 = vrot.lane.b32.xlu0 %v688, 8
        %v1078 = vpop.permute.xlu0 %1077
        %1079 = vrot.lane.b32.xlu0 %v689, 8
        %v1080 = vpop.permute.xlu0 %1079
        %1081 = vrot.lane.b32.xlu0 %v690, 8
        %v1082 = vpop.permute.xlu0 %1081
        %1083 = vrot.lane.b32.xlu0 %v691, 8
        %v1084 = vpop.permute.xlu0 %1083
        %1085 = vrot.lane.b32.xlu0 %v692, 8
        %v1086 = vpop.permute.xlu0 %1085
        %1087 = vrot.lane.b32.xlu0 %v693, 8
        %v1088 = vpop.permute.xlu0 %1087
        %1089 = vrot.lane.b32.xlu0 %v694, 8
        %v1090 = vpop.permute.xlu0 %1089
        %1091 = vrot.lane.b32.xlu0 %v695, 8
        %v1092 = vpop.permute.xlu0 %1091
        %1093 = vrot.lane.b32.xlu0 %v696, 8
        %v1094 = vpop.permute.xlu0 %1093
        %1095 = vrot.lane.b32.xlu0 %v697, 8
        %v1096 = vpop.permute.xlu0 %1095
        %1097 = vrot.lane.b32.xlu0 %v698, 8
        %v1098 = vpop.permute.xlu0 %1097
        %1099 = vrot.lane.b32.xlu0 %v699, 8
        %v1100 = vpop.permute.xlu0 %1099
        %1101 = vrot.lane.b32.xlu0 %v700, 8
        %v1102 = vpop.permute.xlu0 %1101
        %1103 = vrot.lane.b32.xlu0 %v701, 8
        %v1104 = vpop.permute.xlu0 %1103
        %1105 = vrot.lane.b32.xlu0 %v702, 8
        %v1106 = vpop.permute.xlu0 %1105
        %1107 = vrot.lane.b32.xlu0 %v703, 8
        %v1108 = vpop.permute.xlu0 %1107
        %1109 = vrot.lane.b32.xlu0 %v704, 8
        %v1110 = vpop.permute.xlu0 %1109
        %1111 = vrot.lane.b32.xlu0 %v705, 8
        %v1112 = vpop.permute.xlu0 %1111
        %1113 = vrot.lane.b32.xlu0 %v706, 8
        %v1114 = vpop.permute.xlu0 %1113
        %1115 = vrot.lane.b32.xlu0 %v707, 8
        %v1116 = vpop.permute.xlu0 %1115
        %1117 = vrot.lane.b32.xlu0 %v708, 8
        %v1118 = vpop.permute.xlu0 %1117
        %1119 = vrot.lane.b32.xlu0 %v709, 8
        %v1120 = vpop.permute.xlu0 %1119
        %1121 = vrot.lane.b32.xlu0 %v710, 8
        %v1122 = vpop.permute.xlu0 %1121
        %1123 = vrot.lane.b32.xlu0 %v711, 8
        %v1124 = vpop.permute.xlu0 %1123
        %1125 = vrot.lane.b32.xlu0 %v712, 8
        %v1126 = vpop.permute.xlu0 %1125
        %1127 = vrot.lane.b32.xlu0 %v713, 8
        %v1128 = vpop.permute.xlu0 %1127
        %1129 = vrot.lane.b32.xlu0 %v714, 8
        %v1130 = vpop.permute.xlu0 %1129
        %1131 = vrot.lane.b32.xlu0 %v715, 8
        %v1132 = vpop.permute.xlu0 %1131
        %1197 = vrot.lane.b32.xlu0 %v716, 12
        %v1198 = vpop.permute.xlu0 %1197
        %1199 = vrot.lane.b32.xlu0 %v717, 12
        %v1200 = vpop.permute.xlu0 %1199
        %1201 = vrot.lane.b32.xlu0 %v718, 12
        %v1202 = vpop.permute.xlu0 %1201
        %1203 = vrot.lane.b32.xlu0 %v719, 12
        %v1204 = vpop.permute.xlu0 %1203
        %1205 = vrot.lane.b32.xlu0 %v720, 12
        %v1206 = vpop.permute.xlu0 %1205
        %1207 = vrot.lane.b32.xlu0 %v721, 12
        %v1208 = vpop.permute.xlu0 %1207
        %1209 = vrot.lane.b32.xlu0 %v722, 12
        %v1210 = vpop.permute.xlu0 %1209
        %1211 = vrot.lane.b32.xlu0 %v723, 12
        %v1212 = vpop.permute.xlu0 %1211
        %1213 = vrot.lane.b32.xlu0 %v724, 12
        %v1214 = vpop.permute.xlu0 %1213
        %1215 = vrot.lane.b32.xlu0 %v725, 12
        %v1216 = vpop.permute.xlu0 %1215
        %1217 = vrot.lane.b32.xlu0 %v726, 12
        %v1218 = vpop.permute.xlu0 %1217
        %1219 = vrot.lane.b32.xlu0 %v727, 12
        %v1220 = vpop.permute.xlu0 %1219
        %1221 = vrot.lane.b32.xlu0 %v728, 12
        %v1222 = vpop.permute.xlu0 %1221
        %1223 = vrot.lane.b32.xlu0 %v729, 12
        %v1224 = vpop.permute.xlu0 %1223
        %1225 = vrot.lane.b32.xlu0 %v730, 12
        %v1226 = vpop.permute.xlu0 %1225
        %1227 = vrot.lane.b32.xlu0 %v731, 12
        %v1228 = vpop.permute.xlu0 %1227
        %1229 = vrot.lane.b32.xlu0 %v732, 12
        %v1230 = vpop.permute.xlu0 %1229
        %1231 = vrot.lane.b32.xlu0 %v733, 12
        %v1232 = vpop.permute.xlu0 %1231
        %1233 = vrot.lane.b32.xlu0 %v734, 12
        %v1234 = vpop.permute.xlu0 %1233
        %1235 = vrot.lane.b32.xlu0 %v735, 12
        %v1236 = vpop.permute.xlu0 %1235
        %1237 = vrot.lane.b32.xlu0 %v736, 12
        %v1238 = vpop.permute.xlu0 %1237
        %1239 = vrot.lane.b32.xlu0 %v737, 12
        %v1240 = vpop.permute.xlu0 %1239
        %1241 = vrot.lane.b32.xlu0 %v738, 12
        %v1242 = vpop.permute.xlu0 %1241
        %1243 = vrot.lane.b32.xlu0 %v739, 12
        %v1244 = vpop.permute.xlu0 %1243
        %1245 = vrot.lane.b32.xlu0 %v740, 12
        %v1246 = vpop.permute.xlu0 %1245
        %1247 = vrot.lane.b32.xlu0 %v741, 12
        %v1248 = vpop.permute.xlu0 %1247
        %1249 = vrot.lane.b32.xlu0 %v742, 12
        %v1250 = vpop.permute.xlu0 %1249
        %1251 = vrot.lane.b32.xlu0 %v743, 12
        %v1252 = vpop.permute.xlu0 %1251
        %1253 = vrot.lane.b32.xlu0 %v744, 12
        %v1254 = vpop.permute.xlu0 %1253
        %1255 = vrot.lane.b32.xlu0 %v745, 12
        %v1256 = vpop.permute.xlu0 %1255
        %1257 = vrot.lane.b32.xlu0 %v746, 12
        %v1258 = vpop.permute.xlu0 %1257
        %1259 = vrot.lane.b32.xlu0 %v747, 12
        %v1260 = vpop.permute.xlu0 %1259
        %1325 = vrot.lane.b32.xlu0 %v748, 16
        %v1326 = vpop.permute.xlu0 %1325
        %1327 = vrot.lane.b32.xlu0 %v749, 16
        %v1328 = vpop.permute.xlu0 %1327
        %1329 = vrot.lane.b32.xlu0 %v750, 16
        %v1330 = vpop.permute.xlu0 %1329
        %1331 = vrot.lane.b32.xlu0 %v751, 16
        %v1332 = vpop.permute.xlu0 %1331
        %1333 = vrot.lane.b32.xlu0 %v752, 16
        %v1334 = vpop.permute.xlu0 %1333
        %1335 = vrot.lane.b32.xlu0 %v753, 16
        %v1336 = vpop.permute.xlu0 %1335
        %1337 = vrot.lane.b32.xlu0 %v754, 16
        %v1338 = vpop.permute.xlu0 %1337
        %1339 = vrot.lane.b32.xlu0 %v755, 16
        %v1340 = vpop.permute.xlu0 %1339
        %1341 = vrot.lane.b32.xlu0 %v756, 16
        %v1342 = vpop.permute.xlu0 %1341
        %1343 = vrot.lane.b32.xlu0 %v757, 16
        %v1344 = vpop.permute.xlu0 %1343
        %1345 = vrot.lane.b32.xlu0 %v758, 16
        %v1346 = vpop.permute.xlu0 %1345
        %1347 = vrot.lane.b32.xlu0 %v759, 16
        %v1348 = vpop.permute.xlu0 %1347
        %1349 = vrot.lane.b32.xlu0 %v760, 16
        %v1350 = vpop.permute.xlu0 %1349
        %1351 = vrot.lane.b32.xlu0 %v761, 16
        %v1352 = vpop.permute.xlu0 %1351
        %1353 = vrot.lane.b32.xlu0 %v762, 16
        %v1354 = vpop.permute.xlu0 %1353
        %1355 = vrot.lane.b32.xlu0 %v763, 16
        %v1356 = vpop.permute.xlu0 %1355
        %1357 = vrot.lane.b32.xlu0 %v764, 16
        %v1358 = vpop.permute.xlu0 %1357
        %1359 = vrot.lane.b32.xlu0 %v765, 16
        %v1360 = vpop.permute.xlu0 %1359
        %1361 = vrot.lane.b32.xlu0 %v766, 16
        %v1362 = vpop.permute.xlu0 %1361
        %1363 = vrot.lane.b32.xlu0 %v767, 16
        %v1364 = vpop.permute.xlu0 %1363
        %1365 = vrot.lane.b32.xlu0 %v768, 16
        %v1366 = vpop.permute.xlu0 %1365
        %1367 = vrot.lane.b32.xlu0 %v769, 16
        %v1368 = vpop.permute.xlu0 %1367
        %1369 = vrot.lane.b32.xlu0 %v770, 16
        %v1370 = vpop.permute.xlu0 %1369
        %1371 = vrot.lane.b32.xlu0 %v771, 16
        %v1372 = vpop.permute.xlu0 %1371
        %1373 = vrot.lane.b32.xlu0 %v772, 16
        %v1374 = vpop.permute.xlu0 %1373
        %1375 = vrot.lane.b32.xlu0 %v773, 16
        %v1376 = vpop.permute.xlu0 %1375
        %1377 = vrot.lane.b32.xlu0 %v774, 16
        %v1378 = vpop.permute.xlu0 %1377
        %1379 = vrot.lane.b32.xlu0 %v775, 16
        %v1380 = vpop.permute.xlu0 %1379
        %1381 = vrot.lane.b32.xlu0 %v776, 16
        %v1382 = vpop.permute.xlu0 %1381
        %1383 = vrot.lane.b32.xlu0 %v777, 16
        %v1384 = vpop.permute.xlu0 %1383
        %1385 = vrot.lane.b32.xlu0 %v778, 16
        %v1386 = vpop.permute.xlu0 %1385
        %1387 = vrot.lane.b32.xlu0 %v779, 16
        %v1388 = vpop.permute.xlu0 %1387
        %1453 = vrot.lane.b32.xlu0 %v780, 20
        %v1454 = vpop.permute.xlu0 %1453
        %1455 = vrot.lane.b32.xlu0 %v781, 20
        %v1456 = vpop.permute.xlu0 %1455
        %1457 = vrot.lane.b32.xlu0 %v782, 20
        %v1458 = vpop.permute.xlu0 %1457
        %1459 = vrot.lane.b32.xlu0 %v783, 20
        %v1460 = vpop.permute.xlu0 %1459
        %1461 = vrot.lane.b32.xlu0 %v784, 20
        %v1462 = vpop.permute.xlu0 %1461
        %1463 = vrot.lane.b32.xlu0 %v785, 20
        %v1464 = vpop.permute.xlu0 %1463
        %1465 = vrot.lane.b32.xlu0 %v786, 20
        %v1466 = vpop.permute.xlu0 %1465
        %1467 = vrot.lane.b32.xlu0 %v787, 20
        %v1468 = vpop.permute.xlu0 %1467
        %1469 = vrot.lane.b32.xlu0 %v788, 20
        %v1470 = vpop.permute.xlu0 %1469
        %1471 = vrot.lane.b32.xlu0 %v789, 20
        %v1472 = vpop.permute.xlu0 %1471
        %1473 = vrot.lane.b32.xlu0 %v790, 20
        %v1474 = vpop.permute.xlu0 %1473
        %1475 = vrot.lane.b32.xlu0 %v791, 20
        %v1476 = vpop.permute.xlu0 %1475
        %1477 = vrot.lane.b32.xlu0 %v792, 20
        %v1478 = vpop.permute.xlu0 %1477
        %1479 = vrot.lane.b32.xlu0 %v793, 20
        %v1480 = vpop.permute.xlu0 %1479
        %1481 = vrot.lane.b32.xlu0 %v794, 20
        %v1482 = vpop.permute.xlu0 %1481
        %1483 = vrot.lane.b32.xlu0 %v795, 20
        %v1484 = vpop.permute.xlu0 %1483
        %1485 = vrot.lane.b32.xlu0 %v796, 20
        %v1486 = vpop.permute.xlu0 %1485
        %1487 = vrot.lane.b32.xlu0 %v797, 20
        %v1488 = vpop.permute.xlu0 %1487
        %1489 = vrot.lane.b32.xlu0 %v798, 20
        %v1490 = vpop.permute.xlu0 %1489
        %1491 = vrot.lane.b32.xlu0 %v799, 20
        %v1492 = vpop.permute.xlu0 %1491
        %1493 = vrot.lane.b32.xlu0 %v800, 20
        %v1494 = vpop.permute.xlu0 %1493
        %1495 = vrot.lane.b32.xlu0 %v801, 20
        %v1496 = vpop.permute.xlu0 %1495
        %1497 = vrot.lane.b32.xlu0 %v802, 20
        %v1498 = vpop.permute.xlu0 %1497
        %1499 = vrot.lane.b32.xlu0 %v803, 20
        %v1500 = vpop.permute.xlu0 %1499
        %1501 = vrot.lane.b32.xlu0 %v804, 20
        %v1502 = vpop.permute.xlu0 %1501
        %1503 = vrot.lane.b32.xlu0 %v805, 20
        %v1504 = vpop.permute.xlu0 %1503
        %1505 = vrot.lane.b32.xlu0 %v806, 20
        %v1506 = vpop.permute.xlu0 %1505
        %1507 = vrot.lane.b32.xlu0 %v807, 20
        %v1508 = vpop.permute.xlu0 %1507
        %1509 = vrot.lane.b32.xlu0 %v808, 20
        %v1510 = vpop.permute.xlu0 %1509
        %1511 = vrot.lane.b32.xlu0 %v809, 20
        %v1512 = vpop.permute.xlu0 %1511
        %1513 = vrot.lane.b32.xlu0 %v810, 20
        %v1514 = vpop.permute.xlu0 %1513
        %1515 = vrot.lane.b32.xlu0 %v811, 20
        %v1516 = vpop.permute.xlu0 %1515
        %1581 = vrot.lane.b32.xlu0 %v813, 24
        %v1582 = vpop.permute.xlu0 %1581
        %1583 = vrot.lane.b32.xlu0 %v814, 24
        %v1584 = vpop.permute.xlu0 %1583
        %1585 = vrot.lane.b32.xlu0 %v815, 24
        %v1586 = vpop.permute.xlu0 %1585
        %1587 = vrot.lane.b32.xlu0 %v816, 24
        %v1588 = vpop.permute.xlu0 %1587
        %1589 = vrot.lane.b32.xlu0 %v817, 24
        %v1590 = vpop.permute.xlu0 %1589
        %1591 = vrot.lane.b32.xlu0 %v818, 24
        %v1592 = vpop.permute.xlu0 %1591
        %1593 = vrot.lane.b32.xlu0 %v819, 24
        %v1594 = vpop.permute.xlu0 %1593
        %1595 = vrot.lane.b32.xlu0 %v820, 24
        %v1596 = vpop.permute.xlu0 %1595
        %1597 = vrot.lane.b32.xlu0 %v821, 24
        %v1598 = vpop.permute.xlu0 %1597
        %1599 = vrot.lane.b32.xlu0 %v822, 24
        %v1600 = vpop.permute.xlu0 %1599
        %1601 = vrot.lane.b32.xlu0 %v823, 24
        %v1602 = vpop.permute.xlu0 %1601
        %1603 = vrot.lane.b32.xlu0 %v824, 24
        %v1604 = vpop.permute.xlu0 %1603
        %1605 = vrot.lane.b32.xlu0 %v825, 24
        %v1606 = vpop.permute.xlu0 %1605
        %1607 = vrot.lane.b32.xlu0 %v826, 24
        %v1608 = vpop.permute.xlu0 %1607
        %1609 = vrot.lane.b32.xlu0 %v827, 24
        %v1610 = vpop.permute.xlu0 %1609
        %1611 = vrot.lane.b32.xlu0 %v828, 24
        %v1612 = vpop.permute.xlu0 %1611
        %1613 = vrot.lane.b32.xlu0 %v829, 24
        %v1614 = vpop.permute.xlu0 %1613
        %1615 = vrot.lane.b32.xlu0 %v830, 24
        %v1616 = vpop.permute.xlu0 %1615
        %1617 = vrot.lane.b32.xlu0 %v831, 24
        %v1618 = vpop.permute.xlu0 %1617
        %1619 = vrot.lane.b32.xlu0 %v832, 24
        %v1620 = vpop.permute.xlu0 %1619
        %1621 = vrot.lane.b32.xlu0 %v833, 24
        %v1622 = vpop.permute.xlu0 %1621
        %1623 = vrot.lane.b32.xlu0 %v834, 24
        %v1624 = vpop.permute.xlu0 %1623
        %1625 = vrot.lane.b32.xlu0 %v835, 24
        %v1626 = vpop.permute.xlu0 %1625
        %1627 = vrot.lane.b32.xlu0 %v836, 24
        %v1628 = vpop.permute.xlu0 %1627
        %1629 = vrot.lane.b32.xlu0 %v837, 24
        %v1630 = vpop.permute.xlu0 %1629
        %1631 = vrot.lane.b32.xlu0 %v838, 24
        %v1632 = vpop.permute.xlu0 %1631
        %1633 = vrot.lane.b32.xlu0 %v839, 24
        %v1634 = vpop.permute.xlu0 %1633
        %1635 = vrot.lane.b32.xlu0 %v840, 24
        %v1636 = vpop.permute.xlu0 %1635
        %1637 = vrot.lane.b32.xlu0 %v841, 24
        %v1638 = vpop.permute.xlu0 %1637
        %1639 = vrot.lane.b32.xlu0 %v842, 24
        %v1640 = vpop.permute.xlu0 %1639
        %1641 = vrot.lane.b32.xlu0 %v843, 24
        %v1642 = vpop.permute.xlu0 %1641
        %1643 = vrot.lane.b32.xlu0 %v844, 24
        %v1644 = vpop.permute.xlu0 %1643
        %1709 = vrot.lane.b32.xlu0 %v845, 28
        %v1710 = vpop.permute.xlu0 %1709
        %1711 = vrot.lane.b32.xlu0 %v846, 28
        %v1712 = vpop.permute.xlu0 %1711
        %1713 = vrot.lane.b32.xlu0 %v847, 28
        %v1714 = vpop.permute.xlu0 %1713
        %1715 = vrot.lane.b32.xlu0 %v848, 28
        %v1716 = vpop.permute.xlu0 %1715
        %1717 = vrot.lane.b32.xlu0 %v849, 28
        %v1718 = vpop.permute.xlu0 %1717
        %1719 = vrot.lane.b32.xlu0 %v850, 28
        %v1720 = vpop.permute.xlu0 %1719
        %1721 = vrot.lane.b32.xlu0 %v851, 28
        %v1722 = vpop.permute.xlu0 %1721
        %1723 = vrot.lane.b32.xlu0 %v852, 28
        %v1724 = vpop.permute.xlu0 %1723
        %1725 = vrot.lane.b32.xlu0 %v853, 28
        %v1726 = vpop.permute.xlu0 %1725
        %1727 = vrot.lane.b32.xlu0 %v854, 28
        %v1728 = vpop.permute.xlu0 %1727
        %1729 = vrot.lane.b32.xlu0 %v855, 28
        %v1730 = vpop.permute.xlu0 %1729
        %1731 = vrot.lane.b32.xlu0 %v856, 28
        %v1732 = vpop.permute.xlu0 %1731
        %1733 = vrot.lane.b32.xlu0 %v857, 28
        %v1734 = vpop.permute.xlu0 %1733
        %1735 = vrot.lane.b32.xlu0 %v858, 28
        %v1736 = vpop.permute.xlu0 %1735
        %1737 = vrot.lane.b32.xlu0 %v859, 28
        %v1738 = vpop.permute.xlu0 %1737
        %1739 = vrot.lane.b32.xlu0 %v860, 28
        %v1740 = vpop.permute.xlu0 %1739
        %1741 = vrot.lane.b32.xlu0 %v861, 28
        %v1742 = vpop.permute.xlu0 %1741
        %1743 = vrot.lane.b32.xlu0 %v862, 28
        %v1744 = vpop.permute.xlu0 %1743
        %1745 = vrot.lane.b32.xlu0 %v863, 28
        %v1746 = vpop.permute.xlu0 %1745
        %1747 = vrot.lane.b32.xlu0 %v864, 28
        %v1748 = vpop.permute.xlu0 %1747
        %1749 = vrot.lane.b32.xlu0 %v865, 28
        %v1750 = vpop.permute.xlu0 %1749
        %1751 = vrot.lane.b32.xlu0 %v866, 28
        %v1752 = vpop.permute.xlu0 %1751
        %1753 = vrot.lane.b32.xlu0 %v867, 28
        %v1754 = vpop.permute.xlu0 %1753
        %1755 = vrot.lane.b32.xlu0 %v868, 28
        %v1756 = vpop.permute.xlu0 %1755
        %1757 = vrot.lane.b32.xlu0 %v869, 28
        %v1758 = vpop.permute.xlu0 %1757
        %1759 = vrot.lane.b32.xlu0 %v870, 28
        %v1760 = vpop.permute.xlu0 %1759
        %1761 = vrot.lane.b32.xlu0 %v871, 28
        %v1762 = vpop.permute.xlu0 %1761
        %1763 = vrot.lane.b32.xlu0 %v872, 28
        %v1764 = vpop.permute.xlu0 %1763
        %1765 = vrot.lane.b32.xlu0 %v873, 28
        %v1766 = vpop.permute.xlu0 %1765
        %1767 = vrot.lane.b32.xlu0 %v874, 28
        %v1768 = vpop.permute.xlu0 %1767
        %1769 = vrot.lane.b32.xlu0 %v875, 28
        %v1770 = vpop.permute.xlu0 %1769
        %1771 = vrot.lane.b32.xlu0 %v876, 28
        %v1772 = vpop.permute.xlu0 %1771
        %1837 = vrot.lane.b32.xlu0 %v877, 32
        %v1838 = vpop.permute.xlu0 %1837
        %1839 = vrot.lane.b32.xlu0 %v878, 32
        %v1840 = vpop.permute.xlu0 %1839
        %1841 = vrot.lane.b32.xlu0 %v879, 32
        %v1842 = vpop.permute.xlu0 %1841
        %1843 = vrot.lane.b32.xlu0 %v880, 32
        %v1844 = vpop.permute.xlu0 %1843
        %1845 = vrot.lane.b32.xlu0 %v881, 32
        %v1846 = vpop.permute.xlu0 %1845
        %1847 = vrot.lane.b32.xlu0 %v882, 32
        %v1848 = vpop.permute.xlu0 %1847
        %1849 = vrot.lane.b32.xlu0 %v883, 32
        %v1850 = vpop.permute.xlu0 %1849
        %1851 = vrot.lane.b32.xlu0 %v884, 32
        %v1852 = vpop.permute.xlu0 %1851
        %1853 = vrot.lane.b32.xlu0 %v885, 32
        %v1854 = vpop.permute.xlu0 %1853
        %1855 = vrot.lane.b32.xlu0 %v886, 32
        %v1856 = vpop.permute.xlu0 %1855
        %1857 = vrot.lane.b32.xlu0 %v887, 32
        %v1858 = vpop.permute.xlu0 %1857
        %1859 = vrot.lane.b32.xlu0 %v888, 32
        %v1860 = vpop.permute.xlu0 %1859
        %1861 = vrot.lane.b32.xlu0 %v889, 32
        %v1862 = vpop.permute.xlu0 %1861
        %1863 = vrot.lane.b32.xlu0 %v890, 32
        %v1864 = vpop.permute.xlu0 %1863
        %1865 = vrot.lane.b32.xlu0 %v891, 32
        %v1866 = vpop.permute.xlu0 %1865
        %1867 = vrot.lane.b32.xlu0 %v892, 32
        %v1868 = vpop.permute.xlu0 %1867
        %1869 = vrot.lane.b32.xlu0 %v893, 32
        %v1870 = vpop.permute.xlu0 %1869
        %1871 = vrot.lane.b32.xlu0 %v894, 32
        %v1872 = vpop.permute.xlu0 %1871
        %1873 = vrot.lane.b32.xlu0 %v895, 32
        %v1874 = vpop.permute.xlu0 %1873
        %1875 = vrot.lane.b32.xlu0 %v896, 32
        %v1876 = vpop.permute.xlu0 %1875
        %1877 = vrot.lane.b32.xlu0 %v897, 32
        %v1878 = vpop.permute.xlu0 %1877
        %1879 = vrot.lane.b32.xlu0 %v898, 32
        %v1880 = vpop.permute.xlu0 %1879
        %1881 = vrot.lane.b32.xlu0 %v899, 32
        %v1882 = vpop.permute.xlu0 %1881
        %1883 = vrot.lane.b32.xlu0 %v900, 32
        %v1884 = vpop.permute.xlu0 %1883
        %1885 = vrot.lane.b32.xlu0 %v901, 32
        %v1886 = vpop.permute.xlu0 %1885
        %1887 = vrot.lane.b32.xlu0 %v902, 32
        %v1888 = vpop.permute.xlu0 %1887
        %1889 = vrot.lane.b32.xlu0 %v903, 32
        %v1890 = vpop.permute.xlu0 %1889
        %1891 = vrot.lane.b32.xlu0 %v904, 32
        %v1892 = vpop.permute.xlu0 %1891
        %1893 = vrot.lane.b32.xlu0 %v905, 32
        %v1894 = vpop.permute.xlu0 %1893
        %1895 = vrot.lane.b32.xlu0 %v906, 32
        %v1896 = vpop.permute.xlu0 %1895
        %1897 = vrot.lane.b32.xlu0 %v907, 32
        %v1898 = vpop.permute.xlu0 %1897
        %1899 = vrot.lane.b32.xlu0 %v908, 32
        %v1900 = vpop.permute.xlu0 %1899
        %1965 = vrot.lane.b32.xlu0 %v555, 36
        %v1966 = vpop.permute.xlu0 %1965
        %1967 = vrot.lane.b32.xlu0 %v556, 36
        %v1968 = vpop.permute.xlu0 %1967
        %1969 = vrot.lane.b32.xlu0 %v557, 36
        %v1970 = vpop.permute.xlu0 %1969
        %1971 = vrot.lane.b32.xlu0 %v558, 36
        %v1972 = vpop.permute.xlu0 %1971
        %1973 = vrot.lane.b32.xlu0 %v559, 36
        %v1974 = vpop.permute.xlu0 %1973
        %1975 = vrot.lane.b32.xlu0 %v560, 36
        %v1976 = vpop.permute.xlu0 %1975
        %1977 = vrot.lane.b32.xlu0 %v561, 36
        %v1978 = vpop.permute.xlu0 %1977
        %1979 = vrot.lane.b32.xlu0 %v562, 36
        %v1980 = vpop.permute.xlu0 %1979
        %1981 = vrot.lane.b32.xlu0 %v563, 36
        %v1982 = vpop.permute.xlu0 %1981
        %1983 = vrot.lane.b32.xlu0 %v564, 36
        %v1984 = vpop.permute.xlu0 %1983
        %1985 = vrot.lane.b32.xlu0 %v565, 36
        %v1986 = vpop.permute.xlu0 %1985
        %1987 = vrot.lane.b32.xlu0 %v566, 36
        %v1988 = vpop.permute.xlu0 %1987
        %1989 = vrot.lane.b32.xlu0 %v567, 36
        %v1990 = vpop.permute.xlu0 %1989
        %1991 = vrot.lane.b32.xlu0 %v568, 36
        %v1992 = vpop.permute.xlu0 %1991
        %1993 = vrot.lane.b32.xlu0 %v569, 36
        %v1994 = vpop.permute.xlu0 %1993
        %1995 = vrot.lane.b32.xlu0 %v570, 36
        %v1996 = vpop.permute.xlu0 %1995
        %1997 = vrot.lane.b32.xlu0 %v571, 36
        %v1998 = vpop.permute.xlu0 %1997
        %1999 = vrot.lane.b32.xlu0 %v572, 36
        %v2000 = vpop.permute.xlu0 %1999
        %2001 = vrot.lane.b32.xlu0 %v573, 36
        %v2002 = vpop.permute.xlu0 %2001
        %2003 = vrot.lane.b32.xlu0 %v574, 36
        %v2004 = vpop.permute.xlu0 %2003
        %2005 = vrot.lane.b32.xlu0 %v575, 36
        %v2006 = vpop.permute.xlu0 %2005
        %2007 = vrot.lane.b32.xlu0 %v576, 36
        %v2008 = vpop.permute.xlu0 %2007
        %2009 = vrot.lane.b32.xlu0 %v577, 36
        %v2010 = vpop.permute.xlu0 %2009
        %2011 = vrot.lane.b32.xlu0 %v578, 36
        %v2012 = vpop.permute.xlu0 %2011
        %2013 = vrot.lane.b32.xlu0 %v579, 36
        %v2014 = vpop.permute.xlu0 %2013
        %2015 = vrot.lane.b32.xlu0 %v580, 36
        %v2016 = vpop.permute.xlu0 %2015
        %2017 = vrot.lane.b32.xlu0 %v581, 36
        %v2018 = vpop.permute.xlu0 %2017
        %2019 = vrot.lane.b32.xlu0 %v582, 36
        %v2020 = vpop.permute.xlu0 %2019
        %2021 = vrot.lane.b32.xlu0 %v583, 36
        %v2022 = vpop.permute.xlu0 %2021
        %2023 = vrot.lane.b32.xlu0 %v584, 36
        %v2024 = vpop.permute.xlu0 %2023
        %2025 = vrot.lane.b32.xlu0 %v585, 36
        %v2026 = vpop.permute.xlu0 %2025
        %2027 = vrot.lane.b32.xlu0 %v586, 36
        %v2028 = vpop.permute.xlu0 %2027
        %v2061 = vsel %vm217, %v620, %v942
        %v2062 = vsel %vm217, %v621, %v944
        %v2063 = vsel %vm217, %v622, %v946
        %v2064 = vsel %vm217, %v623, %v948
        %v2065 = vsel %vm217, %v624, %v950
        %v2066 = vsel %vm217, %v625, %v952
        %v2067 = vsel %vm217, %v626, %v954
        %v2068 = vsel %vm217, %v627, %v956
        %v2069 = vsel %vm217, %v628, %v958
        %v2070 = vsel %vm217, %v629, %v960
        %v2071 = vsel %vm217, %v630, %v962
        %v2072 = vsel %vm217, %v631, %v964
        %v2073 = vsel %vm217, %v632, %v966
        %v2074 = vsel %vm217, %v633, %v968
        %v2075 = vsel %vm217, %v634, %v970
        %v2076 = vsel %vm217, %v635, %v972
        %v2077 = vsel %vm217, %v636, %v974
        %v2078 = vsel %vm217, %v637, %v976
        %v2079 = vsel %vm217, %v638, %v978
        %v2080 = vsel %vm217, %v639, %v980
        %v2081 = vsel %vm217, %v640, %v982
        %v2082 = vsel %vm217, %v641, %v984
        %v2083 = vsel %vm217, %v642, %v986
        %v2084 = vsel %vm217, %v643, %v988
        %v2085 = vsel %vm217, %v644, %v990
        %v2086 = vsel %vm217, %v645, %v992
        %v2087 = vsel %vm217, %v646, %v994
        %v2088 = vsel %vm217, %v647, %v996
        %v2089 = vsel %vm217, %v648, %v998
        %v2090 = vsel %vm217, %v649, %v1000
        %v2091 = vsel %vm217, %v650, %v1002
        %v2092 = vsel %vm217, %v651, %v1004
        %vm2093 = vcmask 64512
        %v2094 = vsel %vm2093, %v2061, %v1070
        %v2095 = vsel %vm2093, %v2062, %v1072
        %v2096 = vsel %vm2093, %v2063, %v1074
        %v2097 = vsel %vm2093, %v2064, %v1076
        %v2098 = vsel %vm2093, %v2065, %v1078
        %v2099 = vsel %vm2093, %v2066, %v1080
        %v2100 = vsel %vm2093, %v2067, %v1082
        %v2101 = vsel %vm2093, %v2068, %v1084
        %v2102 = vsel %vm2093, %v2069, %v1086
        %v2103 = vsel %vm2093, %v2070, %v1088
        %v2104 = vsel %vm2093, %v2071, %v1090
        %v2105 = vsel %vm2093, %v2072, %v1092
        %v2106 = vsel %vm2093, %v2073, %v1094
        %v2107 = vsel %vm2093, %v2074, %v1096
        %v2108 = vsel %vm2093, %v2075, %v1098
        %v2109 = vsel %vm2093, %v2076, %v1100
        %v2110 = vsel %vm2093, %v2077, %v1102
        %v2111 = vsel %vm2093, %v2078, %v1104
        %v2112 = vsel %vm2093, %v2079, %v1106
        %v2113 = vsel %vm2093, %v2080, %v1108
        %v2114 = vsel %vm2093, %v2081, %v1110
        %v2115 = vsel %vm2093, %v2082, %v1112
        %v2116 = vsel %vm2093, %v2083, %v1114
        %v2117 = vsel %vm2093, %v2084, %v1116
        %v2118 = vsel %vm2093, %v2085, %v1118
        %v2119 = vsel %vm2093, %v2086, %v1120
        %v2120 = vsel %vm2093, %v2087, %v1122
        %v2121 = vsel %vm2093, %v2088, %v1124
        %v2122 = vsel %vm2093, %v2089, %v1126
        %v2123 = vsel %vm2093, %v2090, %v1128
        %v2124 = vsel %vm2093, %v2091, %v1130
        %v2125 = vsel %vm2093, %v2092, %v1132
        %vm2126 = vcmask 97280
        %v2127 = vsel %vm2126, %v2094, %v1198
        %v2128 = vsel %vm2126, %v2095, %v1200
        %v2129 = vsel %vm2126, %v2096, %v1202
        %v2130 = vsel %vm2126, %v2097, %v1204
        %v2131 = vsel %vm2126, %v2098, %v1206
        %v2132 = vsel %vm2126, %v2099, %v1208
        %v2133 = vsel %vm2126, %v2100, %v1210
        %v2134 = vsel %vm2126, %v2101, %v1212
        %v2135 = vsel %vm2126, %v2102, %v1214
        %v2136 = vsel %vm2126, %v2103, %v1216
        %v2137 = vsel %vm2126, %v2104, %v1218
        %v2138 = vsel %vm2126, %v2105, %v1220
        %v2139 = vsel %vm2126, %v2106, %v1222
        %v2140 = vsel %vm2126, %v2107, %v1224
        %v2141 = vsel %vm2126, %v2108, %v1226
        %v2142 = vsel %vm2126, %v2109, %v1228
        %v2143 = vsel %vm2126, %v2110, %v1230
        %v2144 = vsel %vm2126, %v2111, %v1232
        %v2145 = vsel %vm2126, %v2112, %v1234
        %v2146 = vsel %vm2126, %v2113, %v1236
        %v2147 = vsel %vm2126, %v2114, %v1238
        %v2148 = vsel %vm2126, %v2115, %v1240
        %v2149 = vsel %vm2126, %v2116, %v1242
        %v2150 = vsel %vm2126, %v2117, %v1244
        %v2151 = vsel %vm2126, %v2118, %v1246
        %v2152 = vsel %vm2126, %v2119, %v1248
        %v2153 = vsel %vm2126, %v2120, %v1250
        %v2154 = vsel %vm2126, %v2121, %v1252
        %v2155 = vsel %vm2126, %v2122, %v1254
        %v2156 = vsel %vm2126, %v2123, %v1256
        %v2157 = vsel %vm2126, %v2124, %v1258
        %v2158 = vsel %vm2126, %v2125, %v1260
        %vm2159 = vcmask 130048
        %v2160 = vsel %vm2159, %v2127, %v1326
        %v2161 = vsel %vm2159, %v2128, %v1328
        %v2162 = vsel %vm2159, %v2129, %v1330
        %v2163 = vsel %vm2159, %v2130, %v1332
        %v2164 = vsel %vm2159, %v2131, %v1334
        %v2165 = vsel %vm2159, %v2132, %v1336
        %v2166 = vsel %vm2159, %v2133, %v1338
        %v2167 = vsel %vm2159, %v2134, %v1340
        %v2168 = vsel %vm2159, %v2135, %v1342
        %v2169 = vsel %vm2159, %v2136, %v1344
        %v2170 = vsel %vm2159, %v2137, %v1346
        %v2171 = vsel %vm2159, %v2138, %v1348
        %v2172 = vsel %vm2159, %v2139, %v1350
        %v2173 = vsel %vm2159, %v2140, %v1352
        %v2174 = vsel %vm2159, %v2141, %v1354
        %v2175 = vsel %vm2159, %v2142, %v1356
        %v2176 = vsel %vm2159, %v2143, %v1358
        %v2177 = vsel %vm2159, %v2144, %v1360
        %v2178 = vsel %vm2159, %v2145, %v1362
        %v2179 = vsel %vm2159, %v2146, %v1364
        %v2180 = vsel %vm2159, %v2147, %v1366
        %v2181 = vsel %vm2159, %v2148, %v1368
        %v2182 = vsel %vm2159, %v2149, %v1370
        %v2183 = vsel %vm2159, %v2150, %v1372
        %v2184 = vsel %vm2159, %v2151, %v1374
        %v2185 = vsel %vm2159, %v2152, %v1376
        %v2186 = vsel %vm2159, %v2153, %v1378
        %v2187 = vsel %vm2159, %v2154, %v1380
        %v2188 = vsel %vm2159, %v2155, %v1382
        %v2189 = vsel %vm2159, %v2156, %v1384
        %v2190 = vsel %vm2159, %v2157, %v1386
        %v2191 = vsel %vm2159, %v2158, %v1388
        %vm2192 = vcmask 162816
        %v2193 = vsel %vm2192, %v2160, %v1454
        %v2194 = vsel %vm2192, %v2161, %v1456
        %v2195 = vsel %vm2192, %v2162, %v1458
        %v2196 = vsel %vm2192, %v2163, %v1460
        %v2197 = vsel %vm2192, %v2164, %v1462
        %v2198 = vsel %vm2192, %v2165, %v1464
        %v2199 = vsel %vm2192, %v2166, %v1466
        %v2200 = vsel %vm2192, %v2167, %v1468
        %v2201 = vsel %vm2192, %v2168, %v1470
        %v2202 = vsel %vm2192, %v2169, %v1472
        %v2203 = vsel %vm2192, %v2170, %v1474
        %v2204 = vsel %vm2192, %v2171, %v1476
        %v2205 = vsel %vm2192, %v2172, %v1478
        %v2206 = vsel %vm2192, %v2173, %v1480
        %v2207 = vsel %vm2192, %v2174, %v1482
        %v2208 = vsel %vm2192, %v2175, %v1484
        %v2209 = vsel %vm2192, %v2176, %v1486
        %v2210 = vsel %vm2192, %v2177, %v1488
        %v2211 = vsel %vm2192, %v2178, %v1490
        %v2212 = vsel %vm2192, %v2179, %v1492
        %v2213 = vsel %vm2192, %v2180, %v1494
        %v2214 = vsel %vm2192, %v2181, %v1496
        %v2215 = vsel %vm2192, %v2182, %v1498
        %v2216 = vsel %vm2192, %v2183, %v1500
        %v2217 = vsel %vm2192, %v2184, %v1502
        %v2218 = vsel %vm2192, %v2185, %v1504
        %v2219 = vsel %vm2192, %v2186, %v1506
        %v2220 = vsel %vm2192, %v2187, %v1508
        %v2221 = vsel %vm2192, %v2188, %v1510
        %v2222 = vsel %vm2192, %v2189, %v1512
        %v2223 = vsel %vm2192, %v2190, %v1514
        %v2224 = vsel %vm2192, %v2191, %v1516
        %vm2225 = vcmask 195584
        %v2226 = vsel %vm2225, %v2193, %v1582
        %v2227 = vsel %vm2225, %v2194, %v1584
        %v2228 = vsel %vm2225, %v2195, %v1586
        %v2229 = vsel %vm2225, %v2196, %v1588
        %v2230 = vsel %vm2225, %v2197, %v1590
        %v2231 = vsel %vm2225, %v2198, %v1592
        %v2232 = vsel %vm2225, %v2199, %v1594
        %v2233 = vsel %vm2225, %v2200, %v1596
        %v2234 = vsel %vm2225, %v2201, %v1598
        %v2235 = vsel %vm2225, %v2202, %v1600
        %v2236 = vsel %vm2225, %v2203, %v1602
        %v2237 = vsel %vm2225, %v2204, %v1604
        %v2238 = vsel %vm2225, %v2205, %v1606
        %v2239 = vsel %vm2225, %v2206, %v1608
        %v2240 = vsel %vm2225, %v2207, %v1610
        %v2241 = vsel %vm2225, %v2208, %v1612
        %v2242 = vsel %vm2225, %v2209, %v1614
        %v2243 = vsel %vm2225, %v2210, %v1616
        %v2244 = vsel %vm2225, %v2211, %v1618
        %v2245 = vsel %vm2225, %v2212, %v1620
        %v2246 = vsel %vm2225, %v2213, %v1622
        %v2247 = vsel %vm2225, %v2214, %v1624
        %v2248 = vsel %vm2225, %v2215, %v1626
        %v2249 = vsel %vm2225, %v2216, %v1628
        %v2250 = vsel %vm2225, %v2217, %v1630
        %v2251 = vsel %vm2225, %v2218, %v1632
        %v2252 = vsel %vm2225, %v2219, %v1634
        %v2253 = vsel %vm2225, %v2220, %v1636
        %v2254 = vsel %vm2225, %v2221, %v1638
        %v2255 = vsel %vm2225, %v2222, %v1640
        %v2256 = vsel %vm2225, %v2223, %v1642
        %v2257 = vsel %vm2225, %v2224, %v1644
        %vm2258 = vcmask 228352
        %v2259 = vsel %vm2258, %v2226, %v1710
        %v2260 = vsel %vm2258, %v2227, %v1712
        %v2261 = vsel %vm2258, %v2228, %v1714
        %v2262 = vsel %vm2258, %v2229, %v1716
        %v2263 = vsel %vm2258, %v2230, %v1718
        %v2264 = vsel %vm2258, %v2231, %v1720
        %v2265 = vsel %vm2258, %v2232, %v1722
        %v2266 = vsel %vm2258, %v2233, %v1724
        %v2267 = vsel %vm2258, %v2234, %v1726
        %v2268 = vsel %vm2258, %v2235, %v1728
        %v2269 = vsel %vm2258, %v2236, %v1730
        %v2270 = vsel %vm2258, %v2237, %v1732
        %v2271 = vsel %vm2258, %v2238, %v1734
        %v2272 = vsel %vm2258, %v2239, %v1736
        %v2273 = vsel %vm2258, %v2240, %v1738
        %v2274 = vsel %vm2258, %v2241, %v1740
        %v2275 = vsel %vm2258, %v2242, %v1742
        %v2276 = vsel %vm2258, %v2243, %v1744
        %v2277 = vsel %vm2258, %v2244, %v1746
        %v2278 = vsel %vm2258, %v2245, %v1748
        %v2279 = vsel %vm2258, %v2246, %v1750
        %v2280 = vsel %vm2258, %v2247, %v1752
        %v2281 = vsel %vm2258, %v2248, %v1754
        %v2282 = vsel %vm2258, %v2249, %v1756
        %v2283 = vsel %vm2258, %v2250, %v1758
        %v2284 = vsel %vm2258, %v2251, %v1760
        %v2285 = vsel %vm2258, %v2252, %v1762
        %v2286 = vsel %vm2258, %v2253, %v1764
        %v2287 = vsel %vm2258, %v2254, %v1766
        %v2288 = vsel %vm2258, %v2255, %v1768
        %v2289 = vsel %vm2258, %v2256, %v1770
        %v2290 = vsel %vm2258, %v2257, %v1772
        %vm2291 = vcmask 261120
        %v2292 = vsel %vm2291, %v2259, %v1838
        %v2293 = vsel %vm2291, %v2260, %v1840
        %v2294 = vsel %vm2291, %v2261, %v1842
        %v2295 = vsel %vm2291, %v2262, %v1844
        %v2296 = vsel %vm2291, %v2263, %v1846
        %v2297 = vsel %vm2291, %v2264, %v1848
        %v2298 = vsel %vm2291, %v2265, %v1850
        %v2299 = vsel %vm2291, %v2266, %v1852
        %v2300 = vsel %vm2291, %v2267, %v1854
        %v2301 = vsel %vm2291, %v2268, %v1856
        %v2302 = vsel %vm2291, %v2269, %v1858
        %v2303 = vsel %vm2291, %v2270, %v1860
        %v2304 = vsel %vm2291, %v2271, %v1862
        %v2305 = vsel %vm2291, %v2272, %v1864
        %v2306 = vsel %vm2291, %v2273, %v1866
        %v2307 = vsel %vm2291, %v2274, %v1868
        %v2308 = vsel %vm2291, %v2275, %v1870
        %v2309 = vsel %vm2291, %v2276, %v1872
        %v2310 = vsel %vm2291, %v2277, %v1874
        %v2311 = vsel %vm2291, %v2278, %v1876
        %v2312 = vsel %vm2291, %v2279, %v1878
        %v2313 = vsel %vm2291, %v2280, %v1880
        %v2314 = vsel %vm2291, %v2281, %v1882
        %v2315 = vsel %vm2291, %v2282, %v1884
        %v2316 = vsel %vm2291, %v2283, %v1886
        %v2317 = vsel %vm2291, %v2284, %v1888
        %v2318 = vsel %vm2291, %v2285, %v1890
        %v2319 = vsel %vm2291, %v2286, %v1892
        %v2320 = vsel %vm2291, %v2287, %v1894
        %v2321 = vsel %vm2291, %v2288, %v1896
        %v2322 = vsel %vm2291, %v2289, %v1898
        %v2323 = vsel %vm2291, %v2290, %v1900
        %vm2324 = vcmask 293888
        %v2325 = vsel %vm2324, %v2292, %v1966
        %v2326 = vsel %vm2324, %v2293, %v1968
        %v2327 = vsel %vm2324, %v2294, %v1970
        %v2328 = vsel %vm2324, %v2295, %v1972
        %v2329 = vsel %vm2324, %v2296, %v1974
        %v2330 = vsel %vm2324, %v2297, %v1976
        %v2331 = vsel %vm2324, %v2298, %v1978
        %v2332 = vsel %vm2324, %v2299, %v1980
        %v2333 = vsel %vm2324, %v2300, %v1982
        %v2334 = vsel %vm2324, %v2301, %v1984
        %v2335 = vsel %vm2324, %v2302, %v1986
        %v2336 = vsel %vm2324, %v2303, %v1988
        %v2337 = vsel %vm2324, %v2304, %v1990
        %v2338 = vsel %vm2324, %v2305, %v1992
        %v2339 = vsel %vm2324, %v2306, %v1994
        %v2340 = vsel %vm2324, %v2307, %v1996
        %v2341 = vsel %vm2324, %v2308, %v1998
        %v2342 = vsel %vm2324, %v2309, %v2000
        %v2343 = vsel %vm2324, %v2310, %v2002
        %v2344 = vsel %vm2324, %v2311, %v2004
        %v2345 = vsel %vm2324, %v2312, %v2006
        %v2346 = vsel %vm2324, %v2313, %v2008
        %v2347 = vsel %vm2324, %v2314, %v2010
        %v2348 = vsel %vm2324, %v2315, %v2012
        %v2349 = vsel %vm2324, %v2316, %v2014
        %v2350 = vsel %vm2324, %v2317, %v2016
        %v2351 = vsel %vm2324, %v2318, %v2018
        %v2352 = vsel %vm2324, %v2319, %v2020
        %v2353 = vsel %vm2324, %v2320, %v2022
        %v2354 = vsel %vm2324, %v2321, %v2024
        %v2355 = vsel %vm2324, %v2322, %v2026
        %v2356 = vsel %vm2324, %v2323, %v2028
        %v2357 = vpack.c.bf16 %v2326, %v2325
        %v2358 = vpack.c.bf16 %v2328, %v2327
        %v2359 = vpack.c.bf16 %v2330, %v2329
        %v2360 = vpack.c.bf16 %v2332, %v2331
        %v2361 = vpack.c.bf16 %v2334, %v2333
        %v2362 = vpack.c.bf16 %v2336, %v2335
        %v2363 = vpack.c.bf16 %v2338, %v2337
        %v2364 = vpack.c.bf16 %v2340, %v2339
        %v2365 = vpack.c.bf16 %v2342, %v2341
        %v2366 = vpack.c.bf16 %v2344, %v2343
        %v2367 = vpack.c.bf16 %v2346, %v2345
        %v2368 = vpack.c.bf16 %v2348, %v2347
        %v2369 = vpack.c.bf16 %v2350, %v2349
        %v2370 = vpack.c.bf16 %v2352, %v2351
        %v2371 = vpack.c.bf16 %v2354, %v2353
        %v2372 = vpack.c.bf16 %v2356, %v2355
        %v2373 = vld [vmem:[%s2] sm:$0xf]
        %v2374 = vld [vmem:[%s2 + $0x4] sm:$0xf]
        %v2375 = vld [vmem:[%s2 + $0x8] sm:$0xf]
        %v2376 = vld [vmem:[%s2 + $0xc] sm:$0xf]
        %v2377 = vld [vmem:[%s2 + $0x10] sm:$0xf]
        %v2378 = vld [vmem:[%s3] sm:$0x1]
        %v2379 = vlaneseq
        %v2380 = vshrl.u32 %v2379, 7
        %v2381 = vsub.s32 0, %v2380
        %v2382 = vrot.slane %v2378, %v2381
        %v2388 = vunpack.c.l.b16 %v2373
        %v2389 = vunpack.c.l.b16 %v2374
        %v2390 = vunpack.c.l.b16 %v2375
        %v2391 = vunpack.c.l.b16 %v2376
        %v2392 = vunpack.c.l.b16 %v2377
        %v2393 = vpack.c.b16 %v2389, %v2388
        %v2394 = vpack.c.b16 %v2391, %v2390
        %v2395 = vpack.c.b16 %v2392, %v2392
        %vm2398 = vcmask 326656
        %v2400 = vsel %vm2398, %v2357, 0
        %v2403 = vsel %vm2398, %v2358, 0
        %v2406 = vsel %vm2398, %v2359, 0
        %v2409 = vsel %vm2398, %v2360, 0
        %v2412 = vsel %vm2398, %v2361, 0
        %v2415 = vsel %vm2398, %v2362, 0
        %v2418 = vsel %vm2398, %v2363, 0
        %v2421 = vsel %vm2398, %v2364, 0
        %v2424 = vsel %vm2398, %v2365, 0
        %v2427 = vsel %vm2398, %v2366, 0
        %v2430 = vsel %vm2398, %v2367, 0
        %v2433 = vsel %vm2398, %v2368, 0
        %v2436 = vsel %vm2398, %v2369, 0
        %v2439 = vsel %vm2398, %v2370, 0
        %v2442 = vsel %vm2398, %v2371, 0
        %v2445 = vsel %vm2398, %v2372, 0
        %vm2447 = vcmask 1043456
        %v2449 = vsel %vm2447, %v2395, 0
        %2451 = vmatprep.subr.bf16.mxu0 0
        %2452 = vmatpush1.bf16.msra.mxu0 0
        %2453 = vmatprep.subr.bf16.mxu0 0
        %2454 = vmatpush1.bf16.msra.mxu0 0
        %2455 = vmatprep.subr.bf16.mxu0 0
        %2456 = vmatpush1.bf16.msra.mxu0 0
        %2457 = vmatprep.subr.bf16.mxu0 0
        %2458 = vmatpush1.bf16.msra.mxu0 0
        %2459 = vmatprep.subr.bf16.mxu0 0
        %2460 = vmatpush1.bf16.msra.mxu0 0
        %2461 = vmatprep.subr.bf16.mxu0 0
        %2462 = vmatpush1.bf16.msra.mxu0 %v2449
        %2463 = vmatprep.subr.bf16.mxu0 0
        %2464 = vmatpush1.bf16.msra.mxu0 %v2394
        %2465 = vmatprep.subr.bf16.mxu0 0
        %2466 = vmatpush1.bf16.msra.mxu0 %v2393
        %2467 = vmatprep.subr.bf16.mxu0 0
        %2468 = vmatpush2.bf16.msra.mxu0 0
        %2469 = vmatprep.subr.bf16.mxu0 0
        %2470 = vmatpush2.bf16.msra.mxu0 0
        %2471 = vmatprep.subr.bf16.mxu0 0
        %2472 = vmatpush2.bf16.msra.mxu0 0
        %2473 = vmatprep.subr.bf16.mxu0 0
        %2474 = vmatpush2.bf16.msra.mxu0 0
        %2475 = vmatprep.subr.bf16.mxu0 0
        %2476 = vmatpush2.bf16.msra.mxu0 0
        %2477 = vmatprep.subr.bf16.mxu0 0
        %2478 = vmatpush2.bf16.msra.mxu0 0
        %2479 = vmatprep.subr.bf16.mxu0 0
        %2480 = vmatpush2.bf16.msra.mxu0 0
        %2481 = vmatprep.subr.bf16.mxu0 0
        %2482 = vmatpush2.bf16.msra.mxu0 0
        %2483 = vmatprep.mubr.bf16.mxu0 0
        %2484 = vmatmul.mubr.bf16.gmra.mxu0 %v2400
        %v2485 = vpop.f32.mrf.mxu0
        %v2486 = vadd.f32 %v2382, %v2485
        %v2487 = vpop.f32.mrf.mxu0
        %v2488 = vpop.f32.mrf.mxu0
        %v2489 = vadd.f32 %v2382, %v2488
        %v2490 = vpop.f32.mrf.mxu0
        %2491 = vmatprep.mubr.bf16.mxu0 0
        %2492 = vmatmul.mubr.bf16.gmra.mxu0 %v2403
        %v2493 = vpop.f32.mrf.mxu0
        %v2494 = vadd.f32 %v2382, %v2493
        %v2495 = vpop.f32.mrf.mxu0
        %v2496 = vpop.f32.mrf.mxu0
        %v2497 = vadd.f32 %v2382, %v2496
        %v2498 = vpop.f32.mrf.mxu0
        %2499 = vmatprep.mubr.bf16.mxu0 0
        %2500 = vmatmul.mubr.bf16.gmra.mxu0 %v2406
        %v2501 = vpop.f32.mrf.mxu0
        %v2502 = vadd.f32 %v2382, %v2501
        %v2503 = vpop.f32.mrf.mxu0
        %v2504 = vpop.f32.mrf.mxu0
        %v2505 = vadd.f32 %v2382, %v2504
        %v2506 = vpop.f32.mrf.mxu0
        %2507 = vmatprep.mubr.bf16.mxu0 0
        %2508 = vmatmul.mubr.bf16.gmra.mxu0 %v2409
        %v2509 = vpop.f32.mrf.mxu0
        %v2510 = vadd.f32 %v2382, %v2509
        %v2511 = vpop.f32.mrf.mxu0
        %v2512 = vpop.f32.mrf.mxu0
        %v2513 = vadd.f32 %v2382, %v2512
        %v2514 = vpop.f32.mrf.mxu0
        %2515 = vmatprep.mubr.bf16.mxu0 0
        %2516 = vmatmul.mubr.bf16.gmra.mxu0 %v2412
        %v2517 = vpop.f32.mrf.mxu0
        %v2518 = vadd.f32 %v2382, %v2517
        %v2519 = vpop.f32.mrf.mxu0
        %v2520 = vpop.f32.mrf.mxu0
        %v2521 = vadd.f32 %v2382, %v2520
        %v2522 = vpop.f32.mrf.mxu0
        %2523 = vmatprep.mubr.bf16.mxu0 0
        %2524 = vmatmul.mubr.bf16.gmra.mxu0 %v2415
        %v2525 = vpop.f32.mrf.mxu0
        %v2526 = vadd.f32 %v2382, %v2525
        %v2527 = vpop.f32.mrf.mxu0
        %v2528 = vpop.f32.mrf.mxu0
        %v2529 = vadd.f32 %v2382, %v2528
        %v2530 = vpop.f32.mrf.mxu0
        %2531 = vmatprep.mubr.bf16.mxu0 0
        %2532 = vmatmul.mubr.bf16.gmra.mxu0 %v2418
        %v2533 = vpop.f32.mrf.mxu0
        %v2534 = vadd.f32 %v2382, %v2533
        %v2535 = vpop.f32.mrf.mxu0
        %v2536 = vpop.f32.mrf.mxu0
        %v2537 = vadd.f32 %v2382, %v2536
        %v2538 = vpop.f32.mrf.mxu0
        %2539 = vmatprep.mubr.bf16.mxu0 0
        %2540 = vmatmul.mubr.bf16.gmra.mxu0 %v2421
        %v2541 = vpop.f32.mrf.mxu0
        %v2542 = vadd.f32 %v2382, %v2541
        %v2543 = vpop.f32.mrf.mxu0
        %v2544 = vpop.f32.mrf.mxu0
        %v2545 = vadd.f32 %v2382, %v2544
        %v2546 = vpop.f32.mrf.mxu0
        %2547 = vmatprep.mubr.bf16.mxu0 0
        %2548 = vmatmul.mubr.bf16.gmra.mxu0 %v2424
        %v2549 = vpop.f32.mrf.mxu0
        %v2550 = vadd.f32 %v2382, %v2549
        %v2551 = vpop.f32.mrf.mxu0
        %v2552 = vpop.f32.mrf.mxu0
        %v2553 = vadd.f32 %v2382, %v2552
        %v2554 = vpop.f32.mrf.mxu0
        %2555 = vmatprep.mubr.bf16.mxu0 0
        %2556 = vmatmul.mubr.bf16.gmra.mxu0 %v2427
        %v2557 = vpop.f32.mrf.mxu0
        %v2558 = vadd.f32 %v2382, %v2557
        %v2559 = vpop.f32.mrf.mxu0
        %v2560 = vpop.f32.mrf.mxu0
        %v2561 = vadd.f32 %v2382, %v2560
        %v2562 = vpop.f32.mrf.mxu0
        %2563 = vmatprep.mubr.bf16.mxu0 0
        %2564 = vmatmul.mubr.bf16.gmra.mxu0 %v2430
        %v2565 = vpop.f32.mrf.mxu0
        %v2566 = vadd.f32 %v2382, %v2565
        %v2567 = vpop.f32.mrf.mxu0
        %v2568 = vpop.f32.mrf.mxu0
        %v2569 = vadd.f32 %v2382, %v2568
        %v2570 = vpop.f32.mrf.mxu0
        %2571 = vmatprep.mubr.bf16.mxu0 0
        %2572 = vmatmul.mubr.bf16.gmra.mxu0 %v2433
        %v2573 = vpop.f32.mrf.mxu0
        %v2574 = vadd.f32 %v2382, %v2573
        %v2575 = vpop.f32.mrf.mxu0
        %v2576 = vpop.f32.mrf.mxu0
        %v2577 = vadd.f32 %v2382, %v2576
        %v2578 = vpop.f32.mrf.mxu0
        %2579 = vmatprep.mubr.bf16.mxu0 0
        %2580 = vmatmul.mubr.bf16.gmra.mxu0 %v2436
        %v2581 = vpop.f32.mrf.mxu0
        %v2582 = vadd.f32 %v2382, %v2581
        %v2583 = vpop.f32.mrf.mxu0
        %v2584 = vpop.f32.mrf.mxu0
        %v2585 = vadd.f32 %v2382, %v2584
        %v2586 = vpop.f32.mrf.mxu0
        %2587 = vmatprep.mubr.bf16.mxu0 0
        %2588 = vmatmul.mubr.bf16.gmra.mxu0 %v2439
        %v2589 = vpop.f32.mrf.mxu0
        %v2590 = vadd.f32 %v2382, %v2589
        %v2591 = vpop.f32.mrf.mxu0
        %v2592 = vpop.f32.mrf.mxu0
        %v2593 = vadd.f32 %v2382, %v2592
        %v2594 = vpop.f32.mrf.mxu0
        %2595 = vmatprep.mubr.bf16.mxu0 0
        %2596 = vmatmul.mubr.bf16.gmra.mxu0 %v2442
        %v2597 = vpop.f32.mrf.mxu0
        %v2598 = vadd.f32 %v2382, %v2597
        %v2599 = vpop.f32.mrf.mxu0
        %v2600 = vpop.f32.mrf.mxu0
        %v2601 = vadd.f32 %v2382, %v2600
        %v2602 = vpop.f32.mrf.mxu0
        %2603 = vmatprep.mubr.bf16.mxu0 0
        %2604 = vmatmul.mubr.bf16.gmra.mxu0 %v2445
        %v2605 = vpop.f32.mrf.mxu0
        %v2606 = vadd.f32 %v2382, %v2605
        %v2607 = vpop.f32.mrf.mxu0
        %v2608 = vpop.f32.mrf.mxu0
        %v2609 = vadd.f32 %v2382, %v2608
        %v2610 = vpop.f32.mrf.mxu0
        %2611 = vdwg.mxu0
        %v2612 = vmax.f32 %v2486, 0.0
        %v2613 = vmax.f32 %v2489, 0.0
        %v2614 = vmax.f32 %v2494, 0.0
        %v2615 = vmax.f32 %v2497, 0.0
        %v2616 = vmax.f32 %v2502, 0.0
        %v2617 = vmax.f32 %v2505, 0.0
        %v2618 = vmax.f32 %v2510, 0.0
        %v2619 = vmax.f32 %v2513, 0.0
        %v2620 = vmax.f32 %v2518, 0.0
        %v2621 = vmax.f32 %v2521, 0.0
        %v2622 = vmax.f32 %v2526, 0.0
        %v2623 = vmax.f32 %v2529, 0.0
        %v2624 = vmax.f32 %v2534, 0.0
        %v2625 = vmax.f32 %v2537, 0.0
        %v2626 = vmax.f32 %v2542, 0.0
        %v2627 = vmax.f32 %v2545, 0.0
        %v2628 = vmax.f32 %v2550, 0.0
        %v2629 = vmax.f32 %v2553, 0.0
        %v2630 = vmax.f32 %v2558, 0.0
        %v2631 = vmax.f32 %v2561, 0.0
        %v2632 = vmax.f32 %v2566, 0.0
        %v2633 = vmax.f32 %v2569, 0.0
        %v2634 = vmax.f32 %v2574, 0.0
        %v2635 = vmax.f32 %v2577, 0.0
        %v2636 = vmax.f32 %v2582, 0.0
        %v2637 = vmax.f32 %v2585, 0.0
        %v2638 = vmax.f32 %v2590, 0.0
        %v2639 = vmax.f32 %v2593, 0.0
        %v2640 = vmax.f32 %v2598, 0.0
        %v2641 = vmax.f32 %v2601, 0.0
        %v2642 = vmax.f32 %v2606, 0.0
        %v2643 = vmax.f32 %v2609, 0.0
        %s2644 = scalar_lea.vmem [#allocation3], 224
        %2645 = vst.msk [vmem:[%s2644 + $0x7] sm:$0xff] %vm217, %v2612
        %2646 = vst.msk [vmem:[%s2644 + $0xf] sm:$0xff] %vm217, %v2613
        %2647 = vst.msk [vmem:[%s2644 + $0x27] sm:$0xff] %vm217, %v2614
        %2648 = vst.msk [vmem:[%s2644 + $0x2f] sm:$0xff] %vm217, %v2615
        %2649 = vst.msk [vmem:[%s2644 + $0x47] sm:$0xff] %vm217, %v2616
        %2650 = vst.msk [vmem:[%s2644 + $0x4f] sm:$0xff] %vm217, %v2617
        %2651 = vst.msk [vmem:[%s2644 + $0x67] sm:$0xff] %vm217, %v2618
        %2652 = vst.msk [vmem:[%s2644 + $0x6f] sm:$0xff] %vm217, %v2619
        %2653 = vst.msk [vmem:[%s2644 + $0x87] sm:$0xff] %vm217, %v2620
        %2654 = vst.msk [vmem:[%s2644 + $0x8f] sm:$0xff] %vm217, %v2621
        %2655 = vst.msk [vmem:[%s2644 + $0xa7] sm:$0xff] %vm217, %v2622
        %2656 = vst.msk [vmem:[%s2644 + $0xaf] sm:$0xff] %vm217, %v2623
        %2657 = vst.msk [vmem:[%s2644 + $0xc7] sm:$0xff] %vm217, %v2624
        %2658 = vst.msk [vmem:[%s2644 + $0xcf] sm:$0xff] %vm217, %v2625
        %2659 = vst.msk [vmem:[%s2644 + $0xe7] sm:$0xff] %vm217, %v2626
        %2660 = vst.msk [vmem:[%s2644 + $0xef] sm:$0xff] %vm217, %v2627
        %2661 = vst.msk [vmem:[%s2644 + $0x107] sm:$0xff] %vm217, %v2628
        %2662 = vst.msk [vmem:[%s2644 + $0x10f] sm:$0xff] %vm217, %v2629
        %2663 = vst.msk [vmem:[%s2644 + $0x127] sm:$0xff] %vm217, %v2630
        %2664 = vst.msk [vmem:[%s2644 + $0x12f] sm:$0xff] %vm217, %v2631
        %2665 = vst.msk [vmem:[%s2644 + $0x147] sm:$0xff] %vm217, %v2632
        %2666 = vst.msk [vmem:[%s2644 + $0x14f] sm:$0xff] %vm217, %v2633
        %2667 = vst.msk [vmem:[%s2644 + $0x167] sm:$0xff] %vm217, %v2634
        %2668 = vst.msk [vmem:[%s2644 + $0x16f] sm:$0xff] %vm217, %v2635
        %2669 = vst.msk [vmem:[%s2644 + $0x187] sm:$0xff] %vm217, %v2636
        %2670 = vst.msk [vmem:[%s2644 + $0x18f] sm:$0xff] %vm217, %v2637
        %2671 = vst.msk [vmem:[%s2644 + $0x1a7] sm:$0xff] %vm217, %v2638
        %2672 = vst.msk [vmem:[%s2644 + $0x1af] sm:$0xff] %vm217, %v2639
        %2673 = vst.msk [vmem:[%s2644 + $0x1c7] sm:$0xff] %vm217, %v2640
        %2674 = vst.msk [vmem:[%s2644 + $0x1cf] sm:$0xff] %vm217, %v2641
        %2675 = vst.msk [vmem:[%s2644 + $0x1e7] sm:$0xff] %vm217, %v2642
        %2676 = vst.msk [vmem:[%s2644 + $0x1ef] sm:$0xff] %vm217, %v2643
        %s2677 = scalar_lea.vmem [#allocation3], 64
        %v2678 = vld [vmem:[%s2677 + $0x2] sm:$0xff]
        %v2679 = vld [vmem:[%s2677 + $0xa] sm:$0xff]
        %v2680 = vld [vmem:[%s2677 + $0x22] sm:$0xff]
        %v2681 = vld [vmem:[%s2677 + $0x2a] sm:$0xff]
        %v2682 = vld [vmem:[%s2677 + $0x42] sm:$0xff]
        %v2683 = vld [vmem:[%s2677 + $0x4a] sm:$0xff]
        %v2684 = vld [vmem:[%s2677 + $0x62] sm:$0xff]
        %v2685 = vld [vmem:[%s2677 + $0x6a] sm:$0xff]
        %v2686 = vld [vmem:[%s2677 + $0x82] sm:$0xff]
        %v2687 = vld [vmem:[%s2677 + $0x8a] sm:$0xff]
        %v2688 = vld [vmem:[%s2677 + $0xa2] sm:$0xff]
        %v2689 = vld [vmem:[%s2677 + $0xaa] sm:$0xff]
        %v2690 = vld [vmem:[%s2677 + $0xc2] sm:$0xff]
        %v2691 = vld [vmem:[%s2677 + $0xca] sm:$0xff]
        %v2692 = vld [vmem:[%s2677 + $0xe2] sm:$0xff]
        %v2693 = vld [vmem:[%s2677 + $0xea] sm:$0xff]
        %v2694 = vld [vmem:[%s2677 + $0x102] sm:$0xff]
        %v2695 = vld [vmem:[%s2677 + $0x10a] sm:$0xff]
        %v2696 = vld [vmem:[%s2677 + $0x122] sm:$0xff]
        %v2697 = vld [vmem:[%s2677 + $0x12a] sm:$0xff]
        %v2698 = vld [vmem:[%s2677 + $0x142] sm:$0xff]
        %v2699 = vld [vmem:[%s2677 + $0x14a] sm:$0xff]
        %v2700 = vld [vmem:[%s2677 + $0x162] sm:$0xff]
        %v2701 = vld [vmem:[%s2677 + $0x16a] sm:$0xff]
        %v2702 = vld [vmem:[%s2677 + $0x182] sm:$0xff]
        %v2703 = vld [vmem:[%s2677 + $0x18a] sm:$0xff]
        %v2704 = vld [vmem:[%s2677 + $0x1a2] sm:$0xff]
        %v2705 = vld [vmem:[%s2677 + $0x1aa] sm:$0xff]
        %v2706 = vld [vmem:[%s2677 + $0x1c2] sm:$0xff]
        %v2707 = vld [vmem:[%s2677 + $0x1ca] sm:$0xff]
        %v2708 = vld [vmem:[%s2677 + $0x1e2] sm:$0xff]
        %v2709 = vld [vmem:[%s2677 + $0x1ea] sm:$0xff]
        %v2710 = vld [vmem:[%s2677 + $0x7] sm:$0xff]
        %v2711 = vld [vmem:[%s2677 + $0xf] sm:$0xff]
        %v2712 = vld [vmem:[%s2677 + $0x27] sm:$0xff]
        %v2713 = vld [vmem:[%s2677 + $0x2f] sm:$0xff]
        %v2714 = vld [vmem:[%s2677 + $0x47] sm:$0xff]
        %v2715 = vld [vmem:[%s2677 + $0x4f] sm:$0xff]
        %v2716 = vld [vmem:[%s2677 + $0x67] sm:$0xff]
        %v2717 = vld [vmem:[%s2677 + $0x6f] sm:$0xff]
        %v2718 = vld [vmem:[%s2677 + $0x87] sm:$0xff]
        %v2719 = vld [vmem:[%s2677 + $0x8f] sm:$0xff]
        %v2720 = vld [vmem:[%s2677 + $0xa7] sm:$0xff]
        %v2721 = vld [vmem:[%s2677 + $0xaf] sm:$0xff]
        %v2722 = vld [vmem:[%s2677 + $0xc7] sm:$0xff]
        %v2723 = vld [vmem:[%s2677 + $0xcf] sm:$0xff]
        %v2724 = vld [vmem:[%s2677 + $0xe7] sm:$0xff]
        %v2725 = vld [vmem:[%s2677 + $0xef] sm:$0xff]
        %v2726 = vld [vmem:[%s2677 + $0x107] sm:$0xff]
        %v2727 = vld [vmem:[%s2677 + $0x10f] sm:$0xff]
        %v2728 = vld [vmem:[%s2677 + $0x127] sm:$0xff]
        %v2729 = vld [vmem:[%s2677 + $0x12f] sm:$0xff]
        %v2730 = vld [vmem:[%s2677 + $0x147] sm:$0xff]
        %v2731 = vld [vmem:[%s2677 + $0x14f] sm:$0xff]
        %v2732 = vld [vmem:[%s2677 + $0x167] sm:$0xff]
        %v2733 = vld [vmem:[%s2677 + $0x16f] sm:$0xff]
        %v2734 = vld [vmem:[%s2677 + $0x187] sm:$0xff]
        %v2735 = vld [vmem:[%s2677 + $0x18f] sm:$0xff]
        %v2736 = vld [vmem:[%s2677 + $0x1a7] sm:$0xff]
        %v2737 = vld [vmem:[%s2677 + $0x1af] sm:$0xff]
        %v2738 = vld [vmem:[%s2677 + $0x1c7] sm:$0xff]
        %v2739 = vld [vmem:[%s2677 + $0x1cf] sm:$0xff]
        %v2740 = vld [vmem:[%s2677 + $0x1e7] sm:$0xff]
        %v2741 = vld [vmem:[%s2677 + $0x1ef] sm:$0xff]
        %v2742 = vld [vmem:[%s2677 + $0xc] sm:$0xff]
        %v2743 = vld [vmem:[%s2677 + $0x14] sm:$0xff]
        %v2744 = vld [vmem:[%s2677 + $0x2c] sm:$0xff]
        %v2745 = vld [vmem:[%s2677 + $0x34] sm:$0xff]
        %v2746 = vld [vmem:[%s2677 + $0x4c] sm:$0xff]
        %v2747 = vld [vmem:[%s2677 + $0x54] sm:$0xff]
        %v2748 = vld [vmem:[%s2677 + $0x6c] sm:$0xff]
        %v2749 = vld [vmem:[%s2677 + $0x74] sm:$0xff]
        %v2750 = vld [vmem:[%s2677 + $0x8c] sm:$0xff]
        %v2751 = vld [vmem:[%s2677 + $0x94] sm:$0xff]
        %v2752 = vld [vmem:[%s2677 + $0xac] sm:$0xff]
        %v2753 = vld [vmem:[%s2677 + $0xb4] sm:$0xff]
        %v2754 = vld [vmem:[%s2677 + $0xcc] sm:$0xff]
        %v2755 = vld [vmem:[%s2677 + $0xd4] sm:$0xff]
        %v2756 = vld [vmem:[%s2677 + $0xec] sm:$0xff]
        %v2757 = vld [vmem:[%s2677 + $0xf4] sm:$0xff]
        %v2758 = vld [vmem:[%s2677 + $0x10c] sm:$0xff]
        %v2759 = vld [vmem:[%s2677 + $0x114] sm:$0xff]
        %v2760 = vld [vmem:[%s2677 + $0x12c] sm:$0xff]
        %v2761 = vld [vmem:[%s2677 + $0x134] sm:$0xff]
        %v2762 = vld [vmem:[%s2677 + $0x14c] sm:$0xff]
        %v2763 = vld [vmem:[%s2677 + $0x154] sm:$0xff]
        %v2764 = vld [vmem:[%s2677 + $0x16c] sm:$0xff]
        %v2765 = vld [vmem:[%s2677 + $0x174] sm:$0xff]
        %v2766 = vld [vmem:[%s2677 + $0x18c] sm:$0xff]
        %v2767 = vld [vmem:[%s2677 + $0x194] sm:$0xff]
        %v2768 = vld [vmem:[%s2677 + $0x1ac] sm:$0xff]
        %v2769 = vld [vmem:[%s2677 + $0x1b4] sm:$0xff]
        %v2770 = vld [vmem:[%s2677 + $0x1cc] sm:$0xff]
        %v2771 = vld [vmem:[%s2677 + $0x1d4] sm:$0xff]
        %v2772 = vld [vmem:[%s2677 + $0x1ec] sm:$0xff]
        %v2773 = vld [vmem:[%s2677 + $0x1f4] sm:$0xff]
        %v2774 = vld [vmem:[%s2644 + $0x2] sm:$0xff]
        %v2775 = vld [vmem:[%s2644 + $0xa] sm:$0xff]
        %v2776 = vld [vmem:[%s2644 + $0x22] sm:$0xff]
        %v2777 = vld [vmem:[%s2644 + $0x2a] sm:$0xff]
        %v2778 = vld [vmem:[%s2644 + $0x42] sm:$0xff]
        %v2779 = vld [vmem:[%s2644 + $0x4a] sm:$0xff]
        %v2780 = vld [vmem:[%s2644 + $0x62] sm:$0xff]
        %v2781 = vld [vmem:[%s2644 + $0x6a] sm:$0xff]
        %v2782 = vld [vmem:[%s2644 + $0x82] sm:$0xff]
        %v2783 = vld [vmem:[%s2644 + $0x8a] sm:$0xff]
        %v2784 = vld [vmem:[%s2644 + $0xa2] sm:$0xff]
        %v2785 = vld [vmem:[%s2644 + $0xaa] sm:$0xff]
        %v2786 = vld [vmem:[%s2644 + $0xc2] sm:$0xff]
        %v2787 = vld [vmem:[%s2644 + $0xca] sm:$0xff]
        %v2788 = vld [vmem:[%s2644 + $0xe2] sm:$0xff]
        %v2789 = vld [vmem:[%s2644 + $0xea] sm:$0xff]
        %v2790 = vld [vmem:[%s2644 + $0x102] sm:$0xff]
        %v2791 = vld [vmem:[%s2644 + $0x10a] sm:$0xff]
        %v2792 = vld [vmem:[%s2644 + $0x122] sm:$0xff]
        %v2793 = vld [vmem:[%s2644 + $0x12a] sm:$0xff]
        %v2794 = vld [vmem:[%s2644 + $0x142] sm:$0xff]
        %v2795 = vld [vmem:[%s2644 + $0x14a] sm:$0xff]
        %v2796 = vld [vmem:[%s2644 + $0x162] sm:$0xff]
        %v2797 = vld [vmem:[%s2644 + $0x16a] sm:$0xff]
        %v2798 = vld [vmem:[%s2644 + $0x182] sm:$0xff]
        %v2799 = vld [vmem:[%s2644 + $0x18a] sm:$0xff]
        %v2800 = vld [vmem:[%s2644 + $0x1a2] sm:$0xff]
        %v2801 = vld [vmem:[%s2644 + $0x1aa] sm:$0xff]
        %v2802 = vld [vmem:[%s2644 + $0x1c2] sm:$0xff]
        %v2803 = vld [vmem:[%s2644 + $0x1ca] sm:$0xff]
        %v2804 = vld [vmem:[%s2644 + $0x1e2] sm:$0xff]
        %v2805 = vld [vmem:[%s2644 + $0x1ea] sm:$0xff]
        %v2806 = vld [vmem:[%s2644 + $0x7] sm:$0xff]
        %v2807 = vld [vmem:[%s2644 + $0xf] sm:$0xff]
        %v2808 = vld [vmem:[%s2644 + $0x27] sm:$0xff]
        %v2809 = vld [vmem:[%s2644 + $0x2f] sm:$0xff]
        %v2810 = vld [vmem:[%s2644 + $0x47] sm:$0xff]
        %v2811 = vld [vmem:[%s2644 + $0x4f] sm:$0xff]
        %v2812 = vld [vmem:[%s2644 + $0x67] sm:$0xff]
        %v2813 = vld [vmem:[%s2644 + $0x6f] sm:$0xff]
        %v2814 = vld [vmem:[%s2644 + $0x87] sm:$0xff]
        %v2815 = vld [vmem:[%s2644 + $0x8f] sm:$0xff]
        %v2816 = vld [vmem:[%s2644 + $0xa7] sm:$0xff]
        %v2817 = vld [vmem:[%s2644 + $0xaf] sm:$0xff]
        %v2818 = vld [vmem:[%s2644 + $0xc7] sm:$0xff]
        %v2819 = vld [vmem:[%s2644 + $0xcf] sm:$0xff]
        %v2820 = vld [vmem:[%s2644 + $0xe7] sm:$0xff]
        %v2821 = vld [vmem:[%s2644 + $0xef] sm:$0xff]
        %v2822 = vld [vmem:[%s2644 + $0x107] sm:$0xff]
        %v2823 = vld [vmem:[%s2644 + $0x10f] sm:$0xff]
        %v2824 = vld [vmem:[%s2644 + $0x127] sm:$0xff]
        %v2825 = vld [vmem:[%s2644 + $0x12f] sm:$0xff]
        %v2826 = vld [vmem:[%s2644 + $0x147] sm:$0xff]
        %v2827 = vld [vmem:[%s2644 + $0x14f] sm:$0xff]
        %v2828 = vld [vmem:[%s2644 + $0x167] sm:$0xff]
        %v2829 = vld [vmem:[%s2644 + $0x16f] sm:$0xff]
        %v2830 = vld [vmem:[%s2644 + $0x187] sm:$0xff]
        %v2831 = vld [vmem:[%s2644 + $0x18f] sm:$0xff]
        %v2832 = vld [vmem:[%s2644 + $0x1a7] sm:$0xff]
        %v2833 = vld [vmem:[%s2644 + $0x1af] sm:$0xff]
        %v2834 = vld [vmem:[%s2644 + $0x1c7] sm:$0xff]
        %v2835 = vld [vmem:[%s2644 + $0x1cf] sm:$0xff]
        %v2836 = vld [vmem:[%s2644 + $0x1e7] sm:$0xff]
        %v2837 = vld [vmem:[%s2644 + $0x1ef] sm:$0xff]
        %v2838 = vld [vmem:[%s2644 + $0xc] sm:$0xff]
        %v2839 = vld [vmem:[%s2644 + $0x14] sm:$0xff]
        %v2840 = vld [vmem:[%s2644 + $0x2c] sm:$0xff]
        %v2841 = vld [vmem:[%s2644 + $0x34] sm:$0xff]
        %v2842 = vld [vmem:[%s2644 + $0x4c] sm:$0xff]
        %v2843 = vld [vmem:[%s2644 + $0x54] sm:$0xff]
        %v2844 = vld [vmem:[%s2644 + $0x6c] sm:$0xff]
        %v2845 = vld [vmem:[%s2644 + $0x74] sm:$0xff]
        %v2846 = vld [vmem:[%s2644 + $0x8c] sm:$0xff]
        %v2847 = vld [vmem:[%s2644 + $0x94] sm:$0xff]
        %v2848 = vld [vmem:[%s2644 + $0xac] sm:$0xff]
        %v2849 = vld [vmem:[%s2644 + $0xb4] sm:$0xff]
        %v2850 = vld [vmem:[%s2644 + $0xcc] sm:$0xff]
        %v2851 = vld [vmem:[%s2644 + $0xd4] sm:$0xff]
        %v2852 = vld [vmem:[%s2644 + $0xec] sm:$0xff]
        %v2853 = vld [vmem:[%s2644 + $0xf4] sm:$0xff]
        %v2854 = vld [vmem:[%s2644 + $0x10c] sm:$0xff]
        %v2855 = vld [vmem:[%s2644 + $0x114] sm:$0xff]
        %v2856 = vld [vmem:[%s2644 + $0x12c] sm:$0xff]
        %v2857 = vld [vmem:[%s2644 + $0x134] sm:$0xff]
        %v2858 = vld [vmem:[%s2644 + $0x14c] sm:$0xff]
        %v2859 = vld [vmem:[%s2644 + $0x154] sm:$0xff]
        %v2860 = vld [vmem:[%s2644 + $0x16c] sm:$0xff]
        %v2861 = vld [vmem:[%s2644 + $0x174] sm:$0xff]
        %v2862 = vld [vmem:[%s2644 + $0x18c] sm:$0xff]
        %v2863 = vld [vmem:[%s2644 + $0x194] sm:$0xff]
        %v2864 = vld [vmem:[%s2644 + $0x1ac] sm:$0xff]
        %v2865 = vld [vmem:[%s2644 + $0x1b4] sm:$0xff]
        %v2866 = vld [vmem:[%s2644 + $0x1cc] sm:$0xff]
        %v2867 = vld [vmem:[%s2644 + $0x1d4] sm:$0xff]
        %v2868 = vld [vmem:[%s2644 + $0x1ec] sm:$0xff]
        %v2869 = vld [vmem:[%s2644 + $0x1f4] sm:$0xff]
        %s2870 = scalar_lea.vmem [#allocation3], 384
        %v2871 = vld [vmem:[%s2870 + $0x2] sm:$0xff]
        %v2872 = vld [vmem:[%s2870 + $0xa] sm:$0xff]
        %v2873 = vld [vmem:[%s2870 + $0x22] sm:$0xff]
        %v2874 = vld [vmem:[%s2870 + $0x2a] sm:$0xff]
        %v2875 = vld [vmem:[%s2870 + $0x42] sm:$0xff]
        %v2876 = vld [vmem:[%s2870 + $0x4a] sm:$0xff]
        %v2877 = vld [vmem:[%s2870 + $0x62] sm:$0xff]
        %v2878 = vld [vmem:[%s2870 + $0x6a] sm:$0xff]
        %v2879 = vld [vmem:[%s2870 + $0x82] sm:$0xff]
        %v2880 = vld [vmem:[%s2870 + $0x8a] sm:$0xff]
        %v2881 = vld [vmem:[%s2870 + $0xa2] sm:$0xff]
        %v2882 = vld [vmem:[%s2870 + $0xaa] sm:$0xff]
        %v2883 = vld [vmem:[%s2870 + $0xc2] sm:$0xff]
        %v2884 = vld [vmem:[%s2870 + $0xca] sm:$0xff]
        %v2885 = vld [vmem:[%s2870 + $0xe2] sm:$0xff]
        %v2886 = vld [vmem:[%s2870 + $0xea] sm:$0xff]
        %v2887 = vld [vmem:[%s2870 + $0x102] sm:$0xff]
        %v2888 = vld [vmem:[%s2870 + $0x10a] sm:$0xff]
        %v2889 = vld [vmem:[%s2870 + $0x122] sm:$0xff]
        %v2890 = vld [vmem:[%s2870 + $0x12a] sm:$0xff]
        %v2891 = vld [vmem:[%s2870 + $0x142] sm:$0xff]
        %v2892 = vld [vmem:[%s2870 + $0x14a] sm:$0xff]
        %v2893 = vld [vmem:[%s2870 + $0x162] sm:$0xff]
        %v2894 = vld [vmem:[%s2870 + $0x16a] sm:$0xff]
        %v2895 = vld [vmem:[%s2870 + $0x182] sm:$0xff]
        %v2896 = vld [vmem:[%s2870 + $0x18a] sm:$0xff]
        %v2897 = vld [vmem:[%s2870 + $0x1a2] sm:$0xff]
        %v2898 = vld [vmem:[%s2870 + $0x1aa] sm:$0xff]
        %v2899 = vld [vmem:[%s2870 + $0x1c2] sm:$0xff]
        %v2900 = vld [vmem:[%s2870 + $0x1ca] sm:$0xff]
        %v2901 = vld [vmem:[%s2870 + $0x1e2] sm:$0xff]
        %v2902 = vld [vmem:[%s2870 + $0x1ea] sm:$0xff]
        %v2903 = vld [vmem:[%s2870 + $0x7] sm:$0xff]
        %v2904 = vld [vmem:[%s2870 + $0xf] sm:$0xff]
        %v2905 = vld [vmem:[%s2870 + $0x27] sm:$0xff]
        %v2906 = vld [vmem:[%s2870 + $0x2f] sm:$0xff]
        %v2907 = vld [vmem:[%s2870 + $0x47] sm:$0xff]
        %v2908 = vld [vmem:[%s2870 + $0x4f] sm:$0xff]
        %v2909 = vld [vmem:[%s2870 + $0x67] sm:$0xff]
        %v2910 = vld [vmem:[%s2870 + $0x6f] sm:$0xff]
        %v2911 = vld [vmem:[%s2870 + $0x87] sm:$0xff]
        %v2912 = vld [vmem:[%s2870 + $0x8f] sm:$0xff]
        %v2913 = vld [vmem:[%s2870 + $0xa7] sm:$0xff]
        %v2914 = vld [vmem:[%s2870 + $0xaf] sm:$0xff]
        %v2915 = vld [vmem:[%s2870 + $0xc7] sm:$0xff]
        %v2916 = vld [vmem:[%s2870 + $0xcf] sm:$0xff]
        %v2917 = vld [vmem:[%s2870 + $0xe7] sm:$0xff]
        %v2918 = vld [vmem:[%s2870 + $0xef] sm:$0xff]
        %v2919 = vld [vmem:[%s2870 + $0x107] sm:$0xff]
        %v2920 = vld [vmem:[%s2870 + $0x10f] sm:$0xff]
        %v2921 = vld [vmem:[%s2870 + $0x127] sm:$0xff]
        %v2922 = vld [vmem:[%s2870 + $0x12f] sm:$0xff]
        %v2923 = vld [vmem:[%s2870 + $0x147] sm:$0xff]
        %v2924 = vld [vmem:[%s2870 + $0x14f] sm:$0xff]
        %v2925 = vld [vmem:[%s2870 + $0x167] sm:$0xff]
        %v2926 = vld [vmem:[%s2870 + $0x16f] sm:$0xff]
        %v2927 = vld [vmem:[%s2870 + $0x187] sm:$0xff]
        %v2928 = vld [vmem:[%s2870 + $0x18f] sm:$0xff]
        %v2929 = vld [vmem:[%s2870 + $0x1a7] sm:$0xff]
        %v2930 = vld [vmem:[%s2870 + $0x1af] sm:$0xff]
        %v2931 = vld [vmem:[%s2870 + $0x1c7] sm:$0xff]
        %v2932 = vld [vmem:[%s2870 + $0x1cf] sm:$0xff]
        %v2933 = vld [vmem:[%s2870 + $0x1e7] sm:$0xff]
        %v2934 = vld [vmem:[%s2870 + $0x1ef] sm:$0xff]
        %v2935 = vld [vmem:[%s2870 + $0xc] sm:$0xff]
        %v2936 = vld [vmem:[%s2870 + $0x14] sm:$0xff]
        %v2937 = vld [vmem:[%s2870 + $0x2c] sm:$0xff]
        %v2938 = vld [vmem:[%s2870 + $0x34] sm:$0xff]
        %v2939 = vld [vmem:[%s2870 + $0x4c] sm:$0xff]
        %v2940 = vld [vmem:[%s2870 + $0x54] sm:$0xff]
        %v2941 = vld [vmem:[%s2870 + $0x6c] sm:$0xff]
        %v2942 = vld [vmem:[%s2870 + $0x74] sm:$0xff]
        %v2943 = vld [vmem:[%s2870 + $0x8c] sm:$0xff]
        %v2944 = vld [vmem:[%s2870 + $0x94] sm:$0xff]
        %v2945 = vld [vmem:[%s2870 + $0xac] sm:$0xff]
        %v2946 = vld [vmem:[%s2870 + $0xb4] sm:$0xff]
        %v2947 = vld [vmem:[%s2870 + $0xcc] sm:$0xff]
        %v2948 = vld [vmem:[%s2870 + $0xd4] sm:$0xff]
        %v2949 = vld [vmem:[%s2870 + $0xec] sm:$0xff]
        %v2950 = vld [vmem:[%s2870 + $0xf4] sm:$0xff]
        %v2951 = vld [vmem:[%s2870 + $0x10c] sm:$0xff]
        %v2952 = vld [vmem:[%s2870 + $0x114] sm:$0xff]
        %v2953 = vld [vmem:[%s2870 + $0x12c] sm:$0xff]
        %v2954 = vld [vmem:[%s2870 + $0x134] sm:$0xff]
        %v2955 = vld [vmem:[%s2870 + $0x14c] sm:$0xff]
        %v2956 = vld [vmem:[%s2870 + $0x154] sm:$0xff]
        %v2957 = vld [vmem:[%s2870 + $0x16c] sm:$0xff]
        %v2958 = vld [vmem:[%s2870 + $0x174] sm:$0xff]
        %v2959 = vld [vmem:[%s2870 + $0x18c] sm:$0xff]
        %v2960 = vld [vmem:[%s2870 + $0x194] sm:$0xff]
        %v2961 = vld [vmem:[%s2870 + $0x1ac] sm:$0xff]
        %v2962 = vld [vmem:[%s2870 + $0x1b4] sm:$0xff]
        %v2963 = vld [vmem:[%s2870 + $0x1cc] sm:$0xff]
        %v2964 = vld [vmem:[%s2870 + $0x1d4] sm:$0xff]
        %v2965 = vld [vmem:[%s2870 + $0x1ec] sm:$0xff]
        %v2966 = vld [vmem:[%s2870 + $0x1f4] sm:$0xff]
        %2999 = vrot.lane.b32.xlu0 %v2710, 4
        %v3000 = vpop.permute.xlu0 %2999
        %3001 = vrot.lane.b32.xlu0 %v2711, 4
        %v3002 = vpop.permute.xlu0 %3001
        %3003 = vrot.lane.b32.xlu0 %v2712, 4
        %v3004 = vpop.permute.xlu0 %3003
        %3005 = vrot.lane.b32.xlu0 %v2713, 4
        %v3006 = vpop.permute.xlu0 %3005
        %3007 = vrot.lane.b32.xlu0 %v2714, 4
        %v3008 = vpop.permute.xlu0 %3007
        %3009 = vrot.lane.b32.xlu0 %v2715, 4
        %v3010 = vpop.permute.xlu0 %3009
        %3011 = vrot.lane.b32.xlu0 %v2716, 4
        %v3012 = vpop.permute.xlu0 %3011
        %3013 = vrot.lane.b32.xlu0 %v2717, 4
        %v3014 = vpop.permute.xlu0 %3013
        %3015 = vrot.lane.b32.xlu0 %v2718, 4
        %v3016 = vpop.permute.xlu0 %3015
        %3017 = vrot.lane.b32.xlu0 %v2719, 4
        %v3018 = vpop.permute.xlu0 %3017
        %3019 = vrot.lane.b32.xlu0 %v2720, 4
        %v3020 = vpop.permute.xlu0 %3019
        %3021 = vrot.lane.b32.xlu0 %v2721, 4
        %v3022 = vpop.permute.xlu0 %3021
        %3023 = vrot.lane.b32.xlu0 %v2722, 4
        %v3024 = vpop.permute.xlu0 %3023
        %3025 = vrot.lane.b32.xlu0 %v2723, 4
        %v3026 = vpop.permute.xlu0 %3025
        %3027 = vrot.lane.b32.xlu0 %v2724, 4
        %v3028 = vpop.permute.xlu0 %3027
        %3029 = vrot.lane.b32.xlu0 %v2725, 4
        %v3030 = vpop.permute.xlu0 %3029
        %3031 = vrot.lane.b32.xlu0 %v2726, 4
        %v3032 = vpop.permute.xlu0 %3031
        %3033 = vrot.lane.b32.xlu0 %v2727, 4
        %v3034 = vpop.permute.xlu0 %3033
        %3035 = vrot.lane.b32.xlu0 %v2728, 4
        %v3036 = vpop.permute.xlu0 %3035
        %3037 = vrot.lane.b32.xlu0 %v2729, 4
        %v3038 = vpop.permute.xlu0 %3037
        %3039 = vrot.lane.b32.xlu0 %v2730, 4
        %v3040 = vpop.permute.xlu0 %3039
        %3041 = vrot.lane.b32.xlu0 %v2731, 4
        %v3042 = vpop.permute.xlu0 %3041
        %3043 = vrot.lane.b32.xlu0 %v2732, 4
        %v3044 = vpop.permute.xlu0 %3043
        %3045 = vrot.lane.b32.xlu0 %v2733, 4
        %v3046 = vpop.permute.xlu0 %3045
        %3047 = vrot.lane.b32.xlu0 %v2734, 4
        %v3048 = vpop.permute.xlu0 %3047
        %3049 = vrot.lane.b32.xlu0 %v2735, 4
        %v3050 = vpop.permute.xlu0 %3049
        %3051 = vrot.lane.b32.xlu0 %v2736, 4
        %v3052 = vpop.permute.xlu0 %3051
        %3053 = vrot.lane.b32.xlu0 %v2737, 4
        %v3054 = vpop.permute.xlu0 %3053
        %3055 = vrot.lane.b32.xlu0 %v2738, 4
        %v3056 = vpop.permute.xlu0 %3055
        %3057 = vrot.lane.b32.xlu0 %v2739, 4
        %v3058 = vpop.permute.xlu0 %3057
        %3059 = vrot.lane.b32.xlu0 %v2740, 4
        %v3060 = vpop.permute.xlu0 %3059
        %3061 = vrot.lane.b32.xlu0 %v2741, 4
        %v3062 = vpop.permute.xlu0 %3061
        %3127 = vrot.lane.b32.xlu0 %v2742, 8
        %v3128 = vpop.permute.xlu0 %3127
        %3129 = vrot.lane.b32.xlu0 %v2743, 8
        %v3130 = vpop.permute.xlu0 %3129
        %3131 = vrot.lane.b32.xlu0 %v2744, 8
        %v3132 = vpop.permute.xlu0 %3131
        %3133 = vrot.lane.b32.xlu0 %v2745, 8
        %v3134 = vpop.permute.xlu0 %3133
        %3135 = vrot.lane.b32.xlu0 %v2746, 8
        %v3136 = vpop.permute.xlu0 %3135
        %3137 = vrot.lane.b32.xlu0 %v2747, 8
        %v3138 = vpop.permute.xlu0 %3137
        %3139 = vrot.lane.b32.xlu0 %v2748, 8
        %v3140 = vpop.permute.xlu0 %3139
        %3141 = vrot.lane.b32.xlu0 %v2749, 8
        %v3142 = vpop.permute.xlu0 %3141
        %3143 = vrot.lane.b32.xlu0 %v2750, 8
        %v3144 = vpop.permute.xlu0 %3143
        %3145 = vrot.lane.b32.xlu0 %v2751, 8
        %v3146 = vpop.permute.xlu0 %3145
        %3147 = vrot.lane.b32.xlu0 %v2752, 8
        %v3148 = vpop.permute.xlu0 %3147
        %3149 = vrot.lane.b32.xlu0 %v2753, 8
        %v3150 = vpop.permute.xlu0 %3149
        %3151 = vrot.lane.b32.xlu0 %v2754, 8
        %v3152 = vpop.permute.xlu0 %3151
        %3153 = vrot.lane.b32.xlu0 %v2755, 8
        %v3154 = vpop.permute.xlu0 %3153
        %3155 = vrot.lane.b32.xlu0 %v2756, 8
        %v3156 = vpop.permute.xlu0 %3155
        %3157 = vrot.lane.b32.xlu0 %v2757, 8
        %v3158 = vpop.permute.xlu0 %3157
        %3159 = vrot.lane.b32.xlu0 %v2758, 8
        %v3160 = vpop.permute.xlu0 %3159
        %3161 = vrot.lane.b32.xlu0 %v2759, 8
        %v3162 = vpop.permute.xlu0 %3161
        %3163 = vrot.lane.b32.xlu0 %v2760, 8
        %v3164 = vpop.permute.xlu0 %3163
        %3165 = vrot.lane.b32.xlu0 %v2761, 8
        %v3166 = vpop.permute.xlu0 %3165
        %3167 = vrot.lane.b32.xlu0 %v2762, 8
        %v3168 = vpop.permute.xlu0 %3167
        %3169 = vrot.lane.b32.xlu0 %v2763, 8
        %v3170 = vpop.permute.xlu0 %3169
        %3171 = vrot.lane.b32.xlu0 %v2764, 8
        %v3172 = vpop.permute.xlu0 %3171
        %3173 = vrot.lane.b32.xlu0 %v2765, 8
        %v3174 = vpop.permute.xlu0 %3173
        %3175 = vrot.lane.b32.xlu0 %v2766, 8
        %v3176 = vpop.permute.xlu0 %3175
        %3177 = vrot.lane.b32.xlu0 %v2767, 8
        %v3178 = vpop.permute.xlu0 %3177
        %3179 = vrot.lane.b32.xlu0 %v2768, 8
        %v3180 = vpop.permute.xlu0 %3179
        %3181 = vrot.lane.b32.xlu0 %v2769, 8
        %v3182 = vpop.permute.xlu0 %3181
        %3183 = vrot.lane.b32.xlu0 %v2770, 8
        %v3184 = vpop.permute.xlu0 %3183
        %3185 = vrot.lane.b32.xlu0 %v2771, 8
        %v3186 = vpop.permute.xlu0 %3185
        %3187 = vrot.lane.b32.xlu0 %v2772, 8
        %v3188 = vpop.permute.xlu0 %3187
        %3189 = vrot.lane.b32.xlu0 %v2773, 8
        %v3190 = vpop.permute.xlu0 %3189
        %3255 = vrot.lane.b32.xlu0 %v2774, 12
        %v3256 = vpop.permute.xlu0 %3255
        %3257 = vrot.lane.b32.xlu0 %v2775, 12
        %v3258 = vpop.permute.xlu0 %3257
        %3259 = vrot.lane.b32.xlu0 %v2776, 12
        %v3260 = vpop.permute.xlu0 %3259
        %3261 = vrot.lane.b32.xlu0 %v2777, 12
        %v3262 = vpop.permute.xlu0 %3261
        %3263 = vrot.lane.b32.xlu0 %v2778, 12
        %v3264 = vpop.permute.xlu0 %3263
        %3265 = vrot.lane.b32.xlu0 %v2779, 12
        %v3266 = vpop.permute.xlu0 %3265
        %3267 = vrot.lane.b32.xlu0 %v2780, 12
        %v3268 = vpop.permute.xlu0 %3267
        %3269 = vrot.lane.b32.xlu0 %v2781, 12
        %v3270 = vpop.permute.xlu0 %3269
        %3271 = vrot.lane.b32.xlu0 %v2782, 12
        %v3272 = vpop.permute.xlu0 %3271
        %3273 = vrot.lane.b32.xlu0 %v2783, 12
        %v3274 = vpop.permute.xlu0 %3273
        %3275 = vrot.lane.b32.xlu0 %v2784, 12
        %v3276 = vpop.permute.xlu0 %3275
        %3277 = vrot.lane.b32.xlu0 %v2785, 12
        %v3278 = vpop.permute.xlu0 %3277
        %3279 = vrot.lane.b32.xlu0 %v2786, 12
        %v3280 = vpop.permute.xlu0 %3279
        %3281 = vrot.lane.b32.xlu0 %v2787, 12
        %v3282 = vpop.permute.xlu0 %3281
        %3283 = vrot.lane.b32.xlu0 %v2788, 12
        %v3284 = vpop.permute.xlu0 %3283
        %3285 = vrot.lane.b32.xlu0 %v2789, 12
        %v3286 = vpop.permute.xlu0 %3285
        %3287 = vrot.lane.b32.xlu0 %v2790, 12
        %v3288 = vpop.permute.xlu0 %3287
        %3289 = vrot.lane.b32.xlu0 %v2791, 12
        %v3290 = vpop.permute.xlu0 %3289
        %3291 = vrot.lane.b32.xlu0 %v2792, 12
        %v3292 = vpop.permute.xlu0 %3291
        %3293 = vrot.lane.b32.xlu0 %v2793, 12
        %v3294 = vpop.permute.xlu0 %3293
        %3295 = vrot.lane.b32.xlu0 %v2794, 12
        %v3296 = vpop.permute.xlu0 %3295
        %3297 = vrot.lane.b32.xlu0 %v2795, 12
        %v3298 = vpop.permute.xlu0 %3297
        %3299 = vrot.lane.b32.xlu0 %v2796, 12
        %v3300 = vpop.permute.xlu0 %3299
        %3301 = vrot.lane.b32.xlu0 %v2797, 12
        %v3302 = vpop.permute.xlu0 %3301
        %3303 = vrot.lane.b32.xlu0 %v2798, 12
        %v3304 = vpop.permute.xlu0 %3303
        %3305 = vrot.lane.b32.xlu0 %v2799, 12
        %v3306 = vpop.permute.xlu0 %3305
        %3307 = vrot.lane.b32.xlu0 %v2800, 12
        %v3308 = vpop.permute.xlu0 %3307
        %3309 = vrot.lane.b32.xlu0 %v2801, 12
        %v3310 = vpop.permute.xlu0 %3309
        %3311 = vrot.lane.b32.xlu0 %v2802, 12
        %v3312 = vpop.permute.xlu0 %3311
        %3313 = vrot.lane.b32.xlu0 %v2803, 12
        %v3314 = vpop.permute.xlu0 %3313
        %3315 = vrot.lane.b32.xlu0 %v2804, 12
        %v3316 = vpop.permute.xlu0 %3315
        %3317 = vrot.lane.b32.xlu0 %v2805, 12
        %v3318 = vpop.permute.xlu0 %3317
        %3383 = vrot.lane.b32.xlu0 %v2806, 16
        %v3384 = vpop.permute.xlu0 %3383
        %3385 = vrot.lane.b32.xlu0 %v2807, 16
        %v3386 = vpop.permute.xlu0 %3385
        %3387 = vrot.lane.b32.xlu0 %v2808, 16
        %v3388 = vpop.permute.xlu0 %3387
        %3389 = vrot.lane.b32.xlu0 %v2809, 16
        %v3390 = vpop.permute.xlu0 %3389
        %3391 = vrot.lane.b32.xlu0 %v2810, 16
        %v3392 = vpop.permute.xlu0 %3391
        %3393 = vrot.lane.b32.xlu0 %v2811, 16
        %v3394 = vpop.permute.xlu0 %3393
        %3395 = vrot.lane.b32.xlu0 %v2812, 16
        %v3396 = vpop.permute.xlu0 %3395
        %3397 = vrot.lane.b32.xlu0 %v2813, 16
        %v3398 = vpop.permute.xlu0 %3397
        %3399 = vrot.lane.b32.xlu0 %v2814, 16
        %v3400 = vpop.permute.xlu0 %3399
        %3401 = vrot.lane.b32.xlu0 %v2815, 16
        %v3402 = vpop.permute.xlu0 %3401
        %3403 = vrot.lane.b32.xlu0 %v2816, 16
        %v3404 = vpop.permute.xlu0 %3403
        %3405 = vrot.lane.b32.xlu0 %v2817, 16
        %v3406 = vpop.permute.xlu0 %3405
        %3407 = vrot.lane.b32.xlu0 %v2818, 16
        %v3408 = vpop.permute.xlu0 %3407
        %3409 = vrot.lane.b32.xlu0 %v2819, 16
        %v3410 = vpop.permute.xlu0 %3409
        %3411 = vrot.lane.b32.xlu0 %v2820, 16
        %v3412 = vpop.permute.xlu0 %3411
        %3413 = vrot.lane.b32.xlu0 %v2821, 16
        %v3414 = vpop.permute.xlu0 %3413
        %3415 = vrot.lane.b32.xlu0 %v2822, 16
        %v3416 = vpop.permute.xlu0 %3415
        %3417 = vrot.lane.b32.xlu0 %v2823, 16
        %v3418 = vpop.permute.xlu0 %3417
        %3419 = vrot.lane.b32.xlu0 %v2824, 16
        %v3420 = vpop.permute.xlu0 %3419
        %3421 = vrot.lane.b32.xlu0 %v2825, 16
        %v3422 = vpop.permute.xlu0 %3421
        %3423 = vrot.lane.b32.xlu0 %v2826, 16
        %v3424 = vpop.permute.xlu0 %3423
        %3425 = vrot.lane.b32.xlu0 %v2827, 16
        %v3426 = vpop.permute.xlu0 %3425
        %3427 = vrot.lane.b32.xlu0 %v2828, 16
        %v3428 = vpop.permute.xlu0 %3427
        %3429 = vrot.lane.b32.xlu0 %v2829, 16
        %v3430 = vpop.permute.xlu0 %3429
        %3431 = vrot.lane.b32.xlu0 %v2830, 16
        %v3432 = vpop.permute.xlu0 %3431
        %3433 = vrot.lane.b32.xlu0 %v2831, 16
        %v3434 = vpop.permute.xlu0 %3433
        %3435 = vrot.lane.b32.xlu0 %v2832, 16
        %v3436 = vpop.permute.xlu0 %3435
        %3437 = vrot.lane.b32.xlu0 %v2833, 16
        %v3438 = vpop.permute.xlu0 %3437
        %3439 = vrot.lane.b32.xlu0 %v2834, 16
        %v3440 = vpop.permute.xlu0 %3439
        %3441 = vrot.lane.b32.xlu0 %v2835, 16
        %v3442 = vpop.permute.xlu0 %3441
        %3443 = vrot.lane.b32.xlu0 %v2836, 16
        %v3444 = vpop.permute.xlu0 %3443
        %3445 = vrot.lane.b32.xlu0 %v2837, 16
        %v3446 = vpop.permute.xlu0 %3445
        %3511 = vrot.lane.b32.xlu0 %v2838, 20
        %v3512 = vpop.permute.xlu0 %3511
        %3513 = vrot.lane.b32.xlu0 %v2839, 20
        %v3514 = vpop.permute.xlu0 %3513
        %3515 = vrot.lane.b32.xlu0 %v2840, 20
        %v3516 = vpop.permute.xlu0 %3515
        %3517 = vrot.lane.b32.xlu0 %v2841, 20
        %v3518 = vpop.permute.xlu0 %3517
        %3519 = vrot.lane.b32.xlu0 %v2842, 20
        %v3520 = vpop.permute.xlu0 %3519
        %3521 = vrot.lane.b32.xlu0 %v2843, 20
        %v3522 = vpop.permute.xlu0 %3521
        %3523 = vrot.lane.b32.xlu0 %v2844, 20
        %v3524 = vpop.permute.xlu0 %3523
        %3525 = vrot.lane.b32.xlu0 %v2845, 20
        %v3526 = vpop.permute.xlu0 %3525
        %3527 = vrot.lane.b32.xlu0 %v2846, 20
        %v3528 = vpop.permute.xlu0 %3527
        %3529 = vrot.lane.b32.xlu0 %v2847, 20
        %v3530 = vpop.permute.xlu0 %3529
        %3531 = vrot.lane.b32.xlu0 %v2848, 20
        %v3532 = vpop.permute.xlu0 %3531
        %3533 = vrot.lane.b32.xlu0 %v2849, 20
        %v3534 = vpop.permute.xlu0 %3533
        %3535 = vrot.lane.b32.xlu0 %v2850, 20
        %v3536 = vpop.permute.xlu0 %3535
        %3537 = vrot.lane.b32.xlu0 %v2851, 20
        %v3538 = vpop.permute.xlu0 %3537
        %3539 = vrot.lane.b32.xlu0 %v2852, 20
        %v3540 = vpop.permute.xlu0 %3539
        %3541 = vrot.lane.b32.xlu0 %v2853, 20
        %v3542 = vpop.permute.xlu0 %3541
        %3543 = vrot.lane.b32.xlu0 %v2854, 20
        %v3544 = vpop.permute.xlu0 %3543
        %3545 = vrot.lane.b32.xlu0 %v2855, 20
        %v3546 = vpop.permute.xlu0 %3545
        %3547 = vrot.lane.b32.xlu0 %v2856, 20
        %v3548 = vpop.permute.xlu0 %3547
        %3549 = vrot.lane.b32.xlu0 %v2857, 20
        %v3550 = vpop.permute.xlu0 %3549
        %3551 = vrot.lane.b32.xlu0 %v2858, 20
        %v3552 = vpop.permute.xlu0 %3551
        %3553 = vrot.lane.b32.xlu0 %v2859, 20
        %v3554 = vpop.permute.xlu0 %3553
        %3555 = vrot.lane.b32.xlu0 %v2860, 20
        %v3556 = vpop.permute.xlu0 %3555
        %3557 = vrot.lane.b32.xlu0 %v2861, 20
        %v3558 = vpop.permute.xlu0 %3557
        %3559 = vrot.lane.b32.xlu0 %v2862, 20
        %v3560 = vpop.permute.xlu0 %3559
        %3561 = vrot.lane.b32.xlu0 %v2863, 20
        %v3562 = vpop.permute.xlu0 %3561
        %3563 = vrot.lane.b32.xlu0 %v2864, 20
        %v3564 = vpop.permute.xlu0 %3563
        %3565 = vrot.lane.b32.xlu0 %v2865, 20
        %v3566 = vpop.permute.xlu0 %3565
        %3567 = vrot.lane.b32.xlu0 %v2866, 20
        %v3568 = vpop.permute.xlu0 %3567
        %3569 = vrot.lane.b32.xlu0 %v2867, 20
        %v3570 = vpop.permute.xlu0 %3569
        %3571 = vrot.lane.b32.xlu0 %v2868, 20
        %v3572 = vpop.permute.xlu0 %3571
        %3573 = vrot.lane.b32.xlu0 %v2869, 20
        %v3574 = vpop.permute.xlu0 %3573
        %3639 = vrot.lane.b32.xlu0 %v2871, 24
        %v3640 = vpop.permute.xlu0 %3639
        %3641 = vrot.lane.b32.xlu0 %v2872, 24
        %v3642 = vpop.permute.xlu0 %3641
        %3643 = vrot.lane.b32.xlu0 %v2873, 24
        %v3644 = vpop.permute.xlu0 %3643
        %3645 = vrot.lane.b32.xlu0 %v2874, 24
        %v3646 = vpop.permute.xlu0 %3645
        %3647 = vrot.lane.b32.xlu0 %v2875, 24
        %v3648 = vpop.permute.xlu0 %3647
        %3649 = vrot.lane.b32.xlu0 %v2876, 24
        %v3650 = vpop.permute.xlu0 %3649
        %3651 = vrot.lane.b32.xlu0 %v2877, 24
        %v3652 = vpop.permute.xlu0 %3651
        %3653 = vrot.lane.b32.xlu0 %v2878, 24
        %v3654 = vpop.permute.xlu0 %3653
        %3655 = vrot.lane.b32.xlu0 %v2879, 24
        %v3656 = vpop.permute.xlu0 %3655
        %3657 = vrot.lane.b32.xlu0 %v2880, 24
        %v3658 = vpop.permute.xlu0 %3657
        %3659 = vrot.lane.b32.xlu0 %v2881, 24
        %v3660 = vpop.permute.xlu0 %3659
        %3661 = vrot.lane.b32.xlu0 %v2882, 24
        %v3662 = vpop.permute.xlu0 %3661
        %3663 = vrot.lane.b32.xlu0 %v2883, 24
        %v3664 = vpop.permute.xlu0 %3663
        %3665 = vrot.lane.b32.xlu0 %v2884, 24
        %v3666 = vpop.permute.xlu0 %3665
        %3667 = vrot.lane.b32.xlu0 %v2885, 24
        %v3668 = vpop.permute.xlu0 %3667
        %3669 = vrot.lane.b32.xlu0 %v2886, 24
        %v3670 = vpop.permute.xlu0 %3669
        %3671 = vrot.lane.b32.xlu0 %v2887, 24
        %v3672 = vpop.permute.xlu0 %3671
        %3673 = vrot.lane.b32.xlu0 %v2888, 24
        %v3674 = vpop.permute.xlu0 %3673
        %3675 = vrot.lane.b32.xlu0 %v2889, 24
        %v3676 = vpop.permute.xlu0 %3675
        %3677 = vrot.lane.b32.xlu0 %v2890, 24
        %v3678 = vpop.permute.xlu0 %3677
        %3679 = vrot.lane.b32.xlu0 %v2891, 24
        %v3680 = vpop.permute.xlu0 %3679
        %3681 = vrot.lane.b32.xlu0 %v2892, 24
        %v3682 = vpop.permute.xlu0 %3681
        %3683 = vrot.lane.b32.xlu0 %v2893, 24
        %v3684 = vpop.permute.xlu0 %3683
        %3685 = vrot.lane.b32.xlu0 %v2894, 24
        %v3686 = vpop.permute.xlu0 %3685
        %3687 = vrot.lane.b32.xlu0 %v2895, 24
        %v3688 = vpop.permute.xlu0 %3687
        %3689 = vrot.lane.b32.xlu0 %v2896, 24
        %v3690 = vpop.permute.xlu0 %3689
        %3691 = vrot.lane.b32.xlu0 %v2897, 24
        %v3692 = vpop.permute.xlu0 %3691
        %3693 = vrot.lane.b32.xlu0 %v2898, 24
        %v3694 = vpop.permute.xlu0 %3693
        %3695 = vrot.lane.b32.xlu0 %v2899, 24
        %v3696 = vpop.permute.xlu0 %3695
        %3697 = vrot.lane.b32.xlu0 %v2900, 24
        %v3698 = vpop.permute.xlu0 %3697
        %3699 = vrot.lane.b32.xlu0 %v2901, 24
        %v3700 = vpop.permute.xlu0 %3699
        %3701 = vrot.lane.b32.xlu0 %v2902, 24
        %v3702 = vpop.permute.xlu0 %3701
        %3767 = vrot.lane.b32.xlu0 %v2903, 28
        %v3768 = vpop.permute.xlu0 %3767
        %3769 = vrot.lane.b32.xlu0 %v2904, 28
        %v3770 = vpop.permute.xlu0 %3769
        %3771 = vrot.lane.b32.xlu0 %v2905, 28
        %v3772 = vpop.permute.xlu0 %3771
        %3773 = vrot.lane.b32.xlu0 %v2906, 28
        %v3774 = vpop.permute.xlu0 %3773
        %3775 = vrot.lane.b32.xlu0 %v2907, 28
        %v3776 = vpop.permute.xlu0 %3775
        %3777 = vrot.lane.b32.xlu0 %v2908, 28
        %v3778 = vpop.permute.xlu0 %3777
        %3779 = vrot.lane.b32.xlu0 %v2909, 28
        %v3780 = vpop.permute.xlu0 %3779
        %3781 = vrot.lane.b32.xlu0 %v2910, 28
        %v3782 = vpop.permute.xlu0 %3781
        %3783 = vrot.lane.b32.xlu0 %v2911, 28
        %v3784 = vpop.permute.xlu0 %3783
        %3785 = vrot.lane.b32.xlu0 %v2912, 28
        %v3786 = vpop.permute.xlu0 %3785
        %3787 = vrot.lane.b32.xlu0 %v2913, 28
        %v3788 = vpop.permute.xlu0 %3787
        %3789 = vrot.lane.b32.xlu0 %v2914, 28
        %v3790 = vpop.permute.xlu0 %3789
        %3791 = vrot.lane.b32.xlu0 %v2915, 28
        %v3792 = vpop.permute.xlu0 %3791
        %3793 = vrot.lane.b32.xlu0 %v2916, 28
        %v3794 = vpop.permute.xlu0 %3793
        %3795 = vrot.lane.b32.xlu0 %v2917, 28
        %v3796 = vpop.permute.xlu0 %3795
        %3797 = vrot.lane.b32.xlu0 %v2918, 28
        %v3798 = vpop.permute.xlu0 %3797
        %3799 = vrot.lane.b32.xlu0 %v2919, 28
        %v3800 = vpop.permute.xlu0 %3799
        %3801 = vrot.lane.b32.xlu0 %v2920, 28
        %v3802 = vpop.permute.xlu0 %3801
        %3803 = vrot.lane.b32.xlu0 %v2921, 28
        %v3804 = vpop.permute.xlu0 %3803
        %3805 = vrot.lane.b32.xlu0 %v2922, 28
        %v3806 = vpop.permute.xlu0 %3805
        %3807 = vrot.lane.b32.xlu0 %v2923, 28
        %v3808 = vpop.permute.xlu0 %3807
        %3809 = vrot.lane.b32.xlu0 %v2924, 28
        %v3810 = vpop.permute.xlu0 %3809
        %3811 = vrot.lane.b32.xlu0 %v2925, 28
        %v3812 = vpop.permute.xlu0 %3811
        %3813 = vrot.lane.b32.xlu0 %v2926, 28
        %v3814 = vpop.permute.xlu0 %3813
        %3815 = vrot.lane.b32.xlu0 %v2927, 28
        %v3816 = vpop.permute.xlu0 %3815
        %3817 = vrot.lane.b32.xlu0 %v2928, 28
        %v3818 = vpop.permute.xlu0 %3817
        %3819 = vrot.lane.b32.xlu0 %v2929, 28
        %v3820 = vpop.permute.xlu0 %3819
        %3821 = vrot.lane.b32.xlu0 %v2930, 28
        %v3822 = vpop.permute.xlu0 %3821
        %3823 = vrot.lane.b32.xlu0 %v2931, 28
        %v3824 = vpop.permute.xlu0 %3823
        %3825 = vrot.lane.b32.xlu0 %v2932, 28
        %v3826 = vpop.permute.xlu0 %3825
        %3827 = vrot.lane.b32.xlu0 %v2933, 28
        %v3828 = vpop.permute.xlu0 %3827
        %3829 = vrot.lane.b32.xlu0 %v2934, 28
        %v3830 = vpop.permute.xlu0 %3829
        %3895 = vrot.lane.b32.xlu0 %v2935, 32
        %v3896 = vpop.permute.xlu0 %3895
        %3897 = vrot.lane.b32.xlu0 %v2936, 32
        %v3898 = vpop.permute.xlu0 %3897
        %3899 = vrot.lane.b32.xlu0 %v2937, 32
        %v3900 = vpop.permute.xlu0 %3899
        %3901 = vrot.lane.b32.xlu0 %v2938, 32
        %v3902 = vpop.permute.xlu0 %3901
        %3903 = vrot.lane.b32.xlu0 %v2939, 32
        %v3904 = vpop.permute.xlu0 %3903
        %3905 = vrot.lane.b32.xlu0 %v2940, 32
        %v3906 = vpop.permute.xlu0 %3905
        %3907 = vrot.lane.b32.xlu0 %v2941, 32
        %v3908 = vpop.permute.xlu0 %3907
        %3909 = vrot.lane.b32.xlu0 %v2942, 32
        %v3910 = vpop.permute.xlu0 %3909
        %3911 = vrot.lane.b32.xlu0 %v2943, 32
        %v3912 = vpop.permute.xlu0 %3911
        %3913 = vrot.lane.b32.xlu0 %v2944, 32
        %v3914 = vpop.permute.xlu0 %3913
        %3915 = vrot.lane.b32.xlu0 %v2945, 32
        %v3916 = vpop.permute.xlu0 %3915
        %3917 = vrot.lane.b32.xlu0 %v2946, 32
        %v3918 = vpop.permute.xlu0 %3917
        %3919 = vrot.lane.b32.xlu0 %v2947, 32
        %v3920 = vpop.permute.xlu0 %3919
        %3921 = vrot.lane.b32.xlu0 %v2948, 32
        %v3922 = vpop.permute.xlu0 %3921
        %3923 = vrot.lane.b32.xlu0 %v2949, 32
        %v3924 = vpop.permute.xlu0 %3923
        %3925 = vrot.lane.b32.xlu0 %v2950, 32
        %v3926 = vpop.permute.xlu0 %3925
        %3927 = vrot.lane.b32.xlu0 %v2951, 32
        %v3928 = vpop.permute.xlu0 %3927
        %3929 = vrot.lane.b32.xlu0 %v2952, 32
        %v3930 = vpop.permute.xlu0 %3929
        %3931 = vrot.lane.b32.xlu0 %v2953, 32
        %v3932 = vpop.permute.xlu0 %3931
        %3933 = vrot.lane.b32.xlu0 %v2954, 32
        %v3934 = vpop.permute.xlu0 %3933
        %3935 = vrot.lane.b32.xlu0 %v2955, 32
        %v3936 = vpop.permute.xlu0 %3935
        %3937 = vrot.lane.b32.xlu0 %v2956, 32
        %v3938 = vpop.permute.xlu0 %3937
        %3939 = vrot.lane.b32.xlu0 %v2957, 32
        %v3940 = vpop.permute.xlu0 %3939
        %3941 = vrot.lane.b32.xlu0 %v2958, 32
        %v3942 = vpop.permute.xlu0 %3941
        %3943 = vrot.lane.b32.xlu0 %v2959, 32
        %v3944 = vpop.permute.xlu0 %3943
        %3945 = vrot.lane.b32.xlu0 %v2960, 32
        %v3946 = vpop.permute.xlu0 %3945
        %3947 = vrot.lane.b32.xlu0 %v2961, 32
        %v3948 = vpop.permute.xlu0 %3947
        %3949 = vrot.lane.b32.xlu0 %v2962, 32
        %v3950 = vpop.permute.xlu0 %3949
        %3951 = vrot.lane.b32.xlu0 %v2963, 32
        %v3952 = vpop.permute.xlu0 %3951
        %3953 = vrot.lane.b32.xlu0 %v2964, 32
        %v3954 = vpop.permute.xlu0 %3953
        %3955 = vrot.lane.b32.xlu0 %v2965, 32
        %v3956 = vpop.permute.xlu0 %3955
        %3957 = vrot.lane.b32.xlu0 %v2966, 32
        %v3958 = vpop.permute.xlu0 %3957
        %v3991 = vsel %vm217, %v2678, %v3000
        %v3992 = vsel %vm217, %v2679, %v3002
        %v3993 = vsel %vm217, %v2680, %v3004
        %v3994 = vsel %vm217, %v2681, %v3006
        %v3995 = vsel %vm217, %v2682, %v3008
        %v3996 = vsel %vm217, %v2683, %v3010
        %v3997 = vsel %vm217, %v2684, %v3012
        %v3998 = vsel %vm217, %v2685, %v3014
        %v3999 = vsel %vm217, %v2686, %v3016
        %v4000 = vsel %vm217, %v2687, %v3018
        %v4001 = vsel %vm217, %v2688, %v3020
        %v4002 = vsel %vm217, %v2689, %v3022
        %v4003 = vsel %vm217, %v2690, %v3024
        %v4004 = vsel %vm217, %v2691, %v3026
        %v4005 = vsel %vm217, %v2692, %v3028
        %v4006 = vsel %vm217, %v2693, %v3030
        %v4007 = vsel %vm217, %v2694, %v3032
        %v4008 = vsel %vm217, %v2695, %v3034
        %v4009 = vsel %vm217, %v2696, %v3036
        %v4010 = vsel %vm217, %v2697, %v3038
        %v4011 = vsel %vm217, %v2698, %v3040
        %v4012 = vsel %vm217, %v2699, %v3042
        %v4013 = vsel %vm217, %v2700, %v3044
        %v4014 = vsel %vm217, %v2701, %v3046
        %v4015 = vsel %vm217, %v2702, %v3048
        %v4016 = vsel %vm217, %v2703, %v3050
        %v4017 = vsel %vm217, %v2704, %v3052
        %v4018 = vsel %vm217, %v2705, %v3054
        %v4019 = vsel %vm217, %v2706, %v3056
        %v4020 = vsel %vm217, %v2707, %v3058
        %v4021 = vsel %vm217, %v2708, %v3060
        %v4022 = vsel %vm217, %v2709, %v3062
        %v4023 = vsel %vm2093, %v3991, %v3128
        %v4024 = vsel %vm2093, %v3992, %v3130
        %v4025 = vsel %vm2093, %v3993, %v3132
        %v4026 = vsel %vm2093, %v3994, %v3134
        %v4027 = vsel %vm2093, %v3995, %v3136
        %v4028 = vsel %vm2093, %v3996, %v3138
        %v4029 = vsel %vm2093, %v3997, %v3140
        %v4030 = vsel %vm2093, %v3998, %v3142
        %v4031 = vsel %vm2093, %v3999, %v3144
        %v4032 = vsel %vm2093, %v4000, %v3146
        %v4033 = vsel %vm2093, %v4001, %v3148
        %v4034 = vsel %vm2093, %v4002, %v3150
        %v4035 = vsel %vm2093, %v4003, %v3152
        %v4036 = vsel %vm2093, %v4004, %v3154
        %v4037 = vsel %vm2093, %v4005, %v3156
        %v4038 = vsel %vm2093, %v4006, %v3158
        %v4039 = vsel %vm2093, %v4007, %v3160
        %v4040 = vsel %vm2093, %v4008, %v3162
        %v4041 = vsel %vm2093, %v4009, %v3164
        %v4042 = vsel %vm2093, %v4010, %v3166
        %v4043 = vsel %vm2093, %v4011, %v3168
        %v4044 = vsel %vm2093, %v4012, %v3170
        %v4045 = vsel %vm2093, %v4013, %v3172
        %v4046 = vsel %vm2093, %v4014, %v3174
        %v4047 = vsel %vm2093, %v4015, %v3176
        %v4048 = vsel %vm2093, %v4016, %v3178
        %v4049 = vsel %vm2093, %v4017, %v3180
        %v4050 = vsel %vm2093, %v4018, %v3182
        %v4051 = vsel %vm2093, %v4019, %v3184
        %v4052 = vsel %vm2093, %v4020, %v3186
        %v4053 = vsel %vm2093, %v4021, %v3188
        %v4054 = vsel %vm2093, %v4022, %v3190
        %v4055 = vsel %vm2126, %v4023, %v3256
        %v4056 = vsel %vm2126, %v4024, %v3258
        %v4057 = vsel %vm2126, %v4025, %v3260
        %v4058 = vsel %vm2126, %v4026, %v3262
        %v4059 = vsel %vm2126, %v4027, %v3264
        %v4060 = vsel %vm2126, %v4028, %v3266
        %v4061 = vsel %vm2126, %v4029, %v3268
        %v4062 = vsel %vm2126, %v4030, %v3270
        %v4063 = vsel %vm2126, %v4031, %v3272
        %v4064 = vsel %vm2126, %v4032, %v3274
        %v4065 = vsel %vm2126, %v4033, %v3276
        %v4066 = vsel %vm2126, %v4034, %v3278
        %v4067 = vsel %vm2126, %v4035, %v3280
        %v4068 = vsel %vm2126, %v4036, %v3282
        %v4069 = vsel %vm2126, %v4037, %v3284
        %v4070 = vsel %vm2126, %v4038, %v3286
        %v4071 = vsel %vm2126, %v4039, %v3288
        %v4072 = vsel %vm2126, %v4040, %v3290
        %v4073 = vsel %vm2126, %v4041, %v3292
        %v4074 = vsel %vm2126, %v4042, %v3294
        %v4075 = vsel %vm2126, %v4043, %v3296
        %v4076 = vsel %vm2126, %v4044, %v3298
        %v4077 = vsel %vm2126, %v4045, %v3300
        %v4078 = vsel %vm2126, %v4046, %v3302
        %v4079 = vsel %vm2126, %v4047, %v3304
        %v4080 = vsel %vm2126, %v4048, %v3306
        %v4081 = vsel %vm2126, %v4049, %v3308
        %v4082 = vsel %vm2126, %v4050, %v3310
        %v4083 = vsel %vm2126, %v4051, %v3312
        %v4084 = vsel %vm2126, %v4052, %v3314
        %v4085 = vsel %vm2126, %v4053, %v3316
        %v4086 = vsel %vm2126, %v4054, %v3318
        %v4087 = vsel %vm2159, %v4055, %v3384
        %v4088 = vsel %vm2159, %v4056, %v3386
        %v4089 = vsel %vm2159, %v4057, %v3388
        %v4090 = vsel %vm2159, %v4058, %v3390
        %v4091 = vsel %vm2159, %v4059, %v3392
        %v4092 = vsel %vm2159, %v4060, %v3394
        %v4093 = vsel %vm2159, %v4061, %v3396
        %v4094 = vsel %vm2159, %v4062, %v3398
        %v4095 = vsel %vm2159, %v4063, %v3400
        %v4096 = vsel %vm2159, %v4064, %v3402
        %v4097 = vsel %vm2159, %v4065, %v3404
        %v4098 = vsel %vm2159, %v4066, %v3406
        %v4099 = vsel %vm2159, %v4067, %v3408
        %v4100 = vsel %vm2159, %v4068, %v3410
        %v4101 = vsel %vm2159, %v4069, %v3412
        %v4102 = vsel %vm2159, %v4070, %v3414
        %v4103 = vsel %vm2159, %v4071, %v3416
        %v4104 = vsel %vm2159, %v4072, %v3418
        %v4105 = vsel %vm2159, %v4073, %v3420
        %v4106 = vsel %vm2159, %v4074, %v3422
        %v4107 = vsel %vm2159, %v4075, %v3424
        %v4108 = vsel %vm2159, %v4076, %v3426
        %v4109 = vsel %vm2159, %v4077, %v3428
        %v4110 = vsel %vm2159, %v4078, %v3430
        %v4111 = vsel %vm2159, %v4079, %v3432
        %v4112 = vsel %vm2159, %v4080, %v3434
        %v4113 = vsel %vm2159, %v4081, %v3436
        %v4114 = vsel %vm2159, %v4082, %v3438
        %v4115 = vsel %vm2159, %v4083, %v3440
        %v4116 = vsel %vm2159, %v4084, %v3442
        %v4117 = vsel %vm2159, %v4085, %v3444
        %v4118 = vsel %vm2159, %v4086, %v3446
        %v4119 = vsel %vm2192, %v4087, %v3512
        %v4120 = vsel %vm2192, %v4088, %v3514
        %v4121 = vsel %vm2192, %v4089, %v3516
        %v4122 = vsel %vm2192, %v4090, %v3518
        %v4123 = vsel %vm2192, %v4091, %v3520
        %v4124 = vsel %vm2192, %v4092, %v3522
        %v4125 = vsel %vm2192, %v4093, %v3524
        %v4126 = vsel %vm2192, %v4094, %v3526
        %v4127 = vsel %vm2192, %v4095, %v3528
        %v4128 = vsel %vm2192, %v4096, %v3530
        %v4129 = vsel %vm2192, %v4097, %v3532
        %v4130 = vsel %vm2192, %v4098, %v3534
        %v4131 = vsel %vm2192, %v4099, %v3536
        %v4132 = vsel %vm2192, %v4100, %v3538
        %v4133 = vsel %vm2192, %v4101, %v3540
        %v4134 = vsel %vm2192, %v4102, %v3542
        %v4135 = vsel %vm2192, %v4103, %v3544
        %v4136 = vsel %vm2192, %v4104, %v3546
        %v4137 = vsel %vm2192, %v4105, %v3548
        %v4138 = vsel %vm2192, %v4106, %v3550
        %v4139 = vsel %vm2192, %v4107, %v3552
        %v4140 = vsel %vm2192, %v4108, %v3554
        %v4141 = vsel %vm2192, %v4109, %v3556
        %v4142 = vsel %vm2192, %v4110, %v3558
        %v4143 = vsel %vm2192, %v4111, %v3560
        %v4144 = vsel %vm2192, %v4112, %v3562
        %v4145 = vsel %vm2192, %v4113, %v3564
        %v4146 = vsel %vm2192, %v4114, %v3566
        %v4147 = vsel %vm2192, %v4115, %v3568
        %v4148 = vsel %vm2192, %v4116, %v3570
        %v4149 = vsel %vm2192, %v4117, %v3572
        %v4150 = vsel %vm2192, %v4118, %v3574
        %v4151 = vsel %vm2225, %v4119, %v3640
        %v4152 = vsel %vm2225, %v4120, %v3642
        %v4153 = vsel %vm2225, %v4121, %v3644
        %v4154 = vsel %vm2225, %v4122, %v3646
        %v4155 = vsel %vm2225, %v4123, %v3648
        %v4156 = vsel %vm2225, %v4124, %v3650
        %v4157 = vsel %vm2225, %v4125, %v3652
        %v4158 = vsel %vm2225, %v4126, %v3654
        %v4159 = vsel %vm2225, %v4127, %v3656
        %v4160 = vsel %vm2225, %v4128, %v3658
        %v4161 = vsel %vm2225, %v4129, %v3660
        %v4162 = vsel %vm2225, %v4130, %v3662
        %v4163 = vsel %vm2225, %v4131, %v3664
        %v4164 = vsel %vm2225, %v4132, %v3666
        %v4165 = vsel %vm2225, %v4133, %v3668
        %v4166 = vsel %vm2225, %v4134, %v3670
        %v4167 = vsel %vm2225, %v4135, %v3672
        %v4168 = vsel %vm2225, %v4136, %v3674
        %v4169 = vsel %vm2225, %v4137, %v3676
        %v4170 = vsel %vm2225, %v4138, %v3678
        %v4171 = vsel %vm2225, %v4139, %v3680
        %v4172 = vsel %vm2225, %v4140, %v3682
        %v4173 = vsel %vm2225, %v4141, %v3684
        %v4174 = vsel %vm2225, %v4142, %v3686
        %v4175 = vsel %vm2225, %v4143, %v3688
        %v4176 = vsel %vm2225, %v4144, %v3690
        %v4177 = vsel %vm2225, %v4145, %v3692
        %v4178 = vsel %vm2225, %v4146, %v3694
        %v4179 = vsel %vm2225, %v4147, %v3696
        %v4180 = vsel %vm2225, %v4148, %v3698
        %v4181 = vsel %vm2225, %v4149, %v3700
        %v4182 = vsel %vm2225, %v4150, %v3702
        %v4183 = vsel %vm2258, %v4151, %v3768
        %v4184 = vsel %vm2258, %v4152, %v3770
        %v4185 = vsel %vm2258, %v4153, %v3772
        %v4186 = vsel %vm2258, %v4154, %v3774
        %v4187 = vsel %vm2258, %v4155, %v3776
        %v4188 = vsel %vm2258, %v4156, %v3778
        %v4189 = vsel %vm2258, %v4157, %v3780
        %v4190 = vsel %vm2258, %v4158, %v3782
        %v4191 = vsel %vm2258, %v4159, %v3784
        %v4192 = vsel %vm2258, %v4160, %v3786
        %v4193 = vsel %vm2258, %v4161, %v3788
        %v4194 = vsel %vm2258, %v4162, %v3790
        %v4195 = vsel %vm2258, %v4163, %v3792
        %v4196 = vsel %vm2258, %v4164, %v3794
        %v4197 = vsel %vm2258, %v4165, %v3796
        %v4198 = vsel %vm2258, %v4166, %v3798
        %v4199 = vsel %vm2258, %v4167, %v3800
        %v4200 = vsel %vm2258, %v4168, %v3802
        %v4201 = vsel %vm2258, %v4169, %v3804
        %v4202 = vsel %vm2258, %v4170, %v3806
        %v4203 = vsel %vm2258, %v4171, %v3808
        %v4204 = vsel %vm2258, %v4172, %v3810
        %v4205 = vsel %vm2258, %v4173, %v3812
        %v4206 = vsel %vm2258, %v4174, %v3814
        %v4207 = vsel %vm2258, %v4175, %v3816
        %v4208 = vsel %vm2258, %v4176, %v3818
        %v4209 = vsel %vm2258, %v4177, %v3820
        %v4210 = vsel %vm2258, %v4178, %v3822
        %v4211 = vsel %vm2258, %v4179, %v3824
        %v4212 = vsel %vm2258, %v4180, %v3826
        %v4213 = vsel %vm2258, %v4181, %v3828
        %v4214 = vsel %vm2258, %v4182, %v3830
        %v4215 = vsel %vm2291, %v4183, %v3896
        %v4216 = vsel %vm2291, %v4184, %v3898
        %v4217 = vsel %vm2291, %v4185, %v3900
        %v4218 = vsel %vm2291, %v4186, %v3902
        %v4219 = vsel %vm2291, %v4187, %v3904
        %v4220 = vsel %vm2291, %v4188, %v3906
        %v4221 = vsel %vm2291, %v4189, %v3908
        %v4222 = vsel %vm2291, %v4190, %v3910
        %v4223 = vsel %vm2291, %v4191, %v3912
        %v4224 = vsel %vm2291, %v4192, %v3914
        %v4225 = vsel %vm2291, %v4193, %v3916
        %v4226 = vsel %vm2291, %v4194, %v3918
        %v4227 = vsel %vm2291, %v4195, %v3920
        %v4228 = vsel %vm2291, %v4196, %v3922
        %v4229 = vsel %vm2291, %v4197, %v3924
        %v4230 = vsel %vm2291, %v4198, %v3926
        %v4231 = vsel %vm2291, %v4199, %v3928
        %v4232 = vsel %vm2291, %v4200, %v3930
        %v4233 = vsel %vm2291, %v4201, %v3932
        %v4234 = vsel %vm2291, %v4202, %v3934
        %v4235 = vsel %vm2291, %v4203, %v3936
        %v4236 = vsel %vm2291, %v4204, %v3938
        %v4237 = vsel %vm2291, %v4205, %v3940
        %v4238 = vsel %vm2291, %v4206, %v3942
        %v4239 = vsel %vm2291, %v4207, %v3944
        %v4240 = vsel %vm2291, %v4208, %v3946
        %v4241 = vsel %vm2291, %v4209, %v3948
        %v4242 = vsel %vm2291, %v4210, %v3950
        %v4243 = vsel %vm2291, %v4211, %v3952
        %v4244 = vsel %vm2291, %v4212, %v3954
        %v4245 = vsel %vm2291, %v4213, %v3956
        %v4246 = vsel %vm2291, %v4214, %v3958
        %v4247 = vsel %vm2324, %v4215, %v1966
        %v4248 = vsel %vm2324, %v4216, %v1968
        %v4249 = vsel %vm2324, %v4217, %v1970
        %v4250 = vsel %vm2324, %v4218, %v1972
        %v4251 = vsel %vm2324, %v4219, %v1974
        %v4252 = vsel %vm2324, %v4220, %v1976
        %v4253 = vsel %vm2324, %v4221, %v1978
        %v4254 = vsel %vm2324, %v4222, %v1980
        %v4255 = vsel %vm2324, %v4223, %v1982
        %v4256 = vsel %vm2324, %v4224, %v1984
        %v4257 = vsel %vm2324, %v4225, %v1986
        %v4258 = vsel %vm2324, %v4226, %v1988
        %v4259 = vsel %vm2324, %v4227, %v1990
        %v4260 = vsel %vm2324, %v4228, %v1992
        %v4261 = vsel %vm2324, %v4229, %v1994
        %v4262 = vsel %vm2324, %v4230, %v1996
        %v4263 = vsel %vm2324, %v4231, %v1998
        %v4264 = vsel %vm2324, %v4232, %v2000
        %v4265 = vsel %vm2324, %v4233, %v2002
        %v4266 = vsel %vm2324, %v4234, %v2004
        %v4267 = vsel %vm2324, %v4235, %v2006
        %v4268 = vsel %vm2324, %v4236, %v2008
        %v4269 = vsel %vm2324, %v4237, %v2010
        %v4270 = vsel %vm2324, %v4238, %v2012
        %v4271 = vsel %vm2324, %v4239, %v2014
        %v4272 = vsel %vm2324, %v4240, %v2016
        %v4273 = vsel %vm2324, %v4241, %v2018
        %v4274 = vsel %vm2324, %v4242, %v2020
        %v4275 = vsel %vm2324, %v4243, %v2022
        %v4276 = vsel %vm2324, %v4244, %v2024
        %v4277 = vsel %vm2324, %v4245, %v2026
        %v4278 = vsel %vm2324, %v4246, %v2028
        %v4279 = vpack.c.bf16 %v4248, %v4247
        %v4280 = vpack.c.bf16 %v4250, %v4249
        %v4281 = vpack.c.bf16 %v4252, %v4251
        %v4282 = vpack.c.bf16 %v4254, %v4253
        %v4283 = vpack.c.bf16 %v4256, %v4255
        %v4284 = vpack.c.bf16 %v4258, %v4257
        %v4285 = vpack.c.bf16 %v4260, %v4259
        %v4286 = vpack.c.bf16 %v4262, %v4261
        %v4287 = vpack.c.bf16 %v4264, %v4263
        %v4288 = vpack.c.bf16 %v4266, %v4265
        %v4289 = vpack.c.bf16 %v4268, %v4267
        %v4290 = vpack.c.bf16 %v4270, %v4269
        %v4291 = vpack.c.bf16 %v4272, %v4271
        %v4292 = vpack.c.bf16 %v4274, %v4273
        %v4293 = vpack.c.bf16 %v4276, %v4275
        %v4294 = vpack.c.bf16 %v4278, %v4277
        %s4295 = scalar_lea.vmem %s2, 20
        %v4296 = vld [vmem:[%s4295] sm:$0xf]
        %v4297 = vld [vmem:[%s4295 + $0x4] sm:$0xf]
        %v4298 = vld [vmem:[%s4295 + $0x8] sm:$0xf]
        %v4299 = vld [vmem:[%s4295 + $0xc] sm:$0xf]
        %v4300 = vld [vmem:[%s4295 + $0x10] sm:$0xf]
        %v4301 = vld [vmem:[%s3 + $0x1] sm:$0x1]
        %v4302 = vlaneseq
        %v4303 = vshrl.u32 %v4302, 7
        %v4304 = vsub.s32 0, %v4303
        %v4305 = vrot.slane %v4301, %v4304
        %v4311 = vunpack.c.l.b16 %v4296
        %v4312 = vunpack.c.l.b16 %v4297
        %v4313 = vunpack.c.l.b16 %v4298
        %v4314 = vunpack.c.l.b16 %v4299
        %v4315 = vunpack.c.l.b16 %v4300
        %v4316 = vpack.c.b16 %v4312, %v4311
        %v4317 = vpack.c.b16 %v4314, %v4313
        %v4318 = vpack.c.b16 %v4315, %v4315
        %v4322 = vsel %vm2398, %v4279, 0
        %v4325 = vsel %vm2398, %v4280, 0
        %v4328 = vsel %vm2398, %v4281, 0
        %v4331 = vsel %vm2398, %v4282, 0
        %v4334 = vsel %vm2398, %v4283, 0
        %v4337 = vsel %vm2398, %v4284, 0
        %v4340 = vsel %vm2398, %v4285, 0
        %v4343 = vsel %vm2398, %v4286, 0
        %v4346 = vsel %vm2398, %v4287, 0
        %v4349 = vsel %vm2398, %v4288, 0
        %v4352 = vsel %vm2398, %v4289, 0
        %v4355 = vsel %vm2398, %v4290, 0
        %v4358 = vsel %vm2398, %v4291, 0
        %v4361 = vsel %vm2398, %v4292, 0
        %v4364 = vsel %vm2398, %v4293, 0
        %v4367 = vsel %vm2398, %v4294, 0
        %v4370 = vsel %vm2447, %v4318, 0
        %4372 = vmatprep.subr.bf16.mxu0 0
        %4373 = vmatpush1.bf16.msra.mxu0 0
        %4374 = vmatprep.subr.bf16.mxu0 0
        %4375 = vmatpush1.bf16.msra.mxu0 0
        %4376 = vmatprep.subr.bf16.mxu0 0
        %4377 = vmatpush1.bf16.msra.mxu0 0
        %4378 = vmatprep.subr.bf16.mxu0 0
        %4379 = vmatpush1.bf16.msra.mxu0 0
        %4380 = vmatprep.subr.bf16.mxu0 0
        %4381 = vmatpush1.bf16.msra.mxu0 0
        %4382 = vmatprep.subr.bf16.mxu0 0
        %4383 = vmatpush1.bf16.msra.mxu0 %v4370
        %4384 = vmatprep.subr.bf16.mxu0 0
        %4385 = vmatpush1.bf16.msra.mxu0 %v4317
        %4386 = vmatprep.subr.bf16.mxu0 0
        %4387 = vmatpush1.bf16.msra.mxu0 %v4316
        %4388 = vmatprep.subr.bf16.mxu0 0
        %4389 = vmatpush2.bf16.msra.mxu0 0
        %4390 = vmatprep.subr.bf16.mxu0 0
        %4391 = vmatpush2.bf16.msra.mxu0 0
        %4392 = vmatprep.subr.bf16.mxu0 0
        %4393 = vmatpush2.bf16.msra.mxu0 0
        %4394 = vmatprep.subr.bf16.mxu0 0
        %4395 = vmatpush2.bf16.msra.mxu0 0
        %4396 = vmatprep.subr.bf16.mxu0 0
        %4397 = vmatpush2.bf16.msra.mxu0 0
        %4398 = vmatprep.subr.bf16.mxu0 0
        %4399 = vmatpush2.bf16.msra.mxu0 0
        %4400 = vmatprep.subr.bf16.mxu0 0
        %4401 = vmatpush2.bf16.msra.mxu0 0
        %4402 = vmatprep.subr.bf16.mxu0 0
        %4403 = vmatpush2.bf16.msra.mxu0 0
        %4404 = vmatprep.mubr.bf16.mxu0 0
        %4405 = vmatmul.mubr.bf16.gmra.mxu0 %v4322
        %v4406 = vpop.f32.mrf.mxu0
        %v4407 = vadd.f32 %v4305, %v4406
        %v4408 = vpop.f32.mrf.mxu0
        %v4409 = vpop.f32.mrf.mxu0
        %v4410 = vadd.f32 %v4305, %v4409
        %v4411 = vpop.f32.mrf.mxu0
        %4412 = vmatprep.mubr.bf16.mxu0 0
        %4413 = vmatmul.mubr.bf16.gmra.mxu0 %v4325
        %v4414 = vpop.f32.mrf.mxu0
        %v4415 = vadd.f32 %v4305, %v4414
        %v4416 = vpop.f32.mrf.mxu0
        %v4417 = vpop.f32.mrf.mxu0
        %v4418 = vadd.f32 %v4305, %v4417
        %v4419 = vpop.f32.mrf.mxu0
        %4420 = vmatprep.mubr.bf16.mxu0 0
        %4421 = vmatmul.mubr.bf16.gmra.mxu0 %v4328
        %v4422 = vpop.f32.mrf.mxu0
        %v4423 = vadd.f32 %v4305, %v4422
        %v4424 = vpop.f32.mrf.mxu0
        %v4425 = vpop.f32.mrf.mxu0
        %v4426 = vadd.f32 %v4305, %v4425
        %v4427 = vpop.f32.mrf.mxu0
        %4428 = vmatprep.mubr.bf16.mxu0 0
        %4429 = vmatmul.mubr.bf16.gmra.mxu0 %v4331
        %v4430 = vpop.f32.mrf.mxu0
        %v4431 = vadd.f32 %v4305, %v4430
        %v4432 = vpop.f32.mrf.mxu0
        %v4433 = vpop.f32.mrf.mxu0
        %v4434 = vadd.f32 %v4305, %v4433
        %v4435 = vpop.f32.mrf.mxu0
        %4436 = vmatprep.mubr.bf16.mxu0 0
        %4437 = vmatmul.mubr.bf16.gmra.mxu0 %v4334
        %v4438 = vpop.f32.mrf.mxu0
        %v4439 = vadd.f32 %v4305, %v4438
        %v4440 = vpop.f32.mrf.mxu0
        %v4441 = vpop.f32.mrf.mxu0
        %v4442 = vadd.f32 %v4305, %v4441
        %v4443 = vpop.f32.mrf.mxu0
        %4444 = vmatprep.mubr.bf16.mxu0 0
        %4445 = vmatmul.mubr.bf16.gmra.mxu0 %v4337
        %v4446 = vpop.f32.mrf.mxu0
        %v4447 = vadd.f32 %v4305, %v4446
        %v4448 = vpop.f32.mrf.mxu0
        %v4449 = vpop.f32.mrf.mxu0
        %v4450 = vadd.f32 %v4305, %v4449
        %v4451 = vpop.f32.mrf.mxu0
        %4452 = vmatprep.mubr.bf16.mxu0 0
        %4453 = vmatmul.mubr.bf16.gmra.mxu0 %v4340
        %v4454 = vpop.f32.mrf.mxu0
        %v4455 = vadd.f32 %v4305, %v4454
        %v4456 = vpop.f32.mrf.mxu0
        %v4457 = vpop.f32.mrf.mxu0
        %v4458 = vadd.f32 %v4305, %v4457
        %v4459 = vpop.f32.mrf.mxu0
        %4460 = vmatprep.mubr.bf16.mxu0 0
        %4461 = vmatmul.mubr.bf16.gmra.mxu0 %v4343
        %v4462 = vpop.f32.mrf.mxu0
        %v4463 = vadd.f32 %v4305, %v4462
        %v4464 = vpop.f32.mrf.mxu0
        %v4465 = vpop.f32.mrf.mxu0
        %v4466 = vadd.f32 %v4305, %v4465
        %v4467 = vpop.f32.mrf.mxu0
        %4468 = vmatprep.mubr.bf16.mxu0 0
        %4469 = vmatmul.mubr.bf16.gmra.mxu0 %v4346
        %v4470 = vpop.f32.mrf.mxu0
        %v4471 = vadd.f32 %v4305, %v4470
        %v4472 = vpop.f32.mrf.mxu0
        %v4473 = vpop.f32.mrf.mxu0
        %v4474 = vadd.f32 %v4305, %v4473
        %v4475 = vpop.f32.mrf.mxu0
        %4476 = vmatprep.mubr.bf16.mxu0 0
        %4477 = vmatmul.mubr.bf16.gmra.mxu0 %v4349
        %v4478 = vpop.f32.mrf.mxu0
        %v4479 = vadd.f32 %v4305, %v4478
        %v4480 = vpop.f32.mrf.mxu0
        %v4481 = vpop.f32.mrf.mxu0
        %v4482 = vadd.f32 %v4305, %v4481
        %v4483 = vpop.f32.mrf.mxu0
        %4484 = vmatprep.mubr.bf16.mxu0 0
        %4485 = vmatmul.mubr.bf16.gmra.mxu0 %v4352
        %v4486 = vpop.f32.mrf.mxu0
        %v4487 = vadd.f32 %v4305, %v4486
        %v4488 = vpop.f32.mrf.mxu0
        %v4489 = vpop.f32.mrf.mxu0
        %v4490 = vadd.f32 %v4305, %v4489
        %v4491 = vpop.f32.mrf.mxu0
        %4492 = vmatprep.mubr.bf16.mxu0 0
        %4493 = vmatmul.mubr.bf16.gmra.mxu0 %v4355
        %v4494 = vpop.f32.mrf.mxu0
        %v4495 = vadd.f32 %v4305, %v4494
        %v4496 = vpop.f32.mrf.mxu0
        %v4497 = vpop.f32.mrf.mxu0
        %v4498 = vadd.f32 %v4305, %v4497
        %v4499 = vpop.f32.mrf.mxu0
        %4500 = vmatprep.mubr.bf16.mxu0 0
        %4501 = vmatmul.mubr.bf16.gmra.mxu0 %v4358
        %v4502 = vpop.f32.mrf.mxu0
        %v4503 = vadd.f32 %v4305, %v4502
        %v4504 = vpop.f32.mrf.mxu0
        %v4505 = vpop.f32.mrf.mxu0
        %v4506 = vadd.f32 %v4305, %v4505
        %v4507 = vpop.f32.mrf.mxu0
        %4508 = vmatprep.mubr.bf16.mxu0 0
        %4509 = vmatmul.mubr.bf16.gmra.mxu0 %v4361
        %v4510 = vpop.f32.mrf.mxu0
        %v4511 = vadd.f32 %v4305, %v4510
        %v4512 = vpop.f32.mrf.mxu0
        %v4513 = vpop.f32.mrf.mxu0
        %v4514 = vadd.f32 %v4305, %v4513
        %v4515 = vpop.f32.mrf.mxu0
        %4516 = vmatprep.mubr.bf16.mxu0 0
        %4517 = vmatmul.mubr.bf16.gmra.mxu0 %v4364
        %v4518 = vpop.f32.mrf.mxu0
        %v4519 = vadd.f32 %v4305, %v4518
        %v4520 = vpop.f32.mrf.mxu0
        %v4521 = vpop.f32.mrf.mxu0
        %v4522 = vadd.f32 %v4305, %v4521
        %v4523 = vpop.f32.mrf.mxu0
        %4524 = vmatprep.mubr.bf16.mxu0 0
        %4525 = vmatmul.mubr.bf16.gmra.mxu0 %v4367
        %v4526 = vpop.f32.mrf.mxu0
        %v4527 = vadd.f32 %v4305, %v4526
        %v4528 = vpop.f32.mrf.mxu0
        %v4529 = vpop.f32.mrf.mxu0
        %v4530 = vadd.f32 %v4305, %v4529
        %v4531 = vpop.f32.mrf.mxu0
        %4532 = vdwg.mxu0
        %v4533 = vmax.f32 %v4407, 0.0
        %v4534 = vmax.f32 %v4410, 0.0
        %v4535 = vmax.f32 %v4415, 0.0
        %v4536 = vmax.f32 %v4418, 0.0
        %v4537 = vmax.f32 %v4423, 0.0
        %v4538 = vmax.f32 %v4426, 0.0
        %v4539 = vmax.f32 %v4431, 0.0
        %v4540 = vmax.f32 %v4434, 0.0
        %v4541 = vmax.f32 %v4439, 0.0
        %v4542 = vmax.f32 %v4442, 0.0
        %v4543 = vmax.f32 %v4447, 0.0
        %v4544 = vmax.f32 %v4450, 0.0
        %v4545 = vmax.f32 %v4455, 0.0
        %v4546 = vmax.f32 %v4458, 0.0
        %v4547 = vmax.f32 %v4463, 0.0
        %v4548 = vmax.f32 %v4466, 0.0
        %v4549 = vmax.f32 %v4471, 0.0
        %v4550 = vmax.f32 %v4474, 0.0
        %v4551 = vmax.f32 %v4479, 0.0
        %v4552 = vmax.f32 %v4482, 0.0
        %v4553 = vmax.f32 %v4487, 0.0
        %v4554 = vmax.f32 %v4490, 0.0
        %v4555 = vmax.f32 %v4495, 0.0
        %v4556 = vmax.f32 %v4498, 0.0
        %v4557 = vmax.f32 %v4503, 0.0
        %v4558 = vmax.f32 %v4506, 0.0
        %v4559 = vmax.f32 %v4511, 0.0
        %v4560 = vmax.f32 %v4514, 0.0
        %v4561 = vmax.f32 %v4519, 0.0
        %v4562 = vmax.f32 %v4522, 0.0
        %v4563 = vmax.f32 %v4527, 0.0
        %v4564 = vmax.f32 %v4530, 0.0
        %4565 = vst.msk [vmem:[%s2644 + $0x7] sm:$0xff] %vm217, %v4533
        %4566 = vst.msk [vmem:[%s2644 + $0xf] sm:$0xff] %vm217, %v4534
        %4567 = vst.msk [vmem:[%s2644 + $0x27] sm:$0xff] %vm217, %v4535
        %4568 = vst.msk [vmem:[%s2644 + $0x2f] sm:$0xff] %vm217, %v4536
        %4569 = vst.msk [vmem:[%s2644 + $0x47] sm:$0xff] %vm217, %v4537
        %4570 = vst.msk [vmem:[%s2644 + $0x4f] sm:$0xff] %vm217, %v4538
        %4571 = vst.msk [vmem:[%s2644 + $0x67] sm:$0xff] %vm217, %v4539
        %4572 = vst.msk [vmem:[%s2644 + $0x6f] sm:$0xff] %vm217, %v4540
        %4573 = vst.msk [vmem:[%s2644 + $0x87] sm:$0xff] %vm217, %v4541
        %4574 = vst.msk [vmem:[%s2644 + $0x8f] sm:$0xff] %vm217, %v4542
        %4575 = vst.msk [vmem:[%s2644 + $0xa7] sm:$0xff] %vm217, %v4543
        %4576 = vst.msk [vmem:[%s2644 + $0xaf] sm:$0xff] %vm217, %v4544
        %4577 = vst.msk [vmem:[%s2644 + $0xc7] sm:$0xff] %vm217, %v4545
        %4578 = vst.msk [vmem:[%s2644 + $0xcf] sm:$0xff] %vm217, %v4546
        %4579 = vst.msk [vmem:[%s2644 + $0xe7] sm:$0xff] %vm217, %v4547
        %4580 = vst.msk [vmem:[%s2644 + $0xef] sm:$0xff] %vm217, %v4548
        %4581 = vst.msk [vmem:[%s2644 + $0x107] sm:$0xff] %vm217, %v4549
        %4582 = vst.msk [vmem:[%s2644 + $0x10f] sm:$0xff] %vm217, %v4550
        %4583 = vst.msk [vmem:[%s2644 + $0x127] sm:$0xff] %vm217, %v4551
        %4584 = vst.msk [vmem:[%s2644 + $0x12f] sm:$0xff] %vm217, %v4552
        %4585 = vst.msk [vmem:[%s2644 + $0x147] sm:$0xff] %vm217, %v4553
        %4586 = vst.msk [vmem:[%s2644 + $0x14f] sm:$0xff] %vm217, %v4554
        %4587 = vst.msk [vmem:[%s2644 + $0x167] sm:$0xff] %vm217, %v4555
        %4588 = vst.msk [vmem:[%s2644 + $0x16f] sm:$0xff] %vm217, %v4556
        %4589 = vst.msk [vmem:[%s2644 + $0x187] sm:$0xff] %vm217, %v4557
        %4590 = vst.msk [vmem:[%s2644 + $0x18f] sm:$0xff] %vm217, %v4558
        %4591 = vst.msk [vmem:[%s2644 + $0x1a7] sm:$0xff] %vm217, %v4559
        %4592 = vst.msk [vmem:[%s2644 + $0x1af] sm:$0xff] %vm217, %v4560
        %4593 = vst.msk [vmem:[%s2644 + $0x1c7] sm:$0xff] %vm217, %v4561
        %4594 = vst.msk [vmem:[%s2644 + $0x1cf] sm:$0xff] %vm217, %v4562
        %4595 = vst.msk [vmem:[%s2644 + $0x1e7] sm:$0xff] %vm217, %v4563
        %4596 = vst.msk [vmem:[%s2644 + $0x1ef] sm:$0xff] %vm217, %v4564
        %s4597 = scalar_lea.vmem [#allocation3], 128
        %v4598 = vld [vmem:[%s4597 + $0x4] sm:$0xff]
        %v4599 = vld [vmem:[%s4597 + $0xc] sm:$0xff]
        %v4600 = vld [vmem:[%s4597 + $0x24] sm:$0xff]
        %v4601 = vld [vmem:[%s4597 + $0x2c] sm:$0xff]
        %v4602 = vld [vmem:[%s4597 + $0x44] sm:$0xff]
        %v4603 = vld [vmem:[%s4597 + $0x4c] sm:$0xff]
        %v4604 = vld [vmem:[%s4597 + $0x64] sm:$0xff]
        %v4605 = vld [vmem:[%s4597 + $0x6c] sm:$0xff]
        %v4606 = vld [vmem:[%s4597 + $0x84] sm:$0xff]
        %v4607 = vld [vmem:[%s4597 + $0x8c] sm:$0xff]
        %v4608 = vld [vmem:[%s4597 + $0xa4] sm:$0xff]
        %v4609 = vld [vmem:[%s4597 + $0xac] sm:$0xff]
        %v4610 = vld [vmem:[%s4597 + $0xc4] sm:$0xff]
        %v4611 = vld [vmem:[%s4597 + $0xcc] sm:$0xff]
        %v4612 = vld [vmem:[%s4597 + $0xe4] sm:$0xff]
        %v4613 = vld [vmem:[%s4597 + $0xec] sm:$0xff]
        %v4614 = vld [vmem:[%s4597 + $0x104] sm:$0xff]
        %v4615 = vld [vmem:[%s4597 + $0x10c] sm:$0xff]
        %v4616 = vld [vmem:[%s4597 + $0x124] sm:$0xff]
        %v4617 = vld [vmem:[%s4597 + $0x12c] sm:$0xff]
        %v4618 = vld [vmem:[%s4597 + $0x144] sm:$0xff]
        %v4619 = vld [vmem:[%s4597 + $0x14c] sm:$0xff]
        %v4620 = vld [vmem:[%s4597 + $0x164] sm:$0xff]
        %v4621 = vld [vmem:[%s4597 + $0x16c] sm:$0xff]
        %v4622 = vld [vmem:[%s4597 + $0x184] sm:$0xff]
        %v4623 = vld [vmem:[%s4597 + $0x18c] sm:$0xff]
        %v4624 = vld [vmem:[%s4597 + $0x1a4] sm:$0xff]
        %v4625 = vld [vmem:[%s4597 + $0x1ac] sm:$0xff]
        %v4626 = vld [vmem:[%s4597 + $0x1c4] sm:$0xff]
        %v4627 = vld [vmem:[%s4597 + $0x1cc] sm:$0xff]
        %v4628 = vld [vmem:[%s4597 + $0x1e4] sm:$0xff]
        %v4629 = vld [vmem:[%s4597 + $0x1ec] sm:$0xff]
        %v4630 = vld [vmem:[%s4597 + $0x7] sm:$0xff]
        %v4631 = vld [vmem:[%s4597 + $0xf] sm:$0xff]
        %v4632 = vld [vmem:[%s4597 + $0x27] sm:$0xff]
        %v4633 = vld [vmem:[%s4597 + $0x2f] sm:$0xff]
        %v4634 = vld [vmem:[%s4597 + $0x47] sm:$0xff]
        %v4635 = vld [vmem:[%s4597 + $0x4f] sm:$0xff]
        %v4636 = vld [vmem:[%s4597 + $0x67] sm:$0xff]
        %v4637 = vld [vmem:[%s4597 + $0x6f] sm:$0xff]
        %v4638 = vld [vmem:[%s4597 + $0x87] sm:$0xff]
        %v4639 = vld [vmem:[%s4597 + $0x8f] sm:$0xff]
        %v4640 = vld [vmem:[%s4597 + $0xa7] sm:$0xff]
        %v4641 = vld [vmem:[%s4597 + $0xaf] sm:$0xff]
        %v4642 = vld [vmem:[%s4597 + $0xc7] sm:$0xff]
        %v4643 = vld [vmem:[%s4597 + $0xcf] sm:$0xff]
        %v4644 = vld [vmem:[%s4597 + $0xe7] sm:$0xff]
        %v4645 = vld [vmem:[%s4597 + $0xef] sm:$0xff]
        %v4646 = vld [vmem:[%s4597 + $0x107] sm:$0xff]
        %v4647 = vld [vmem:[%s4597 + $0x10f] sm:$0xff]
        %v4648 = vld [vmem:[%s4597 + $0x127] sm:$0xff]
        %v4649 = vld [vmem:[%s4597 + $0x12f] sm:$0xff]
        %v4650 = vld [vmem:[%s4597 + $0x147] sm:$0xff]
        %v4651 = vld [vmem:[%s4597 + $0x14f] sm:$0xff]
        %v4652 = vld [vmem:[%s4597 + $0x167] sm:$0xff]
        %v4653 = vld [vmem:[%s4597 + $0x16f] sm:$0xff]
        %v4654 = vld [vmem:[%s4597 + $0x187] sm:$0xff]
        %v4655 = vld [vmem:[%s4597 + $0x18f] sm:$0xff]
        %v4656 = vld [vmem:[%s4597 + $0x1a7] sm:$0xff]
        %v4657 = vld [vmem:[%s4597 + $0x1af] sm:$0xff]
        %v4658 = vld [vmem:[%s4597 + $0x1c7] sm:$0xff]
        %v4659 = vld [vmem:[%s4597 + $0x1cf] sm:$0xff]
        %v4660 = vld [vmem:[%s4597 + $0x1e7] sm:$0xff]
        %v4661 = vld [vmem:[%s4597 + $0x1ef] sm:$0xff]
        %v4662 = vld [vmem:[%s4597 + $0xa] sm:$0xff]
        %v4663 = vld [vmem:[%s4597 + $0x12] sm:$0xff]
        %v4664 = vld [vmem:[%s4597 + $0x2a] sm:$0xff]
        %v4665 = vld [vmem:[%s4597 + $0x32] sm:$0xff]
        %v4666 = vld [vmem:[%s4597 + $0x4a] sm:$0xff]
        %v4667 = vld [vmem:[%s4597 + $0x52] sm:$0xff]
        %v4668 = vld [vmem:[%s4597 + $0x6a] sm:$0xff]
        %v4669 = vld [vmem:[%s4597 + $0x72] sm:$0xff]
        %v4670 = vld [vmem:[%s4597 + $0x8a] sm:$0xff]
        %v4671 = vld [vmem:[%s4597 + $0x92] sm:$0xff]
        %v4672 = vld [vmem:[%s4597 + $0xaa] sm:$0xff]
        %v4673 = vld [vmem:[%s4597 + $0xb2] sm:$0xff]
        %v4674 = vld [vmem:[%s4597 + $0xca] sm:$0xff]
        %v4675 = vld [vmem:[%s4597 + $0xd2] sm:$0xff]
        %v4676 = vld [vmem:[%s4597 + $0xea] sm:$0xff]
        %v4677 = vld [vmem:[%s4597 + $0xf2] sm:$0xff]
        %v4678 = vld [vmem:[%s4597 + $0x10a] sm:$0xff]
        %v4679 = vld [vmem:[%s4597 + $0x112] sm:$0xff]
        %v4680 = vld [vmem:[%s4597 + $0x12a] sm:$0xff]
        %v4681 = vld [vmem:[%s4597 + $0x132] sm:$0xff]
        %v4682 = vld [vmem:[%s4597 + $0x14a] sm:$0xff]
        %v4683 = vld [vmem:[%s4597 + $0x152] sm:$0xff]
        %v4684 = vld [vmem:[%s4597 + $0x16a] sm:$0xff]
        %v4685 = vld [vmem:[%s4597 + $0x172] sm:$0xff]
        %v4686 = vld [vmem:[%s4597 + $0x18a] sm:$0xff]
        %v4687 = vld [vmem:[%s4597 + $0x192] sm:$0xff]
        %v4688 = vld [vmem:[%s4597 + $0x1aa] sm:$0xff]
        %v4689 = vld [vmem:[%s4597 + $0x1b2] sm:$0xff]
        %v4690 = vld [vmem:[%s4597 + $0x1ca] sm:$0xff]
        %v4691 = vld [vmem:[%s4597 + $0x1d2] sm:$0xff]
        %v4692 = vld [vmem:[%s4597 + $0x1ea] sm:$0xff]
        %v4693 = vld [vmem:[%s4597 + $0x1f2] sm:$0xff]
        %v4694 = vld [vmem:[%s2644 + $0x4] sm:$0xff]
        %v4695 = vld [vmem:[%s2644 + $0xc] sm:$0xff]
        %v4696 = vld [vmem:[%s2644 + $0x24] sm:$0xff]
        %v4697 = vld [vmem:[%s2644 + $0x2c] sm:$0xff]
        %v4698 = vld [vmem:[%s2644 + $0x44] sm:$0xff]
        %v4699 = vld [vmem:[%s2644 + $0x4c] sm:$0xff]
        %v4700 = vld [vmem:[%s2644 + $0x64] sm:$0xff]
        %v4701 = vld [vmem:[%s2644 + $0x6c] sm:$0xff]
        %v4702 = vld [vmem:[%s2644 + $0x84] sm:$0xff]
        %v4703 = vld [vmem:[%s2644 + $0x8c] sm:$0xff]
        %v4704 = vld [vmem:[%s2644 + $0xa4] sm:$0xff]
        %v4705 = vld [vmem:[%s2644 + $0xac] sm:$0xff]
        %v4706 = vld [vmem:[%s2644 + $0xc4] sm:$0xff]
        %v4707 = vld [vmem:[%s2644 + $0xcc] sm:$0xff]
        %v4708 = vld [vmem:[%s2644 + $0xe4] sm:$0xff]
        %v4709 = vld [vmem:[%s2644 + $0xec] sm:$0xff]
        %v4710 = vld [vmem:[%s2644 + $0x104] sm:$0xff]
        %v4711 = vld [vmem:[%s2644 + $0x10c] sm:$0xff]
        %v4712 = vld [vmem:[%s2644 + $0x124] sm:$0xff]
        %v4713 = vld [vmem:[%s2644 + $0x12c] sm:$0xff]
        %v4714 = vld [vmem:[%s2644 + $0x144] sm:$0xff]
        %v4715 = vld [vmem:[%s2644 + $0x14c] sm:$0xff]
        %v4716 = vld [vmem:[%s2644 + $0x164] sm:$0xff]
        %v4717 = vld [vmem:[%s2644 + $0x16c] sm:$0xff]
        %v4718 = vld [vmem:[%s2644 + $0x184] sm:$0xff]
        %v4719 = vld [vmem:[%s2644 + $0x18c] sm:$0xff]
        %v4720 = vld [vmem:[%s2644 + $0x1a4] sm:$0xff]
        %v4721 = vld [vmem:[%s2644 + $0x1ac] sm:$0xff]
        %v4722 = vld [vmem:[%s2644 + $0x1c4] sm:$0xff]
        %v4723 = vld [vmem:[%s2644 + $0x1cc] sm:$0xff]
        %v4724 = vld [vmem:[%s2644 + $0x1e4] sm:$0xff]
        %v4725 = vld [vmem:[%s2644 + $0x1ec] sm:$0xff]
        %v4726 = vld [vmem:[%s2644 + $0x7] sm:$0xff]
        %v4727 = vld [vmem:[%s2644 + $0xf] sm:$0xff]
        %v4728 = vld [vmem:[%s2644 + $0x27] sm:$0xff]
        %v4729 = vld [vmem:[%s2644 + $0x2f] sm:$0xff]
        %v4730 = vld [vmem:[%s2644 + $0x47] sm:$0xff]
        %v4731 = vld [vmem:[%s2644 + $0x4f] sm:$0xff]
        %v4732 = vld [vmem:[%s2644 + $0x67] sm:$0xff]
        %v4733 = vld [vmem:[%s2644 + $0x6f] sm:$0xff]
        %v4734 = vld [vmem:[%s2644 + $0x87] sm:$0xff]
        %v4735 = vld [vmem:[%s2644 + $0x8f] sm:$0xff]
        %v4736 = vld [vmem:[%s2644 + $0xa7] sm:$0xff]
        %v4737 = vld [vmem:[%s2644 + $0xaf] sm:$0xff]
        %v4738 = vld [vmem:[%s2644 + $0xc7] sm:$0xff]
        %v4739 = vld [vmem:[%s2644 + $0xcf] sm:$0xff]
        %v4740 = vld [vmem:[%s2644 + $0xe7] sm:$0xff]
        %v4741 = vld [vmem:[%s2644 + $0xef] sm:$0xff]
        %v4742 = vld [vmem:[%s2644 + $0x107] sm:$0xff]
        %v4743 = vld [vmem:[%s2644 + $0x10f] sm:$0xff]
        %v4744 = vld [vmem:[%s2644 + $0x127] sm:$0xff]
        %v4745 = vld [vmem:[%s2644 + $0x12f] sm:$0xff]
        %v4746 = vld [vmem:[%s2644 + $0x147] sm:$0xff]
        %v4747 = vld [vmem:[%s2644 + $0x14f] sm:$0xff]
        %v4748 = vld [vmem:[%s2644 + $0x167] sm:$0xff]
        %v4749 = vld [vmem:[%s2644 + $0x16f] sm:$0xff]
        %v4750 = vld [vmem:[%s2644 + $0x187] sm:$0xff]
        %v4751 = vld [vmem:[%s2644 + $0x18f] sm:$0xff]
        %v4752 = vld [vmem:[%s2644 + $0x1a7] sm:$0xff]
        %v4753 = vld [vmem:[%s2644 + $0x1af] sm:$0xff]
        %v4754 = vld [vmem:[%s2644 + $0x1c7] sm:$0xff]
        %v4755 = vld [vmem:[%s2644 + $0x1cf] sm:$0xff]
        %v4756 = vld [vmem:[%s2644 + $0x1e7] sm:$0xff]
        %v4757 = vld [vmem:[%s2644 + $0x1ef] sm:$0xff]
        %v4758 = vld [vmem:[%s2644 + $0xa] sm:$0xff]
        %v4759 = vld [vmem:[%s2644 + $0x12] sm:$0xff]
        %v4760 = vld [vmem:[%s2644 + $0x2a] sm:$0xff]
        %v4761 = vld [vmem:[%s2644 + $0x32] sm:$0xff]
        %v4762 = vld [vmem:[%s2644 + $0x4a] sm:$0xff]
        %v4763 = vld [vmem:[%s2644 + $0x52] sm:$0xff]
        %v4764 = vld [vmem:[%s2644 + $0x6a] sm:$0xff]
        %v4765 = vld [vmem:[%s2644 + $0x72] sm:$0xff]
        %v4766 = vld [vmem:[%s2644 + $0x8a] sm:$0xff]
        %v4767 = vld [vmem:[%s2644 + $0x92] sm:$0xff]
        %v4768 = vld [vmem:[%s2644 + $0xaa] sm:$0xff]
        %v4769 = vld [vmem:[%s2644 + $0xb2] sm:$0xff]
        %v4770 = vld [vmem:[%s2644 + $0xca] sm:$0xff]
        %v4771 = vld [vmem:[%s2644 + $0xd2] sm:$0xff]
        %v4772 = vld [vmem:[%s2644 + $0xea] sm:$0xff]
        %v4773 = vld [vmem:[%s2644 + $0xf2] sm:$0xff]
        %v4774 = vld [vmem:[%s2644 + $0x10a] sm:$0xff]
        %v4775 = vld [vmem:[%s2644 + $0x112] sm:$0xff]
        %v4776 = vld [vmem:[%s2644 + $0x12a] sm:$0xff]
        %v4777 = vld [vmem:[%s2644 + $0x132] sm:$0xff]
        %v4778 = vld [vmem:[%s2644 + $0x14a] sm:$0xff]
        %v4779 = vld [vmem:[%s2644 + $0x152] sm:$0xff]
        %v4780 = vld [vmem:[%s2644 + $0x16a] sm:$0xff]
        %v4781 = vld [vmem:[%s2644 + $0x172] sm:$0xff]
        %v4782 = vld [vmem:[%s2644 + $0x18a] sm:$0xff]
        %v4783 = vld [vmem:[%s2644 + $0x192] sm:$0xff]
        %v4784 = vld [vmem:[%s2644 + $0x1aa] sm:$0xff]
        %v4785 = vld [vmem:[%s2644 + $0x1b2] sm:$0xff]
        %v4786 = vld [vmem:[%s2644 + $0x1ca] sm:$0xff]
        %v4787 = vld [vmem:[%s2644 + $0x1d2] sm:$0xff]
        %v4788 = vld [vmem:[%s2644 + $0x1ea] sm:$0xff]
        %v4789 = vld [vmem:[%s2644 + $0x1f2] sm:$0xff]
        %s4790 = scalar_lea.vmem [#allocation3], 320
        %v4791 = vld [vmem:[%s4790 + $0x4] sm:$0xff]
        %v4792 = vld [vmem:[%s4790 + $0xc] sm:$0xff]
        %v4793 = vld [vmem:[%s4790 + $0x24] sm:$0xff]
        %v4794 = vld [vmem:[%s4790 + $0x2c] sm:$0xff]
        %v4795 = vld [vmem:[%s4790 + $0x44] sm:$0xff]
        %v4796 = vld [vmem:[%s4790 + $0x4c] sm:$0xff]
        %v4797 = vld [vmem:[%s4790 + $0x64] sm:$0xff]
        %v4798 = vld [vmem:[%s4790 + $0x6c] sm:$0xff]
        %v4799 = vld [vmem:[%s4790 + $0x84] sm:$0xff]
        %v4800 = vld [vmem:[%s4790 + $0x8c] sm:$0xff]
        %v4801 = vld [vmem:[%s4790 + $0xa4] sm:$0xff]
        %v4802 = vld [vmem:[%s4790 + $0xac] sm:$0xff]
        %v4803 = vld [vmem:[%s4790 + $0xc4] sm:$0xff]
        %v4804 = vld [vmem:[%s4790 + $0xcc] sm:$0xff]
        %v4805 = vld [vmem:[%s4790 + $0xe4] sm:$0xff]
        %v4806 = vld [vmem:[%s4790 + $0xec] sm:$0xff]
        %v4807 = vld [vmem:[%s4790 + $0x104] sm:$0xff]
        %v4808 = vld [vmem:[%s4790 + $0x10c] sm:$0xff]
        %v4809 = vld [vmem:[%s4790 + $0x124] sm:$0xff]
        %v4810 = vld [vmem:[%s4790 + $0x12c] sm:$0xff]
        %v4811 = vld [vmem:[%s4790 + $0x144] sm:$0xff]
        %v4812 = vld [vmem:[%s4790 + $0x14c] sm:$0xff]
        %v4813 = vld [vmem:[%s4790 + $0x164] sm:$0xff]
        %v4814 = vld [vmem:[%s4790 + $0x16c] sm:$0xff]
        %v4815 = vld [vmem:[%s4790 + $0x184] sm:$0xff]
        %v4816 = vld [vmem:[%s4790 + $0x18c] sm:$0xff]
        %v4817 = vld [vmem:[%s4790 + $0x1a4] sm:$0xff]
        %v4818 = vld [vmem:[%s4790 + $0x1ac] sm:$0xff]
        %v4819 = vld [vmem:[%s4790 + $0x1c4] sm:$0xff]
        %v4820 = vld [vmem:[%s4790 + $0x1cc] sm:$0xff]
        %v4821 = vld [vmem:[%s4790 + $0x1e4] sm:$0xff]
        %v4822 = vld [vmem:[%s4790 + $0x1ec] sm:$0xff]
        %v4823 = vld [vmem:[%s4790 + $0x7] sm:$0xff]
        %v4824 = vld [vmem:[%s4790 + $0xf] sm:$0xff]
        %v4825 = vld [vmem:[%s4790 + $0x27] sm:$0xff]
        %v4826 = vld [vmem:[%s4790 + $0x2f] sm:$0xff]
        %v4827 = vld [vmem:[%s4790 + $0x47] sm:$0xff]
        %v4828 = vld [vmem:[%s4790 + $0x4f] sm:$0xff]
        %v4829 = vld [vmem:[%s4790 + $0x67] sm:$0xff]
        %v4830 = vld [vmem:[%s4790 + $0x6f] sm:$0xff]
        %v4831 = vld [vmem:[%s4790 + $0x87] sm:$0xff]
        %v4832 = vld [vmem:[%s4790 + $0x8f] sm:$0xff]
        %v4833 = vld [vmem:[%s4790 + $0xa7] sm:$0xff]
        %v4834 = vld [vmem:[%s4790 + $0xaf] sm:$0xff]
        %v4835 = vld [vmem:[%s4790 + $0xc7] sm:$0xff]
        %v4836 = vld [vmem:[%s4790 + $0xcf] sm:$0xff]
        %v4837 = vld [vmem:[%s4790 + $0xe7] sm:$0xff]
        %v4838 = vld [vmem:[%s4790 + $0xef] sm:$0xff]
        %v4839 = vld [vmem:[%s4790 + $0x107] sm:$0xff]
        %v4840 = vld [vmem:[%s4790 + $0x10f] sm:$0xff]
        %v4841 = vld [vmem:[%s4790 + $0x127] sm:$0xff]
        %v4842 = vld [vmem:[%s4790 + $0x12f] sm:$0xff]
        %v4843 = vld [vmem:[%s4790 + $0x147] sm:$0xff]
        %v4844 = vld [vmem:[%s4790 + $0x14f] sm:$0xff]
        %v4845 = vld [vmem:[%s4790 + $0x167] sm:$0xff]
        %v4846 = vld [vmem:[%s4790 + $0x16f] sm:$0xff]
        %v4847 = vld [vmem:[%s4790 + $0x187] sm:$0xff]
        %v4848 = vld [vmem:[%s4790 + $0x18f] sm:$0xff]
        %v4849 = vld [vmem:[%s4790 + $0x1a7] sm:$0xff]
        %v4850 = vld [vmem:[%s4790 + $0x1af] sm:$0xff]
        %v4851 = vld [vmem:[%s4790 + $0x1c7] sm:$0xff]
        %v4852 = vld [vmem:[%s4790 + $0x1cf] sm:$0xff]
        %v4853 = vld [vmem:[%s4790 + $0x1e7] sm:$0xff]
        %v4854 = vld [vmem:[%s4790 + $0x1ef] sm:$0xff]
        %v4855 = vld [vmem:[%s4790 + $0xa] sm:$0xff]
        %v4856 = vld [vmem:[%s4790 + $0x12] sm:$0xff]
        %v4857 = vld [vmem:[%s4790 + $0x2a] sm:$0xff]
        %v4858 = vld [vmem:[%s4790 + $0x32] sm:$0xff]
        %v4859 = vld [vmem:[%s4790 + $0x4a] sm:$0xff]
        %v4860 = vld [vmem:[%s4790 + $0x52] sm:$0xff]
        %v4861 = vld [vmem:[%s4790 + $0x6a] sm:$0xff]
        %v4862 = vld [vmem:[%s4790 + $0x72] sm:$0xff]
        %v4863 = vld [vmem:[%s4790 + $0x8a] sm:$0xff]
        %v4864 = vld [vmem:[%s4790 + $0x92] sm:$0xff]
        %v4865 = vld [vmem:[%s4790 + $0xaa] sm:$0xff]
        %v4866 = vld [vmem:[%s4790 + $0xb2] sm:$0xff]
        %v4867 = vld [vmem:[%s4790 + $0xca] sm:$0xff]
        %v4868 = vld [vmem:[%s4790 + $0xd2] sm:$0xff]
        %v4869 = vld [vmem:[%s4790 + $0xea] sm:$0xff]
        %v4870 = vld [vmem:[%s4790 + $0xf2] sm:$0xff]
        %v4871 = vld [vmem:[%s4790 + $0x10a] sm:$0xff]
        %v4872 = vld [vmem:[%s4790 + $0x112] sm:$0xff]
        %v4873 = vld [vmem:[%s4790 + $0x12a] sm:$0xff]
        %v4874 = vld [vmem:[%s4790 + $0x132] sm:$0xff]
        %v4875 = vld [vmem:[%s4790 + $0x14a] sm:$0xff]
        %v4876 = vld [vmem:[%s4790 + $0x152] sm:$0xff]
        %v4877 = vld [vmem:[%s4790 + $0x16a] sm:$0xff]
        %v4878 = vld [vmem:[%s4790 + $0x172] sm:$0xff]
        %v4879 = vld [vmem:[%s4790 + $0x18a] sm:$0xff]
        %v4880 = vld [vmem:[%s4790 + $0x192] sm:$0xff]
        %v4881 = vld [vmem:[%s4790 + $0x1aa] sm:$0xff]
        %v4882 = vld [vmem:[%s4790 + $0x1b2] sm:$0xff]
        %v4883 = vld [vmem:[%s4790 + $0x1ca] sm:$0xff]
        %v4884 = vld [vmem:[%s4790 + $0x1d2] sm:$0xff]
        %v4885 = vld [vmem:[%s4790 + $0x1ea] sm:$0xff]
        %v4886 = vld [vmem:[%s4790 + $0x1f2] sm:$0xff]
        %4919 = vrot.lane.b32.xlu0 %v4630, 4
        %v4920 = vpop.permute.xlu0 %4919
        %4921 = vrot.lane.b32.xlu0 %v4631, 4
        %v4922 = vpop.permute.xlu0 %4921
        %4923 = vrot.lane.b32.xlu0 %v4632, 4
        %v4924 = vpop.permute.xlu0 %4923
        %4925 = vrot.lane.b32.xlu0 %v4633, 4
        %v4926 = vpop.permute.xlu0 %4925
        %4927 = vrot.lane.b32.xlu0 %v4634, 4
        %v4928 = vpop.permute.xlu0 %4927
        %4929 = vrot.lane.b32.xlu0 %v4635, 4
        %v4930 = vpop.permute.xlu0 %4929
        %4931 = vrot.lane.b32.xlu0 %v4636, 4
        %v4932 = vpop.permute.xlu0 %4931
        %4933 = vrot.lane.b32.xlu0 %v4637, 4
        %v4934 = vpop.permute.xlu0 %4933
        %4935 = vrot.lane.b32.xlu0 %v4638, 4
        %v4936 = vpop.permute.xlu0 %4935
        %4937 = vrot.lane.b32.xlu0 %v4639, 4
        %v4938 = vpop.permute.xlu0 %4937
        %4939 = vrot.lane.b32.xlu0 %v4640, 4
        %v4940 = vpop.permute.xlu0 %4939
        %4941 = vrot.lane.b32.xlu0 %v4641, 4
        %v4942 = vpop.permute.xlu0 %4941
        %4943 = vrot.lane.b32.xlu0 %v4642, 4
        %v4944 = vpop.permute.xlu0 %4943
        %4945 = vrot.lane.b32.xlu0 %v4643, 4
        %v4946 = vpop.permute.xlu0 %4945
        %4947 = vrot.lane.b32.xlu0 %v4644, 4
        %v4948 = vpop.permute.xlu0 %4947
        %4949 = vrot.lane.b32.xlu0 %v4645, 4
        %v4950 = vpop.permute.xlu0 %4949
        %4951 = vrot.lane.b32.xlu0 %v4646, 4
        %v4952 = vpop.permute.xlu0 %4951
        %4953 = vrot.lane.b32.xlu0 %v4647, 4
        %v4954 = vpop.permute.xlu0 %4953
        %4955 = vrot.lane.b32.xlu0 %v4648, 4
        %v4956 = vpop.permute.xlu0 %4955
        %4957 = vrot.lane.b32.xlu0 %v4649, 4
        %v4958 = vpop.permute.xlu0 %4957
        %4959 = vrot.lane.b32.xlu0 %v4650, 4
        %v4960 = vpop.permute.xlu0 %4959
        %4961 = vrot.lane.b32.xlu0 %v4651, 4
        %v4962 = vpop.permute.xlu0 %4961
        %4963 = vrot.lane.b32.xlu0 %v4652, 4
        %v4964 = vpop.permute.xlu0 %4963
        %4965 = vrot.lane.b32.xlu0 %v4653, 4
        %v4966 = vpop.permute.xlu0 %4965
        %4967 = vrot.lane.b32.xlu0 %v4654, 4
        %v4968 = vpop.permute.xlu0 %4967
        %4969 = vrot.lane.b32.xlu0 %v4655, 4
        %v4970 = vpop.permute.xlu0 %4969
        %4971 = vrot.lane.b32.xlu0 %v4656, 4
        %v4972 = vpop.permute.xlu0 %4971
        %4973 = vrot.lane.b32.xlu0 %v4657, 4
        %v4974 = vpop.permute.xlu0 %4973
        %4975 = vrot.lane.b32.xlu0 %v4658, 4
        %v4976 = vpop.permute.xlu0 %4975
        %4977 = vrot.lane.b32.xlu0 %v4659, 4
        %v4978 = vpop.permute.xlu0 %4977
        %4979 = vrot.lane.b32.xlu0 %v4660, 4
        %v4980 = vpop.permute.xlu0 %4979
        %4981 = vrot.lane.b32.xlu0 %v4661, 4
        %v4982 = vpop.permute.xlu0 %4981
        %5047 = vrot.lane.b32.xlu0 %v4662, 8
        %v5048 = vpop.permute.xlu0 %5047
        %5049 = vrot.lane.b32.xlu0 %v4663, 8
        %v5050 = vpop.permute.xlu0 %5049
        %5051 = vrot.lane.b32.xlu0 %v4664, 8
        %v5052 = vpop.permute.xlu0 %5051
        %5053 = vrot.lane.b32.xlu0 %v4665, 8
        %v5054 = vpop.permute.xlu0 %5053
        %5055 = vrot.lane.b32.xlu0 %v4666, 8
        %v5056 = vpop.permute.xlu0 %5055
        %5057 = vrot.lane.b32.xlu0 %v4667, 8
        %v5058 = vpop.permute.xlu0 %5057
        %5059 = vrot.lane.b32.xlu0 %v4668, 8
        %v5060 = vpop.permute.xlu0 %5059
        %5061 = vrot.lane.b32.xlu0 %v4669, 8
        %v5062 = vpop.permute.xlu0 %5061
        %5063 = vrot.lane.b32.xlu0 %v4670, 8
        %v5064 = vpop.permute.xlu0 %5063
        %5065 = vrot.lane.b32.xlu0 %v4671, 8
        %v5066 = vpop.permute.xlu0 %5065
        %5067 = vrot.lane.b32.xlu0 %v4672, 8
        %v5068 = vpop.permute.xlu0 %5067
        %5069 = vrot.lane.b32.xlu0 %v4673, 8
        %v5070 = vpop.permute.xlu0 %5069
        %5071 = vrot.lane.b32.xlu0 %v4674, 8
        %v5072 = vpop.permute.xlu0 %5071
        %5073 = vrot.lane.b32.xlu0 %v4675, 8
        %v5074 = vpop.permute.xlu0 %5073
        %5075 = vrot.lane.b32.xlu0 %v4676, 8
        %v5076 = vpop.permute.xlu0 %5075
        %5077 = vrot.lane.b32.xlu0 %v4677, 8
        %v5078 = vpop.permute.xlu0 %5077
        %5079 = vrot.lane.b32.xlu0 %v4678, 8
        %v5080 = vpop.permute.xlu0 %5079
        %5081 = vrot.lane.b32.xlu0 %v4679, 8
        %v5082 = vpop.permute.xlu0 %5081
        %5083 = vrot.lane.b32.xlu0 %v4680, 8
        %v5084 = vpop.permute.xlu0 %5083
        %5085 = vrot.lane.b32.xlu0 %v4681, 8
        %v5086 = vpop.permute.xlu0 %5085
        %5087 = vrot.lane.b32.xlu0 %v4682, 8
        %v5088 = vpop.permute.xlu0 %5087
        %5089 = vrot.lane.b32.xlu0 %v4683, 8
        %v5090 = vpop.permute.xlu0 %5089
        %5091 = vrot.lane.b32.xlu0 %v4684, 8
        %v5092 = vpop.permute.xlu0 %5091
        %5093 = vrot.lane.b32.xlu0 %v4685, 8
        %v5094 = vpop.permute.xlu0 %5093
        %5095 = vrot.lane.b32.xlu0 %v4686, 8
        %v5096 = vpop.permute.xlu0 %5095
        %5097 = vrot.lane.b32.xlu0 %v4687, 8
        %v5098 = vpop.permute.xlu0 %5097
        %5099 = vrot.lane.b32.xlu0 %v4688, 8
        %v5100 = vpop.permute.xlu0 %5099
        %5101 = vrot.lane.b32.xlu0 %v4689, 8
        %v5102 = vpop.permute.xlu0 %5101
        %5103 = vrot.lane.b32.xlu0 %v4690, 8
        %v5104 = vpop.permute.xlu0 %5103
        %5105 = vrot.lane.b32.xlu0 %v4691, 8
        %v5106 = vpop.permute.xlu0 %5105
        %5107 = vrot.lane.b32.xlu0 %v4692, 8
        %v5108 = vpop.permute.xlu0 %5107
        %5109 = vrot.lane.b32.xlu0 %v4693, 8
        %v5110 = vpop.permute.xlu0 %5109
        %5175 = vrot.lane.b32.xlu0 %v4694, 12
        %v5176 = vpop.permute.xlu0 %5175
        %5177 = vrot.lane.b32.xlu0 %v4695, 12
        %v5178 = vpop.permute.xlu0 %5177
        %5179 = vrot.lane.b32.xlu0 %v4696, 12
        %v5180 = vpop.permute.xlu0 %5179
        %5181 = vrot.lane.b32.xlu0 %v4697, 12
        %v5182 = vpop.permute.xlu0 %5181
        %5183 = vrot.lane.b32.xlu0 %v4698, 12
        %v5184 = vpop.permute.xlu0 %5183
        %5185 = vrot.lane.b32.xlu0 %v4699, 12
        %v5186 = vpop.permute.xlu0 %5185
        %5187 = vrot.lane.b32.xlu0 %v4700, 12
        %v5188 = vpop.permute.xlu0 %5187
        %5189 = vrot.lane.b32.xlu0 %v4701, 12
        %v5190 = vpop.permute.xlu0 %5189
        %5191 = vrot.lane.b32.xlu0 %v4702, 12
        %v5192 = vpop.permute.xlu0 %5191
        %5193 = vrot.lane.b32.xlu0 %v4703, 12
        %v5194 = vpop.permute.xlu0 %5193
        %5195 = vrot.lane.b32.xlu0 %v4704, 12
        %v5196 = vpop.permute.xlu0 %5195
        %5197 = vrot.lane.b32.xlu0 %v4705, 12
        %v5198 = vpop.permute.xlu0 %5197
        %5199 = vrot.lane.b32.xlu0 %v4706, 12
        %v5200 = vpop.permute.xlu0 %5199
        %5201 = vrot.lane.b32.xlu0 %v4707, 12
        %v5202 = vpop.permute.xlu0 %5201
        %5203 = vrot.lane.b32.xlu0 %v4708, 12
        %v5204 = vpop.permute.xlu0 %5203
        %5205 = vrot.lane.b32.xlu0 %v4709, 12
        %v5206 = vpop.permute.xlu0 %5205
        %5207 = vrot.lane.b32.xlu0 %v4710, 12
        %v5208 = vpop.permute.xlu0 %5207
        %5209 = vrot.lane.b32.xlu0 %v4711, 12
        %v5210 = vpop.permute.xlu0 %5209
        %5211 = vrot.lane.b32.xlu0 %v4712, 12
        %v5212 = vpop.permute.xlu0 %5211
        %5213 = vrot.lane.b32.xlu0 %v4713, 12
        %v5214 = vpop.permute.xlu0 %5213
        %5215 = vrot.lane.b32.xlu0 %v4714, 12
        %v5216 = vpop.permute.xlu0 %5215
        %5217 = vrot.lane.b32.xlu0 %v4715, 12
        %v5218 = vpop.permute.xlu0 %5217
        %5219 = vrot.lane.b32.xlu0 %v4716, 12
        %v5220 = vpop.permute.xlu0 %5219
        %5221 = vrot.lane.b32.xlu0 %v4717, 12
        %v5222 = vpop.permute.xlu0 %5221
        %5223 = vrot.lane.b32.xlu0 %v4718, 12
        %v5224 = vpop.permute.xlu0 %5223
        %5225 = vrot.lane.b32.xlu0 %v4719, 12
        %v5226 = vpop.permute.xlu0 %5225
        %5227 = vrot.lane.b32.xlu0 %v4720, 12
        %v5228 = vpop.permute.xlu0 %5227
        %5229 = vrot.lane.b32.xlu0 %v4721, 12
        %v5230 = vpop.permute.xlu0 %5229
        %5231 = vrot.lane.b32.xlu0 %v4722, 12
        %v5232 = vpop.permute.xlu0 %5231
        %5233 = vrot.lane.b32.xlu0 %v4723, 12
        %v5234 = vpop.permute.xlu0 %5233
        %5235 = vrot.lane.b32.xlu0 %v4724, 12
        %v5236 = vpop.permute.xlu0 %5235
        %5237 = vrot.lane.b32.xlu0 %v4725, 12
        %v5238 = vpop.permute.xlu0 %5237
        %5303 = vrot.lane.b32.xlu0 %v4726, 16
        %v5304 = vpop.permute.xlu0 %5303
        %5305 = vrot.lane.b32.xlu0 %v4727, 16
        %v5306 = vpop.permute.xlu0 %5305
        %5307 = vrot.lane.b32.xlu0 %v4728, 16
        %v5308 = vpop.permute.xlu0 %5307
        %5309 = vrot.lane.b32.xlu0 %v4729, 16
        %v5310 = vpop.permute.xlu0 %5309
        %5311 = vrot.lane.b32.xlu0 %v4730, 16
        %v5312 = vpop.permute.xlu0 %5311
        %5313 = vrot.lane.b32.xlu0 %v4731, 16
        %v5314 = vpop.permute.xlu0 %5313
        %5315 = vrot.lane.b32.xlu0 %v4732, 16
        %v5316 = vpop.permute.xlu0 %5315
        %5317 = vrot.lane.b32.xlu0 %v4733, 16
        %v5318 = vpop.permute.xlu0 %5317
        %5319 = vrot.lane.b32.xlu0 %v4734, 16
        %v5320 = vpop.permute.xlu0 %5319
        %5321 = vrot.lane.b32.xlu0 %v4735, 16
        %v5322 = vpop.permute.xlu0 %5321
        %5323 = vrot.lane.b32.xlu0 %v4736, 16
        %v5324 = vpop.permute.xlu0 %5323
        %5325 = vrot.lane.b32.xlu0 %v4737, 16
        %v5326 = vpop.permute.xlu0 %5325
        %5327 = vrot.lane.b32.xlu0 %v4738, 16
        %v5328 = vpop.permute.xlu0 %5327
        %5329 = vrot.lane.b32.xlu0 %v4739, 16
        %v5330 = vpop.permute.xlu0 %5329
        %5331 = vrot.lane.b32.xlu0 %v4740, 16
        %v5332 = vpop.permute.xlu0 %5331
        %5333 = vrot.lane.b32.xlu0 %v4741, 16
        %v5334 = vpop.permute.xlu0 %5333
        %5335 = vrot.lane.b32.xlu0 %v4742, 16
        %v5336 = vpop.permute.xlu0 %5335
        %5337 = vrot.lane.b32.xlu0 %v4743, 16
        %v5338 = vpop.permute.xlu0 %5337
        %5339 = vrot.lane.b32.xlu0 %v4744, 16
        %v5340 = vpop.permute.xlu0 %5339
        %5341 = vrot.lane.b32.xlu0 %v4745, 16
        %v5342 = vpop.permute.xlu0 %5341
        %5343 = vrot.lane.b32.xlu0 %v4746, 16
        %v5344 = vpop.permute.xlu0 %5343
        %5345 = vrot.lane.b32.xlu0 %v4747, 16
        %v5346 = vpop.permute.xlu0 %5345
        %5347 = vrot.lane.b32.xlu0 %v4748, 16
        %v5348 = vpop.permute.xlu0 %5347
        %5349 = vrot.lane.b32.xlu0 %v4749, 16
        %v5350 = vpop.permute.xlu0 %5349
        %5351 = vrot.lane.b32.xlu0 %v4750, 16
        %v5352 = vpop.permute.xlu0 %5351
        %5353 = vrot.lane.b32.xlu0 %v4751, 16
        %v5354 = vpop.permute.xlu0 %5353
        %5355 = vrot.lane.b32.xlu0 %v4752, 16
        %v5356 = vpop.permute.xlu0 %5355
        %5357 = vrot.lane.b32.xlu0 %v4753, 16
        %v5358 = vpop.permute.xlu0 %5357
        %5359 = vrot.lane.b32.xlu0 %v4754, 16
        %v5360 = vpop.permute.xlu0 %5359
        %5361 = vrot.lane.b32.xlu0 %v4755, 16
        %v5362 = vpop.permute.xlu0 %5361
        %5363 = vrot.lane.b32.xlu0 %v4756, 16
        %v5364 = vpop.permute.xlu0 %5363
        %5365 = vrot.lane.b32.xlu0 %v4757, 16
        %v5366 = vpop.permute.xlu0 %5365
        %5431 = vrot.lane.b32.xlu0 %v4758, 20
        %v5432 = vpop.permute.xlu0 %5431
        %5433 = vrot.lane.b32.xlu0 %v4759, 20
        %v5434 = vpop.permute.xlu0 %5433
        %5435 = vrot.lane.b32.xlu0 %v4760, 20
        %v5436 = vpop.permute.xlu0 %5435
        %5437 = vrot.lane.b32.xlu0 %v4761, 20
        %v5438 = vpop.permute.xlu0 %5437
        %5439 = vrot.lane.b32.xlu0 %v4762, 20
        %v5440 = vpop.permute.xlu0 %5439
        %5441 = vrot.lane.b32.xlu0 %v4763, 20
        %v5442 = vpop.permute.xlu0 %5441
        %5443 = vrot.lane.b32.xlu0 %v4764, 20
        %v5444 = vpop.permute.xlu0 %5443
        %5445 = vrot.lane.b32.xlu0 %v4765, 20
        %v5446 = vpop.permute.xlu0 %5445
        %5447 = vrot.lane.b32.xlu0 %v4766, 20
        %v5448 = vpop.permute.xlu0 %5447
        %5449 = vrot.lane.b32.xlu0 %v4767, 20
        %v5450 = vpop.permute.xlu0 %5449
        %5451 = vrot.lane.b32.xlu0 %v4768, 20
        %v5452 = vpop.permute.xlu0 %5451
        %5453 = vrot.lane.b32.xlu0 %v4769, 20
        %v5454 = vpop.permute.xlu0 %5453
        %5455 = vrot.lane.b32.xlu0 %v4770, 20
        %v5456 = vpop.permute.xlu0 %5455
        %5457 = vrot.lane.b32.xlu0 %v4771, 20
        %v5458 = vpop.permute.xlu0 %5457
        %5459 = vrot.lane.b32.xlu0 %v4772, 20
        %v5460 = vpop.permute.xlu0 %5459
        %5461 = vrot.lane.b32.xlu0 %v4773, 20
        %v5462 = vpop.permute.xlu0 %5461
        %5463 = vrot.lane.b32.xlu0 %v4774, 20
        %v5464 = vpop.permute.xlu0 %5463
        %5465 = vrot.lane.b32.xlu0 %v4775, 20
        %v5466 = vpop.permute.xlu0 %5465
        %5467 = vrot.lane.b32.xlu0 %v4776, 20
        %v5468 = vpop.permute.xlu0 %5467
        %5469 = vrot.lane.b32.xlu0 %v4777, 20
        %v5470 = vpop.permute.xlu0 %5469
        %5471 = vrot.lane.b32.xlu0 %v4778, 20
        %v5472 = vpop.permute.xlu0 %5471
        %5473 = vrot.lane.b32.xlu0 %v4779, 20
        %v5474 = vpop.permute.xlu0 %5473
        %5475 = vrot.lane.b32.xlu0 %v4780, 20
        %v5476 = vpop.permute.xlu0 %5475
        %5477 = vrot.lane.b32.xlu0 %v4781, 20
        %v5478 = vpop.permute.xlu0 %5477
        %5479 = vrot.lane.b32.xlu0 %v4782, 20
        %v5480 = vpop.permute.xlu0 %5479
        %5481 = vrot.lane.b32.xlu0 %v4783, 20
        %v5482 = vpop.permute.xlu0 %5481
        %5483 = vrot.lane.b32.xlu0 %v4784, 20
        %v5484 = vpop.permute.xlu0 %5483
        %5485 = vrot.lane.b32.xlu0 %v4785, 20
        %v5486 = vpop.permute.xlu0 %5485
        %5487 = vrot.lane.b32.xlu0 %v4786, 20
        %v5488 = vpop.permute.xlu0 %5487
        %5489 = vrot.lane.b32.xlu0 %v4787, 20
        %v5490 = vpop.permute.xlu0 %5489
        %5491 = vrot.lane.b32.xlu0 %v4788, 20
        %v5492 = vpop.permute.xlu0 %5491
        %5493 = vrot.lane.b32.xlu0 %v4789, 20
        %v5494 = vpop.permute.xlu0 %5493
        %5559 = vrot.lane.b32.xlu0 %v4791, 24
        %v5560 = vpop.permute.xlu0 %5559
        %5561 = vrot.lane.b32.xlu0 %v4792, 24
        %v5562 = vpop.permute.xlu0 %5561
        %5563 = vrot.lane.b32.xlu0 %v4793, 24
        %v5564 = vpop.permute.xlu0 %5563
        %5565 = vrot.lane.b32.xlu0 %v4794, 24
        %v5566 = vpop.permute.xlu0 %5565
        %5567 = vrot.lane.b32.xlu0 %v4795, 24
        %v5568 = vpop.permute.xlu0 %5567
        %5569 = vrot.lane.b32.xlu0 %v4796, 24
        %v5570 = vpop.permute.xlu0 %5569
        %5571 = vrot.lane.b32.xlu0 %v4797, 24
        %v5572 = vpop.permute.xlu0 %5571
        %5573 = vrot.lane.b32.xlu0 %v4798, 24
        %v5574 = vpop.permute.xlu0 %5573
        %5575 = vrot.lane.b32.xlu0 %v4799, 24
        %v5576 = vpop.permute.xlu0 %5575
        %5577 = vrot.lane.b32.xlu0 %v4800, 24
        %v5578 = vpop.permute.xlu0 %5577
        %5579 = vrot.lane.b32.xlu0 %v4801, 24
        %v5580 = vpop.permute.xlu0 %5579
        %5581 = vrot.lane.b32.xlu0 %v4802, 24
        %v5582 = vpop.permute.xlu0 %5581
        %5583 = vrot.lane.b32.xlu0 %v4803, 24
        %v5584 = vpop.permute.xlu0 %5583
        %5585 = vrot.lane.b32.xlu0 %v4804, 24
        %v5586 = vpop.permute.xlu0 %5585
        %5587 = vrot.lane.b32.xlu0 %v4805, 24
        %v5588 = vpop.permute.xlu0 %5587
        %5589 = vrot.lane.b32.xlu0 %v4806, 24
        %v5590 = vpop.permute.xlu0 %5589
        %5591 = vrot.lane.b32.xlu0 %v4807, 24
        %v5592 = vpop.permute.xlu0 %5591
        %5593 = vrot.lane.b32.xlu0 %v4808, 24
        %v5594 = vpop.permute.xlu0 %5593
        %5595 = vrot.lane.b32.xlu0 %v4809, 24
        %v5596 = vpop.permute.xlu0 %5595
        %5597 = vrot.lane.b32.xlu0 %v4810, 24
        %v5598 = vpop.permute.xlu0 %5597
        %5599 = vrot.lane.b32.xlu0 %v4811, 24
        %v5600 = vpop.permute.xlu0 %5599
        %5601 = vrot.lane.b32.xlu0 %v4812, 24
        %v5602 = vpop.permute.xlu0 %5601
        %5603 = vrot.lane.b32.xlu0 %v4813, 24
        %v5604 = vpop.permute.xlu0 %5603
        %5605 = vrot.lane.b32.xlu0 %v4814, 24
        %v5606 = vpop.permute.xlu0 %5605
        %5607 = vrot.lane.b32.xlu0 %v4815, 24
        %v5608 = vpop.permute.xlu0 %5607
        %5609 = vrot.lane.b32.xlu0 %v4816, 24
        %v5610 = vpop.permute.xlu0 %5609
        %5611 = vrot.lane.b32.xlu0 %v4817, 24
        %v5612 = vpop.permute.xlu0 %5611
        %5613 = vrot.lane.b32.xlu0 %v4818, 24
        %v5614 = vpop.permute.xlu0 %5613
        %5615 = vrot.lane.b32.xlu0 %v4819, 24
        %v5616 = vpop.permute.xlu0 %5615
        %5617 = vrot.lane.b32.xlu0 %v4820, 24
        %v5618 = vpop.permute.xlu0 %5617
        %5619 = vrot.lane.b32.xlu0 %v4821, 24
        %v5620 = vpop.permute.xlu0 %5619
        %5621 = vrot.lane.b32.xlu0 %v4822, 24
        %v5622 = vpop.permute.xlu0 %5621
        %5687 = vrot.lane.b32.xlu0 %v4823, 28
        %v5688 = vpop.permute.xlu0 %5687
        %5689 = vrot.lane.b32.xlu0 %v4824, 28
        %v5690 = vpop.permute.xlu0 %5689
        %5691 = vrot.lane.b32.xlu0 %v4825, 28
        %v5692 = vpop.permute.xlu0 %5691
        %5693 = vrot.lane.b32.xlu0 %v4826, 28
        %v5694 = vpop.permute.xlu0 %5693
        %5695 = vrot.lane.b32.xlu0 %v4827, 28
        %v5696 = vpop.permute.xlu0 %5695
        %5697 = vrot.lane.b32.xlu0 %v4828, 28
        %v5698 = vpop.permute.xlu0 %5697
        %5699 = vrot.lane.b32.xlu0 %v4829, 28
        %v5700 = vpop.permute.xlu0 %5699
        %5701 = vrot.lane.b32.xlu0 %v4830, 28
        %v5702 = vpop.permute.xlu0 %5701
        %5703 = vrot.lane.b32.xlu0 %v4831, 28
        %v5704 = vpop.permute.xlu0 %5703
        %5705 = vrot.lane.b32.xlu0 %v4832, 28
        %v5706 = vpop.permute.xlu0 %5705
        %5707 = vrot.lane.b32.xlu0 %v4833, 28
        %v5708 = vpop.permute.xlu0 %5707
        %5709 = vrot.lane.b32.xlu0 %v4834, 28
        %v5710 = vpop.permute.xlu0 %5709
        %5711 = vrot.lane.b32.xlu0 %v4835, 28
        %v5712 = vpop.permute.xlu0 %5711
        %5713 = vrot.lane.b32.xlu0 %v4836, 28
        %v5714 = vpop.permute.xlu0 %5713
        %5715 = vrot.lane.b32.xlu0 %v4837, 28
        %v5716 = vpop.permute.xlu0 %5715
        %5717 = vrot.lane.b32.xlu0 %v4838, 28
        %v5718 = vpop.permute.xlu0 %5717
        %5719 = vrot.lane.b32.xlu0 %v4839, 28
        %v5720 = vpop.permute.xlu0 %5719
        %5721 = vrot.lane.b32.xlu0 %v4840, 28
        %v5722 = vpop.permute.xlu0 %5721
        %5723 = vrot.lane.b32.xlu0 %v4841, 28
        %v5724 = vpop.permute.xlu0 %5723
        %5725 = vrot.lane.b32.xlu0 %v4842, 28
        %v5726 = vpop.permute.xlu0 %5725
        %5727 = vrot.lane.b32.xlu0 %v4843, 28
        %v5728 = vpop.permute.xlu0 %5727
        %5729 = vrot.lane.b32.xlu0 %v4844, 28
        %v5730 = vpop.permute.xlu0 %5729
        %5731 = vrot.lane.b32.xlu0 %v4845, 28
        %v5732 = vpop.permute.xlu0 %5731
        %5733 = vrot.lane.b32.xlu0 %v4846, 28
        %v5734 = vpop.permute.xlu0 %5733
        %5735 = vrot.lane.b32.xlu0 %v4847, 28
        %v5736 = vpop.permute.xlu0 %5735
        %5737 = vrot.lane.b32.xlu0 %v4848, 28
        %v5738 = vpop.permute.xlu0 %5737
        %5739 = vrot.lane.b32.xlu0 %v4849, 28
        %v5740 = vpop.permute.xlu0 %5739
        %5741 = vrot.lane.b32.xlu0 %v4850, 28
        %v5742 = vpop.permute.xlu0 %5741
        %5743 = vrot.lane.b32.xlu0 %v4851, 28
        %v5744 = vpop.permute.xlu0 %5743
        %5745 = vrot.lane.b32.xlu0 %v4852, 28
        %v5746 = vpop.permute.xlu0 %5745
        %5747 = vrot.lane.b32.xlu0 %v4853, 28
        %v5748 = vpop.permute.xlu0 %5747
        %5749 = vrot.lane.b32.xlu0 %v4854, 28
        %v5750 = vpop.permute.xlu0 %5749
        %5815 = vrot.lane.b32.xlu0 %v4855, 32
        %v5816 = vpop.permute.xlu0 %5815
        %5817 = vrot.lane.b32.xlu0 %v4856, 32
        %v5818 = vpop.permute.xlu0 %5817
        %5819 = vrot.lane.b32.xlu0 %v4857, 32
        %v5820 = vpop.permute.xlu0 %5819
        %5821 = vrot.lane.b32.xlu0 %v4858, 32
        %v5822 = vpop.permute.xlu0 %5821
        %5823 = vrot.lane.b32.xlu0 %v4859, 32
        %v5824 = vpop.permute.xlu0 %5823
        %5825 = vrot.lane.b32.xlu0 %v4860, 32
        %v5826 = vpop.permute.xlu0 %5825
        %5827 = vrot.lane.b32.xlu0 %v4861, 32
        %v5828 = vpop.permute.xlu0 %5827
        %5829 = vrot.lane.b32.xlu0 %v4862, 32
        %v5830 = vpop.permute.xlu0 %5829
        %5831 = vrot.lane.b32.xlu0 %v4863, 32
        %v5832 = vpop.permute.xlu0 %5831
        %5833 = vrot.lane.b32.xlu0 %v4864, 32
        %v5834 = vpop.permute.xlu0 %5833
        %5835 = vrot.lane.b32.xlu0 %v4865, 32
        %v5836 = vpop.permute.xlu0 %5835
        %5837 = vrot.lane.b32.xlu0 %v4866, 32
        %v5838 = vpop.permute.xlu0 %5837
        %5839 = vrot.lane.b32.xlu0 %v4867, 32
        %v5840 = vpop.permute.xlu0 %5839
        %5841 = vrot.lane.b32.xlu0 %v4868, 32
        %v5842 = vpop.permute.xlu0 %5841
        %5843 = vrot.lane.b32.xlu0 %v4869, 32
        %v5844 = vpop.permute.xlu0 %5843
        %5845 = vrot.lane.b32.xlu0 %v4870, 32
        %v5846 = vpop.permute.xlu0 %5845
        %5847 = vrot.lane.b32.xlu0 %v4871, 32
        %v5848 = vpop.permute.xlu0 %5847
        %5849 = vrot.lane.b32.xlu0 %v4872, 32
        %v5850 = vpop.permute.xlu0 %5849
        %5851 = vrot.lane.b32.xlu0 %v4873, 32
        %v5852 = vpop.permute.xlu0 %5851
        %5853 = vrot.lane.b32.xlu0 %v4874, 32
        %v5854 = vpop.permute.xlu0 %5853
        %5855 = vrot.lane.b32.xlu0 %v4875, 32
        %v5856 = vpop.permute.xlu0 %5855
        %5857 = vrot.lane.b32.xlu0 %v4876, 32
        %v5858 = vpop.permute.xlu0 %5857
        %5859 = vrot.lane.b32.xlu0 %v4877, 32
        %v5860 = vpop.permute.xlu0 %5859
        %5861 = vrot.lane.b32.xlu0 %v4878, 32
        %v5862 = vpop.permute.xlu0 %5861
        %5863 = vrot.lane.b32.xlu0 %v4879, 32
        %v5864 = vpop.permute.xlu0 %5863
        %5865 = vrot.lane.b32.xlu0 %v4880, 32
        %v5866 = vpop.permute.xlu0 %5865
        %5867 = vrot.lane.b32.xlu0 %v4881, 32
        %v5868 = vpop.permute.xlu0 %5867
        %5869 = vrot.lane.b32.xlu0 %v4882, 32
        %v5870 = vpop.permute.xlu0 %5869
        %5871 = vrot.lane.b32.xlu0 %v4883, 32
        %v5872 = vpop.permute.xlu0 %5871
        %5873 = vrot.lane.b32.xlu0 %v4884, 32
        %v5874 = vpop.permute.xlu0 %5873
        %5875 = vrot.lane.b32.xlu0 %v4885, 32
        %v5876 = vpop.permute.xlu0 %5875
        %5877 = vrot.lane.b32.xlu0 %v4886, 32
        %v5878 = vpop.permute.xlu0 %5877
        %v5911 = vsel %vm217, %v4598, %v4920
        %v5912 = vsel %vm217, %v4599, %v4922
        %v5913 = vsel %vm217, %v4600, %v4924
        %v5914 = vsel %vm217, %v4601, %v4926
        %v5915 = vsel %vm217, %v4602, %v4928
        %v5916 = vsel %vm217, %v4603, %v4930
        %v5917 = vsel %vm217, %v4604, %v4932
        %v5918 = vsel %vm217, %v4605, %v4934
        %v5919 = vsel %vm217, %v4606, %v4936
        %v5920 = vsel %vm217, %v4607, %v4938
        %v5921 = vsel %vm217, %v4608, %v4940
        %v5922 = vsel %vm217, %v4609, %v4942
        %v5923 = vsel %vm217, %v4610, %v4944
        %v5924 = vsel %vm217, %v4611, %v4946
        %v5925 = vsel %vm217, %v4612, %v4948
        %v5926 = vsel %vm217, %v4613, %v4950
        %v5927 = vsel %vm217, %v4614, %v4952
        %v5928 = vsel %vm217, %v4615, %v4954
        %v5929 = vsel %vm217, %v4616, %v4956
        %v5930 = vsel %vm217, %v4617, %v4958
        %v5931 = vsel %vm217, %v4618, %v4960
        %v5932 = vsel %vm217, %v4619, %v4962
        %v5933 = vsel %vm217, %v4620, %v4964
        %v5934 = vsel %vm217, %v4621, %v4966
        %v5935 = vsel %vm217, %v4622, %v4968
        %v5936 = vsel %vm217, %v4623, %v4970
        %v5937 = vsel %vm217, %v4624, %v4972
        %v5938 = vsel %vm217, %v4625, %v4974
        %v5939 = vsel %vm217, %v4626, %v4976
        %v5940 = vsel %vm217, %v4627, %v4978
        %v5941 = vsel %vm217, %v4628, %v4980
        %v5942 = vsel %vm217, %v4629, %v4982
        %v5943 = vsel %vm2093, %v5911, %v5048
        %v5944 = vsel %vm2093, %v5912, %v5050
        %v5945 = vsel %vm2093, %v5913, %v5052
        %v5946 = vsel %vm2093, %v5914, %v5054
        %v5947 = vsel %vm2093, %v5915, %v5056
        %v5948 = vsel %vm2093, %v5916, %v5058
        %v5949 = vsel %vm2093, %v5917, %v5060
        %v5950 = vsel %vm2093, %v5918, %v5062
        %v5951 = vsel %vm2093, %v5919, %v5064
        %v5952 = vsel %vm2093, %v5920, %v5066
        %v5953 = vsel %vm2093, %v5921, %v5068
        %v5954 = vsel %vm2093, %v5922, %v5070
        %v5955 = vsel %vm2093, %v5923, %v5072
        %v5956 = vsel %vm2093, %v5924, %v5074
        %v5957 = vsel %vm2093, %v5925, %v5076
        %v5958 = vsel %vm2093, %v5926, %v5078
        %v5959 = vsel %vm2093, %v5927, %v5080
        %v5960 = vsel %vm2093, %v5928, %v5082
        %v5961 = vsel %vm2093, %v5929, %v5084
        %v5962 = vsel %vm2093, %v5930, %v5086
        %v5963 = vsel %vm2093, %v5931, %v5088
        %v5964 = vsel %vm2093, %v5932, %v5090
        %v5965 = vsel %vm2093, %v5933, %v5092
        %v5966 = vsel %vm2093, %v5934, %v5094
        %v5967 = vsel %vm2093, %v5935, %v5096
        %v5968 = vsel %vm2093, %v5936, %v5098
        %v5969 = vsel %vm2093, %v5937, %v5100
        %v5970 = vsel %vm2093, %v5938, %v5102
        %v5971 = vsel %vm2093, %v5939, %v5104
        %v5972 = vsel %vm2093, %v5940, %v5106
        %v5973 = vsel %vm2093, %v5941, %v5108
        %v5974 = vsel %vm2093, %v5942, %v5110
        %v5975 = vsel %vm2126, %v5943, %v5176
        %v5976 = vsel %vm2126, %v5944, %v5178
        %v5977 = vsel %vm2126, %v5945, %v5180
        %v5978 = vsel %vm2126, %v5946, %v5182
        %v5979 = vsel %vm2126, %v5947, %v5184
        %v5980 = vsel %vm2126, %v5948, %v5186
        %v5981 = vsel %vm2126, %v5949, %v5188
        %v5982 = vsel %vm2126, %v5950, %v5190
        %v5983 = vsel %vm2126, %v5951, %v5192
        %v5984 = vsel %vm2126, %v5952, %v5194
        %v5985 = vsel %vm2126, %v5953, %v5196
        %v5986 = vsel %vm2126, %v5954, %v5198
        %v5987 = vsel %vm2126, %v5955, %v5200
        %v5988 = vsel %vm2126, %v5956, %v5202
        %v5989 = vsel %vm2126, %v5957, %v5204
        %v5990 = vsel %vm2126, %v5958, %v5206
        %v5991 = vsel %vm2126, %v5959, %v5208
        %v5992 = vsel %vm2126, %v5960, %v5210
        %v5993 = vsel %vm2126, %v5961, %v5212
        %v5994 = vsel %vm2126, %v5962, %v5214
        %v5995 = vsel %vm2126, %v5963, %v5216
        %v5996 = vsel %vm2126, %v5964, %v5218
        %v5997 = vsel %vm2126, %v5965, %v5220
        %v5998 = vsel %vm2126, %v5966, %v5222
        %v5999 = vsel %vm2126, %v5967, %v5224
        %v6000 = vsel %vm2126, %v5968, %v5226
        %v6001 = vsel %vm2126, %v5969, %v5228
        %v6002 = vsel %vm2126, %v5970, %v5230
        %v6003 = vsel %vm2126, %v5971, %v5232
        %v6004 = vsel %vm2126, %v5972, %v5234
        %v6005 = vsel %vm2126, %v5973, %v5236
        %v6006 = vsel %vm2126, %v5974, %v5238
        %v6007 = vsel %vm2159, %v5975, %v5304
        %v6008 = vsel %vm2159, %v5976, %v5306
        %v6009 = vsel %vm2159, %v5977, %v5308
        %v6010 = vsel %vm2159, %v5978, %v5310
        %v6011 = vsel %vm2159, %v5979, %v5312
        %v6012 = vsel %vm2159, %v5980, %v5314
        %v6013 = vsel %vm2159, %v5981, %v5316
        %v6014 = vsel %vm2159, %v5982, %v5318
        %v6015 = vsel %vm2159, %v5983, %v5320
        %v6016 = vsel %vm2159, %v5984, %v5322
        %v6017 = vsel %vm2159, %v5985, %v5324
        %v6018 = vsel %vm2159, %v5986, %v5326
        %v6019 = vsel %vm2159, %v5987, %v5328
        %v6020 = vsel %vm2159, %v5988, %v5330
        %v6021 = vsel %vm2159, %v5989, %v5332
        %v6022 = vsel %vm2159, %v5990, %v5334
        %v6023 = vsel %vm2159, %v5991, %v5336
        %v6024 = vsel %vm2159, %v5992, %v5338
        %v6025 = vsel %vm2159, %v5993, %v5340
        %v6026 = vsel %vm2159, %v5994, %v5342
        %v6027 = vsel %vm2159, %v5995, %v5344
        %v6028 = vsel %vm2159, %v5996, %v5346
        %v6029 = vsel %vm2159, %v5997, %v5348
        %v6030 = vsel %vm2159, %v5998, %v5350
        %v6031 = vsel %vm2159, %v5999, %v5352
        %v6032 = vsel %vm2159, %v6000, %v5354
        %v6033 = vsel %vm2159, %v6001, %v5356
        %v6034 = vsel %vm2159, %v6002, %v5358
        %v6035 = vsel %vm2159, %v6003, %v5360
        %v6036 = vsel %vm2159, %v6004, %v5362
        %v6037 = vsel %vm2159, %v6005, %v5364
        %v6038 = vsel %vm2159, %v6006, %v5366
        %v6039 = vsel %vm2192, %v6007, %v5432
        %v6040 = vsel %vm2192, %v6008, %v5434
        %v6041 = vsel %vm2192, %v6009, %v5436
        %v6042 = vsel %vm2192, %v6010, %v5438
        %v6043 = vsel %vm2192, %v6011, %v5440
        %v6044 = vsel %vm2192, %v6012, %v5442
        %v6045 = vsel %vm2192, %v6013, %v5444
        %v6046 = vsel %vm2192, %v6014, %v5446
        %v6047 = vsel %vm2192, %v6015, %v5448
        %v6048 = vsel %vm2192, %v6016, %v5450
        %v6049 = vsel %vm2192, %v6017, %v5452
        %v6050 = vsel %vm2192, %v6018, %v5454
        %v6051 = vsel %vm2192, %v6019, %v5456
        %v6052 = vsel %vm2192, %v6020, %v5458
        %v6053 = vsel %vm2192, %v6021, %v5460
        %v6054 = vsel %vm2192, %v6022, %v5462
        %v6055 = vsel %vm2192, %v6023, %v5464
        %v6056 = vsel %vm2192, %v6024, %v5466
        %v6057 = vsel %vm2192, %v6025, %v5468
        %v6058 = vsel %vm2192, %v6026, %v5470
        %v6059 = vsel %vm2192, %v6027, %v5472
        %v6060 = vsel %vm2192, %v6028, %v5474
        %v6061 = vsel %vm2192, %v6029, %v5476
        %v6062 = vsel %vm2192, %v6030, %v5478
        %v6063 = vsel %vm2192, %v6031, %v5480
        %v6064 = vsel %vm2192, %v6032, %v5482
        %v6065 = vsel %vm2192, %v6033, %v5484
        %v6066 = vsel %vm2192, %v6034, %v5486
        %v6067 = vsel %vm2192, %v6035, %v5488
        %v6068 = vsel %vm2192, %v6036, %v5490
        %v6069 = vsel %vm2192, %v6037, %v5492
        %v6070 = vsel %vm2192, %v6038, %v5494
        %v6071 = vsel %vm2225, %v6039, %v5560
        %v6072 = vsel %vm2225, %v6040, %v5562
        %v6073 = vsel %vm2225, %v6041, %v5564
        %v6074 = vsel %vm2225, %v6042, %v5566
        %v6075 = vsel %vm2225, %v6043, %v5568
        %v6076 = vsel %vm2225, %v6044, %v5570
        %v6077 = vsel %vm2225, %v6045, %v5572
        %v6078 = vsel %vm2225, %v6046, %v5574
        %v6079 = vsel %vm2225, %v6047, %v5576
        %v6080 = vsel %vm2225, %v6048, %v5578
        %v6081 = vsel %vm2225, %v6049, %v5580
        %v6082 = vsel %vm2225, %v6050, %v5582
        %v6083 = vsel %vm2225, %v6051, %v5584
        %v6084 = vsel %vm2225, %v6052, %v5586
        %v6085 = vsel %vm2225, %v6053, %v5588
        %v6086 = vsel %vm2225, %v6054, %v5590
        %v6087 = vsel %vm2225, %v6055, %v5592
        %v6088 = vsel %vm2225, %v6056, %v5594
        %v6089 = vsel %vm2225, %v6057, %v5596
        %v6090 = vsel %vm2225, %v6058, %v5598
        %v6091 = vsel %vm2225, %v6059, %v5600
        %v6092 = vsel %vm2225, %v6060, %v5602
        %v6093 = vsel %vm2225, %v6061, %v5604
        %v6094 = vsel %vm2225, %v6062, %v5606
        %v6095 = vsel %vm2225, %v6063, %v5608
        %v6096 = vsel %vm2225, %v6064, %v5610
        %v6097 = vsel %vm2225, %v6065, %v5612
        %v6098 = vsel %vm2225, %v6066, %v5614
        %v6099 = vsel %vm2225, %v6067, %v5616
        %v6100 = vsel %vm2225, %v6068, %v5618
        %v6101 = vsel %vm2225, %v6069, %v5620
        %v6102 = vsel %vm2225, %v6070, %v5622
        %v6103 = vsel %vm2258, %v6071, %v5688
        %v6104 = vsel %vm2258, %v6072, %v5690
        %v6105 = vsel %vm2258, %v6073, %v5692
        %v6106 = vsel %vm2258, %v6074, %v5694
        %v6107 = vsel %vm2258, %v6075, %v5696
        %v6108 = vsel %vm2258, %v6076, %v5698
        %v6109 = vsel %vm2258, %v6077, %v5700
        %v6110 = vsel %vm2258, %v6078, %v5702
        %v6111 = vsel %vm2258, %v6079, %v5704
        %v6112 = vsel %vm2258, %v6080, %v5706
        %v6113 = vsel %vm2258, %v6081, %v5708
        %v6114 = vsel %vm2258, %v6082, %v5710
        %v6115 = vsel %vm2258, %v6083, %v5712
        %v6116 = vsel %vm2258, %v6084, %v5714
        %v6117 = vsel %vm2258, %v6085, %v5716
        %v6118 = vsel %vm2258, %v6086, %v5718
        %v6119 = vsel %vm2258, %v6087, %v5720
        %v6120 = vsel %vm2258, %v6088, %v5722
        %v6121 = vsel %vm2258, %v6089, %v5724
        %v6122 = vsel %vm2258, %v6090, %v5726
        %v6123 = vsel %vm2258, %v6091, %v5728
        %v6124 = vsel %vm2258, %v6092, %v5730
        %v6125 = vsel %vm2258, %v6093, %v5732
        %v6126 = vsel %vm2258, %v6094, %v5734
        %v6127 = vsel %vm2258, %v6095, %v5736
        %v6128 = vsel %vm2258, %v6096, %v5738
        %v6129 = vsel %vm2258, %v6097, %v5740
        %v6130 = vsel %vm2258, %v6098, %v5742
        %v6131 = vsel %vm2258, %v6099, %v5744
        %v6132 = vsel %vm2258, %v6100, %v5746
        %v6133 = vsel %vm2258, %v6101, %v5748
        %v6134 = vsel %vm2258, %v6102, %v5750
        %v6135 = vsel %vm2291, %v6103, %v5816
        %v6136 = vsel %vm2291, %v6104, %v5818
        %v6137 = vsel %vm2291, %v6105, %v5820
        %v6138 = vsel %vm2291, %v6106, %v5822
        %v6139 = vsel %vm2291, %v6107, %v5824
        %v6140 = vsel %vm2291, %v6108, %v5826
        %v6141 = vsel %vm2291, %v6109, %v5828
        %v6142 = vsel %vm2291, %v6110, %v5830
        %v6143 = vsel %vm2291, %v6111, %v5832
        %v6144 = vsel %vm2291, %v6112, %v5834
        %v6145 = vsel %vm2291, %v6113, %v5836
        %v6146 = vsel %vm2291, %v6114, %v5838
        %v6147 = vsel %vm2291, %v6115, %v5840
        %v6148 = vsel %vm2291, %v6116, %v5842
        %v6149 = vsel %vm2291, %v6117, %v5844
        %v6150 = vsel %vm2291, %v6118, %v5846
        %v6151 = vsel %vm2291, %v6119, %v5848
        %v6152 = vsel %vm2291, %v6120, %v5850
        %v6153 = vsel %vm2291, %v6121, %v5852
        %v6154 = vsel %vm2291, %v6122, %v5854
        %v6155 = vsel %vm2291, %v6123, %v5856
        %v6156 = vsel %vm2291, %v6124, %v5858
        %v6157 = vsel %vm2291, %v6125, %v5860
        %v6158 = vsel %vm2291, %v6126, %v5862
        %v6159 = vsel %vm2291, %v6127, %v5864
        %v6160 = vsel %vm2291, %v6128, %v5866
        %v6161 = vsel %vm2291, %v6129, %v5868
        %v6162 = vsel %vm2291, %v6130, %v5870
        %v6163 = vsel %vm2291, %v6131, %v5872
        %v6164 = vsel %vm2291, %v6132, %v5874
        %v6165 = vsel %vm2291, %v6133, %v5876
        %v6166 = vsel %vm2291, %v6134, %v5878
        %v6167 = vsel %vm2324, %v6135, %v1966
        %v6168 = vsel %vm2324, %v6136, %v1968
        %v6169 = vsel %vm2324, %v6137, %v1970
        %v6170 = vsel %vm2324, %v6138, %v1972
        %v6171 = vsel %vm2324, %v6139, %v1974
        %v6172 = vsel %vm2324, %v6140, %v1976
        %v6173 = vsel %vm2324, %v6141, %v1978
        %v6174 = vsel %vm2324, %v6142, %v1980
        %v6175 = vsel %vm2324, %v6143, %v1982
        %v6176 = vsel %vm2324, %v6144, %v1984
        %v6177 = vsel %vm2324, %v6145, %v1986
        %v6178 = vsel %vm2324, %v6146, %v1988
        %v6179 = vsel %vm2324, %v6147, %v1990
        %v6180 = vsel %vm2324, %v6148, %v1992
        %v6181 = vsel %vm2324, %v6149, %v1994
        %v6182 = vsel %vm2324, %v6150, %v1996
        %v6183 = vsel %vm2324, %v6151, %v1998
        %v6184 = vsel %vm2324, %v6152, %v2000
        %v6185 = vsel %vm2324, %v6153, %v2002
        %v6186 = vsel %vm2324, %v6154, %v2004
        %v6187 = vsel %vm2324, %v6155, %v2006
        %v6188 = vsel %vm2324, %v6156, %v2008
        %v6189 = vsel %vm2324, %v6157, %v2010
        %v6190 = vsel %vm2324, %v6158, %v2012
        %v6191 = vsel %vm2324, %v6159, %v2014
        %v6192 = vsel %vm2324, %v6160, %v2016
        %v6193 = vsel %vm2324, %v6161, %v2018
        %v6194 = vsel %vm2324, %v6162, %v2020
        %v6195 = vsel %vm2324, %v6163, %v2022
        %v6196 = vsel %vm2324, %v6164, %v2024
        %v6197 = vsel %vm2324, %v6165, %v2026
        %v6198 = vsel %vm2324, %v6166, %v2028
        %v6199 = vpack.c.bf16 %v6168, %v6167
        %v6200 = vpack.c.bf16 %v6170, %v6169
        %v6201 = vpack.c.bf16 %v6172, %v6171
        %v6202 = vpack.c.bf16 %v6174, %v6173
        %v6203 = vpack.c.bf16 %v6176, %v6175
        %v6204 = vpack.c.bf16 %v6178, %v6177
        %v6205 = vpack.c.bf16 %v6180, %v6179
        %v6206 = vpack.c.bf16 %v6182, %v6181
        %v6207 = vpack.c.bf16 %v6184, %v6183
        %v6208 = vpack.c.bf16 %v6186, %v6185
        %v6209 = vpack.c.bf16 %v6188, %v6187
        %v6210 = vpack.c.bf16 %v6190, %v6189
        %v6211 = vpack.c.bf16 %v6192, %v6191
        %v6212 = vpack.c.bf16 %v6194, %v6193
        %v6213 = vpack.c.bf16 %v6196, %v6195
        %v6214 = vpack.c.bf16 %v6198, %v6197
        %s6215 = scalar_lea.vmem %s2, 40
        %v6216 = vld [vmem:[%s6215] sm:$0xf]
        %v6217 = vld [vmem:[%s6215 + $0x4] sm:$0xf]
        %v6218 = vld [vmem:[%s6215 + $0x8] sm:$0xf]
        %v6219 = vld [vmem:[%s6215 + $0xc] sm:$0xf]
        %v6220 = vld [vmem:[%s6215 + $0x10] sm:$0xf]
        %v6221 = vld [vmem:[%s3 + $0x2] sm:$0x1]
        %v6222 = vlaneseq
        %v6223 = vshrl.u32 %v6222, 7
        %v6224 = vsub.s32 0, %v6223
        %v6225 = vrot.slane %v6221, %v6224
        %v6231 = vunpack.c.l.b16 %v6216
        %v6232 = vunpack.c.l.b16 %v6217
        %v6233 = vunpack.c.l.b16 %v6218
        %v6234 = vunpack.c.l.b16 %v6219
        %v6235 = vunpack.c.l.b16 %v6220
        %v6236 = vpack.c.b16 %v6232, %v6231
        %v6237 = vpack.c.b16 %v6234, %v6233
        %v6238 = vpack.c.b16 %v6235, %v6235
        %v6242 = vsel %vm2398, %v6199, 0
        %v6245 = vsel %vm2398, %v6200, 0
        %v6248 = vsel %vm2398, %v6201, 0
        %v6251 = vsel %vm2398, %v6202, 0
        %v6254 = vsel %vm2398, %v6203, 0
        %v6257 = vsel %vm2398, %v6204, 0
        %v6260 = vsel %vm2398, %v6205, 0
        %v6263 = vsel %vm2398, %v6206, 0
        %v6266 = vsel %vm2398, %v6207, 0
        %v6269 = vsel %vm2398, %v6208, 0
        %v6272 = vsel %vm2398, %v6209, 0
        %v6275 = vsel %vm2398, %v6210, 0
        %v6278 = vsel %vm2398, %v6211, 0
        %v6281 = vsel %vm2398, %v6212, 0
        %v6284 = vsel %vm2398, %v6213, 0
        %v6287 = vsel %vm2398, %v6214, 0
        %v6290 = vsel %vm2447, %v6238, 0
        %6292 = vmatprep.subr.bf16.mxu0 0
        %6293 = vmatpush1.bf16.msra.mxu0 0
        %6294 = vmatprep.subr.bf16.mxu0 0
        %6295 = vmatpush1.bf16.msra.mxu0 0
        %6296 = vmatprep.subr.bf16.mxu0 0
        %6297 = vmatpush1.bf16.msra.mxu0 0
        %6298 = vmatprep.subr.bf16.mxu0 0
        %6299 = vmatpush1.bf16.msra.mxu0 0
        %6300 = vmatprep.subr.bf16.mxu0 0
        %6301 = vmatpush1.bf16.msra.mxu0 0
        %6302 = vmatprep.subr.bf16.mxu0 0
        %6303 = vmatpush1.bf16.msra.mxu0 %v6290
        %6304 = vmatprep.subr.bf16.mxu0 0
        %6305 = vmatpush1.bf16.msra.mxu0 %v6237
        %6306 = vmatprep.subr.bf16.mxu0 0
        %6307 = vmatpush1.bf16.msra.mxu0 %v6236
        %6308 = vmatprep.subr.bf16.mxu0 0
        %6309 = vmatpush2.bf16.msra.mxu0 0
        %6310 = vmatprep.subr.bf16.mxu0 0
        %6311 = vmatpush2.bf16.msra.mxu0 0
        %6312 = vmatprep.subr.bf16.mxu0 0
        %6313 = vmatpush2.bf16.msra.mxu0 0
        %6314 = vmatprep.subr.bf16.mxu0 0
        %6315 = vmatpush2.bf16.msra.mxu0 0
        %6316 = vmatprep.subr.bf16.mxu0 0
        %6317 = vmatpush2.bf16.msra.mxu0 0
        %6318 = vmatprep.subr.bf16.mxu0 0
        %6319 = vmatpush2.bf16.msra.mxu0 0
        %6320 = vmatprep.subr.bf16.mxu0 0
        %6321 = vmatpush2.bf16.msra.mxu0 0
        %6322 = vmatprep.subr.bf16.mxu0 0
        %6323 = vmatpush2.bf16.msra.mxu0 0
        %6324 = vmatprep.mubr.bf16.mxu0 0
        %6325 = vmatmul.mubr.bf16.gmra.mxu0 %v6242
        %v6326 = vpop.f32.mrf.mxu0
        %v6327 = vadd.f32 %v6225, %v6326
        %v6328 = vpop.f32.mrf.mxu0
        %v6329 = vpop.f32.mrf.mxu0
        %v6330 = vadd.f32 %v6225, %v6329
        %v6331 = vpop.f32.mrf.mxu0
        %6332 = vmatprep.mubr.bf16.mxu0 0
        %6333 = vmatmul.mubr.bf16.gmra.mxu0 %v6245
        %v6334 = vpop.f32.mrf.mxu0
        %v6335 = vadd.f32 %v6225, %v6334
        %v6336 = vpop.f32.mrf.mxu0
        %v6337 = vpop.f32.mrf.mxu0
        %v6338 = vadd.f32 %v6225, %v6337
        %v6339 = vpop.f32.mrf.mxu0
        %6340 = vmatprep.mubr.bf16.mxu0 0
        %6341 = vmatmul.mubr.bf16.gmra.mxu0 %v6248
        %v6342 = vpop.f32.mrf.mxu0
        %v6343 = vadd.f32 %v6225, %v6342
        %v6344 = vpop.f32.mrf.mxu0
        %v6345 = vpop.f32.mrf.mxu0
        %v6346 = vadd.f32 %v6225, %v6345
        %v6347 = vpop.f32.mrf.mxu0
        %6348 = vmatprep.mubr.bf16.mxu0 0
        %6349 = vmatmul.mubr.bf16.gmra.mxu0 %v6251
        %v6350 = vpop.f32.mrf.mxu0
        %v6351 = vadd.f32 %v6225, %v6350
        %v6352 = vpop.f32.mrf.mxu0
        %v6353 = vpop.f32.mrf.mxu0
        %v6354 = vadd.f32 %v6225, %v6353
        %v6355 = vpop.f32.mrf.mxu0
        %6356 = vmatprep.mubr.bf16.mxu0 0
        %6357 = vmatmul.mubr.bf16.gmra.mxu0 %v6254
        %v6358 = vpop.f32.mrf.mxu0
        %v6359 = vadd.f32 %v6225, %v6358
        %v6360 = vpop.f32.mrf.mxu0
        %v6361 = vpop.f32.mrf.mxu0
        %v6362 = vadd.f32 %v6225, %v6361
        %v6363 = vpop.f32.mrf.mxu0
        %6364 = vmatprep.mubr.bf16.mxu0 0
        %6365 = vmatmul.mubr.bf16.gmra.mxu0 %v6257
        %v6366 = vpop.f32.mrf.mxu0
        %v6367 = vadd.f32 %v6225, %v6366
        %v6368 = vpop.f32.mrf.mxu0
        %v6369 = vpop.f32.mrf.mxu0
        %v6370 = vadd.f32 %v6225, %v6369
        %v6371 = vpop.f32.mrf.mxu0
        %6372 = vmatprep.mubr.bf16.mxu0 0
        %6373 = vmatmul.mubr.bf16.gmra.mxu0 %v6260
        %v6374 = vpop.f32.mrf.mxu0
        %v6375 = vadd.f32 %v6225, %v6374
        %v6376 = vpop.f32.mrf.mxu0
        %v6377 = vpop.f32.mrf.mxu0
        %v6378 = vadd.f32 %v6225, %v6377
        %v6379 = vpop.f32.mrf.mxu0
        %6380 = vmatprep.mubr.bf16.mxu0 0
        %6381 = vmatmul.mubr.bf16.gmra.mxu0 %v6263
        %v6382 = vpop.f32.mrf.mxu0
        %v6383 = vadd.f32 %v6225, %v6382
        %v6384 = vpop.f32.mrf.mxu0
        %v6385 = vpop.f32.mrf.mxu0
        %v6386 = vadd.f32 %v6225, %v6385
        %v6387 = vpop.f32.mrf.mxu0
        %6388 = vmatprep.mubr.bf16.mxu0 0
        %6389 = vmatmul.mubr.bf16.gmra.mxu0 %v6266
        %v6390 = vpop.f32.mrf.mxu0
        %v6391 = vadd.f32 %v6225, %v6390
        %v6392 = vpop.f32.mrf.mxu0
        %v6393 = vpop.f32.mrf.mxu0
        %v6394 = vadd.f32 %v6225, %v6393
        %v6395 = vpop.f32.mrf.mxu0
        %6396 = vmatprep.mubr.bf16.mxu0 0
        %6397 = vmatmul.mubr.bf16.gmra.mxu0 %v6269
        %v6398 = vpop.f32.mrf.mxu0
        %v6399 = vadd.f32 %v6225, %v6398
        %v6400 = vpop.f32.mrf.mxu0
        %v6401 = vpop.f32.mrf.mxu0
        %v6402 = vadd.f32 %v6225, %v6401
        %v6403 = vpop.f32.mrf.mxu0
        %6404 = vmatprep.mubr.bf16.mxu0 0
        %6405 = vmatmul.mubr.bf16.gmra.mxu0 %v6272
        %v6406 = vpop.f32.mrf.mxu0
        %v6407 = vadd.f32 %v6225, %v6406
        %v6408 = vpop.f32.mrf.mxu0
        %v6409 = vpop.f32.mrf.mxu0
        %v6410 = vadd.f32 %v6225, %v6409
        %v6411 = vpop.f32.mrf.mxu0
        %6412 = vmatprep.mubr.bf16.mxu0 0
        %6413 = vmatmul.mubr.bf16.gmra.mxu0 %v6275
        %v6414 = vpop.f32.mrf.mxu0
        %v6415 = vadd.f32 %v6225, %v6414
        %v6416 = vpop.f32.mrf.mxu0
        %v6417 = vpop.f32.mrf.mxu0
        %v6418 = vadd.f32 %v6225, %v6417
        %v6419 = vpop.f32.mrf.mxu0
        %6420 = vmatprep.mubr.bf16.mxu0 0
        %6421 = vmatmul.mubr.bf16.gmra.mxu0 %v6278
        %v6422 = vpop.f32.mrf.mxu0
        %v6423 = vadd.f32 %v6225, %v6422
        %v6424 = vpop.f32.mrf.mxu0
        %v6425 = vpop.f32.mrf.mxu0
        %v6426 = vadd.f32 %v6225, %v6425
        %v6427 = vpop.f32.mrf.mxu0
        %6428 = vmatprep.mubr.bf16.mxu0 0
        %6429 = vmatmul.mubr.bf16.gmra.mxu0 %v6281
        %v6430 = vpop.f32.mrf.mxu0
        %v6431 = vadd.f32 %v6225, %v6430
        %v6432 = vpop.f32.mrf.mxu0
        %v6433 = vpop.f32.mrf.mxu0
        %v6434 = vadd.f32 %v6225, %v6433
        %v6435 = vpop.f32.mrf.mxu0
        %6436 = vmatprep.mubr.bf16.mxu0 0
        %6437 = vmatmul.mubr.bf16.gmra.mxu0 %v6284
        %v6438 = vpop.f32.mrf.mxu0
        %v6439 = vadd.f32 %v6225, %v6438
        %v6440 = vpop.f32.mrf.mxu0
        %v6441 = vpop.f32.mrf.mxu0
        %v6442 = vadd.f32 %v6225, %v6441
        %v6443 = vpop.f32.mrf.mxu0
        %6444 = vmatprep.mubr.bf16.mxu0 0
        %6445 = vmatmul.mubr.bf16.gmra.mxu0 %v6287
        %v6446 = vpop.f32.mrf.mxu0
        %v6447 = vadd.f32 %v6225, %v6446
        %v6448 = vpop.f32.mrf.mxu0
        %v6449 = vpop.f32.mrf.mxu0
        %v6450 = vadd.f32 %v6225, %v6449
        %v6451 = vpop.f32.mrf.mxu0
        %6452 = vdwg.mxu0
        %v6453 = vmax.f32 %v6327, 0.0
        %v6454 = vmax.f32 %v6330, 0.0
        %v6455 = vmax.f32 %v6335, 0.0
        %v6456 = vmax.f32 %v6338, 0.0
        %v6457 = vmax.f32 %v6343, 0.0
        %v6458 = vmax.f32 %v6346, 0.0
        %v6459 = vmax.f32 %v6351, 0.0
        %v6460 = vmax.f32 %v6354, 0.0
        %v6461 = vmax.f32 %v6359, 0.0
        %v6462 = vmax.f32 %v6362, 0.0
        %v6463 = vmax.f32 %v6367, 0.0
        %v6464 = vmax.f32 %v6370, 0.0
        %v6465 = vmax.f32 %v6375, 0.0
        %v6466 = vmax.f32 %v6378, 0.0
        %v6467 = vmax.f32 %v6383, 0.0
        %v6468 = vmax.f32 %v6386, 0.0
        %v6469 = vmax.f32 %v6391, 0.0
        %v6470 = vmax.f32 %v6394, 0.0
        %v6471 = vmax.f32 %v6399, 0.0
        %v6472 = vmax.f32 %v6402, 0.0
        %v6473 = vmax.f32 %v6407, 0.0
        %v6474 = vmax.f32 %v6410, 0.0
        %v6475 = vmax.f32 %v6415, 0.0
        %v6476 = vmax.f32 %v6418, 0.0
        %v6477 = vmax.f32 %v6423, 0.0
        %v6478 = vmax.f32 %v6426, 0.0
        %v6479 = vmax.f32 %v6431, 0.0
        %v6480 = vmax.f32 %v6434, 0.0
        %v6481 = vmax.f32 %v6439, 0.0
        %v6482 = vmax.f32 %v6442, 0.0
        %v6483 = vmax.f32 %v6447, 0.0
        %v6484 = vmax.f32 %v6450, 0.0
        %6485 = vst.msk [vmem:[%s2644 + $0x7] sm:$0xff] %vm217, %v6453
        %6486 = vst.msk [vmem:[%s2644 + $0xf] sm:$0xff] %vm217, %v6454
        %6487 = vst.msk [vmem:[%s2644 + $0x27] sm:$0xff] %vm217, %v6455
        %6488 = vst.msk [vmem:[%s2644 + $0x2f] sm:$0xff] %vm217, %v6456
        %6489 = vst.msk [vmem:[%s2644 + $0x47] sm:$0xff] %vm217, %v6457
        %6490 = vst.msk [vmem:[%s2644 + $0x4f] sm:$0xff] %vm217, %v6458
        %6491 = vst.msk [vmem:[%s2644 + $0x67] sm:$0xff] %vm217, %v6459
        %6492 = vst.msk [vmem:[%s2644 + $0x6f] sm:$0xff] %vm217, %v6460
        %6493 = vst.msk [vmem:[%s2644 + $0x87] sm:$0xff] %vm217, %v6461
        %6494 = vst.msk [vmem:[%s2644 + $0x8f] sm:$0xff] %vm217, %v6462
        %6495 = vst.msk [vmem:[%s2644 + $0xa7] sm:$0xff] %vm217, %v6463
        %6496 = vst.msk [vmem:[%s2644 + $0xaf] sm:$0xff] %vm217, %v6464
        %6497 = vst.msk [vmem:[%s2644 + $0xc7] sm:$0xff] %vm217, %v6465
        %6498 = vst.msk [vmem:[%s2644 + $0xcf] sm:$0xff] %vm217, %v6466
        %6499 = vst.msk [vmem:[%s2644 + $0xe7] sm:$0xff] %vm217, %v6467
        %6500 = vst.msk [vmem:[%s2644 + $0xef] sm:$0xff] %vm217, %v6468
        %6501 = vst.msk [vmem:[%s2644 + $0x107] sm:$0xff] %vm217, %v6469
        %6502 = vst.msk [vmem:[%s2644 + $0x10f] sm:$0xff] %vm217, %v6470
        %6503 = vst.msk [vmem:[%s2644 + $0x127] sm:$0xff] %vm217, %v6471
        %6504 = vst.msk [vmem:[%s2644 + $0x12f] sm:$0xff] %vm217, %v6472
        %6505 = vst.msk [vmem:[%s2644 + $0x147] sm:$0xff] %vm217, %v6473
        %6506 = vst.msk [vmem:[%s2644 + $0x14f] sm:$0xff] %vm217, %v6474
        %6507 = vst.msk [vmem:[%s2644 + $0x167] sm:$0xff] %vm217, %v6475
        %6508 = vst.msk [vmem:[%s2644 + $0x16f] sm:$0xff] %vm217, %v6476
        %6509 = vst.msk [vmem:[%s2644 + $0x187] sm:$0xff] %vm217, %v6477
        %6510 = vst.msk [vmem:[%s2644 + $0x18f] sm:$0xff] %vm217, %v6478
        %6511 = vst.msk [vmem:[%s2644 + $0x1a7] sm:$0xff] %vm217, %v6479
        %6512 = vst.msk [vmem:[%s2644 + $0x1af] sm:$0xff] %vm217, %v6480
        %6513 = vst.msk [vmem:[%s2644 + $0x1c7] sm:$0xff] %vm217, %v6481
        %6514 = vst.msk [vmem:[%s2644 + $0x1cf] sm:$0xff] %vm217, %v6482
        %6515 = vst.msk [vmem:[%s2644 + $0x1e7] sm:$0xff] %vm217, %v6483
        %6516 = vst.msk [vmem:[%s2644 + $0x1ef] sm:$0xff] %vm217, %v6484
        %s6517 = scalar_lea.vmem [#allocation3], 192
        %v6518 = vld [vmem:[%s6517 + $0x6] sm:$0xff]
        %v6519 = vld [vmem:[%s6517 + $0xe] sm:$0xff]
        %v6520 = vld [vmem:[%s6517 + $0x26] sm:$0xff]
        %v6521 = vld [vmem:[%s6517 + $0x2e] sm:$0xff]
        %v6522 = vld [vmem:[%s6517 + $0x46] sm:$0xff]
        %v6523 = vld [vmem:[%s6517 + $0x4e] sm:$0xff]
        %v6524 = vld [vmem:[%s6517 + $0x66] sm:$0xff]
        %v6525 = vld [vmem:[%s6517 + $0x6e] sm:$0xff]
        %v6526 = vld [vmem:[%s6517 + $0x86] sm:$0xff]
        %v6527 = vld [vmem:[%s6517 + $0x8e] sm:$0xff]
        %v6528 = vld [vmem:[%s6517 + $0xa6] sm:$0xff]
        %v6529 = vld [vmem:[%s6517 + $0xae] sm:$0xff]
        %v6530 = vld [vmem:[%s6517 + $0xc6] sm:$0xff]
        %v6531 = vld [vmem:[%s6517 + $0xce] sm:$0xff]
        %v6532 = vld [vmem:[%s6517 + $0xe6] sm:$0xff]
        %v6533 = vld [vmem:[%s6517 + $0xee] sm:$0xff]
        %v6534 = vld [vmem:[%s6517 + $0x106] sm:$0xff]
        %v6535 = vld [vmem:[%s6517 + $0x10e] sm:$0xff]
        %v6536 = vld [vmem:[%s6517 + $0x126] sm:$0xff]
        %v6537 = vld [vmem:[%s6517 + $0x12e] sm:$0xff]
        %v6538 = vld [vmem:[%s6517 + $0x146] sm:$0xff]
        %v6539 = vld [vmem:[%s6517 + $0x14e] sm:$0xff]
        %v6540 = vld [vmem:[%s6517 + $0x166] sm:$0xff]
        %v6541 = vld [vmem:[%s6517 + $0x16e] sm:$0xff]
        %v6542 = vld [vmem:[%s6517 + $0x186] sm:$0xff]
        %v6543 = vld [vmem:[%s6517 + $0x18e] sm:$0xff]
        %v6544 = vld [vmem:[%s6517 + $0x1a6] sm:$0xff]
        %v6545 = vld [vmem:[%s6517 + $0x1ae] sm:$0xff]
        %v6546 = vld [vmem:[%s6517 + $0x1c6] sm:$0xff]
        %v6547 = vld [vmem:[%s6517 + $0x1ce] sm:$0xff]
        %v6548 = vld [vmem:[%s6517 + $0x1e6] sm:$0xff]
        %v6549 = vld [vmem:[%s6517 + $0x1ee] sm:$0xff]
        %v6550 = vld [vmem:[%s6517 + $0x7] sm:$0xff]
        %v6551 = vld [vmem:[%s6517 + $0xf] sm:$0xff]
        %v6552 = vld [vmem:[%s6517 + $0x27] sm:$0xff]
        %v6553 = vld [vmem:[%s6517 + $0x2f] sm:$0xff]
        %v6554 = vld [vmem:[%s6517 + $0x47] sm:$0xff]
        %v6555 = vld [vmem:[%s6517 + $0x4f] sm:$0xff]
        %v6556 = vld [vmem:[%s6517 + $0x67] sm:$0xff]
        %v6557 = vld [vmem:[%s6517 + $0x6f] sm:$0xff]
        %v6558 = vld [vmem:[%s6517 + $0x87] sm:$0xff]
        %v6559 = vld [vmem:[%s6517 + $0x8f] sm:$0xff]
        %v6560 = vld [vmem:[%s6517 + $0xa7] sm:$0xff]
        %v6561 = vld [vmem:[%s6517 + $0xaf] sm:$0xff]
        %v6562 = vld [vmem:[%s6517 + $0xc7] sm:$0xff]
        %v6563 = vld [vmem:[%s6517 + $0xcf] sm:$0xff]
        %v6564 = vld [vmem:[%s6517 + $0xe7] sm:$0xff]
        %v6565 = vld [vmem:[%s6517 + $0xef] sm:$0xff]
        %v6566 = vld [vmem:[%s6517 + $0x107] sm:$0xff]
        %v6567 = vld [vmem:[%s6517 + $0x10f] sm:$0xff]
        %v6568 = vld [vmem:[%s6517 + $0x127] sm:$0xff]
        %v6569 = vld [vmem:[%s6517 + $0x12f] sm:$0xff]
        %v6570 = vld [vmem:[%s6517 + $0x147] sm:$0xff]
        %v6571 = vld [vmem:[%s6517 + $0x14f] sm:$0xff]
        %v6572 = vld [vmem:[%s6517 + $0x167] sm:$0xff]
        %v6573 = vld [vmem:[%s6517 + $0x16f] sm:$0xff]
        %v6574 = vld [vmem:[%s6517 + $0x187] sm:$0xff]
        %v6575 = vld [vmem:[%s6517 + $0x18f] sm:$0xff]
        %v6576 = vld [vmem:[%s6517 + $0x1a7] sm:$0xff]
        %v6577 = vld [vmem:[%s6517 + $0x1af] sm:$0xff]
        %v6578 = vld [vmem:[%s6517 + $0x1c7] sm:$0xff]
        %v6579 = vld [vmem:[%s6517 + $0x1cf] sm:$0xff]
        %v6580 = vld [vmem:[%s6517 + $0x1e7] sm:$0xff]
        %v6581 = vld [vmem:[%s6517 + $0x1ef] sm:$0xff]
        %v6582 = vld [vmem:[%s6517 + $0x8] sm:$0xff]
        %v6583 = vld [vmem:[%s6517 + $0x10] sm:$0xff]
        %v6584 = vld [vmem:[%s6517 + $0x28] sm:$0xff]
        %v6585 = vld [vmem:[%s6517 + $0x30] sm:$0xff]
        %v6586 = vld [vmem:[%s6517 + $0x48] sm:$0xff]
        %v6587 = vld [vmem:[%s6517 + $0x50] sm:$0xff]
        %v6588 = vld [vmem:[%s6517 + $0x68] sm:$0xff]
        %v6589 = vld [vmem:[%s6517 + $0x70] sm:$0xff]
        %v6590 = vld [vmem:[%s6517 + $0x88] sm:$0xff]
        %v6591 = vld [vmem:[%s6517 + $0x90] sm:$0xff]
        %v6592 = vld [vmem:[%s6517 + $0xa8] sm:$0xff]
        %v6593 = vld [vmem:[%s6517 + $0xb0] sm:$0xff]
        %v6594 = vld [vmem:[%s6517 + $0xc8] sm:$0xff]
        %v6595 = vld [vmem:[%s6517 + $0xd0] sm:$0xff]
        %v6596 = vld [vmem:[%s6517 + $0xe8] sm:$0xff]
        %v6597 = vld [vmem:[%s6517 + $0xf0] sm:$0xff]
        %v6598 = vld [vmem:[%s6517 + $0x108] sm:$0xff]
        %v6599 = vld [vmem:[%s6517 + $0x110] sm:$0xff]
        %v6600 = vld [vmem:[%s6517 + $0x128] sm:$0xff]
        %v6601 = vld [vmem:[%s6517 + $0x130] sm:$0xff]
        %v6602 = vld [vmem:[%s6517 + $0x148] sm:$0xff]
        %v6603 = vld [vmem:[%s6517 + $0x150] sm:$0xff]
        %v6604 = vld [vmem:[%s6517 + $0x168] sm:$0xff]
        %v6605 = vld [vmem:[%s6517 + $0x170] sm:$0xff]
        %v6606 = vld [vmem:[%s6517 + $0x188] sm:$0xff]
        %v6607 = vld [vmem:[%s6517 + $0x190] sm:$0xff]
        %v6608 = vld [vmem:[%s6517 + $0x1a8] sm:$0xff]
        %v6609 = vld [vmem:[%s6517 + $0x1b0] sm:$0xff]
        %v6610 = vld [vmem:[%s6517 + $0x1c8] sm:$0xff]
        %v6611 = vld [vmem:[%s6517 + $0x1d0] sm:$0xff]
        %v6612 = vld [vmem:[%s6517 + $0x1e8] sm:$0xff]
        %v6613 = vld [vmem:[%s6517 + $0x1f0] sm:$0xff]
        %v6614 = vld [vmem:[%s2644 + $0x6] sm:$0xff]
        %v6615 = vld [vmem:[%s2644 + $0xe] sm:$0xff]
        %v6616 = vld [vmem:[%s2644 + $0x26] sm:$0xff]
        %v6617 = vld [vmem:[%s2644 + $0x2e] sm:$0xff]
        %v6618 = vld [vmem:[%s2644 + $0x46] sm:$0xff]
        %v6619 = vld [vmem:[%s2644 + $0x4e] sm:$0xff]
        %v6620 = vld [vmem:[%s2644 + $0x66] sm:$0xff]
        %v6621 = vld [vmem:[%s2644 + $0x6e] sm:$0xff]
        %v6622 = vld [vmem:[%s2644 + $0x86] sm:$0xff]
        %v6623 = vld [vmem:[%s2644 + $0x8e] sm:$0xff]
        %v6624 = vld [vmem:[%s2644 + $0xa6] sm:$0xff]
        %v6625 = vld [vmem:[%s2644 + $0xae] sm:$0xff]
        %v6626 = vld [vmem:[%s2644 + $0xc6] sm:$0xff]
        %v6627 = vld [vmem:[%s2644 + $0xce] sm:$0xff]
        %v6628 = vld [vmem:[%s2644 + $0xe6] sm:$0xff]
        %v6629 = vld [vmem:[%s2644 + $0xee] sm:$0xff]
        %v6630 = vld [vmem:[%s2644 + $0x106] sm:$0xff]
        %v6631 = vld [vmem:[%s2644 + $0x10e] sm:$0xff]
        %v6632 = vld [vmem:[%s2644 + $0x126] sm:$0xff]
        %v6633 = vld [vmem:[%s2644 + $0x12e] sm:$0xff]
        %v6634 = vld [vmem:[%s2644 + $0x146] sm:$0xff]
        %v6635 = vld [vmem:[%s2644 + $0x14e] sm:$0xff]
        %v6636 = vld [vmem:[%s2644 + $0x166] sm:$0xff]
        %v6637 = vld [vmem:[%s2644 + $0x16e] sm:$0xff]
        %v6638 = vld [vmem:[%s2644 + $0x186] sm:$0xff]
        %v6639 = vld [vmem:[%s2644 + $0x18e] sm:$0xff]
        %v6640 = vld [vmem:[%s2644 + $0x1a6] sm:$0xff]
        %v6641 = vld [vmem:[%s2644 + $0x1ae] sm:$0xff]
        %v6642 = vld [vmem:[%s2644 + $0x1c6] sm:$0xff]
        %v6643 = vld [vmem:[%s2644 + $0x1ce] sm:$0xff]
        %v6644 = vld [vmem:[%s2644 + $0x1e6] sm:$0xff]
        %v6645 = vld [vmem:[%s2644 + $0x1ee] sm:$0xff]
        %v6646 = vld [vmem:[%s2644 + $0x7] sm:$0xff]
        %v6647 = vld [vmem:[%s2644 + $0xf] sm:$0xff]
        %v6648 = vld [vmem:[%s2644 + $0x27] sm:$0xff]
        %v6649 = vld [vmem:[%s2644 + $0x2f] sm:$0xff]
        %v6650 = vld [vmem:[%s2644 + $0x47] sm:$0xff]
        %v6651 = vld [vmem:[%s2644 + $0x4f] sm:$0xff]
        %v6652 = vld [vmem:[%s2644 + $0x67] sm:$0xff]
        %v6653 = vld [vmem:[%s2644 + $0x6f] sm:$0xff]
        %v6654 = vld [vmem:[%s2644 + $0x87] sm:$0xff]
        %v6655 = vld [vmem:[%s2644 + $0x8f] sm:$0xff]
        %v6656 = vld [vmem:[%s2644 + $0xa7] sm:$0xff]
        %v6657 = vld [vmem:[%s2644 + $0xaf] sm:$0xff]
        %v6658 = vld [vmem:[%s2644 + $0xc7] sm:$0xff]
        %v6659 = vld [vmem:[%s2644 + $0xcf] sm:$0xff]
        %v6660 = vld [vmem:[%s2644 + $0xe7] sm:$0xff]
        %v6661 = vld [vmem:[%s2644 + $0xef] sm:$0xff]
        %v6662 = vld [vmem:[%s2644 + $0x107] sm:$0xff]
        %v6663 = vld [vmem:[%s2644 + $0x10f] sm:$0xff]
        %v6664 = vld [vmem:[%s2644 + $0x127] sm:$0xff]
        %v6665 = vld [vmem:[%s2644 + $0x12f] sm:$0xff]
        %v6666 = vld [vmem:[%s2644 + $0x147] sm:$0xff]
        %v6667 = vld [vmem:[%s2644 + $0x14f] sm:$0xff]
        %v6668 = vld [vmem:[%s2644 + $0x167] sm:$0xff]
        %v6669 = vld [vmem:[%s2644 + $0x16f] sm:$0xff]
        %v6670 = vld [vmem:[%s2644 + $0x187] sm:$0xff]
        %v6671 = vld [vmem:[%s2644 + $0x18f] sm:$0xff]
        %v6672 = vld [vmem:[%s2644 + $0x1a7] sm:$0xff]
        %v6673 = vld [vmem:[%s2644 + $0x1af] sm:$0xff]
        %v6674 = vld [vmem:[%s2644 + $0x1c7] sm:$0xff]
        %v6675 = vld [vmem:[%s2644 + $0x1cf] sm:$0xff]
        %v6676 = vld [vmem:[%s2644 + $0x1e7] sm:$0xff]
        %v6677 = vld [vmem:[%s2644 + $0x1ef] sm:$0xff]
        %v6678 = vld [vmem:[%s2644 + $0x8] sm:$0xff]
        %v6679 = vld [vmem:[%s2644 + $0x10] sm:$0xff]
        %v6680 = vld [vmem:[%s2644 + $0x28] sm:$0xff]
        %v6681 = vld [vmem:[%s2644 + $0x30] sm:$0xff]
        %v6682 = vld [vmem:[%s2644 + $0x48] sm:$0xff]
        %v6683 = vld [vmem:[%s2644 + $0x50] sm:$0xff]
        %v6684 = vld [vmem:[%s2644 + $0x68] sm:$0xff]
        %v6685 = vld [vmem:[%s2644 + $0x70] sm:$0xff]
        %v6686 = vld [vmem:[%s2644 + $0x88] sm:$0xff]
        %v6687 = vld [vmem:[%s2644 + $0x90] sm:$0xff]
        %v6688 = vld [vmem:[%s2644 + $0xa8] sm:$0xff]
        %v6689 = vld [vmem:[%s2644 + $0xb0] sm:$0xff]
        %v6690 = vld [vmem:[%s2644 + $0xc8] sm:$0xff]
        %v6691 = vld [vmem:[%s2644 + $0xd0] sm:$0xff]
        %v6692 = vld [vmem:[%s2644 + $0xe8] sm:$0xff]
        %v6693 = vld [vmem:[%s2644 + $0xf0] sm:$0xff]
        %v6694 = vld [vmem:[%s2644 + $0x108] sm:$0xff]
        %v6695 = vld [vmem:[%s2644 + $0x110] sm:$0xff]
        %v6696 = vld [vmem:[%s2644 + $0x128] sm:$0xff]
        %v6697 = vld [vmem:[%s2644 + $0x130] sm:$0xff]
        %v6698 = vld [vmem:[%s2644 + $0x148] sm:$0xff]
        %v6699 = vld [vmem:[%s2644 + $0x150] sm:$0xff]
        %v6700 = vld [vmem:[%s2644 + $0x168] sm:$0xff]
        %v6701 = vld [vmem:[%s2644 + $0x170] sm:$0xff]
        %v6702 = vld [vmem:[%s2644 + $0x188] sm:$0xff]
        %v6703 = vld [vmem:[%s2644 + $0x190] sm:$0xff]
        %v6704 = vld [vmem:[%s2644 + $0x1a8] sm:$0xff]
        %v6705 = vld [vmem:[%s2644 + $0x1b0] sm:$0xff]
        %v6706 = vld [vmem:[%s2644 + $0x1c8] sm:$0xff]
        %v6707 = vld [vmem:[%s2644 + $0x1d0] sm:$0xff]
        %v6708 = vld [vmem:[%s2644 + $0x1e8] sm:$0xff]
        %v6709 = vld [vmem:[%s2644 + $0x1f0] sm:$0xff]
        %s6710 = scalar_lea.vmem [#allocation3], 256
        %v6711 = vld [vmem:[%s6710 + $0x6] sm:$0xff]
        %v6712 = vld [vmem:[%s6710 + $0xe] sm:$0xff]
        %v6713 = vld [vmem:[%s6710 + $0x26] sm:$0xff]
        %v6714 = vld [vmem:[%s6710 + $0x2e] sm:$0xff]
        %v6715 = vld [vmem:[%s6710 + $0x46] sm:$0xff]
        %v6716 = vld [vmem:[%s6710 + $0x4e] sm:$0xff]
        %v6717 = vld [vmem:[%s6710 + $0x66] sm:$0xff]
        %v6718 = vld [vmem:[%s6710 + $0x6e] sm:$0xff]
        %v6719 = vld [vmem:[%s6710 + $0x86] sm:$0xff]
        %v6720 = vld [vmem:[%s6710 + $0x8e] sm:$0xff]
        %v6721 = vld [vmem:[%s6710 + $0xa6] sm:$0xff]
        %v6722 = vld [vmem:[%s6710 + $0xae] sm:$0xff]
        %v6723 = vld [vmem:[%s6710 + $0xc6] sm:$0xff]
        %v6724 = vld [vmem:[%s6710 + $0xce] sm:$0xff]
        %v6725 = vld [vmem:[%s6710 + $0xe6] sm:$0xff]
        %v6726 = vld [vmem:[%s6710 + $0xee] sm:$0xff]
        %v6727 = vld [vmem:[%s6710 + $0x106] sm:$0xff]
        %v6728 = vld [vmem:[%s6710 + $0x10e] sm:$0xff]
        %v6729 = vld [vmem:[%s6710 + $0x126] sm:$0xff]
        %v6730 = vld [vmem:[%s6710 + $0x12e] sm:$0xff]
        %v6731 = vld [vmem:[%s6710 + $0x146] sm:$0xff]
        %v6732 = vld [vmem:[%s6710 + $0x14e] sm:$0xff]
        %v6733 = vld [vmem:[%s6710 + $0x166] sm:$0xff]
        %v6734 = vld [vmem:[%s6710 + $0x16e] sm:$0xff]
        %v6735 = vld [vmem:[%s6710 + $0x186] sm:$0xff]
        %v6736 = vld [vmem:[%s6710 + $0x18e] sm:$0xff]
        %v6737 = vld [vmem:[%s6710 + $0x1a6] sm:$0xff]
        %v6738 = vld [vmem:[%s6710 + $0x1ae] sm:$0xff]
        %v6739 = vld [vmem:[%s6710 + $0x1c6] sm:$0xff]
        %v6740 = vld [vmem:[%s6710 + $0x1ce] sm:$0xff]
        %v6741 = vld [vmem:[%s6710 + $0x1e6] sm:$0xff]
        %v6742 = vld [vmem:[%s6710 + $0x1ee] sm:$0xff]
        %v6743 = vld [vmem:[%s6710 + $0x7] sm:$0xff]
        %v6744 = vld [vmem:[%s6710 + $0xf] sm:$0xff]
        %v6745 = vld [vmem:[%s6710 + $0x27] sm:$0xff]
        %v6746 = vld [vmem:[%s6710 + $0x2f] sm:$0xff]
        %v6747 = vld [vmem:[%s6710 + $0x47] sm:$0xff]
        %v6748 = vld [vmem:[%s6710 + $0x4f] sm:$0xff]
        %v6749 = vld [vmem:[%s6710 + $0x67] sm:$0xff]
        %v6750 = vld [vmem:[%s6710 + $0x6f] sm:$0xff]
        %v6751 = vld [vmem:[%s6710 + $0x87] sm:$0xff]
        %v6752 = vld [vmem:[%s6710 + $0x8f] sm:$0xff]
        %v6753 = vld [vmem:[%s6710 + $0xa7] sm:$0xff]
        %v6754 = vld [vmem:[%s6710 + $0xaf] sm:$0xff]
        %v6755 = vld [vmem:[%s6710 + $0xc7] sm:$0xff]
        %v6756 = vld [vmem:[%s6710 + $0xcf] sm:$0xff]
        %v6757 = vld [vmem:[%s6710 + $0xe7] sm:$0xff]
        %v6758 = vld [vmem:[%s6710 + $0xef] sm:$0xff]
        %v6759 = vld [vmem:[%s6710 + $0x107] sm:$0xff]
        %v6760 = vld [vmem:[%s6710 + $0x10f] sm:$0xff]
        %v6761 = vld [vmem:[%s6710 + $0x127] sm:$0xff]
        %v6762 = vld [vmem:[%s6710 + $0x12f] sm:$0xff]
        %v6763 = vld [vmem:[%s6710 + $0x147] sm:$0xff]
        %v6764 = vld [vmem:[%s6710 + $0x14f] sm:$0xff]
        %v6765 = vld [vmem:[%s6710 + $0x167] sm:$0xff]
        %v6766 = vld [vmem:[%s6710 + $0x16f] sm:$0xff]
        %v6767 = vld [vmem:[%s6710 + $0x187] sm:$0xff]
        %v6768 = vld [vmem:[%s6710 + $0x18f] sm:$0xff]
        %v6769 = vld [vmem:[%s6710 + $0x1a7] sm:$0xff]
        %v6770 = vld [vmem:[%s6710 + $0x1af] sm:$0xff]
        %v6771 = vld [vmem:[%s6710 + $0x1c7] sm:$0xff]
        %v6772 = vld [vmem:[%s6710 + $0x1cf] sm:$0xff]
        %v6773 = vld [vmem:[%s6710 + $0x1e7] sm:$0xff]
        %v6774 = vld [vmem:[%s6710 + $0x1ef] sm:$0xff]
        %v6775 = vld [vmem:[%s6710 + $0x8] sm:$0xff]
        %v6776 = vld [vmem:[%s6710 + $0x10] sm:$0xff]
        %v6777 = vld [vmem:[%s6710 + $0x28] sm:$0xff]
        %v6778 = vld [vmem:[%s6710 + $0x30] sm:$0xff]
        %v6779 = vld [vmem:[%s6710 + $0x48] sm:$0xff]
        %v6780 = vld [vmem:[%s6710 + $0x50] sm:$0xff]
        %v6781 = vld [vmem:[%s6710 + $0x68] sm:$0xff]
        %v6782 = vld [vmem:[%s6710 + $0x70] sm:$0xff]
        %v6783 = vld [vmem:[%s6710 + $0x88] sm:$0xff]
        %v6784 = vld [vmem:[%s6710 + $0x90] sm:$0xff]
        %v6785 = vld [vmem:[%s6710 + $0xa8] sm:$0xff]
        %v6786 = vld [vmem:[%s6710 + $0xb0] sm:$0xff]
        %v6787 = vld [vmem:[%s6710 + $0xc8] sm:$0xff]
        %v6788 = vld [vmem:[%s6710 + $0xd0] sm:$0xff]
        %v6789 = vld [vmem:[%s6710 + $0xe8] sm:$0xff]
        %v6790 = vld [vmem:[%s6710 + $0xf0] sm:$0xff]
        %v6791 = vld [vmem:[%s6710 + $0x108] sm:$0xff]
        %v6792 = vld [vmem:[%s6710 + $0x110] sm:$0xff]
        %v6793 = vld [vmem:[%s6710 + $0x128] sm:$0xff]
        %v6794 = vld [vmem:[%s6710 + $0x130] sm:$0xff]
        %v6795 = vld [vmem:[%s6710 + $0x148] sm:$0xff]
        %v6796 = vld [vmem:[%s6710 + $0x150] sm:$0xff]
        %v6797 = vld [vmem:[%s6710 + $0x168] sm:$0xff]
        %v6798 = vld [vmem:[%s6710 + $0x170] sm:$0xff]
        %v6799 = vld [vmem:[%s6710 + $0x188] sm:$0xff]
        %v6800 = vld [vmem:[%s6710 + $0x190] sm:$0xff]
        %v6801 = vld [vmem:[%s6710 + $0x1a8] sm:$0xff]
        %v6802 = vld [vmem:[%s6710 + $0x1b0] sm:$0xff]
        %v6803 = vld [vmem:[%s6710 + $0x1c8] sm:$0xff]
        %v6804 = vld [vmem:[%s6710 + $0x1d0] sm:$0xff]
        %v6805 = vld [vmem:[%s6710 + $0x1e8] sm:$0xff]
        %v6806 = vld [vmem:[%s6710 + $0x1f0] sm:$0xff]
        %6839 = vrot.lane.b32.xlu0 %v6550, 4
        %v6840 = vpop.permute.xlu0 %6839
        %6841 = vrot.lane.b32.xlu0 %v6551, 4
        %v6842 = vpop.permute.xlu0 %6841
        %6843 = vrot.lane.b32.xlu0 %v6552, 4
        %v6844 = vpop.permute.xlu0 %6843
        %6845 = vrot.lane.b32.xlu0 %v6553, 4
        %v6846 = vpop.permute.xlu0 %6845
        %6847 = vrot.lane.b32.xlu0 %v6554, 4
        %v6848 = vpop.permute.xlu0 %6847
        %6849 = vrot.lane.b32.xlu0 %v6555, 4
        %v6850 = vpop.permute.xlu0 %6849
        %6851 = vrot.lane.b32.xlu0 %v6556, 4
        %v6852 = vpop.permute.xlu0 %6851
        %6853 = vrot.lane.b32.xlu0 %v6557, 4
        %v6854 = vpop.permute.xlu0 %6853
        %6855 = vrot.lane.b32.xlu0 %v6558, 4
        %v6856 = vpop.permute.xlu0 %6855
        %6857 = vrot.lane.b32.xlu0 %v6559, 4
        %v6858 = vpop.permute.xlu0 %6857
        %6859 = vrot.lane.b32.xlu0 %v6560, 4
        %v6860 = vpop.permute.xlu0 %6859
        %6861 = vrot.lane.b32.xlu0 %v6561, 4
        %v6862 = vpop.permute.xlu0 %6861
        %6863 = vrot.lane.b32.xlu0 %v6562, 4
        %v6864 = vpop.permute.xlu0 %6863
        %6865 = vrot.lane.b32.xlu0 %v6563, 4
        %v6866 = vpop.permute.xlu0 %6865
        %6867 = vrot.lane.b32.xlu0 %v6564, 4
        %v6868 = vpop.permute.xlu0 %6867
        %6869 = vrot.lane.b32.xlu0 %v6565, 4
        %v6870 = vpop.permute.xlu0 %6869
        %6871 = vrot.lane.b32.xlu0 %v6566, 4
        %v6872 = vpop.permute.xlu0 %6871
        %6873 = vrot.lane.b32.xlu0 %v6567, 4
        %v6874 = vpop.permute.xlu0 %6873
        %6875 = vrot.lane.b32.xlu0 %v6568, 4
        %v6876 = vpop.permute.xlu0 %6875
        %6877 = vrot.lane.b32.xlu0 %v6569, 4
        %v6878 = vpop.permute.xlu0 %6877
        %6879 = vrot.lane.b32.xlu0 %v6570, 4
        %v6880 = vpop.permute.xlu0 %6879
        %6881 = vrot.lane.b32.xlu0 %v6571, 4
        %v6882 = vpop.permute.xlu0 %6881
        %6883 = vrot.lane.b32.xlu0 %v6572, 4
        %v6884 = vpop.permute.xlu0 %6883
        %6885 = vrot.lane.b32.xlu0 %v6573, 4
        %v6886 = vpop.permute.xlu0 %6885
        %6887 = vrot.lane.b32.xlu0 %v6574, 4
        %v6888 = vpop.permute.xlu0 %6887
        %6889 = vrot.lane.b32.xlu0 %v6575, 4
        %v6890 = vpop.permute.xlu0 %6889
        %6891 = vrot.lane.b32.xlu0 %v6576, 4
        %v6892 = vpop.permute.xlu0 %6891
        %6893 = vrot.lane.b32.xlu0 %v6577, 4
        %v6894 = vpop.permute.xlu0 %6893
        %6895 = vrot.lane.b32.xlu0 %v6578, 4
        %v6896 = vpop.permute.xlu0 %6895
        %6897 = vrot.lane.b32.xlu0 %v6579, 4
        %v6898 = vpop.permute.xlu0 %6897
        %6899 = vrot.lane.b32.xlu0 %v6580, 4
        %v6900 = vpop.permute.xlu0 %6899
        %6901 = vrot.lane.b32.xlu0 %v6581, 4
        %v6902 = vpop.permute.xlu0 %6901
        %6967 = vrot.lane.b32.xlu0 %v6582, 8
        %v6968 = vpop.permute.xlu0 %6967
        %6969 = vrot.lane.b32.xlu0 %v6583, 8
        %v6970 = vpop.permute.xlu0 %6969
        %6971 = vrot.lane.b32.xlu0 %v6584, 8
        %v6972 = vpop.permute.xlu0 %6971
        %6973 = vrot.lane.b32.xlu0 %v6585, 8
        %v6974 = vpop.permute.xlu0 %6973
        %6975 = vrot.lane.b32.xlu0 %v6586, 8
        %v6976 = vpop.permute.xlu0 %6975
        %6977 = vrot.lane.b32.xlu0 %v6587, 8
        %v6978 = vpop.permute.xlu0 %6977
        %6979 = vrot.lane.b32.xlu0 %v6588, 8
        %v6980 = vpop.permute.xlu0 %6979
        %6981 = vrot.lane.b32.xlu0 %v6589, 8
        %v6982 = vpop.permute.xlu0 %6981
        %6983 = vrot.lane.b32.xlu0 %v6590, 8
        %v6984 = vpop.permute.xlu0 %6983
        %6985 = vrot.lane.b32.xlu0 %v6591, 8
        %v6986 = vpop.permute.xlu0 %6985
        %6987 = vrot.lane.b32.xlu0 %v6592, 8
        %v6988 = vpop.permute.xlu0 %6987
        %6989 = vrot.lane.b32.xlu0 %v6593, 8
        %v6990 = vpop.permute.xlu0 %6989
        %6991 = vrot.lane.b32.xlu0 %v6594, 8
        %v6992 = vpop.permute.xlu0 %6991
        %6993 = vrot.lane.b32.xlu0 %v6595, 8
        %v6994 = vpop.permute.xlu0 %6993
        %6995 = vrot.lane.b32.xlu0 %v6596, 8
        %v6996 = vpop.permute.xlu0 %6995
        %6997 = vrot.lane.b32.xlu0 %v6597, 8
        %v6998 = vpop.permute.xlu0 %6997
        %6999 = vrot.lane.b32.xlu0 %v6598, 8
        %v7000 = vpop.permute.xlu0 %6999
        %7001 = vrot.lane.b32.xlu0 %v6599, 8
        %v7002 = vpop.permute.xlu0 %7001
        %7003 = vrot.lane.b32.xlu0 %v6600, 8
        %v7004 = vpop.permute.xlu0 %7003
        %7005 = vrot.lane.b32.xlu0 %v6601, 8
        %v7006 = vpop.permute.xlu0 %7005
        %7007 = vrot.lane.b32.xlu0 %v6602, 8
        %v7008 = vpop.permute.xlu0 %7007
        %7009 = vrot.lane.b32.xlu0 %v6603, 8
        %v7010 = vpop.permute.xlu0 %7009
        %7011 = vrot.lane.b32.xlu0 %v6604, 8
        %v7012 = vpop.permute.xlu0 %7011
        %7013 = vrot.lane.b32.xlu0 %v6605, 8
        %v7014 = vpop.permute.xlu0 %7013
        %7015 = vrot.lane.b32.xlu0 %v6606, 8
        %v7016 = vpop.permute.xlu0 %7015
        %7017 = vrot.lane.b32.xlu0 %v6607, 8
        %v7018 = vpop.permute.xlu0 %7017
        %7019 = vrot.lane.b32.xlu0 %v6608, 8
        %v7020 = vpop.permute.xlu0 %7019
        %7021 = vrot.lane.b32.xlu0 %v6609, 8
        %v7022 = vpop.permute.xlu0 %7021
        %7023 = vrot.lane.b32.xlu0 %v6610, 8
        %v7024 = vpop.permute.xlu0 %7023
        %7025 = vrot.lane.b32.xlu0 %v6611, 8
        %v7026 = vpop.permute.xlu0 %7025
        %7027 = vrot.lane.b32.xlu0 %v6612, 8
        %v7028 = vpop.permute.xlu0 %7027
        %7029 = vrot.lane.b32.xlu0 %v6613, 8
        %v7030 = vpop.permute.xlu0 %7029
        %7095 = vrot.lane.b32.xlu0 %v6614, 12
        %v7096 = vpop.permute.xlu0 %7095
        %7097 = vrot.lane.b32.xlu0 %v6615, 12
        %v7098 = vpop.permute.xlu0 %7097
        %7099 = vrot.lane.b32.xlu0 %v6616, 12
        %v7100 = vpop.permute.xlu0 %7099
        %7101 = vrot.lane.b32.xlu0 %v6617, 12
        %v7102 = vpop.permute.xlu0 %7101
        %7103 = vrot.lane.b32.xlu0 %v6618, 12
        %v7104 = vpop.permute.xlu0 %7103
        %7105 = vrot.lane.b32.xlu0 %v6619, 12
        %v7106 = vpop.permute.xlu0 %7105
        %7107 = vrot.lane.b32.xlu0 %v6620, 12
        %v7108 = vpop.permute.xlu0 %7107
        %7109 = vrot.lane.b32.xlu0 %v6621, 12
        %v7110 = vpop.permute.xlu0 %7109
        %7111 = vrot.lane.b32.xlu0 %v6622, 12
        %v7112 = vpop.permute.xlu0 %7111
        %7113 = vrot.lane.b32.xlu0 %v6623, 12
        %v7114 = vpop.permute.xlu0 %7113
        %7115 = vrot.lane.b32.xlu0 %v6624, 12
        %v7116 = vpop.permute.xlu0 %7115
        %7117 = vrot.lane.b32.xlu0 %v6625, 12
        %v7118 = vpop.permute.xlu0 %7117
        %7119 = vrot.lane.b32.xlu0 %v6626, 12
        %v7120 = vpop.permute.xlu0 %7119
        %7121 = vrot.lane.b32.xlu0 %v6627, 12
        %v7122 = vpop.permute.xlu0 %7121
        %7123 = vrot.lane.b32.xlu0 %v6628, 12
        %v7124 = vpop.permute.xlu0 %7123
        %7125 = vrot.lane.b32.xlu0 %v6629, 12
        %v7126 = vpop.permute.xlu0 %7125
        %7127 = vrot.lane.b32.xlu0 %v6630, 12
        %v7128 = vpop.permute.xlu0 %7127
        %7129 = vrot.lane.b32.xlu0 %v6631, 12
        %v7130 = vpop.permute.xlu0 %7129
        %7131 = vrot.lane.b32.xlu0 %v6632, 12
        %v7132 = vpop.permute.xlu0 %7131
        %7133 = vrot.lane.b32.xlu0 %v6633, 12
        %v7134 = vpop.permute.xlu0 %7133
        %7135 = vrot.lane.b32.xlu0 %v6634, 12
        %v7136 = vpop.permute.xlu0 %7135
        %7137 = vrot.lane.b32.xlu0 %v6635, 12
        %v7138 = vpop.permute.xlu0 %7137
        %7139 = vrot.lane.b32.xlu0 %v6636, 12
        %v7140 = vpop.permute.xlu0 %7139
        %7141 = vrot.lane.b32.xlu0 %v6637, 12
        %v7142 = vpop.permute.xlu0 %7141
        %7143 = vrot.lane.b32.xlu0 %v6638, 12
        %v7144 = vpop.permute.xlu0 %7143
        %7145 = vrot.lane.b32.xlu0 %v6639, 12
        %v7146 = vpop.permute.xlu0 %7145
        %7147 = vrot.lane.b32.xlu0 %v6640, 12
        %v7148 = vpop.permute.xlu0 %7147
        %7149 = vrot.lane.b32.xlu0 %v6641, 12
        %v7150 = vpop.permute.xlu0 %7149
        %7151 = vrot.lane.b32.xlu0 %v6642, 12
        %v7152 = vpop.permute.xlu0 %7151
        %7153 = vrot.lane.b32.xlu0 %v6643, 12
        %v7154 = vpop.permute.xlu0 %7153
        %7155 = vrot.lane.b32.xlu0 %v6644, 12
        %v7156 = vpop.permute.xlu0 %7155
        %7157 = vrot.lane.b32.xlu0 %v6645, 12
        %v7158 = vpop.permute.xlu0 %7157
        %7223 = vrot.lane.b32.xlu0 %v6646, 16
        %v7224 = vpop.permute.xlu0 %7223
        %7225 = vrot.lane.b32.xlu0 %v6647, 16
        %v7226 = vpop.permute.xlu0 %7225
        %7227 = vrot.lane.b32.xlu0 %v6648, 16
        %v7228 = vpop.permute.xlu0 %7227
        %7229 = vrot.lane.b32.xlu0 %v6649, 16
        %v7230 = vpop.permute.xlu0 %7229
        %7231 = vrot.lane.b32.xlu0 %v6650, 16
        %v7232 = vpop.permute.xlu0 %7231
        %7233 = vrot.lane.b32.xlu0 %v6651, 16
        %v7234 = vpop.permute.xlu0 %7233
        %7235 = vrot.lane.b32.xlu0 %v6652, 16
        %v7236 = vpop.permute.xlu0 %7235
        %7237 = vrot.lane.b32.xlu0 %v6653, 16
        %v7238 = vpop.permute.xlu0 %7237
        %7239 = vrot.lane.b32.xlu0 %v6654, 16
        %v7240 = vpop.permute.xlu0 %7239
        %7241 = vrot.lane.b32.xlu0 %v6655, 16
        %v7242 = vpop.permute.xlu0 %7241
        %7243 = vrot.lane.b32.xlu0 %v6656, 16
        %v7244 = vpop.permute.xlu0 %7243
        %7245 = vrot.lane.b32.xlu0 %v6657, 16
        %v7246 = vpop.permute.xlu0 %7245
        %7247 = vrot.lane.b32.xlu0 %v6658, 16
        %v7248 = vpop.permute.xlu0 %7247
        %7249 = vrot.lane.b32.xlu0 %v6659, 16
        %v7250 = vpop.permute.xlu0 %7249
        %7251 = vrot.lane.b32.xlu0 %v6660, 16
        %v7252 = vpop.permute.xlu0 %7251
        %7253 = vrot.lane.b32.xlu0 %v6661, 16
        %v7254 = vpop.permute.xlu0 %7253
        %7255 = vrot.lane.b32.xlu0 %v6662, 16
        %v7256 = vpop.permute.xlu0 %7255
        %7257 = vrot.lane.b32.xlu0 %v6663, 16
        %v7258 = vpop.permute.xlu0 %7257
        %7259 = vrot.lane.b32.xlu0 %v6664, 16
        %v7260 = vpop.permute.xlu0 %7259
        %7261 = vrot.lane.b32.xlu0 %v6665, 16
        %v7262 = vpop.permute.xlu0 %7261
        %7263 = vrot.lane.b32.xlu0 %v6666, 16
        %v7264 = vpop.permute.xlu0 %7263
        %7265 = vrot.lane.b32.xlu0 %v6667, 16
        %v7266 = vpop.permute.xlu0 %7265
        %7267 = vrot.lane.b32.xlu0 %v6668, 16
        %v7268 = vpop.permute.xlu0 %7267
        %7269 = vrot.lane.b32.xlu0 %v6669, 16
        %v7270 = vpop.permute.xlu0 %7269
        %7271 = vrot.lane.b32.xlu0 %v6670, 16
        %v7272 = vpop.permute.xlu0 %7271
        %7273 = vrot.lane.b32.xlu0 %v6671, 16
        %v7274 = vpop.permute.xlu0 %7273
        %7275 = vrot.lane.b32.xlu0 %v6672, 16
        %v7276 = vpop.permute.xlu0 %7275
        %7277 = vrot.lane.b32.xlu0 %v6673, 16
        %v7278 = vpop.permute.xlu0 %7277
        %7279 = vrot.lane.b32.xlu0 %v6674, 16
        %v7280 = vpop.permute.xlu0 %7279
        %7281 = vrot.lane.b32.xlu0 %v6675, 16
        %v7282 = vpop.permute.xlu0 %7281
        %7283 = vrot.lane.b32.xlu0 %v6676, 16
        %v7284 = vpop.permute.xlu0 %7283
        %7285 = vrot.lane.b32.xlu0 %v6677, 16
        %v7286 = vpop.permute.xlu0 %7285
        %7351 = vrot.lane.b32.xlu0 %v6678, 20
        %v7352 = vpop.permute.xlu0 %7351
        %7353 = vrot.lane.b32.xlu0 %v6679, 20
        %v7354 = vpop.permute.xlu0 %7353
        %7355 = vrot.lane.b32.xlu0 %v6680, 20
        %v7356 = vpop.permute.xlu0 %7355
        %7357 = vrot.lane.b32.xlu0 %v6681, 20
        %v7358 = vpop.permute.xlu0 %7357
        %7359 = vrot.lane.b32.xlu0 %v6682, 20
        %v7360 = vpop.permute.xlu0 %7359
        %7361 = vrot.lane.b32.xlu0 %v6683, 20
        %v7362 = vpop.permute.xlu0 %7361
        %7363 = vrot.lane.b32.xlu0 %v6684, 20
        %v7364 = vpop.permute.xlu0 %7363
        %7365 = vrot.lane.b32.xlu0 %v6685, 20
        %v7366 = vpop.permute.xlu0 %7365
        %7367 = vrot.lane.b32.xlu0 %v6686, 20
        %v7368 = vpop.permute.xlu0 %7367
        %7369 = vrot.lane.b32.xlu0 %v6687, 20
        %v7370 = vpop.permute.xlu0 %7369
        %7371 = vrot.lane.b32.xlu0 %v6688, 20
        %v7372 = vpop.permute.xlu0 %7371
        %7373 = vrot.lane.b32.xlu0 %v6689, 20
        %v7374 = vpop.permute.xlu0 %7373
        %7375 = vrot.lane.b32.xlu0 %v6690, 20
        %v7376 = vpop.permute.xlu0 %7375
        %7377 = vrot.lane.b32.xlu0 %v6691, 20
        %v7378 = vpop.permute.xlu0 %7377
        %7379 = vrot.lane.b32.xlu0 %v6692, 20
        %v7380 = vpop.permute.xlu0 %7379
        %7381 = vrot.lane.b32.xlu0 %v6693, 20
        %v7382 = vpop.permute.xlu0 %7381
        %7383 = vrot.lane.b32.xlu0 %v6694, 20
        %v7384 = vpop.permute.xlu0 %7383
        %7385 = vrot.lane.b32.xlu0 %v6695, 20
        %v7386 = vpop.permute.xlu0 %7385
        %7387 = vrot.lane.b32.xlu0 %v6696, 20
        %v7388 = vpop.permute.xlu0 %7387
        %7389 = vrot.lane.b32.xlu0 %v6697, 20
        %v7390 = vpop.permute.xlu0 %7389
        %7391 = vrot.lane.b32.xlu0 %v6698, 20
        %v7392 = vpop.permute.xlu0 %7391
        %7393 = vrot.lane.b32.xlu0 %v6699, 20
        %v7394 = vpop.permute.xlu0 %7393
        %7395 = vrot.lane.b32.xlu0 %v6700, 20
        %v7396 = vpop.permute.xlu0 %7395
        %7397 = vrot.lane.b32.xlu0 %v6701, 20
        %v7398 = vpop.permute.xlu0 %7397
        %7399 = vrot.lane.b32.xlu0 %v6702, 20
        %v7400 = vpop.permute.xlu0 %7399
        %7401 = vrot.lane.b32.xlu0 %v6703, 20
        %v7402 = vpop.permute.xlu0 %7401
        %7403 = vrot.lane.b32.xlu0 %v6704, 20
        %v7404 = vpop.permute.xlu0 %7403
        %7405 = vrot.lane.b32.xlu0 %v6705, 20
        %v7406 = vpop.permute.xlu0 %7405
        %7407 = vrot.lane.b32.xlu0 %v6706, 20
        %v7408 = vpop.permute.xlu0 %7407
        %7409 = vrot.lane.b32.xlu0 %v6707, 20
        %v7410 = vpop.permute.xlu0 %7409
        %7411 = vrot.lane.b32.xlu0 %v6708, 20
        %v7412 = vpop.permute.xlu0 %7411
        %7413 = vrot.lane.b32.xlu0 %v6709, 20
        %v7414 = vpop.permute.xlu0 %7413
        %7479 = vrot.lane.b32.xlu0 %v6711, 24
        %v7480 = vpop.permute.xlu0 %7479
        %7481 = vrot.lane.b32.xlu0 %v6712, 24
        %v7482 = vpop.permute.xlu0 %7481
        %7483 = vrot.lane.b32.xlu0 %v6713, 24
        %v7484 = vpop.permute.xlu0 %7483
        %7485 = vrot.lane.b32.xlu0 %v6714, 24
        %v7486 = vpop.permute.xlu0 %7485
        %7487 = vrot.lane.b32.xlu0 %v6715, 24
        %v7488 = vpop.permute.xlu0 %7487
        %7489 = vrot.lane.b32.xlu0 %v6716, 24
        %v7490 = vpop.permute.xlu0 %7489
        %7491 = vrot.lane.b32.xlu0 %v6717, 24
        %v7492 = vpop.permute.xlu0 %7491
        %7493 = vrot.lane.b32.xlu0 %v6718, 24
        %v7494 = vpop.permute.xlu0 %7493
        %7495 = vrot.lane.b32.xlu0 %v6719, 24
        %v7496 = vpop.permute.xlu0 %7495
        %7497 = vrot.lane.b32.xlu0 %v6720, 24
        %v7498 = vpop.permute.xlu0 %7497
        %7499 = vrot.lane.b32.xlu0 %v6721, 24
        %v7500 = vpop.permute.xlu0 %7499
        %7501 = vrot.lane.b32.xlu0 %v6722, 24
        %v7502 = vpop.permute.xlu0 %7501
        %7503 = vrot.lane.b32.xlu0 %v6723, 24
        %v7504 = vpop.permute.xlu0 %7503
        %7505 = vrot.lane.b32.xlu0 %v6724, 24
        %v7506 = vpop.permute.xlu0 %7505
        %7507 = vrot.lane.b32.xlu0 %v6725, 24
        %v7508 = vpop.permute.xlu0 %7507
        %7509 = vrot.lane.b32.xlu0 %v6726, 24
        %v7510 = vpop.permute.xlu0 %7509
        %7511 = vrot.lane.b32.xlu0 %v6727, 24
        %v7512 = vpop.permute.xlu0 %7511
        %7513 = vrot.lane.b32.xlu0 %v6728, 24
        %v7514 = vpop.permute.xlu0 %7513
        %7515 = vrot.lane.b32.xlu0 %v6729, 24
        %v7516 = vpop.permute.xlu0 %7515
        %7517 = vrot.lane.b32.xlu0 %v6730, 24
        %v7518 = vpop.permute.xlu0 %7517
        %7519 = vrot.lane.b32.xlu0 %v6731, 24
        %v7520 = vpop.permute.xlu0 %7519
        %7521 = vrot.lane.b32.xlu0 %v6732, 24
        %v7522 = vpop.permute.xlu0 %7521
        %7523 = vrot.lane.b32.xlu0 %v6733, 24
        %v7524 = vpop.permute.xlu0 %7523
        %7525 = vrot.lane.b32.xlu0 %v6734, 24
        %v7526 = vpop.permute.xlu0 %7525
        %7527 = vrot.lane.b32.xlu0 %v6735, 24
        %v7528 = vpop.permute.xlu0 %7527
        %7529 = vrot.lane.b32.xlu0 %v6736, 24
        %v7530 = vpop.permute.xlu0 %7529
        %7531 = vrot.lane.b32.xlu0 %v6737, 24
        %v7532 = vpop.permute.xlu0 %7531
        %7533 = vrot.lane.b32.xlu0 %v6738, 24
        %v7534 = vpop.permute.xlu0 %7533
        %7535 = vrot.lane.b32.xlu0 %v6739, 24
        %v7536 = vpop.permute.xlu0 %7535
        %7537 = vrot.lane.b32.xlu0 %v6740, 24
        %v7538 = vpop.permute.xlu0 %7537
        %7539 = vrot.lane.b32.xlu0 %v6741, 24
        %v7540 = vpop.permute.xlu0 %7539
        %7541 = vrot.lane.b32.xlu0 %v6742, 24
        %v7542 = vpop.permute.xlu0 %7541
        %7607 = vrot.lane.b32.xlu0 %v6743, 28
        %v7608 = vpop.permute.xlu0 %7607
        %7609 = vrot.lane.b32.xlu0 %v6744, 28
        %v7610 = vpop.permute.xlu0 %7609
        %7611 = vrot.lane.b32.xlu0 %v6745, 28
        %v7612 = vpop.permute.xlu0 %7611
        %7613 = vrot.lane.b32.xlu0 %v6746, 28
        %v7614 = vpop.permute.xlu0 %7613
        %7615 = vrot.lane.b32.xlu0 %v6747, 28
        %v7616 = vpop.permute.xlu0 %7615
        %7617 = vrot.lane.b32.xlu0 %v6748, 28
        %v7618 = vpop.permute.xlu0 %7617
        %7619 = vrot.lane.b32.xlu0 %v6749, 28
        %v7620 = vpop.permute.xlu0 %7619
        %7621 = vrot.lane.b32.xlu0 %v6750, 28
        %v7622 = vpop.permute.xlu0 %7621
        %7623 = vrot.lane.b32.xlu0 %v6751, 28
        %v7624 = vpop.permute.xlu0 %7623
        %7625 = vrot.lane.b32.xlu0 %v6752, 28
        %v7626 = vpop.permute.xlu0 %7625
        %7627 = vrot.lane.b32.xlu0 %v6753, 28
        %v7628 = vpop.permute.xlu0 %7627
        %7629 = vrot.lane.b32.xlu0 %v6754, 28
        %v7630 = vpop.permute.xlu0 %7629
        %7631 = vrot.lane.b32.xlu0 %v6755, 28
        %v7632 = vpop.permute.xlu0 %7631
        %7633 = vrot.lane.b32.xlu0 %v6756, 28
        %v7634 = vpop.permute.xlu0 %7633
        %7635 = vrot.lane.b32.xlu0 %v6757, 28
        %v7636 = vpop.permute.xlu0 %7635
        %7637 = vrot.lane.b32.xlu0 %v6758, 28
        %v7638 = vpop.permute.xlu0 %7637
        %7639 = vrot.lane.b32.xlu0 %v6759, 28
        %v7640 = vpop.permute.xlu0 %7639
        %7641 = vrot.lane.b32.xlu0 %v6760, 28
        %v7642 = vpop.permute.xlu0 %7641
        %7643 = vrot.lane.b32.xlu0 %v6761, 28
        %v7644 = vpop.permute.xlu0 %7643
        %7645 = vrot.lane.b32.xlu0 %v6762, 28
        %v7646 = vpop.permute.xlu0 %7645
        %7647 = vrot.lane.b32.xlu0 %v6763, 28
        %v7648 = vpop.permute.xlu0 %7647
        %7649 = vrot.lane.b32.xlu0 %v6764, 28
        %v7650 = vpop.permute.xlu0 %7649
        %7651 = vrot.lane.b32.xlu0 %v6765, 28
        %v7652 = vpop.permute.xlu0 %7651
        %7653 = vrot.lane.b32.xlu0 %v6766, 28
        %v7654 = vpop.permute.xlu0 %7653
        %7655 = vrot.lane.b32.xlu0 %v6767, 28
        %v7656 = vpop.permute.xlu0 %7655
        %7657 = vrot.lane.b32.xlu0 %v6768, 28
        %v7658 = vpop.permute.xlu0 %7657
        %7659 = vrot.lane.b32.xlu0 %v6769, 28
        %v7660 = vpop.permute.xlu0 %7659
        %7661 = vrot.lane.b32.xlu0 %v6770, 28
        %v7662 = vpop.permute.xlu0 %7661
        %7663 = vrot.lane.b32.xlu0 %v6771, 28
        %v7664 = vpop.permute.xlu0 %7663
        %7665 = vrot.lane.b32.xlu0 %v6772, 28
        %v7666 = vpop.permute.xlu0 %7665
        %7667 = vrot.lane.b32.xlu0 %v6773, 28
        %v7668 = vpop.permute.xlu0 %7667
        %7669 = vrot.lane.b32.xlu0 %v6774, 28
        %v7670 = vpop.permute.xlu0 %7669
        %7735 = vrot.lane.b32.xlu0 %v6775, 32
        %v7736 = vpop.permute.xlu0 %7735
        %7737 = vrot.lane.b32.xlu0 %v6776, 32
        %v7738 = vpop.permute.xlu0 %7737
        %7739 = vrot.lane.b32.xlu0 %v6777, 32
        %v7740 = vpop.permute.xlu0 %7739
        %7741 = vrot.lane.b32.xlu0 %v6778, 32
        %v7742 = vpop.permute.xlu0 %7741
        %7743 = vrot.lane.b32.xlu0 %v6779, 32
        %v7744 = vpop.permute.xlu0 %7743
        %7745 = vrot.lane.b32.xlu0 %v6780, 32
        %v7746 = vpop.permute.xlu0 %7745
        %7747 = vrot.lane.b32.xlu0 %v6781, 32
        %v7748 = vpop.permute.xlu0 %7747
        %7749 = vrot.lane.b32.xlu0 %v6782, 32
        %v7750 = vpop.permute.xlu0 %7749
        %7751 = vrot.lane.b32.xlu0 %v6783, 32
        %v7752 = vpop.permute.xlu0 %7751
        %7753 = vrot.lane.b32.xlu0 %v6784, 32
        %v7754 = vpop.permute.xlu0 %7753
        %7755 = vrot.lane.b32.xlu0 %v6785, 32
        %v7756 = vpop.permute.xlu0 %7755
        %7757 = vrot.lane.b32.xlu0 %v6786, 32
        %v7758 = vpop.permute.xlu0 %7757
        %7759 = vrot.lane.b32.xlu0 %v6787, 32
        %v7760 = vpop.permute.xlu0 %7759
        %7761 = vrot.lane.b32.xlu0 %v6788, 32
        %v7762 = vpop.permute.xlu0 %7761
        %7763 = vrot.lane.b32.xlu0 %v6789, 32
        %v7764 = vpop.permute.xlu0 %7763
        %7765 = vrot.lane.b32.xlu0 %v6790, 32
        %v7766 = vpop.permute.xlu0 %7765
        %7767 = vrot.lane.b32.xlu0 %v6791, 32
        %v7768 = vpop.permute.xlu0 %7767
        %7769 = vrot.lane.b32.xlu0 %v6792, 32
        %v7770 = vpop.permute.xlu0 %7769
        %7771 = vrot.lane.b32.xlu0 %v6793, 32
        %v7772 = vpop.permute.xlu0 %7771
        %7773 = vrot.lane.b32.xlu0 %v6794, 32
        %v7774 = vpop.permute.xlu0 %7773
        %7775 = vrot.lane.b32.xlu0 %v6795, 32
        %v7776 = vpop.permute.xlu0 %7775
        %7777 = vrot.lane.b32.xlu0 %v6796, 32
        %v7778 = vpop.permute.xlu0 %7777
        %7779 = vrot.lane.b32.xlu0 %v6797, 32
        %v7780 = vpop.permute.xlu0 %7779
        %7781 = vrot.lane.b32.xlu0 %v6798, 32
        %v7782 = vpop.permute.xlu0 %7781
        %7783 = vrot.lane.b32.xlu0 %v6799, 32
        %v7784 = vpop.permute.xlu0 %7783
        %7785 = vrot.lane.b32.xlu0 %v6800, 32
        %v7786 = vpop.permute.xlu0 %7785
        %7787 = vrot.lane.b32.xlu0 %v6801, 32
        %v7788 = vpop.permute.xlu0 %7787
        %7789 = vrot.lane.b32.xlu0 %v6802, 32
        %v7790 = vpop.permute.xlu0 %7789
        %7791 = vrot.lane.b32.xlu0 %v6803, 32
        %v7792 = vpop.permute.xlu0 %7791
        %7793 = vrot.lane.b32.xlu0 %v6804, 32
        %v7794 = vpop.permute.xlu0 %7793
        %7795 = vrot.lane.b32.xlu0 %v6805, 32
        %v7796 = vpop.permute.xlu0 %7795
        %7797 = vrot.lane.b32.xlu0 %v6806, 32
        %v7798 = vpop.permute.xlu0 %7797
        %v7831 = vsel %vm217, %v6518, %v6840
        %v7832 = vsel %vm217, %v6519, %v6842
        %v7833 = vsel %vm217, %v6520, %v6844
        %v7834 = vsel %vm217, %v6521, %v6846
        %v7835 = vsel %vm217, %v6522, %v6848
        %v7836 = vsel %vm217, %v6523, %v6850
        %v7837 = vsel %vm217, %v6524, %v6852
        %v7838 = vsel %vm217, %v6525, %v6854
        %v7839 = vsel %vm217, %v6526, %v6856
        %v7840 = vsel %vm217, %v6527, %v6858
        %v7841 = vsel %vm217, %v6528, %v6860
        %v7842 = vsel %vm217, %v6529, %v6862
        %v7843 = vsel %vm217, %v6530, %v6864
        %v7844 = vsel %vm217, %v6531, %v6866
        %v7845 = vsel %vm217, %v6532, %v6868
        %v7846 = vsel %vm217, %v6533, %v6870
        %v7847 = vsel %vm217, %v6534, %v6872
        %v7848 = vsel %vm217, %v6535, %v6874
        %v7849 = vsel %vm217, %v6536, %v6876
        %v7850 = vsel %vm217, %v6537, %v6878
        %v7851 = vsel %vm217, %v6538, %v6880
        %v7852 = vsel %vm217, %v6539, %v6882
        %v7853 = vsel %vm217, %v6540, %v6884
        %v7854 = vsel %vm217, %v6541, %v6886
        %v7855 = vsel %vm217, %v6542, %v6888
        %v7856 = vsel %vm217, %v6543, %v6890
        %v7857 = vsel %vm217, %v6544, %v6892
        %v7858 = vsel %vm217, %v6545, %v6894
        %v7859 = vsel %vm217, %v6546, %v6896
        %v7860 = vsel %vm217, %v6547, %v6898
        %v7861 = vsel %vm217, %v6548, %v6900
        %v7862 = vsel %vm217, %v6549, %v6902
        %v7863 = vsel %vm2093, %v7831, %v6968
        %v7864 = vsel %vm2093, %v7832, %v6970
        %v7865 = vsel %vm2093, %v7833, %v6972
        %v7866 = vsel %vm2093, %v7834, %v6974
        %v7867 = vsel %vm2093, %v7835, %v6976
        %v7868 = vsel %vm2093, %v7836, %v6978
        %v7869 = vsel %vm2093, %v7837, %v6980
        %v7870 = vsel %vm2093, %v7838, %v6982
        %v7871 = vsel %vm2093, %v7839, %v6984
        %v7872 = vsel %vm2093, %v7840, %v6986
        %v7873 = vsel %vm2093, %v7841, %v6988
        %v7874 = vsel %vm2093, %v7842, %v6990
        %v7875 = vsel %vm2093, %v7843, %v6992
        %v7876 = vsel %vm2093, %v7844, %v6994
        %v7877 = vsel %vm2093, %v7845, %v6996
        %v7878 = vsel %vm2093, %v7846, %v6998
        %v7879 = vsel %vm2093, %v7847, %v7000
        %v7880 = vsel %vm2093, %v7848, %v7002
        %v7881 = vsel %vm2093, %v7849, %v7004
        %v7882 = vsel %vm2093, %v7850, %v7006
        %v7883 = vsel %vm2093, %v7851, %v7008
        %v7884 = vsel %vm2093, %v7852, %v7010
        %v7885 = vsel %vm2093, %v7853, %v7012
        %v7886 = vsel %vm2093, %v7854, %v7014
        %v7887 = vsel %vm2093, %v7855, %v7016
        %v7888 = vsel %vm2093, %v7856, %v7018
        %v7889 = vsel %vm2093, %v7857, %v7020
        %v7890 = vsel %vm2093, %v7858, %v7022
        %v7891 = vsel %vm2093, %v7859, %v7024
        %v7892 = vsel %vm2093, %v7860, %v7026
        %v7893 = vsel %vm2093, %v7861, %v7028
        %v7894 = vsel %vm2093, %v7862, %v7030
        %v7895 = vsel %vm2126, %v7863, %v7096
        %v7896 = vsel %vm2126, %v7864, %v7098
        %v7897 = vsel %vm2126, %v7865, %v7100
        %v7898 = vsel %vm2126, %v7866, %v7102
        %v7899 = vsel %vm2126, %v7867, %v7104
        %v7900 = vsel %vm2126, %v7868, %v7106
        %v7901 = vsel %vm2126, %v7869, %v7108
        %v7902 = vsel %vm2126, %v7870, %v7110
        %v7903 = vsel %vm2126, %v7871, %v7112
        %v7904 = vsel %vm2126, %v7872, %v7114
        %v7905 = vsel %vm2126, %v7873, %v7116
        %v7906 = vsel %vm2126, %v7874, %v7118
        %v7907 = vsel %vm2126, %v7875, %v7120
        %v7908 = vsel %vm2126, %v7876, %v7122
        %v7909 = vsel %vm2126, %v7877, %v7124
        %v7910 = vsel %vm2126, %v7878, %v7126
        %v7911 = vsel %vm2126, %v7879, %v7128
        %v7912 = vsel %vm2126, %v7880, %v7130
        %v7913 = vsel %vm2126, %v7881, %v7132
        %v7914 = vsel %vm2126, %v7882, %v7134
        %v7915 = vsel %vm2126, %v7883, %v7136
        %v7916 = vsel %vm2126, %v7884, %v7138
        %v7917 = vsel %vm2126, %v7885, %v7140
        %v7918 = vsel %vm2126, %v7886, %v7142
        %v7919 = vsel %vm2126, %v7887, %v7144
        %v7920 = vsel %vm2126, %v7888, %v7146
        %v7921 = vsel %vm2126, %v7889, %v7148
        %v7922 = vsel %vm2126, %v7890, %v7150
        %v7923 = vsel %vm2126, %v7891, %v7152
        %v7924 = vsel %vm2126, %v7892, %v7154
        %v7925 = vsel %vm2126, %v7893, %v7156
        %v7926 = vsel %vm2126, %v7894, %v7158
        %v7927 = vsel %vm2159, %v7895, %v7224
        %v7928 = vsel %vm2159, %v7896, %v7226
        %v7929 = vsel %vm2159, %v7897, %v7228
        %v7930 = vsel %vm2159, %v7898, %v7230
        %v7931 = vsel %vm2159, %v7899, %v7232
        %v7932 = vsel %vm2159, %v7900, %v7234
        %v7933 = vsel %vm2159, %v7901, %v7236
        %v7934 = vsel %vm2159, %v7902, %v7238
        %v7935 = vsel %vm2159, %v7903, %v7240
        %v7936 = vsel %vm2159, %v7904, %v7242
        %v7937 = vsel %vm2159, %v7905, %v7244
        %v7938 = vsel %vm2159, %v7906, %v7246
        %v7939 = vsel %vm2159, %v7907, %v7248
        %v7940 = vsel %vm2159, %v7908, %v7250
        %v7941 = vsel %vm2159, %v7909, %v7252
        %v7942 = vsel %vm2159, %v7910, %v7254
        %v7943 = vsel %vm2159, %v7911, %v7256
        %v7944 = vsel %vm2159, %v7912, %v7258
        %v7945 = vsel %vm2159, %v7913, %v7260
        %v7946 = vsel %vm2159, %v7914, %v7262
        %v7947 = vsel %vm2159, %v7915, %v7264
        %v7948 = vsel %vm2159, %v7916, %v7266
        %v7949 = vsel %vm2159, %v7917, %v7268
        %v7950 = vsel %vm2159, %v7918, %v7270
        %v7951 = vsel %vm2159, %v7919, %v7272
        %v7952 = vsel %vm2159, %v7920, %v7274
        %v7953 = vsel %vm2159, %v7921, %v7276
        %v7954 = vsel %vm2159, %v7922, %v7278
        %v7955 = vsel %vm2159, %v7923, %v7280
        %v7956 = vsel %vm2159, %v7924, %v7282
        %v7957 = vsel %vm2159, %v7925, %v7284
        %v7958 = vsel %vm2159, %v7926, %v7286
        %v7959 = vsel %vm2192, %v7927, %v7352
        %v7960 = vsel %vm2192, %v7928, %v7354
        %v7961 = vsel %vm2192, %v7929, %v7356
        %v7962 = vsel %vm2192, %v7930, %v7358
        %v7963 = vsel %vm2192, %v7931, %v7360
        %v7964 = vsel %vm2192, %v7932, %v7362
        %v7965 = vsel %vm2192, %v7933, %v7364
        %v7966 = vsel %vm2192, %v7934, %v7366
        %v7967 = vsel %vm2192, %v7935, %v7368
        %v7968 = vsel %vm2192, %v7936, %v7370
        %v7969 = vsel %vm2192, %v7937, %v7372
        %v7970 = vsel %vm2192, %v7938, %v7374
        %v7971 = vsel %vm2192, %v7939, %v7376
        %v7972 = vsel %vm2192, %v7940, %v7378
        %v7973 = vsel %vm2192, %v7941, %v7380
        %v7974 = vsel %vm2192, %v7942, %v7382
        %v7975 = vsel %vm2192, %v7943, %v7384
        %v7976 = vsel %vm2192, %v7944, %v7386
        %v7977 = vsel %vm2192, %v7945, %v7388
        %v7978 = vsel %vm2192, %v7946, %v7390
        %v7979 = vsel %vm2192, %v7947, %v7392
        %v7980 = vsel %vm2192, %v7948, %v7394
        %v7981 = vsel %vm2192, %v7949, %v7396
        %v7982 = vsel %vm2192, %v7950, %v7398
        %v7983 = vsel %vm2192, %v7951, %v7400
        %v7984 = vsel %vm2192, %v7952, %v7402
        %v7985 = vsel %vm2192, %v7953, %v7404
        %v7986 = vsel %vm2192, %v7954, %v7406
        %v7987 = vsel %vm2192, %v7955, %v7408
        %v7988 = vsel %vm2192, %v7956, %v7410
        %v7989 = vsel %vm2192, %v7957, %v7412
        %v7990 = vsel %vm2192, %v7958, %v7414
        %v7991 = vsel %vm2225, %v7959, %v7480
        %v7992 = vsel %vm2225, %v7960, %v7482
        %v7993 = vsel %vm2225, %v7961, %v7484
        %v7994 = vsel %vm2225, %v7962, %v7486
        %v7995 = vsel %vm2225, %v7963, %v7488
        %v7996 = vsel %vm2225, %v7964, %v7490
        %v7997 = vsel %vm2225, %v7965, %v7492
        %v7998 = vsel %vm2225, %v7966, %v7494
        %v7999 = vsel %vm2225, %v7967, %v7496
        %v8000 = vsel %vm2225, %v7968, %v7498
        %v8001 = vsel %vm2225, %v7969, %v7500
        %v8002 = vsel %vm2225, %v7970, %v7502
        %v8003 = vsel %vm2225, %v7971, %v7504
        %v8004 = vsel %vm2225, %v7972, %v7506
        %v8005 = vsel %vm2225, %v7973, %v7508
        %v8006 = vsel %vm2225, %v7974, %v7510
        %v8007 = vsel %vm2225, %v7975, %v7512
        %v8008 = vsel %vm2225, %v7976, %v7514
        %v8009 = vsel %vm2225, %v7977, %v7516
        %v8010 = vsel %vm2225, %v7978, %v7518
        %v8011 = vsel %vm2225, %v7979, %v7520
        %v8012 = vsel %vm2225, %v7980, %v7522
        %v8013 = vsel %vm2225, %v7981, %v7524
        %v8014 = vsel %vm2225, %v7982, %v7526
        %v8015 = vsel %vm2225, %v7983, %v7528
        %v8016 = vsel %vm2225, %v7984, %v7530
        %v8017 = vsel %vm2225, %v7985, %v7532
        %v8018 = vsel %vm2225, %v7986, %v7534
        %v8019 = vsel %vm2225, %v7987, %v7536
        %v8020 = vsel %vm2225, %v7988, %v7538
        %v8021 = vsel %vm2225, %v7989, %v7540
        %v8022 = vsel %vm2225, %v7990, %v7542
        %v8023 = vsel %vm2258, %v7991, %v7608
        %v8024 = vsel %vm2258, %v7992, %v7610
        %v8025 = vsel %vm2258, %v7993, %v7612
        %v8026 = vsel %vm2258, %v7994, %v7614
        %v8027 = vsel %vm2258, %v7995, %v7616
        %v8028 = vsel %vm2258, %v7996, %v7618
        %v8029 = vsel %vm2258, %v7997, %v7620
        %v8030 = vsel %vm2258, %v7998, %v7622
        %v8031 = vsel %vm2258, %v7999, %v7624
        %v8032 = vsel %vm2258, %v8000, %v7626
        %v8033 = vsel %vm2258, %v8001, %v7628
        %v8034 = vsel %vm2258, %v8002, %v7630
        %v8035 = vsel %vm2258, %v8003, %v7632
        %v8036 = vsel %vm2258, %v8004, %v7634
        %v8037 = vsel %vm2258, %v8005, %v7636
        %v8038 = vsel %vm2258, %v8006, %v7638
        %v8039 = vsel %vm2258, %v8007, %v7640
        %v8040 = vsel %vm2258, %v8008, %v7642
        %v8041 = vsel %vm2258, %v8009, %v7644
        %v8042 = vsel %vm2258, %v8010, %v7646
        %v8043 = vsel %vm2258, %v8011, %v7648
        %v8044 = vsel %vm2258, %v8012, %v7650
        %v8045 = vsel %vm2258, %v8013, %v7652
        %v8046 = vsel %vm2258, %v8014, %v7654
        %v8047 = vsel %vm2258, %v8015, %v7656
        %v8048 = vsel %vm2258, %v8016, %v7658
        %v8049 = vsel %vm2258, %v8017, %v7660
        %v8050 = vsel %vm2258, %v8018, %v7662
        %v8051 = vsel %vm2258, %v8019, %v7664
        %v8052 = vsel %vm2258, %v8020, %v7666
        %v8053 = vsel %vm2258, %v8021, %v7668
        %v8054 = vsel %vm2258, %v8022, %v7670
        %v8055 = vsel %vm2291, %v8023, %v7736
        %v8056 = vsel %vm2291, %v8024, %v7738
        %v8057 = vsel %vm2291, %v8025, %v7740
        %v8058 = vsel %vm2291, %v8026, %v7742
        %v8059 = vsel %vm2291, %v8027, %v7744
        %v8060 = vsel %vm2291, %v8028, %v7746
        %v8061 = vsel %vm2291, %v8029, %v7748
        %v8062 = vsel %vm2291, %v8030, %v7750
        %v8063 = vsel %vm2291, %v8031, %v7752
        %v8064 = vsel %vm2291, %v8032, %v7754
        %v8065 = vsel %vm2291, %v8033, %v7756
        %v8066 = vsel %vm2291, %v8034, %v7758
        %v8067 = vsel %vm2291, %v8035, %v7760
        %v8068 = vsel %vm2291, %v8036, %v7762
        %v8069 = vsel %vm2291, %v8037, %v7764
        %v8070 = vsel %vm2291, %v8038, %v7766
        %v8071 = vsel %vm2291, %v8039, %v7768
        %v8072 = vsel %vm2291, %v8040, %v7770
        %v8073 = vsel %vm2291, %v8041, %v7772
        %v8074 = vsel %vm2291, %v8042, %v7774
        %v8075 = vsel %vm2291, %v8043, %v7776
        %v8076 = vsel %vm2291, %v8044, %v7778
        %v8077 = vsel %vm2291, %v8045, %v7780
        %v8078 = vsel %vm2291, %v8046, %v7782
        %v8079 = vsel %vm2291, %v8047, %v7784
        %v8080 = vsel %vm2291, %v8048, %v7786
        %v8081 = vsel %vm2291, %v8049, %v7788
        %v8082 = vsel %vm2291, %v8050, %v7790
        %v8083 = vsel %vm2291, %v8051, %v7792
        %v8084 = vsel %vm2291, %v8052, %v7794
        %v8085 = vsel %vm2291, %v8053, %v7796
        %v8086 = vsel %vm2291, %v8054, %v7798
        %v8087 = vsel %vm2324, %v8055, %v1966
        %v8088 = vsel %vm2324, %v8056, %v1968
        %v8089 = vsel %vm2324, %v8057, %v1970
        %v8090 = vsel %vm2324, %v8058, %v1972
        %v8091 = vsel %vm2324, %v8059, %v1974
        %v8092 = vsel %vm2324, %v8060, %v1976
        %v8093 = vsel %vm2324, %v8061, %v1978
        %v8094 = vsel %vm2324, %v8062, %v1980
        %v8095 = vsel %vm2324, %v8063, %v1982
        %v8096 = vsel %vm2324, %v8064, %v1984
        %v8097 = vsel %vm2324, %v8065, %v1986
        %v8098 = vsel %vm2324, %v8066, %v1988
        %v8099 = vsel %vm2324, %v8067, %v1990
        %v8100 = vsel %vm2324, %v8068, %v1992
        %v8101 = vsel %vm2324, %v8069, %v1994
        %v8102 = vsel %vm2324, %v8070, %v1996
        %v8103 = vsel %vm2324, %v8071, %v1998
        %v8104 = vsel %vm2324, %v8072, %v2000
        %v8105 = vsel %vm2324, %v8073, %v2002
        %v8106 = vsel %vm2324, %v8074, %v2004
        %v8107 = vsel %vm2324, %v8075, %v2006
        %v8108 = vsel %vm2324, %v8076, %v2008
        %v8109 = vsel %vm2324, %v8077, %v2010
        %v8110 = vsel %vm2324, %v8078, %v2012
        %v8111 = vsel %vm2324, %v8079, %v2014
        %v8112 = vsel %vm2324, %v8080, %v2016
        %v8113 = vsel %vm2324, %v8081, %v2018
        %v8114 = vsel %vm2324, %v8082, %v2020
        %v8115 = vsel %vm2324, %v8083, %v2022
        %v8116 = vsel %vm2324, %v8084, %v2024
        %v8117 = vsel %vm2324, %v8085, %v2026
        %v8118 = vsel %vm2324, %v8086, %v2028
        %v8119 = vpack.c.bf16 %v8088, %v8087
        %v8120 = vpack.c.bf16 %v8090, %v8089
        %v8121 = vpack.c.bf16 %v8092, %v8091
        %v8122 = vpack.c.bf16 %v8094, %v8093
        %v8123 = vpack.c.bf16 %v8096, %v8095
        %v8124 = vpack.c.bf16 %v8098, %v8097
        %v8125 = vpack.c.bf16 %v8100, %v8099
        %v8126 = vpack.c.bf16 %v8102, %v8101
        %v8127 = vpack.c.bf16 %v8104, %v8103
        %v8128 = vpack.c.bf16 %v8106, %v8105
        %v8129 = vpack.c.bf16 %v8108, %v8107
        %v8130 = vpack.c.bf16 %v8110, %v8109
        %v8131 = vpack.c.bf16 %v8112, %v8111
        %v8132 = vpack.c.bf16 %v8114, %v8113
        %v8133 = vpack.c.bf16 %v8116, %v8115
        %v8134 = vpack.c.bf16 %v8118, %v8117
        %s8135 = scalar_lea.vmem %s2, 60
        %v8136 = vld [vmem:[%s8135] sm:$0xf]
        %v8137 = vld [vmem:[%s8135 + $0x4] sm:$0xf]
        %v8138 = vld [vmem:[%s8135 + $0x8] sm:$0xf]
        %v8139 = vld [vmem:[%s8135 + $0xc] sm:$0xf]
        %v8140 = vld [vmem:[%s8135 + $0x10] sm:$0xf]
        %v8141 = vld [vmem:[%s3 + $0x3] sm:$0x1]
        %v8142 = vlaneseq
        %v8143 = vshrl.u32 %v8142, 7
        %v8144 = vsub.s32 0, %v8143
        %v8145 = vrot.slane %v8141, %v8144
        %v8151 = vunpack.c.l.b16 %v8136
        %v8152 = vunpack.c.l.b16 %v8137
        %v8153 = vunpack.c.l.b16 %v8138
        %v8154 = vunpack.c.l.b16 %v8139
        %v8155 = vunpack.c.l.b16 %v8140
        %v8156 = vpack.c.b16 %v8152, %v8151
        %v8157 = vpack.c.b16 %v8154, %v8153
        %v8158 = vpack.c.b16 %v8155, %v8155
        %v8162 = vsel %vm2398, %v8119, 0
        %v8165 = vsel %vm2398, %v8120, 0
        %v8168 = vsel %vm2398, %v8121, 0
        %v8171 = vsel %vm2398, %v8122, 0
        %v8174 = vsel %vm2398, %v8123, 0
        %v8177 = vsel %vm2398, %v8124, 0
        %v8180 = vsel %vm2398, %v8125, 0
        %v8183 = vsel %vm2398, %v8126, 0
        %v8186 = vsel %vm2398, %v8127, 0
        %v8189 = vsel %vm2398, %v8128, 0
        %v8192 = vsel %vm2398, %v8129, 0
        %v8195 = vsel %vm2398, %v8130, 0
        %v8198 = vsel %vm2398, %v8131, 0
        %v8201 = vsel %vm2398, %v8132, 0
        %v8204 = vsel %vm2398, %v8133, 0
        %v8207 = vsel %vm2398, %v8134, 0
        %v8210 = vsel %vm2447, %v8158, 0
        %8212 = vmatprep.subr.bf16.mxu0 0
        %8213 = vmatpush1.bf16.msra.mxu0 0
        %8214 = vmatprep.subr.bf16.mxu0 0
        %8215 = vmatpush1.bf16.msra.mxu0 0
        %8216 = vmatprep.subr.bf16.mxu0 0
        %8217 = vmatpush1.bf16.msra.mxu0 0
        %8218 = vmatprep.subr.bf16.mxu0 0
        %8219 = vmatpush1.bf16.msra.mxu0 0
        %8220 = vmatprep.subr.bf16.mxu0 0
        %8221 = vmatpush1.bf16.msra.mxu0 0
        %8222 = vmatprep.subr.bf16.mxu0 0
        %8223 = vmatpush1.bf16.msra.mxu0 %v8210
        %8224 = vmatprep.subr.bf16.mxu0 0
        %8225 = vmatpush1.bf16.msra.mxu0 %v8157
        %8226 = vmatprep.subr.bf16.mxu0 0
        %8227 = vmatpush1.bf16.msra.mxu0 %v8156
        %8228 = vmatprep.subr.bf16.mxu0 0
        %8229 = vmatpush2.bf16.msra.mxu0 0
        %8230 = vmatprep.subr.bf16.mxu0 0
        %8231 = vmatpush2.bf16.msra.mxu0 0
        %8232 = vmatprep.subr.bf16.mxu0 0
        %8233 = vmatpush2.bf16.msra.mxu0 0
        %8234 = vmatprep.subr.bf16.mxu0 0
        %8235 = vmatpush2.bf16.msra.mxu0 0
        %8236 = vmatprep.subr.bf16.mxu0 0
        %8237 = vmatpush2.bf16.msra.mxu0 0
        %8238 = vmatprep.subr.bf16.mxu0 0
        %8239 = vmatpush2.bf16.msra.mxu0 0
        %8240 = vmatprep.subr.bf16.mxu0 0
        %8241 = vmatpush2.bf16.msra.mxu0 0
        %8242 = vmatprep.subr.bf16.mxu0 0
        %8243 = vmatpush2.bf16.msra.mxu0 0
        %8244 = vmatprep.mubr.bf16.mxu0 0
        %8245 = vmatmul.mubr.bf16.gmra.mxu0 %v8162
        %v8246 = vpop.f32.mrf.mxu0
        %v8247 = vadd.f32 %v8145, %v8246
        %v8248 = vpop.f32.mrf.mxu0
        %v8249 = vpop.f32.mrf.mxu0
        %v8250 = vadd.f32 %v8145, %v8249
        %v8251 = vpop.f32.mrf.mxu0
        %8252 = vmatprep.mubr.bf16.mxu0 0
        %8253 = vmatmul.mubr.bf16.gmra.mxu0 %v8165
        %v8254 = vpop.f32.mrf.mxu0
        %v8255 = vadd.f32 %v8145, %v8254
        %v8256 = vpop.f32.mrf.mxu0
        %v8257 = vpop.f32.mrf.mxu0
        %v8258 = vadd.f32 %v8145, %v8257
        %v8259 = vpop.f32.mrf.mxu0
        %8260 = vmatprep.mubr.bf16.mxu0 0
        %8261 = vmatmul.mubr.bf16.gmra.mxu0 %v8168
        %v8262 = vpop.f32.mrf.mxu0
        %v8263 = vadd.f32 %v8145, %v8262
        %v8264 = vpop.f32.mrf.mxu0
        %v8265 = vpop.f32.mrf.mxu0
        %v8266 = vadd.f32 %v8145, %v8265
        %v8267 = vpop.f32.mrf.mxu0
        %8268 = vmatprep.mubr.bf16.mxu0 0
        %8269 = vmatmul.mubr.bf16.gmra.mxu0 %v8171
        %v8270 = vpop.f32.mrf.mxu0
        %v8271 = vadd.f32 %v8145, %v8270
        %v8272 = vpop.f32.mrf.mxu0
        %v8273 = vpop.f32.mrf.mxu0
        %v8274 = vadd.f32 %v8145, %v8273
        %v8275 = vpop.f32.mrf.mxu0
        %8276 = vmatprep.mubr.bf16.mxu0 0
        %8277 = vmatmul.mubr.bf16.gmra.mxu0 %v8174
        %v8278 = vpop.f32.mrf.mxu0
        %v8279 = vadd.f32 %v8145, %v8278
        %v8280 = vpop.f32.mrf.mxu0
        %v8281 = vpop.f32.mrf.mxu0
        %v8282 = vadd.f32 %v8145, %v8281
        %v8283 = vpop.f32.mrf.mxu0
        %8284 = vmatprep.mubr.bf16.mxu0 0
        %8285 = vmatmul.mubr.bf16.gmra.mxu0 %v8177
        %v8286 = vpop.f32.mrf.mxu0
        %v8287 = vadd.f32 %v8145, %v8286
        %v8288 = vpop.f32.mrf.mxu0
        %v8289 = vpop.f32.mrf.mxu0
        %v8290 = vadd.f32 %v8145, %v8289
        %v8291 = vpop.f32.mrf.mxu0
        %8292 = vmatprep.mubr.bf16.mxu0 0
        %8293 = vmatmul.mubr.bf16.gmra.mxu0 %v8180
        %v8294 = vpop.f32.mrf.mxu0
        %v8295 = vadd.f32 %v8145, %v8294
        %v8296 = vpop.f32.mrf.mxu0
        %v8297 = vpop.f32.mrf.mxu0
        %v8298 = vadd.f32 %v8145, %v8297
        %v8299 = vpop.f32.mrf.mxu0
        %8300 = vmatprep.mubr.bf16.mxu0 0
        %8301 = vmatmul.mubr.bf16.gmra.mxu0 %v8183
        %v8302 = vpop.f32.mrf.mxu0
        %v8303 = vadd.f32 %v8145, %v8302
        %v8304 = vpop.f32.mrf.mxu0
        %v8305 = vpop.f32.mrf.mxu0
        %v8306 = vadd.f32 %v8145, %v8305
        %v8307 = vpop.f32.mrf.mxu0
        %8308 = vmatprep.mubr.bf16.mxu0 0
        %8309 = vmatmul.mubr.bf16.gmra.mxu0 %v8186
        %v8310 = vpop.f32.mrf.mxu0
        %v8311 = vadd.f32 %v8145, %v8310
        %v8312 = vpop.f32.mrf.mxu0
        %v8313 = vpop.f32.mrf.mxu0
        %v8314 = vadd.f32 %v8145, %v8313
        %v8315 = vpop.f32.mrf.mxu0
        %8316 = vmatprep.mubr.bf16.mxu0 0
        %8317 = vmatmul.mubr.bf16.gmra.mxu0 %v8189
        %v8318 = vpop.f32.mrf.mxu0
        %v8319 = vadd.f32 %v8145, %v8318
        %v8320 = vpop.f32.mrf.mxu0
        %v8321 = vpop.f32.mrf.mxu0
        %v8322 = vadd.f32 %v8145, %v8321
        %v8323 = vpop.f32.mrf.mxu0
        %8324 = vmatprep.mubr.bf16.mxu0 0
        %8325 = vmatmul.mubr.bf16.gmra.mxu0 %v8192
        %v8326 = vpop.f32.mrf.mxu0
        %v8327 = vadd.f32 %v8145, %v8326
        %v8328 = vpop.f32.mrf.mxu0
        %v8329 = vpop.f32.mrf.mxu0
        %v8330 = vadd.f32 %v8145, %v8329
        %v8331 = vpop.f32.mrf.mxu0
        %8332 = vmatprep.mubr.bf16.mxu0 0
        %8333 = vmatmul.mubr.bf16.gmra.mxu0 %v8195
        %v8334 = vpop.f32.mrf.mxu0
        %v8335 = vadd.f32 %v8145, %v8334
        %v8336 = vpop.f32.mrf.mxu0
        %v8337 = vpop.f32.mrf.mxu0
        %v8338 = vadd.f32 %v8145, %v8337
        %v8339 = vpop.f32.mrf.mxu0
        %8340 = vmatprep.mubr.bf16.mxu0 0
        %8341 = vmatmul.mubr.bf16.gmra.mxu0 %v8198
        %v8342 = vpop.f32.mrf.mxu0
        %v8343 = vadd.f32 %v8145, %v8342
        %v8344 = vpop.f32.mrf.mxu0
        %v8345 = vpop.f32.mrf.mxu0
        %v8346 = vadd.f32 %v8145, %v8345
        %v8347 = vpop.f32.mrf.mxu0
        %8348 = vmatprep.mubr.bf16.mxu0 0
        %8349 = vmatmul.mubr.bf16.gmra.mxu0 %v8201
        %v8350 = vpop.f32.mrf.mxu0
        %v8351 = vadd.f32 %v8145, %v8350
        %v8352 = vpop.f32.mrf.mxu0
        %v8353 = vpop.f32.mrf.mxu0
        %v8354 = vadd.f32 %v8145, %v8353
        %v8355 = vpop.f32.mrf.mxu0
        %8356 = vmatprep.mubr.bf16.mxu0 0
        %8357 = vmatmul.mubr.bf16.gmra.mxu0 %v8204
        %v8358 = vpop.f32.mrf.mxu0
        %v8359 = vadd.f32 %v8145, %v8358
        %v8360 = vpop.f32.mrf.mxu0
        %v8361 = vpop.f32.mrf.mxu0
        %v8362 = vadd.f32 %v8145, %v8361
        %v8363 = vpop.f32.mrf.mxu0
        %8364 = vmatprep.mubr.bf16.mxu0 0
        %8365 = vmatmul.mubr.bf16.gmra.mxu0 %v8207
        %v8366 = vpop.f32.mrf.mxu0
        %v8367 = vadd.f32 %v8145, %v8366
        %v8368 = vpop.f32.mrf.mxu0
        %v8369 = vpop.f32.mrf.mxu0
        %v8370 = vadd.f32 %v8145, %v8369
        %v8371 = vpop.f32.mrf.mxu0
        %8372 = vdwg.mxu0
        %v8373 = vmax.f32 %v8247, 0.0
        %v8374 = vmax.f32 %v8250, 0.0
        %v8375 = vmax.f32 %v8255, 0.0
        %v8376 = vmax.f32 %v8258, 0.0
        %v8377 = vmax.f32 %v8263, 0.0
        %v8378 = vmax.f32 %v8266, 0.0
        %v8379 = vmax.f32 %v8271, 0.0
        %v8380 = vmax.f32 %v8274, 0.0
        %v8381 = vmax.f32 %v8279, 0.0
        %v8382 = vmax.f32 %v8282, 0.0
        %v8383 = vmax.f32 %v8287, 0.0
        %v8384 = vmax.f32 %v8290, 0.0
        %v8385 = vmax.f32 %v8295, 0.0
        %v8386 = vmax.f32 %v8298, 0.0
        %v8387 = vmax.f32 %v8303, 0.0
        %v8388 = vmax.f32 %v8306, 0.0
        %v8389 = vmax.f32 %v8311, 0.0
        %v8390 = vmax.f32 %v8314, 0.0
        %v8391 = vmax.f32 %v8319, 0.0
        %v8392 = vmax.f32 %v8322, 0.0
        %v8393 = vmax.f32 %v8327, 0.0
        %v8394 = vmax.f32 %v8330, 0.0
        %v8395 = vmax.f32 %v8335, 0.0
        %v8396 = vmax.f32 %v8338, 0.0
        %v8397 = vmax.f32 %v8343, 0.0
        %v8398 = vmax.f32 %v8346, 0.0
        %v8399 = vmax.f32 %v8351, 0.0
        %v8400 = vmax.f32 %v8354, 0.0
        %v8401 = vmax.f32 %v8359, 0.0
        %v8402 = vmax.f32 %v8362, 0.0
        %v8403 = vmax.f32 %v8367, 0.0
        %v8404 = vmax.f32 %v8370, 0.0
        %8405 = vst [vmem:[%s205] sm:$0xff] %v8373
        %8406 = vst [vmem:[%s205 + $0x8] sm:$0xff] %v8374
        %8407 = vst [vmem:[%s205 + $0x10] sm:$0xff] %v8375
        %8408 = vst [vmem:[%s205 + $0x18] sm:$0xff] %v8376
        %8409 = vst [vmem:[%s205 + $0x20] sm:$0xff] %v8377
        %8410 = vst [vmem:[%s205 + $0x28] sm:$0xff] %v8378
        %8411 = vst [vmem:[%s205 + $0x30] sm:$0xff] %v8379
        %8412 = vst [vmem:[%s205 + $0x38] sm:$0xff] %v8380
        %8413 = vst [vmem:[%s205 + $0x40] sm:$0xff] %v8381
        %8414 = vst [vmem:[%s205 + $0x48] sm:$0xff] %v8382
        %8415 = vst [vmem:[%s205 + $0x50] sm:$0xff] %v8383
        %8416 = vst [vmem:[%s205 + $0x58] sm:$0xff] %v8384
        %8417 = vst [vmem:[%s205 + $0x60] sm:$0xff] %v8385
        %8418 = vst [vmem:[%s205 + $0x68] sm:$0xff] %v8386
        %8419 = vst [vmem:[%s205 + $0x70] sm:$0xff] %v8387
        %8420 = vst [vmem:[%s205 + $0x78] sm:$0xff] %v8388
        %8421 = vst [vmem:[%s205 + $0x80] sm:$0xff] %v8389
        %8422 = vst [vmem:[%s205 + $0x88] sm:$0xff] %v8390
        %8423 = vst [vmem:[%s205 + $0x90] sm:$0xff] %v8391
        %8424 = vst [vmem:[%s205 + $0x98] sm:$0xff] %v8392
        %8425 = vst [vmem:[%s205 + $0xa0] sm:$0xff] %v8393
        %8426 = vst [vmem:[%s205 + $0xa8] sm:$0xff] %v8394
        %8427 = vst [vmem:[%s205 + $0xb0] sm:$0xff] %v8395
        %8428 = vst [vmem:[%s205 + $0xb8] sm:$0xff] %v8396
        %8429 = vst [vmem:[%s205 + $0xc0] sm:$0xff] %v8397
        %8430 = vst [vmem:[%s205 + $0xc8] sm:$0xff] %v8398
        %8431 = vst [vmem:[%s205 + $0xd0] sm:$0xff] %v8399
        %8432 = vst [vmem:[%s205 + $0xd8] sm:$0xff] %v8400
        %8433 = vst [vmem:[%s205 + $0xe0] sm:$0xff] %v8401
        %8434 = vst [vmem:[%s205 + $0xe8] sm:$0xff] %v8402
        %8435 = vst [vmem:[%s205 + $0xf0] sm:$0xff] %v8403
        %8436 = vst [vmem:[%s205 + $0xf8] sm:$0xff] %v8404
        %s8437 = sand.u32 %s120, 1
        %s8438 = scalar_lea.sflag [#allocation5], %s8437
        %s8439 = sand.u32 %s120, 1
        %s8440 = smul.addr %s8439, 256
        %s8441 = scalar_lea.vmem [#allocation4], %s8440
        // Predicated region
        $region37: #{tpu_custom_call.1} parent=35 // pred_check
          %p8442 = pneg %p130
        $region38: #{tpu_custom_call.1} parent=35 // pred_check_branch
          %8444 = sbr.rel (%p8442) target = $region40
        $region39: #{tpu_custom_call.1} parent=35 // pred_region
          %s8446 = ssub.s32 4096, 4096
          %8447 = vsyncadd %s8438, %s8446
          %s8448 = smul.addr %s18, 32
          %s8449 = smul.addr %s8448, 128
          %s8450 = scalar_lea.hbm %s4, %s8449
          %s8451 = sshll.u32 %s8441, 4
          %s8452 = int_to_ptr.vmem [resolvable:$true] %s8451
          %8457 = dma.vmem_to_hbm [thread:$0]  %s8452, 4096, %s8450, %s8438, 128, 128, 8
        $region40: #{tpu_custom_call.1} parent=35 // pred_fallthru
          _
      $region36: #{tpu_custom_call.1} parent=5 // pred_fallthru
        _
      %p8458 = scmp.le.s32.totalorder 2, %s13
      // Predicated region
      $region41: #{tpu_custom_call.1} parent=5 // pred_check
        %p8459 = pneg %p8458
      $region42: #{tpu_custom_call.1} parent=5 // pred_check_branch
        %8461 = sbr.rel (%p8459) target = $region44
      $region43: #{tpu_custom_call.1} parent=5 // pred_region
        %s8462 = ssub.s32 %s13, 2
        // Predicated region
        $region45: #{tpu_custom_call.1} parent=43 // pred_check
          %p8463 = pneg %p136
        $region46: #{tpu_custom_call.1} parent=43 // pred_check_branch
          %8465 = sbr.rel (%p8463) target = $region48
        $region47: #{tpu_custom_call.1} parent=43 // pred_region
          %s8466 = sand.u32 %s121, 1
          %s8467 = scalar_lea.sflag [#allocation5], %s8466
          %s8468 = sand.u32 %s121, 1
          %s8469 = smul.addr %s8468, 256
          %s8470 = scalar_lea.vmem [#allocation4], %s8469
          %8471 = dma.done %s8467, 4096
        $region48: #{tpu_custom_call.1} parent=43 // pred_fallthru
          _
      $region44: #{tpu_custom_call.1} parent=5 // pred_fallthru
        _
    $region6: #{tpu_custom_call.1} parent=1 // loop_footer
      %s17 = sadd.s32 1, %s13
    $region7: #{tpu_custom_call.1} parent=1 // loop_footer_branch
      %12 = sbr.rel target = $region3
    $region8: #{tpu_custom_call.1} parent=1 // loop_exit
      _
    %8472 = vsyncpa [#allocation5], 1
    %s8473 = scalar_lea.sflag [#allocation5], 1
    %8474 = vsyncpa %s8473, 1

</llo_original>
